<compile_context>
chip_gen: v7x
topology: tpu7x:2x2x1
jax: 0.10.0
libtpu: 0.0.40
codegen_flags: <defaults>
</compile_context>

<pallas_src>
import math

import jax
import jax.numpy as jnp
from jax.experimental import pallas as pl
from jax.experimental.pallas import tpu as pltpu


def _round_up(a, b):
    return pl.cdiv(a, b) * b


def _vmem_capacity_bytes():
    """Physical VMEM of this generation (v5e/v6e: 128 MiB, v7x: 64 MiB)."""
    try:
        cap = int(pltpu.get_tpu_info().vmem_capacity_bytes)
        if cap > 0:
            return cap
    except Exception:
        pass
    return 64 * 1024 * 1024  # conservative fallback: v7x per-TC VMEM


def _select_tiles(M, d_model, d_ff, x_bytes, w_bytes, budget):
    """Pick (tm, tk, n_weight_buffers, fused) under a VMEM byte budget.

    The streamed path's arithmetic intensity equals tm FLOPs per weight byte
    (weights re-stream per row tile), so tm is the primary roofline knob.
    tk only trades k-loop / accumulator RMW overhead against VMEM.
    """
    tm = min(512, _round_up(max(M, 1), 128))      # never pad tiny M up to 512
    if M >= 512:
        # Keep >= 2 row tiles so the "parallel" M axis can shard across the two
        # TensorCores on v7x (v5e/v6e are single-TC; harmless there).
        tm = min(tm, _round_up(_round_up(M, 256) // 2, 256))

    def fused_bytes(tm_):
        x_t = tm_ * d_model * x_bytes
        o_t = tm_ * d_model * x_bytes
        w_full = (d_model * d_ff + d_ff * d_model) * w_bytes
        h_t = tm_ * d_ff * 4
        return 2 * (x_t + o_t) + 2 * w_full + h_t   # 2x: pipeline buffering

    def streamed_bytes(tm_, tk_, n_wbuf):
        x_t = tm_ * d_model * x_bytes
        o_t = tm_ * d_model * x_bytes
        acc = tm_ * d_model * 4
        w_t = (d_model * tk_ + tk_ * d_model) * w_bytes
        h_t = tm_ * tk_ * 4
        return acc + 2 * (x_t + o_t) + n_wbuf * w_t + h_t

    while True:
        if fused_bytes(tm) <= budget:
            return tm, d_ff, 2, True
        tk_ = d_ff
        while tk_ >= 128:
            if d_ff % tk_ == 0 and streamed_bytes(tm, tk_, 2) <= budget:
                # Deepen weight prefetch when there's headroom and enough k-steps.
                n_wbuf = 3 if (d_ff // tk_ >= 3
                               and streamed_bytes(tm, tk_, 3) <= budget) else 2
                return tm, tk_, n_wbuf, False
            tk_ -= 128
        if tm <= 128:
            break
        tm = max(128, (tm // 2 // 128) * 128)
    # Last resort: smallest legal tiles; Mosaic may still make it fit.
    return 128, 128, 2, False


def ffn_fused_kernel(x_ref, w1_ref, b1_ref, w2_ref, b2_ref, o_ref):
    # Weights-resident single pass: W1/W2 index_maps are constant over the row
    # grid, so the pipeline DMAs them from HBM once for the whole kernel.
    h = jnp.dot(x_ref[...], w1_ref[...], preferred_element_type=jnp.float32)
    h = jnp.maximum(h + b1_ref[...], 0.0)                       # f32 bias + ReLU
    out = jnp.dot(h.astype(w2_ref.dtype), w2_ref[...],
                  preferred_element_type=jnp.float32)
    o_ref[...] = (out + b2_ref[...]).astype(o_ref.dtype)
    # TODO(synk): nn.Dropout(p=0.1) is training-only; eval-mode forward (identity)
    # is implemented.  Training would use pltpu.prng_seed/prng_random_bits.


def ffn_streamed_kernel(x_ref, w1_ref, b1_ref, w2_ref, b2_ref, o_ref, acc_ref):
    k = pl.program_id(1)

    @pl.when(k == 0)
    def _():
        acc_ref[...] = jnp.zeros_like(acc_ref)

    # (tm, d_model) @ (d_model, tk) -> f32, bias + ReLU on this d_ff slice.
    h = jnp.dot(x_ref[...], w1_ref[...], preferred_element_type=jnp.float32)
    h = jnp.maximum(h + b1_ref[...], 0.0)
    # Accumulate (tm, tk) @ (tk, d_model) into the f32 scratch.
    acc_ref[...] += jnp.dot(h.astype(w2_ref.dtype), w2_ref[...],
                            preferred_element_type=jnp.float32)

    @pl.when(k == pl.num_programs(1) - 1)
    def _():
        # b2 folded into the finalize (added once per output tile).
        o_ref[...] = (acc_ref[...] + b2_ref[...]).astype(o_ref.dtype)


def feed_forward(x, w1, b1, w2, b2, *, tm=None, tk=None, interpret=False):
    """x: [..., d_model]; w1: [d_model, d_ff]; w2: [d_ff, d_model] (pre-transposed)."""
    *lead, d_model = x.shape
    d_ff = w1.shape[1]
    assert w1.shape == (d_model, d_ff) and w2.shape == (d_ff, d_model)
    assert b1.shape == (d_ff,) and b2.shape == (d_model,)
    # Lane-dense contract: full-width MXU tiles + unmasked output stores.
    assert d_model % 128 == 0, "d_model must be a multiple of 128 (TPU lane width)"
    assert d_ff % 128 == 0, "d_ff must be a multiple of 128 (TPU lane width)"

    M = math.prod(lead) if lead else 1
    x2d = x.reshape(M, d_model)

    vmem_cap = _vmem_capacity_bytes()
    # Headroom for Mosaic-internal scratch / semaphores:
    #   128 MiB (v5e/v6e) -> ~108 MiB limit; 64 MiB (v7x) -> ~54 MiB limit.
    vmem_limit = min(int(vmem_cap * 0.85), vmem_cap - (8 << 20))
    budget = int(vmem_limit * 0.9)

    sel_tm, sel_tk, n_wbuf, fused = _select_tiles(
        M, d_model, d_ff, x.dtype.itemsize, w1.dtype.itemsize, budget)
    tm = sel_tm if tm is None else min(_round_up(tm, 128), _round_up(M, 128))
    tk = sel_tk if tk is None else tk
    assert d_ff % tk == 0, "d_ff must be divisible by the hidden tile tk"
    fused = fused and (tk == d_ff)

    M_pad = _round_up(M, tm)
    if M_pad != M:
        # Padded rows compute relu(b1) @ W2 + b2 (nonzero garbage); they are
        # sliced off below and never observable.
        x2d = jnp.pad(x2d, ((0, M_pad - M), (0, 0)))

    b1_2d = b1.reshape(1, d_ff)
    b2_2d = b2.reshape(1, d_model)

    n_m_tiles = M_pad // tm
    nbytes = lambda a: a.size * a.dtype.itemsize
    # Weights are fetched once in the resident path (constant index_map, no
    # re-DMA), but re-stream once per row tile in the streamed path.
    weight_passes = 1 if fused else n_m_tiles
    cost = pl.CostEstimate(
        flops=4 * M_pad * d_model * d_ff,              # two matmuls, 2 flops/MAC
        transcendentals=0,
        bytes_accessed=(nbytes(x2d)
                        + weight_passes * (nbytes(w1) + nbytes(w2))
                        + nbytes(b1_2d) + nbytes(b2_2d)
                        + M_pad * d_model * x.dtype.itemsize),
    )

    common = dict(
        out_shape=jax.ShapeDtypeStruct((M_pad, d_model), x.dtype),
        cost_estimate=cost,
        interpret=interpret,
    )

    if fused:
        out = pl.pallas_call(
            ffn_fused_kernel,
            grid_spec=pltpu.PrefetchScalarGridSpec(
                num_scalar_prefetch=0,
                grid=(n_m_tiles,),
                in_specs=[
                    pl.BlockSpec((tm, d_model), lambda i: (i, 0)),    # x row tile
                    pl.BlockSpec((d_model, d_ff), lambda i: (0, 0)),  # W1 resident
                    pl.BlockSpec((1, d_ff), lambda i: (0, 0)),        # b1 resident
                    pl.BlockSpec((d_ff, d_model), lambda i: (0, 0)),  # W2 resident
                    pl.BlockSpec((1, d_model), lambda i: (0, 0)),     # b2 resident
                ],
                out_specs=pl.BlockSpec((tm, d_model), lambda i: (i, 0)),
            ),
            compiler_params=pltpu.CompilerParams(
                dimension_semantics=("parallel",),
                vmem_limit_bytes=vmem_limit,
            ),
            **common,
        )(x2d, w1, b1_2d, w2, b2_2d)
    else:
        use_buffered = (n_wbuf > 2) and hasattr(pl, "Buffered")
        if use_buffered:
            w1_spec = pl.BlockSpec((d_model, tk), lambda i, k: (0, k),
                                   pipeline_mode=pl.Buffered(n_wbuf))
            w2_spec = pl.BlockSpec((tk, d_model), lambda i, k: (k, 0),
                                   pipeline_mode=pl.Buffered(n_wbuf))
        else:
            w1_spec = pl.BlockSpec((d_model, tk), lambda i, k: (0, k))
            w2_spec = pl.BlockSpec((tk, d_model), lambda i, k: (k, 0))
        out = pl.pallas_call(
            ffn_streamed_kernel,
            grid_spec=pltpu.PrefetchScalarGridSpec(
                num_scalar_prefetch=0,
                grid=(n_m_tiles, d_ff // tk),   # rows (parallel), d_ff (reduction, last)
                in_specs=[
                    pl.BlockSpec((tm, d_model), lambda i, k: (i, 0)),  # x (constant over k)
                    w1_spec,                                           # W1 column block
                    pl.BlockSpec((1, tk), lambda i, k: (0, k)),        # b1 slice
                    w2_spec,                                           # W2 row block
                    pl.BlockSpec((1, d_model), lambda i, k: (0, 0)),   # b2 (tiny, resident)
                ],
                out_specs=pl.BlockSpec((tm, d_model), lambda i, k: (i, 0)),
                scratch_shapes=[pltpu.VMEM((tm, d_model), jnp.float32)],  # f32 accumulator
            ),
            compiler_params=pltpu.CompilerParams(
                dimension_semantics=("parallel", "arbitrary"),
                vmem_limit_bytes=vmem_limit,
            ),
            **common,
        )(x2d, w1, b1_2d, w2, b2_2d)

    if M_pad != M:
        out = out[:M]
    return out.reshape(*lead, d_model)


if __name__ == "__main__":
    # Small shapes consistent with the module defaults: d_model=512, d_ff=2048.
    B, S = 2, 8
    d_model, d_ff = 512, 2048

    key = jax.random.PRNGKey(0)
    kx, kw1, kb1, kw2, kb2 = jax.random.split(key, 5)

    # bf16 matmul operands (MXU-native), f32 biases; accumulation is f32 in-kernel.
    x = jax.random.normal(kx, (B, S, d_model), dtype=jnp.float32).astype(jnp.bfloat16)
    w1 = (jax.random.normal(kw1, (d_model, d_ff), dtype=jnp.float32) * 0.02).astype(jnp.bfloat16)
    b1 = jax.random.normal(kb1, (d_ff,), dtype=jnp.float32) * 0.02
    w2 = (jax.random.normal(kw2, (d_ff, d_model), dtype=jnp.float32) * 0.02).astype(jnp.bfloat16)
    b2 = jax.random.normal(kb2, (d_model,), dtype=jnp.float32) * 0.02

    y = feed_forward(x, w1, b1, w2, b2)
    y = jax.block_until_ready(y)

    # f32 reference built from the same bf16-quantized operands.
    xf = x.astype(jnp.float32)
    h_ref = jnp.maximum(xf @ w1.astype(jnp.float32) + b1, 0.0)
    y_ref = h_ref @ w2.astype(jnp.float32) + b2

    assert y.shape == (B, S, d_model)
    assert jnp.allclose(y.astype(jnp.float32), y_ref, atol=2e-2, rtol=2e-2)

    print("KERNEL_OK")
</pallas_src>

<mosaic_0001>
module attributes {stable_mosaic.version = 11 : i64} {
  func.func @ffn_fused_kernel(%arg0: i32, %arg1: memref<128x512xbf16, #tpu.memory_space<vmem>>, %arg2: memref<512x2048xbf16, #tpu.memory_space<vmem>>, %arg3: memref<1x2048xf32, #tpu.memory_space<vmem>>, %arg4: memref<2048x512xbf16, #tpu.memory_space<vmem>>, %arg5: memref<1x512xf32, #tpu.memory_space<vmem>>, %arg6: memref<128x512xbf16, #tpu.memory_space<vmem>>) attributes {dimension_semantics = [#tpu.dimension_semantics<parallel>], iteration_bounds = array<i64: 1>, scalar_prefetch = 0 : i64, scratch_operands = 0 : i64, tpu.core_type = #tpu.core_type<tc>, window_params = [{transform_indices = @transform_0, window_bounds = array<i64: 128, 512>}, {pipeline_mode = #tpu.pipeline_mode<synchronous>, transform_indices = @transform_1, window_bounds = array<i64: 512, 2048>}, {pipeline_mode = #tpu.pipeline_mode<synchronous>, transform_indices = @transform_2, window_bounds = array<i64: 1, 2048>}, {pipeline_mode = #tpu.pipeline_mode<synchronous>, transform_indices = @transform_3, window_bounds = array<i64: 2048, 512>}, {pipeline_mode = #tpu.pipeline_mode<synchronous>, transform_indices = @transform_4, window_bounds = array<i64: 1, 512>}, {transform_indices = @transform_5, window_bounds = array<i64: 128, 512>}]} {
    %c0 = arith.constant 0 : index
    %c0_0 = arith.constant 0 : index
    %0 = vector.load %arg1[%c0, %c0_0] : memref<128x512xbf16, #tpu.memory_space<vmem>>, vector<128x512xbf16>
    %c0_1 = arith.constant 0 : index
    %c0_2 = arith.constant 0 : index
    %1 = vector.load %arg2[%c0_1, %c0_2] : memref<512x2048xbf16, #tpu.memory_space<vmem>>, vector<512x2048xbf16>
    %cst = arith.constant dense<0.000000e+00> : vector<128x2048xf32>
    %2 = tpu.matmul %0, %1, %cst {dimension_numbers = #tpu.dot_dimension_numbers<[1], [0], [0], [1], [0, 0, 1, 1], [], []>} : vector<128x512xbf16>, vector<512x2048xbf16>, vector<128x2048xf32> -> vector<128x2048xf32>
    %c0_3 = arith.constant 0 : index
    %c0_4 = arith.constant 0 : index
    %3 = vector.load %arg3[%c0_3, %c0_4] : memref<1x2048xf32, #tpu.memory_space<vmem>>, vector<1x2048xf32>
    %4 = vector.broadcast %3 : vector<1x2048xf32> to vector<128x2048xf32>
    %5 = arith.addf %2, %4 : vector<128x2048xf32>
    %cst_5 = arith.constant 0.000000e+00 : f32
    %6 = vector.broadcast %cst_5 : f32 to vector<128x2048xf32>
    %7 = arith.maximumf %5, %6 : vector<128x2048xf32>
    %8 = arith.truncf %7 : vector<128x2048xf32> to vector<128x2048xbf16>
    %c0_6 = arith.constant 0 : index
    %c0_7 = arith.constant 0 : index
    %9 = vector.load %arg4[%c0_6, %c0_7] : memref<2048x512xbf16, #tpu.memory_space<vmem>>, vector<2048x512xbf16>
    %cst_8 = arith.constant dense<0.000000e+00> : vector<128x512xf32>
    %10 = tpu.matmul %8, %9, %cst_8 {dimension_numbers = #tpu.dot_dimension_numbers<[1], [0], [0], [1], [0, 0, 1, 1], [], []>} : vector<128x2048xbf16>, vector<2048x512xbf16>, vector<128x512xf32> -> vector<128x512xf32>
    %c0_9 = arith.constant 0 : index
    %c0_10 = arith.constant 0 : index
    %11 = vector.load %arg5[%c0_9, %c0_10] : memref<1x512xf32, #tpu.memory_space<vmem>>, vector<1x512xf32>
    %12 = vector.broadcast %11 : vector<1x512xf32> to vector<128x512xf32>
    %13 = arith.addf %10, %12 : vector<128x512xf32>
    %14 = arith.truncf %13 : vector<128x512xf32> to vector<128x512xbf16>
    %c0_11 = arith.constant 0 : index
    %c0_12 = arith.constant 0 : index
    %15 = vector.load %arg6[%c0_11, %c0_12] : memref<128x512xbf16, #tpu.memory_space<vmem>>, vector<128x512xbf16>
    tpu.vector_store %arg6[%c0_11, %c0_12], %14 {strides = array<i32>} : memref<128x512xbf16, #tpu.memory_space<vmem>>, vector<128x512xbf16>,
    return
  }
  func.func @transform_0(%arg0: i32) -> (i32, i32) {
    %c0_i32 = arith.constant 0 : i32
    %c0_i32_0 = arith.constant 0 : i32
    return %arg0, %c0_i32 : i32, i32
  }
  func.func @transform_1(%arg0: i32) -> (i32, i32) {
    %c0_i32 = arith.constant 0 : i32
    %c0_i32_0 = arith.constant 0 : i32
    %c0_i32_1 = arith.constant 0 : i32
    return %c0_i32, %c0_i32_0 : i32, i32
  }
  func.func @transform_2(%arg0: i32) -> (i32, i32) {
    %c0_i32 = arith.constant 0 : i32
    %c0_i32_0 = arith.constant 0 : i32
    %c0_i32_1 = arith.constant 0 : i32
    return %c0_i32, %c0_i32_0 : i32, i32
  }
  func.func @transform_3(%arg0: i32) -> (i32, i32) {
    %c0_i32 = arith.constant 0 : i32
    %c0_i32_0 = arith.constant 0 : i32
    %c0_i32_1 = arith.constant 0 : i32
    return %c0_i32, %c0_i32_0 : i32, i32
  }
  func.func @transform_4(%arg0: i32) -> (i32, i32) {
    %c0_i32 = arith.constant 0 : i32
    %c0_i32_0 = arith.constant 0 : i32
    %c0_i32_1 = arith.constant 0 : i32
    return %c0_i32, %c0_i32_0 : i32, i32
  }
  func.func @transform_5(%arg0: i32) -> (i32, i32) {
    %c0_i32 = arith.constant 0 : i32
    %c0_i32_0 = arith.constant 0 : i32
    return %arg0, %c0_i32 : i32, i32
  }
}

</mosaic_0001>

<llo_original>
// kernel: tpu_custom_call.1
$region0: #{tpu_custom_call.1}
  #allocation0 [shape = 'u32[]', space=smem, size = 0x4, offset = 0x4, fixed_abs, tag = 'smem constant byte address 0x4 - core index']
  #allocation1 [shape = 'u32[144,128]{1,0:T(1,128)}', space=vmem, size = 0x12000, scoped, tag = 'internal scratch']
  %s0 = inlined_call_operand.hbm [shape: bf16[128,512], index: 0, kind: input, shape index: {}]
  %s1 = inlined_call_operand.hbm [shape: bf16[512,2048], index: 1, kind: input, shape index: {}]
  %s2 = inlined_call_operand.hbm [shape: f32[1,2048], index: 2, kind: input, shape index: {}]
  %s3 = inlined_call_operand.hbm [shape: bf16[2048,512], index: 3, kind: input, shape index: {}]
  %s4 = inlined_call_operand.hbm [shape: f32[1,512], index: 4, kind: input, shape index: {}]
  %s5 = inlined_call_operand.hbm [shape: bf16[128,512], index: 5, kind: output, shape index: {}]
  %s6 = sld [smem:[#allocation0]]
  $region50: #{tpu_custom_call.1} parent=0
    _
  %s8 = ssub.s32 1, %s6
  %s9 = scalar_select 0, %s8, %s6
  $region1: #{tpu_custom_call.1} parent=0
    #allocation2 [shape = 'u8[131072]{0}', space=vmem, size = 0x20000, scoped, tag = 'input window, operand 0, single buffered']
    #allocation3 [shape = 's32[1]{0}', space=sflag, size = 0x4, scoped, tag = 'scoped memory for tpu_custom_call.1']
    #allocation4 [shape = 's32[1]{0}', space=sflag, size = 0x4, scoped, tag = 'scoped memory for tpu_custom_call.1']
    #allocation5 [shape = 'u8[2097152]{0}', space=vmem, size = 0x200000, scoped, tag = 'input window, operand 1, single buffered']
    #allocation6 [shape = 's32[1]{0}', space=sflag, size = 0x4, scoped, tag = 'scoped memory for tpu_custom_call.1']
    #allocation7 [shape = 'u8[8192]{0}', space=vmem, size = 0x2000, scoped, tag = 'input window, operand 2, single buffered']
    #allocation8 [shape = 'u8[2097152]{0}', space=vmem, size = 0x200000, scoped, tag = 'input window, operand 3, single buffered']
    #allocation9 [shape = 's32[1]{0}', space=sflag, size = 0x4, scoped, tag = 'scoped memory for tpu_custom_call.1']
    #allocation10 [shape = 'u8[2048]{0}', space=vmem, size = 0x800, scoped, tag = 'input window, operand 4, single buffered']
    #allocation11 [shape = 'u8[131072]{0}', space=vmem, size = 0x20000, scoped, tag = 'output window, operand 0, single buffered']
    %10 = vsyncpa [#allocation3], 0
    %11 = vsyncpa [#allocation6], 0
    %12 = vsyncpa [#allocation9], 0
    %13 = vsyncpa [#allocation4], 0
    // Predicated region
    $region2: #{tpu_custom_call.1} parent=1 // pred_check
      _
    $region3: #{tpu_custom_call.1} parent=1 // pred_check_branch
      %15 = sbr.rel (0) target = $region5
    $region4: #{tpu_custom_call.1} parent=1 // pred_region
      %s17 = ssub.s32 4096, 4096
      %18 = vsyncadd [#allocation3], %s17
      %s19 = sshll.u32 [#allocation2], 4
      %s20 = int_to_ptr.vmem [resolvable:$true] %s19
      %25 = dma.hbm_to_vmem [thread:$0]  %s0, 4096, %s20, [#allocation3], 256, 256, 16
    $region5: #{tpu_custom_call.1} parent=1 // pred_fallthru
      _
    // Predicated region
    $region6: #{tpu_custom_call.1} parent=1 // pred_check
      _
    $region7: #{tpu_custom_call.1} parent=1 // pred_check_branch
      %27 = sbr.rel (0) target = $region9
    $region8: #{tpu_custom_call.1} parent=1 // pred_region
      %s29 = ssub.s32 65536, 65536
      %30 = vsyncadd [#allocation6], %s29
      %s31 = sshll.u32 [#allocation5], 4
      %s32 = int_to_ptr.vmem [resolvable:$true] %s31
      %37 = dma.hbm_to_vmem [thread:$0]  %s1, 65536, %s32, [#allocation6], 1024, 1024, 64
    $region9: #{tpu_custom_call.1} parent=1 // pred_fallthru
      _
    // Predicated region
    $region10: #{tpu_custom_call.1} parent=1 // pred_check
      _
    $region11: #{tpu_custom_call.1} parent=1 // pred_check_branch
      %39 = sbr.rel (0) target = $region13
    $region12: #{tpu_custom_call.1} parent=1 // pred_region
      %s41 = ssub.s32 256, 256
      %42 = vsyncadd [#allocation6], %s41
      %s44 = sshll.u32 [#allocation7], 4
      %s45 = int_to_ptr.vmem [resolvable:$true] %s44
      %47 = dma.hbm_to_vmem [thread:$0]  %s2, 256, %s45, [#allocation6]
    $region13: #{tpu_custom_call.1} parent=1 // pred_fallthru
      _
    // Predicated region
    $region14: #{tpu_custom_call.1} parent=1 // pred_check
      _
    $region15: #{tpu_custom_call.1} parent=1 // pred_check_branch
      %49 = sbr.rel (0) target = $region17
    $region16: #{tpu_custom_call.1} parent=1 // pred_region
      %s51 = ssub.s32 65536, 65536
      %52 = vsyncadd [#allocation9], %s51
      %s53 = sshll.u32 [#allocation8], 4
      %s54 = int_to_ptr.vmem [resolvable:$true] %s53
      %59 = dma.hbm_to_vmem [thread:$0]  %s3, 65536, %s54, [#allocation9], 256, 256, 16
    $region17: #{tpu_custom_call.1} parent=1 // pred_fallthru
      _
    // Predicated region
    $region18: #{tpu_custom_call.1} parent=1 // pred_check
      _
    $region19: #{tpu_custom_call.1} parent=1 // pred_check_branch
      %61 = sbr.rel (0) target = $region21
    $region20: #{tpu_custom_call.1} parent=1 // pred_region
      %s63 = ssub.s32 64, 64
      %64 = vsyncadd [#allocation9], %s63
      %s66 = sshll.u32 [#allocation10], 4
      %s67 = int_to_ptr.vmem [resolvable:$true] %s66
      %69 = dma.hbm_to_vmem [thread:$0]  %s4, 64, %s67, [#allocation9]
    $region21: #{tpu_custom_call.1} parent=1 // pred_fallthru
      _
    // Predicated region
    $region22: #{tpu_custom_call.1} parent=1 // pred_check
      _
    $region23: #{tpu_custom_call.1} parent=1 // pred_check_branch
      %71 = sbr.rel (0) target = $region25
    $region24: #{tpu_custom_call.1} parent=1 // pred_region
      %72 = dma.done [#allocation3], 4096
    $region25: #{tpu_custom_call.1} parent=1 // pred_fallthru
      _
    // Predicated region
    $region26: #{tpu_custom_call.1} parent=1 // pred_check
      _
    $region27: #{tpu_custom_call.1} parent=1 // pred_check_branch
      %74 = sbr.rel (0) target = $region29
    $region28: #{tpu_custom_call.1} parent=1 // pred_region
      %75 = dma.done [#allocation6], 65536
    $region29: #{tpu_custom_call.1} parent=1 // pred_fallthru
      _
    // Predicated region
    $region30: #{tpu_custom_call.1} parent=1 // pred_check
      _
    $region31: #{tpu_custom_call.1} parent=1 // pred_check_branch
      %77 = sbr.rel (0) target = $region33
    $region32: #{tpu_custom_call.1} parent=1 // pred_region
      %78 = dma.done [#allocation6], 256
    $region33: #{tpu_custom_call.1} parent=1 // pred_fallthru
      _
    // Predicated region
    $region34: #{tpu_custom_call.1} parent=1 // pred_check
      _
    $region35: #{tpu_custom_call.1} parent=1 // pred_check_branch
      %80 = sbr.rel (0) target = $region37
    $region36: #{tpu_custom_call.1} parent=1 // pred_region
      %81 = dma.done [#allocation9], 65536
    $region37: #{tpu_custom_call.1} parent=1 // pred_fallthru
      _
    // Predicated region
    $region38: #{tpu_custom_call.1} parent=1 // pred_check
      _
    $region39: #{tpu_custom_call.1} parent=1 // pred_check_branch
      %83 = sbr.rel (0) target = $region41
    $region40: #{tpu_custom_call.1} parent=1 // pred_region
      %84 = dma.done [#allocation9], 64
    $region41: #{tpu_custom_call.1} parent=1 // pred_fallthru
      _
    %v85 = vld [vmem:[#allocation2] sm:$0xff]
    %v86 = vld [vmem:[#allocation2 + $0x8] sm:$0xff]
    %v87 = vld [vmem:[#allocation2 + $0x10] sm:$0xff]
    %v88 = vld [vmem:[#allocation2 + $0x18] sm:$0xff]
    %v89 = vld [vmem:[#allocation2 + $0x20] sm:$0xff]
    %v90 = vld [vmem:[#allocation2 + $0x28] sm:$0xff]
    %v91 = vld [vmem:[#allocation2 + $0x30] sm:$0xff]
    %v92 = vld [vmem:[#allocation2 + $0x38] sm:$0xff]
    %v93 = vld [vmem:[#allocation2 + $0x40] sm:$0xff]
    %v94 = vld [vmem:[#allocation2 + $0x48] sm:$0xff]
    %v95 = vld [vmem:[#allocation2 + $0x50] sm:$0xff]
    %v96 = vld [vmem:[#allocation2 + $0x58] sm:$0xff]
    %v97 = vld [vmem:[#allocation2 + $0x60] sm:$0xff]
    %v98 = vld [vmem:[#allocation2 + $0x68] sm:$0xff]
    %v99 = vld [vmem:[#allocation2 + $0x70] sm:$0xff]
    %v100 = vld [vmem:[#allocation2 + $0x78] sm:$0xff]
    %v101 = vld [vmem:[#allocation2 + $0x80] sm:$0xff]
    %v102 = vld [vmem:[#allocation2 + $0x88] sm:$0xff]
    %v103 = vld [vmem:[#allocation2 + $0x90] sm:$0xff]
    %v104 = vld [vmem:[#allocation2 + $0x98] sm:$0xff]
    %v105 = vld [vmem:[#allocation2 + $0xa0] sm:$0xff]
    %v106 = vld [vmem:[#allocation2 + $0xa8] sm:$0xff]
    %v107 = vld [vmem:[#allocation2 + $0xb0] sm:$0xff]
    %v108 = vld [vmem:[#allocation2 + $0xb8] sm:$0xff]
    %v109 = vld [vmem:[#allocation2 + $0xc0] sm:$0xff]
    %v110 = vld [vmem:[#allocation2 + $0xc8] sm:$0xff]
    %v111 = vld [vmem:[#allocation2 + $0xd0] sm:$0xff]
    %v112 = vld [vmem:[#allocation2 + $0xd8] sm:$0xff]
    %v113 = vld [vmem:[#allocation2 + $0xe0] sm:$0xff]
    %v114 = vld [vmem:[#allocation2 + $0xe8] sm:$0xff]
    %v115 = vld [vmem:[#allocation2 + $0xf0] sm:$0xff]
    %v116 = vld [vmem:[#allocation2 + $0xf8] sm:$0xff]
    %v117 = vld [vmem:[#allocation5] sm:$0xff]
    %v118 = vld [vmem:[#allocation5 + $0x8] sm:$0xff]
    %v119 = vld [vmem:[#allocation5 + $0x10] sm:$0xff]
    %v120 = vld [vmem:[#allocation5 + $0x18] sm:$0xff]
    %v121 = vld [vmem:[#allocation5 + $0x20] sm:$0xff]
    %v122 = vld [vmem:[#allocation5 + $0x28] sm:$0xff]
    %v123 = vld [vmem:[#allocation5 + $0x30] sm:$0xff]
    %v124 = vld [vmem:[#allocation5 + $0x38] sm:$0xff]
    %v125 = vld [vmem:[#allocation5 + $0x40] sm:$0xff]
    %v126 = vld [vmem:[#allocation5 + $0x48] sm:$0xff]
    %v127 = vld [vmem:[#allocation5 + $0x50] sm:$0xff]
    %v128 = vld [vmem:[#allocation5 + $0x58] sm:$0xff]
    %v129 = vld [vmem:[#allocation5 + $0x60] sm:$0xff]
    %v130 = vld [vmem:[#allocation5 + $0x68] sm:$0xff]
    %v131 = vld [vmem:[#allocation5 + $0x70] sm:$0xff]
    %v132 = vld [vmem:[#allocation5 + $0x78] sm:$0xff]
    %v133 = vld [vmem:[#allocation5 + $0x80] sm:$0xff]
    %v134 = vld [vmem:[#allocation5 + $0x88] sm:$0xff]
    %v135 = vld [vmem:[#allocation5 + $0x90] sm:$0xff]
    %v136 = vld [vmem:[#allocation5 + $0x98] sm:$0xff]
    %v137 = vld [vmem:[#allocation5 + $0xa0] sm:$0xff]
    %v138 = vld [vmem:[#allocation5 + $0xa8] sm:$0xff]
    %v139 = vld [vmem:[#allocation5 + $0xb0] sm:$0xff]
    %v140 = vld [vmem:[#allocation5 + $0xb8] sm:$0xff]
    %v141 = vld [vmem:[#allocation5 + $0xc0] sm:$0xff]
    %v142 = vld [vmem:[#allocation5 + $0xc8] sm:$0xff]
    %v143 = vld [vmem:[#allocation5 + $0xd0] sm:$0xff]
    %v144 = vld [vmem:[#allocation5 + $0xd8] sm:$0xff]
    %v145 = vld [vmem:[#allocation5 + $0xe0] sm:$0xff]
    %v146 = vld [vmem:[#allocation5 + $0xe8] sm:$0xff]
    %v147 = vld [vmem:[#allocation5 + $0xf0] sm:$0xff]
    %v148 = vld [vmem:[#allocation5 + $0xf8] sm:$0xff]
    %v149 = vld [vmem:[#allocation5 + $0x100] sm:$0xff]
    %v150 = vld [vmem:[#allocation5 + $0x108] sm:$0xff]
    %v151 = vld [vmem:[#allocation5 + $0x110] sm:$0xff]
    %v152 = vld [vmem:[#allocation5 + $0x118] sm:$0xff]
    %v153 = vld [vmem:[#allocation5 + $0x120] sm:$0xff]
    %v154 = vld [vmem:[#allocation5 + $0x128] sm:$0xff]
    %v155 = vld [vmem:[#allocation5 + $0x130] sm:$0xff]
    %v156 = vld [vmem:[#allocation5 + $0x138] sm:$0xff]
    %v157 = vld [vmem:[#allocation5 + $0x140] sm:$0xff]
    %v158 = vld [vmem:[#allocation5 + $0x148] sm:$0xff]
    %v159 = vld [vmem:[#allocation5 + $0x150] sm:$0xff]
    %v160 = vld [vmem:[#allocation5 + $0x158] sm:$0xff]
    %v161 = vld [vmem:[#allocation5 + $0x160] sm:$0xff]
    %v162 = vld [vmem:[#allocation5 + $0x168] sm:$0xff]
    %v163 = vld [vmem:[#allocation5 + $0x170] sm:$0xff]
    %v164 = vld [vmem:[#allocation5 + $0x178] sm:$0xff]
    %v165 = vld [vmem:[#allocation5 + $0x180] sm:$0xff]
    %v166 = vld [vmem:[#allocation5 + $0x188] sm:$0xff]
    %v167 = vld [vmem:[#allocation5 + $0x190] sm:$0xff]
    %v168 = vld [vmem:[#allocation5 + $0x198] sm:$0xff]
    %v169 = vld [vmem:[#allocation5 + $0x1a0] sm:$0xff]
    %v170 = vld [vmem:[#allocation5 + $0x1a8] sm:$0xff]
    %v171 = vld [vmem:[#allocation5 + $0x1b0] sm:$0xff]
    %v172 = vld [vmem:[#allocation5 + $0x1b8] sm:$0xff]
    %v173 = vld [vmem:[#allocation5 + $0x1c0] sm:$0xff]
    %v174 = vld [vmem:[#allocation5 + $0x1c8] sm:$0xff]
    %v175 = vld [vmem:[#allocation5 + $0x1d0] sm:$0xff]
    %v176 = vld [vmem:[#allocation5 + $0x1d8] sm:$0xff]
    %v177 = vld [vmem:[#allocation5 + $0x1e0] sm:$0xff]
    %v178 = vld [vmem:[#allocation5 + $0x1e8] sm:$0xff]
    %v179 = vld [vmem:[#allocation5 + $0x1f0] sm:$0xff]
    %v180 = vld [vmem:[#allocation5 + $0x1f8] sm:$0xff]
    %v181 = vld [vmem:[#allocation5 + $0x200] sm:$0xff]
    %v182 = vld [vmem:[#allocation5 + $0x208] sm:$0xff]
    %v183 = vld [vmem:[#allocation5 + $0x210] sm:$0xff]
    %v184 = vld [vmem:[#allocation5 + $0x218] sm:$0xff]
    %v185 = vld [vmem:[#allocation5 + $0x220] sm:$0xff]
    %v186 = vld [vmem:[#allocation5 + $0x228] sm:$0xff]
    %v187 = vld [vmem:[#allocation5 + $0x230] sm:$0xff]
    %v188 = vld [vmem:[#allocation5 + $0x238] sm:$0xff]
    %v189 = vld [vmem:[#allocation5 + $0x240] sm:$0xff]
    %v190 = vld [vmem:[#allocation5 + $0x248] sm:$0xff]
    %v191 = vld [vmem:[#allocation5 + $0x250] sm:$0xff]
    %v192 = vld [vmem:[#allocation5 + $0x258] sm:$0xff]
    %v193 = vld [vmem:[#allocation5 + $0x260] sm:$0xff]
    %v194 = vld [vmem:[#allocation5 + $0x268] sm:$0xff]
    %v195 = vld [vmem:[#allocation5 + $0x270] sm:$0xff]
    %v196 = vld [vmem:[#allocation5 + $0x278] sm:$0xff]
    %v197 = vld [vmem:[#allocation5 + $0x280] sm:$0xff]
    %v198 = vld [vmem:[#allocation5 + $0x288] sm:$0xff]
    %v199 = vld [vmem:[#allocation5 + $0x290] sm:$0xff]
    %v200 = vld [vmem:[#allocation5 + $0x298] sm:$0xff]
    %v201 = vld [vmem:[#allocation5 + $0x2a0] sm:$0xff]
    %v202 = vld [vmem:[#allocation5 + $0x2a8] sm:$0xff]
    %v203 = vld [vmem:[#allocation5 + $0x2b0] sm:$0xff]
    %v204 = vld [vmem:[#allocation5 + $0x2b8] sm:$0xff]
    %v205 = vld [vmem:[#allocation5 + $0x2c0] sm:$0xff]
    %v206 = vld [vmem:[#allocation5 + $0x2c8] sm:$0xff]
    %v207 = vld [vmem:[#allocation5 + $0x2d0] sm:$0xff]
    %v208 = vld [vmem:[#allocation5 + $0x2d8] sm:$0xff]
    %v209 = vld [vmem:[#allocation5 + $0x2e0] sm:$0xff]
    %v210 = vld [vmem:[#allocation5 + $0x2e8] sm:$0xff]
    %v211 = vld [vmem:[#allocation5 + $0x2f0] sm:$0xff]
    %v212 = vld [vmem:[#allocation5 + $0x2f8] sm:$0xff]
    %v213 = vld [vmem:[#allocation5 + $0x300] sm:$0xff]
    %v214 = vld [vmem:[#allocation5 + $0x308] sm:$0xff]
    %v215 = vld [vmem:[#allocation5 + $0x310] sm:$0xff]
    %v216 = vld [vmem:[#allocation5 + $0x318] sm:$0xff]
    %v217 = vld [vmem:[#allocation5 + $0x320] sm:$0xff]
    %v218 = vld [vmem:[#allocation5 + $0x328] sm:$0xff]
    %v219 = vld [vmem:[#allocation5 + $0x330] sm:$0xff]
    %v220 = vld [vmem:[#allocation5 + $0x338] sm:$0xff]
    %v221 = vld [vmem:[#allocation5 + $0x340] sm:$0xff]
    %v222 = vld [vmem:[#allocation5 + $0x348] sm:$0xff]
    %v223 = vld [vmem:[#allocation5 + $0x350] sm:$0xff]
    %v224 = vld [vmem:[#allocation5 + $0x358] sm:$0xff]
    %v225 = vld [vmem:[#allocation5 + $0x360] sm:$0xff]
    %v226 = vld [vmem:[#allocation5 + $0x368] sm:$0xff]
    %v227 = vld [vmem:[#allocation5 + $0x370] sm:$0xff]
    %v228 = vld [vmem:[#allocation5 + $0x378] sm:$0xff]
    %v229 = vld [vmem:[#allocation5 + $0x380] sm:$0xff]
    %v230 = vld [vmem:[#allocation5 + $0x388] sm:$0xff]
    %v231 = vld [vmem:[#allocation5 + $0x390] sm:$0xff]
    %v232 = vld [vmem:[#allocation5 + $0x398] sm:$0xff]
    %v233 = vld [vmem:[#allocation5 + $0x3a0] sm:$0xff]
    %v234 = vld [vmem:[#allocation5 + $0x3a8] sm:$0xff]
    %v235 = vld [vmem:[#allocation5 + $0x3b0] sm:$0xff]
    %v236 = vld [vmem:[#allocation5 + $0x3b8] sm:$0xff]
    %v237 = vld [vmem:[#allocation5 + $0x3c0] sm:$0xff]
    %v238 = vld [vmem:[#allocation5 + $0x3c8] sm:$0xff]
    %v239 = vld [vmem:[#allocation5 + $0x3d0] sm:$0xff]
    %v240 = vld [vmem:[#allocation5 + $0x3d8] sm:$0xff]
    %v241 = vld [vmem:[#allocation5 + $0x3e0] sm:$0xff]
    %v242 = vld [vmem:[#allocation5 + $0x3e8] sm:$0xff]
    %v243 = vld [vmem:[#allocation5 + $0x3f0] sm:$0xff]
    %v244 = vld [vmem:[#allocation5 + $0x3f8] sm:$0xff]
    %v245 = vld [vmem:[#allocation5 + $0x400] sm:$0xff]
    %v246 = vld [vmem:[#allocation5 + $0x408] sm:$0xff]
    %v247 = vld [vmem:[#allocation5 + $0x410] sm:$0xff]
    %v248 = vld [vmem:[#allocation5 + $0x418] sm:$0xff]
    %v249 = vld [vmem:[#allocation5 + $0x420] sm:$0xff]
    %v250 = vld [vmem:[#allocation5 + $0x428] sm:$0xff]
    %v251 = vld [vmem:[#allocation5 + $0x430] sm:$0xff]
    %v252 = vld [vmem:[#allocation5 + $0x438] sm:$0xff]
    %v253 = vld [vmem:[#allocation5 + $0x440] sm:$0xff]
    %v254 = vld [vmem:[#allocation5 + $0x448] sm:$0xff]
    %v255 = vld [vmem:[#allocation5 + $0x450] sm:$0xff]
    %v256 = vld [vmem:[#allocation5 + $0x458] sm:$0xff]
    %v257 = vld [vmem:[#allocation5 + $0x460] sm:$0xff]
    %v258 = vld [vmem:[#allocation5 + $0x468] sm:$0xff]
    %v259 = vld [vmem:[#allocation5 + $0x470] sm:$0xff]
    %v260 = vld [vmem:[#allocation5 + $0x478] sm:$0xff]
    %v261 = vld [vmem:[#allocation5 + $0x480] sm:$0xff]
    %v262 = vld [vmem:[#allocation5 + $0x488] sm:$0xff]
    %v263 = vld [vmem:[#allocation5 + $0x490] sm:$0xff]
    %v264 = vld [vmem:[#allocation5 + $0x498] sm:$0xff]
    %v265 = vld [vmem:[#allocation5 + $0x4a0] sm:$0xff]
    %v266 = vld [vmem:[#allocation5 + $0x4a8] sm:$0xff]
    %v267 = vld [vmem:[#allocation5 + $0x4b0] sm:$0xff]
    %v268 = vld [vmem:[#allocation5 + $0x4b8] sm:$0xff]
    %v269 = vld [vmem:[#allocation5 + $0x4c0] sm:$0xff]
    %v270 = vld [vmem:[#allocation5 + $0x4c8] sm:$0xff]
    %v271 = vld [vmem:[#allocation5 + $0x4d0] sm:$0xff]
    %v272 = vld [vmem:[#allocation5 + $0x4d8] sm:$0xff]
    %v273 = vld [vmem:[#allocation5 + $0x4e0] sm:$0xff]
    %v274 = vld [vmem:[#allocation5 + $0x4e8] sm:$0xff]
    %v275 = vld [vmem:[#allocation5 + $0x4f0] sm:$0xff]
    %v276 = vld [vmem:[#allocation5 + $0x4f8] sm:$0xff]
    %v277 = vld [vmem:[#allocation5 + $0x500] sm:$0xff]
    %v278 = vld [vmem:[#allocation5 + $0x508] sm:$0xff]
    %v279 = vld [vmem:[#allocation5 + $0x510] sm:$0xff]
    %v280 = vld [vmem:[#allocation5 + $0x518] sm:$0xff]
    %v281 = vld [vmem:[#allocation5 + $0x520] sm:$0xff]
    %v282 = vld [vmem:[#allocation5 + $0x528] sm:$0xff]
    %v283 = vld [vmem:[#allocation5 + $0x530] sm:$0xff]
    %v284 = vld [vmem:[#allocation5 + $0x538] sm:$0xff]
    %v285 = vld [vmem:[#allocation5 + $0x540] sm:$0xff]
    %v286 = vld [vmem:[#allocation5 + $0x548] sm:$0xff]
    %v287 = vld [vmem:[#allocation5 + $0x550] sm:$0xff]
    %v288 = vld [vmem:[#allocation5 + $0x558] sm:$0xff]
    %v289 = vld [vmem:[#allocation5 + $0x560] sm:$0xff]
    %v290 = vld [vmem:[#allocation5 + $0x568] sm:$0xff]
    %v291 = vld [vmem:[#allocation5 + $0x570] sm:$0xff]
    %v292 = vld [vmem:[#allocation5 + $0x578] sm:$0xff]
    %v293 = vld [vmem:[#allocation5 + $0x580] sm:$0xff]
    %v294 = vld [vmem:[#allocation5 + $0x588] sm:$0xff]
    %v295 = vld [vmem:[#allocation5 + $0x590] sm:$0xff]
    %v296 = vld [vmem:[#allocation5 + $0x598] sm:$0xff]
    %v297 = vld [vmem:[#allocation5 + $0x5a0] sm:$0xff]
    %v298 = vld [vmem:[#allocation5 + $0x5a8] sm:$0xff]
    %v299 = vld [vmem:[#allocation5 + $0x5b0] sm:$0xff]
    %v300 = vld [vmem:[#allocation5 + $0x5b8] sm:$0xff]
    %v301 = vld [vmem:[#allocation5 + $0x5c0] sm:$0xff]
    %v302 = vld [vmem:[#allocation5 + $0x5c8] sm:$0xff]
    %v303 = vld [vmem:[#allocation5 + $0x5d0] sm:$0xff]
    %v304 = vld [vmem:[#allocation5 + $0x5d8] sm:$0xff]
    %v305 = vld [vmem:[#allocation5 + $0x5e0] sm:$0xff]
    %v306 = vld [vmem:[#allocation5 + $0x5e8] sm:$0xff]
    %v307 = vld [vmem:[#allocation5 + $0x5f0] sm:$0xff]
    %v308 = vld [vmem:[#allocation5 + $0x5f8] sm:$0xff]
    %v309 = vld [vmem:[#allocation5 + $0x600] sm:$0xff]
    %v310 = vld [vmem:[#allocation5 + $0x608] sm:$0xff]
    %v311 = vld [vmem:[#allocation5 + $0x610] sm:$0xff]
    %v312 = vld [vmem:[#allocation5 + $0x618] sm:$0xff]
    %v313 = vld [vmem:[#allocation5 + $0x620] sm:$0xff]
    %v314 = vld [vmem:[#allocation5 + $0x628] sm:$0xff]
    %v315 = vld [vmem:[#allocation5 + $0x630] sm:$0xff]
    %v316 = vld [vmem:[#allocation5 + $0x638] sm:$0xff]
    %v317 = vld [vmem:[#allocation5 + $0x640] sm:$0xff]
    %v318 = vld [vmem:[#allocation5 + $0x648] sm:$0xff]
    %v319 = vld [vmem:[#allocation5 + $0x650] sm:$0xff]
    %v320 = vld [vmem:[#allocation5 + $0x658] sm:$0xff]
    %v321 = vld [vmem:[#allocation5 + $0x660] sm:$0xff]
    %v322 = vld [vmem:[#allocation5 + $0x668] sm:$0xff]
    %v323 = vld [vmem:[#allocation5 + $0x670] sm:$0xff]
    %v324 = vld [vmem:[#allocation5 + $0x678] sm:$0xff]
    %v325 = vld [vmem:[#allocation5 + $0x680] sm:$0xff]
    %v326 = vld [vmem:[#allocation5 + $0x688] sm:$0xff]
    %v327 = vld [vmem:[#allocation5 + $0x690] sm:$0xff]
    %v328 = vld [vmem:[#allocation5 + $0x698] sm:$0xff]
    %v329 = vld [vmem:[#allocation5 + $0x6a0] sm:$0xff]
    %v330 = vld [vmem:[#allocation5 + $0x6a8] sm:$0xff]
    %v331 = vld [vmem:[#allocation5 + $0x6b0] sm:$0xff]
    %v332 = vld [vmem:[#allocation5 + $0x6b8] sm:$0xff]
    %v333 = vld [vmem:[#allocation5 + $0x6c0] sm:$0xff]
    %v334 = vld [vmem:[#allocation5 + $0x6c8] sm:$0xff]
    %v335 = vld [vmem:[#allocation5 + $0x6d0] sm:$0xff]
    %v336 = vld [vmem:[#allocation5 + $0x6d8] sm:$0xff]
    %v337 = vld [vmem:[#allocation5 + $0x6e0] sm:$0xff]
    %v338 = vld [vmem:[#allocation5 + $0x6e8] sm:$0xff]
    %v339 = vld [vmem:[#allocation5 + $0x6f0] sm:$0xff]
    %v340 = vld [vmem:[#allocation5 + $0x6f8] sm:$0xff]
    %v341 = vld [vmem:[#allocation5 + $0x700] sm:$0xff]
    %v342 = vld [vmem:[#allocation5 + $0x708] sm:$0xff]
    %v343 = vld [vmem:[#allocation5 + $0x710] sm:$0xff]
    %v344 = vld [vmem:[#allocation5 + $0x718] sm:$0xff]
    %v345 = vld [vmem:[#allocation5 + $0x720] sm:$0xff]
    %v346 = vld [vmem:[#allocation5 + $0x728] sm:$0xff]
    %v347 = vld [vmem:[#allocation5 + $0x730] sm:$0xff]
    %v348 = vld [vmem:[#allocation5 + $0x738] sm:$0xff]
    %v349 = vld [vmem:[#allocation5 + $0x740] sm:$0xff]
    %v350 = vld [vmem:[#allocation5 + $0x748] sm:$0xff]
    %v351 = vld [vmem:[#allocation5 + $0x750] sm:$0xff]
    %v352 = vld [vmem:[#allocation5 + $0x758] sm:$0xff]
    %v353 = vld [vmem:[#allocation5 + $0x760] sm:$0xff]
    %v354 = vld [vmem:[#allocation5 + $0x768] sm:$0xff]
    %v355 = vld [vmem:[#allocation5 + $0x770] sm:$0xff]
    %v356 = vld [vmem:[#allocation5 + $0x778] sm:$0xff]
    %v357 = vld [vmem:[#allocation5 + $0x780] sm:$0xff]
    %v358 = vld [vmem:[#allocation5 + $0x788] sm:$0xff]
    %v359 = vld [vmem:[#allocation5 + $0x790] sm:$0xff]
    %v360 = vld [vmem:[#allocation5 + $0x798] sm:$0xff]
    %v361 = vld [vmem:[#allocation5 + $0x7a0] sm:$0xff]
    %v362 = vld [vmem:[#allocation5 + $0x7a8] sm:$0xff]
    %v363 = vld [vmem:[#allocation5 + $0x7b0] sm:$0xff]
    %v364 = vld [vmem:[#allocation5 + $0x7b8] sm:$0xff]
    %v365 = vld [vmem:[#allocation5 + $0x7c0] sm:$0xff]
    %v366 = vld [vmem:[#allocation5 + $0x7c8] sm:$0xff]
    %v367 = vld [vmem:[#allocation5 + $0x7d0] sm:$0xff]
    %v368 = vld [vmem:[#allocation5 + $0x7d8] sm:$0xff]
    %v369 = vld [vmem:[#allocation5 + $0x7e0] sm:$0xff]
    %v370 = vld [vmem:[#allocation5 + $0x7e8] sm:$0xff]
    %v371 = vld [vmem:[#allocation5 + $0x7f0] sm:$0xff]
    %v372 = vld [vmem:[#allocation5 + $0x7f8] sm:$0xff]
    %v373 = vld [vmem:[#allocation5 + $0x800] sm:$0xff]
    %v374 = vld [vmem:[#allocation5 + $0x808] sm:$0xff]
    %v375 = vld [vmem:[#allocation5 + $0x810] sm:$0xff]
    %v376 = vld [vmem:[#allocation5 + $0x818] sm:$0xff]
    %v377 = vld [vmem:[#allocation5 + $0x820] sm:$0xff]
    %v378 = vld [vmem:[#allocation5 + $0x828] sm:$0xff]
    %v379 = vld [vmem:[#allocation5 + $0x830] sm:$0xff]
    %v380 = vld [vmem:[#allocation5 + $0x838] sm:$0xff]
    %v381 = vld [vmem:[#allocation5 + $0x840] sm:$0xff]
    %v382 = vld [vmem:[#allocation5 + $0x848] sm:$0xff]
    %v383 = vld [vmem:[#allocation5 + $0x850] sm:$0xff]
    %v384 = vld [vmem:[#allocation5 + $0x858] sm:$0xff]
    %v385 = vld [vmem:[#allocation5 + $0x860] sm:$0xff]
    %v386 = vld [vmem:[#allocation5 + $0x868] sm:$0xff]
    %v387 = vld [vmem:[#allocation5 + $0x870] sm:$0xff]
    %v388 = vld [vmem:[#allocation5 + $0x878] sm:$0xff]
    %v389 = vld [vmem:[#allocation5 + $0x880] sm:$0xff]
    %v390 = vld [vmem:[#allocation5 + $0x888] sm:$0xff]
    %v391 = vld [vmem:[#allocation5 + $0x890] sm:$0xff]
    %v392 = vld [vmem:[#allocation5 + $0x898] sm:$0xff]
    %v393 = vld [vmem:[#allocation5 + $0x8a0] sm:$0xff]
    %v394 = vld [vmem:[#allocation5 + $0x8a8] sm:$0xff]
    %v395 = vld [vmem:[#allocation5 + $0x8b0] sm:$0xff]
    %v396 = vld [vmem:[#allocation5 + $0x8b8] sm:$0xff]
    %v397 = vld [vmem:[#allocation5 + $0x8c0] sm:$0xff]
    %v398 = vld [vmem:[#allocation5 + $0x8c8] sm:$0xff]
    %v399 = vld [vmem:[#allocation5 + $0x8d0] sm:$0xff]
    %v400 = vld [vmem:[#allocation5 + $0x8d8] sm:$0xff]
    %v401 = vld [vmem:[#allocation5 + $0x8e0] sm:$0xff]
    %v402 = vld [vmem:[#allocation5 + $0x8e8] sm:$0xff]
    %v403 = vld [vmem:[#allocation5 + $0x8f0] sm:$0xff]
    %v404 = vld [vmem:[#allocation5 + $0x8f8] sm:$0xff]
    %v405 = vld [vmem:[#allocation5 + $0x900] sm:$0xff]
    %v406 = vld [vmem:[#allocation5 + $0x908] sm:$0xff]
    %v407 = vld [vmem:[#allocation5 + $0x910] sm:$0xff]
    %v408 = vld [vmem:[#allocation5 + $0x918] sm:$0xff]
    %v409 = vld [vmem:[#allocation5 + $0x920] sm:$0xff]
    %v410 = vld [vmem:[#allocation5 + $0x928] sm:$0xff]
    %v411 = vld [vmem:[#allocation5 + $0x930] sm:$0xff]
    %v412 = vld [vmem:[#allocation5 + $0x938] sm:$0xff]
    %v413 = vld [vmem:[#allocation5 + $0x940] sm:$0xff]
    %v414 = vld [vmem:[#allocation5 + $0x948] sm:$0xff]
    %v415 = vld [vmem:[#allocation5 + $0x950] sm:$0xff]
    %v416 = vld [vmem:[#allocation5 + $0x958] sm:$0xff]
    %v417 = vld [vmem:[#allocation5 + $0x960] sm:$0xff]
    %v418 = vld [vmem:[#allocation5 + $0x968] sm:$0xff]
    %v419 = vld [vmem:[#allocation5 + $0x970] sm:$0xff]
    %v420 = vld [vmem:[#allocation5 + $0x978] sm:$0xff]
    %v421 = vld [vmem:[#allocation5 + $0x980] sm:$0xff]
    %v422 = vld [vmem:[#allocation5 + $0x988] sm:$0xff]
    %v423 = vld [vmem:[#allocation5 + $0x990] sm:$0xff]
    %v424 = vld [vmem:[#allocation5 + $0x998] sm:$0xff]
    %v425 = vld [vmem:[#allocation5 + $0x9a0] sm:$0xff]
    %v426 = vld [vmem:[#allocation5 + $0x9a8] sm:$0xff]
    %v427 = vld [vmem:[#allocation5 + $0x9b0] sm:$0xff]
    %v428 = vld [vmem:[#allocation5 + $0x9b8] sm:$0xff]
    %v429 = vld [vmem:[#allocation5 + $0x9c0] sm:$0xff]
    %v430 = vld [vmem:[#allocation5 + $0x9c8] sm:$0xff]
    %v431 = vld [vmem:[#allocation5 + $0x9d0] sm:$0xff]
    %v432 = vld [vmem:[#allocation5 + $0x9d8] sm:$0xff]
    %v433 = vld [vmem:[#allocation5 + $0x9e0] sm:$0xff]
    %v434 = vld [vmem:[#allocation5 + $0x9e8] sm:$0xff]
    %v435 = vld [vmem:[#allocation5 + $0x9f0] sm:$0xff]
    %v436 = vld [vmem:[#allocation5 + $0x9f8] sm:$0xff]
    %v437 = vld [vmem:[#allocation5 + $0xa00] sm:$0xff]
    %v438 = vld [vmem:[#allocation5 + $0xa08] sm:$0xff]
    %v439 = vld [vmem:[#allocation5 + $0xa10] sm:$0xff]
    %v440 = vld [vmem:[#allocation5 + $0xa18] sm:$0xff]
    %v441 = vld [vmem:[#allocation5 + $0xa20] sm:$0xff]
    %v442 = vld [vmem:[#allocation5 + $0xa28] sm:$0xff]
    %v443 = vld [vmem:[#allocation5 + $0xa30] sm:$0xff]
    %v444 = vld [vmem:[#allocation5 + $0xa38] sm:$0xff]
    %v445 = vld [vmem:[#allocation5 + $0xa40] sm:$0xff]
    %v446 = vld [vmem:[#allocation5 + $0xa48] sm:$0xff]
    %v447 = vld [vmem:[#allocation5 + $0xa50] sm:$0xff]
    %v448 = vld [vmem:[#allocation5 + $0xa58] sm:$0xff]
    %v449 = vld [vmem:[#allocation5 + $0xa60] sm:$0xff]
    %v450 = vld [vmem:[#allocation5 + $0xa68] sm:$0xff]
    %v451 = vld [vmem:[#allocation5 + $0xa70] sm:$0xff]
    %v452 = vld [vmem:[#allocation5 + $0xa78] sm:$0xff]
    %v453 = vld [vmem:[#allocation5 + $0xa80] sm:$0xff]
    %v454 = vld [vmem:[#allocation5 + $0xa88] sm:$0xff]
    %v455 = vld [vmem:[#allocation5 + $0xa90] sm:$0xff]
    %v456 = vld [vmem:[#allocation5 + $0xa98] sm:$0xff]
    %v457 = vld [vmem:[#allocation5 + $0xaa0] sm:$0xff]
    %v458 = vld [vmem:[#allocation5 + $0xaa8] sm:$0xff]
    %v459 = vld [vmem:[#allocation5 + $0xab0] sm:$0xff]
    %v460 = vld [vmem:[#allocation5 + $0xab8] sm:$0xff]
    %v461 = vld [vmem:[#allocation5 + $0xac0] sm:$0xff]
    %v462 = vld [vmem:[#allocation5 + $0xac8] sm:$0xff]
    %v463 = vld [vmem:[#allocation5 + $0xad0] sm:$0xff]
    %v464 = vld [vmem:[#allocation5 + $0xad8] sm:$0xff]
    %v465 = vld [vmem:[#allocation5 + $0xae0] sm:$0xff]
    %v466 = vld [vmem:[#allocation5 + $0xae8] sm:$0xff]
    %v467 = vld [vmem:[#allocation5 + $0xaf0] sm:$0xff]
    %v468 = vld [vmem:[#allocation5 + $0xaf8] sm:$0xff]
    %v469 = vld [vmem:[#allocation5 + $0xb00] sm:$0xff]
    %v470 = vld [vmem:[#allocation5 + $0xb08] sm:$0xff]
    %v471 = vld [vmem:[#allocation5 + $0xb10] sm:$0xff]
    %v472 = vld [vmem:[#allocation5 + $0xb18] sm:$0xff]
    %v473 = vld [vmem:[#allocation5 + $0xb20] sm:$0xff]
    %v474 = vld [vmem:[#allocation5 + $0xb28] sm:$0xff]
    %v475 = vld [vmem:[#allocation5 + $0xb30] sm:$0xff]
    %v476 = vld [vmem:[#allocation5 + $0xb38] sm:$0xff]
    %v477 = vld [vmem:[#allocation5 + $0xb40] sm:$0xff]
    %v478 = vld [vmem:[#allocation5 + $0xb48] sm:$0xff]
    %v479 = vld [vmem:[#allocation5 + $0xb50] sm:$0xff]
    %v480 = vld [vmem:[#allocation5 + $0xb58] sm:$0xff]
    %v481 = vld [vmem:[#allocation5 + $0xb60] sm:$0xff]
    %v482 = vld [vmem:[#allocation5 + $0xb68] sm:$0xff]
    %v483 = vld [vmem:[#allocation5 + $0xb70] sm:$0xff]
    %v484 = vld [vmem:[#allocation5 + $0xb78] sm:$0xff]
    %v485 = vld [vmem:[#allocation5 + $0xb80] sm:$0xff]
    %v486 = vld [vmem:[#allocation5 + $0xb88] sm:$0xff]
    %v487 = vld [vmem:[#allocation5 + $0xb90] sm:$0xff]
    %v488 = vld [vmem:[#allocation5 + $0xb98] sm:$0xff]
    %v489 = vld [vmem:[#allocation5 + $0xba0] sm:$0xff]
    %v490 = vld [vmem:[#allocation5 + $0xba8] sm:$0xff]
    %v491 = vld [vmem:[#allocation5 + $0xbb0] sm:$0xff]
    %v492 = vld [vmem:[#allocation5 + $0xbb8] sm:$0xff]
    %v493 = vld [vmem:[#allocation5 + $0xbc0] sm:$0xff]
    %v494 = vld [vmem:[#allocation5 + $0xbc8] sm:$0xff]
    %v495 = vld [vmem:[#allocation5 + $0xbd0] sm:$0xff]
    %v496 = vld [vmem:[#allocation5 + $0xbd8] sm:$0xff]
    %v497 = vld [vmem:[#allocation5 + $0xbe0] sm:$0xff]
    %v498 = vld [vmem:[#allocation5 + $0xbe8] sm:$0xff]
    %v499 = vld [vmem:[#allocation5 + $0xbf0] sm:$0xff]
    %v500 = vld [vmem:[#allocation5 + $0xbf8] sm:$0xff]
    %v501 = vld [vmem:[#allocation5 + $0xc00] sm:$0xff]
    %v502 = vld [vmem:[#allocation5 + $0xc08] sm:$0xff]
    %v503 = vld [vmem:[#allocation5 + $0xc10] sm:$0xff]
    %v504 = vld [vmem:[#allocation5 + $0xc18] sm:$0xff]
    %v505 = vld [vmem:[#allocation5 + $0xc20] sm:$0xff]
    %v506 = vld [vmem:[#allocation5 + $0xc28] sm:$0xff]
    %v507 = vld [vmem:[#allocation5 + $0xc30] sm:$0xff]
    %v508 = vld [vmem:[#allocation5 + $0xc38] sm:$0xff]
    %v509 = vld [vmem:[#allocation5 + $0xc40] sm:$0xff]
    %v510 = vld [vmem:[#allocation5 + $0xc48] sm:$0xff]
    %v511 = vld [vmem:[#allocation5 + $0xc50] sm:$0xff]
    %v512 = vld [vmem:[#allocation5 + $0xc58] sm:$0xff]
    %v513 = vld [vmem:[#allocation5 + $0xc60] sm:$0xff]
    %v514 = vld [vmem:[#allocation5 + $0xc68] sm:$0xff]
    %v515 = vld [vmem:[#allocation5 + $0xc70] sm:$0xff]
    %v516 = vld [vmem:[#allocation5 + $0xc78] sm:$0xff]
    %v517 = vld [vmem:[#allocation5 + $0xc80] sm:$0xff]
    %v518 = vld [vmem:[#allocation5 + $0xc88] sm:$0xff]
    %v519 = vld [vmem:[#allocation5 + $0xc90] sm:$0xff]
    %v520 = vld [vmem:[#allocation5 + $0xc98] sm:$0xff]
    %v521 = vld [vmem:[#allocation5 + $0xca0] sm:$0xff]
    %v522 = vld [vmem:[#allocation5 + $0xca8] sm:$0xff]
    %v523 = vld [vmem:[#allocation5 + $0xcb0] sm:$0xff]
    %v524 = vld [vmem:[#allocation5 + $0xcb8] sm:$0xff]
    %v525 = vld [vmem:[#allocation5 + $0xcc0] sm:$0xff]
    %v526 = vld [vmem:[#allocation5 + $0xcc8] sm:$0xff]
    %v527 = vld [vmem:[#allocation5 + $0xcd0] sm:$0xff]
    %v528 = vld [vmem:[#allocation5 + $0xcd8] sm:$0xff]
    %v529 = vld [vmem:[#allocation5 + $0xce0] sm:$0xff]
    %v530 = vld [vmem:[#allocation5 + $0xce8] sm:$0xff]
    %v531 = vld [vmem:[#allocation5 + $0xcf0] sm:$0xff]
    %v532 = vld [vmem:[#allocation5 + $0xcf8] sm:$0xff]
    %v533 = vld [vmem:[#allocation5 + $0xd00] sm:$0xff]
    %v534 = vld [vmem:[#allocation5 + $0xd08] sm:$0xff]
    %v535 = vld [vmem:[#allocation5 + $0xd10] sm:$0xff]
    %v536 = vld [vmem:[#allocation5 + $0xd18] sm:$0xff]
    %v537 = vld [vmem:[#allocation5 + $0xd20] sm:$0xff]
    %v538 = vld [vmem:[#allocation5 + $0xd28] sm:$0xff]
    %v539 = vld [vmem:[#allocation5 + $0xd30] sm:$0xff]
    %v540 = vld [vmem:[#allocation5 + $0xd38] sm:$0xff]
    %v541 = vld [vmem:[#allocation5 + $0xd40] sm:$0xff]
    %v542 = vld [vmem:[#allocation5 + $0xd48] sm:$0xff]
    %v543 = vld [vmem:[#allocation5 + $0xd50] sm:$0xff]
    %v544 = vld [vmem:[#allocation5 + $0xd58] sm:$0xff]
    %v545 = vld [vmem:[#allocation5 + $0xd60] sm:$0xff]
    %v546 = vld [vmem:[#allocation5 + $0xd68] sm:$0xff]
    %v547 = vld [vmem:[#allocation5 + $0xd70] sm:$0xff]
    %v548 = vld [vmem:[#allocation5 + $0xd78] sm:$0xff]
    %v549 = vld [vmem:[#allocation5 + $0xd80] sm:$0xff]
    %v550 = vld [vmem:[#allocation5 + $0xd88] sm:$0xff]
    %v551 = vld [vmem:[#allocation5 + $0xd90] sm:$0xff]
    %v552 = vld [vmem:[#allocation5 + $0xd98] sm:$0xff]
    %v553 = vld [vmem:[#allocation5 + $0xda0] sm:$0xff]
    %v554 = vld [vmem:[#allocation5 + $0xda8] sm:$0xff]
    %v555 = vld [vmem:[#allocation5 + $0xdb0] sm:$0xff]
    %v556 = vld [vmem:[#allocation5 + $0xdb8] sm:$0xff]
    %v557 = vld [vmem:[#allocation5 + $0xdc0] sm:$0xff]
    %v558 = vld [vmem:[#allocation5 + $0xdc8] sm:$0xff]
    %v559 = vld [vmem:[#allocation5 + $0xdd0] sm:$0xff]
    %v560 = vld [vmem:[#allocation5 + $0xdd8] sm:$0xff]
    %v561 = vld [vmem:[#allocation5 + $0xde0] sm:$0xff]
    %v562 = vld [vmem:[#allocation5 + $0xde8] sm:$0xff]
    %v563 = vld [vmem:[#allocation5 + $0xdf0] sm:$0xff]
    %v564 = vld [vmem:[#allocation5 + $0xdf8] sm:$0xff]
    %v565 = vld [vmem:[#allocation5 + $0xe00] sm:$0xff]
    %v566 = vld [vmem:[#allocation5 + $0xe08] sm:$0xff]
    %v567 = vld [vmem:[#allocation5 + $0xe10] sm:$0xff]
    %v568 = vld [vmem:[#allocation5 + $0xe18] sm:$0xff]
    %v569 = vld [vmem:[#allocation5 + $0xe20] sm:$0xff]
    %v570 = vld [vmem:[#allocation5 + $0xe28] sm:$0xff]
    %v571 = vld [vmem:[#allocation5 + $0xe30] sm:$0xff]
    %v572 = vld [vmem:[#allocation5 + $0xe38] sm:$0xff]
    %v573 = vld [vmem:[#allocation5 + $0xe40] sm:$0xff]
    %v574 = vld [vmem:[#allocation5 + $0xe48] sm:$0xff]
    %v575 = vld [vmem:[#allocation5 + $0xe50] sm:$0xff]
    %v576 = vld [vmem:[#allocation5 + $0xe58] sm:$0xff]
    %v577 = vld [vmem:[#allocation5 + $0xe60] sm:$0xff]
    %v578 = vld [vmem:[#allocation5 + $0xe68] sm:$0xff]
    %v579 = vld [vmem:[#allocation5 + $0xe70] sm:$0xff]
    %v580 = vld [vmem:[#allocation5 + $0xe78] sm:$0xff]
    %v581 = vld [vmem:[#allocation5 + $0xe80] sm:$0xff]
    %v582 = vld [vmem:[#allocation5 + $0xe88] sm:$0xff]
    %v583 = vld [vmem:[#allocation5 + $0xe90] sm:$0xff]
    %v584 = vld [vmem:[#allocation5 + $0xe98] sm:$0xff]
    %v585 = vld [vmem:[#allocation5 + $0xea0] sm:$0xff]
    %v586 = vld [vmem:[#allocation5 + $0xea8] sm:$0xff]
    %v587 = vld [vmem:[#allocation5 + $0xeb0] sm:$0xff]
    %v588 = vld [vmem:[#allocation5 + $0xeb8] sm:$0xff]
    %v589 = vld [vmem:[#allocation5 + $0xec0] sm:$0xff]
    %v590 = vld [vmem:[#allocation5 + $0xec8] sm:$0xff]
    %v591 = vld [vmem:[#allocation5 + $0xed0] sm:$0xff]
    %v592 = vld [vmem:[#allocation5 + $0xed8] sm:$0xff]
    %v593 = vld [vmem:[#allocation5 + $0xee0] sm:$0xff]
    %v594 = vld [vmem:[#allocation5 + $0xee8] sm:$0xff]
    %v595 = vld [vmem:[#allocation5 + $0xef0] sm:$0xff]
    %v596 = vld [vmem:[#allocation5 + $0xef8] sm:$0xff]
    %v597 = vld [vmem:[#allocation5 + $0xf00] sm:$0xff]
    %v598 = vld [vmem:[#allocation5 + $0xf08] sm:$0xff]
    %v599 = vld [vmem:[#allocation5 + $0xf10] sm:$0xff]
    %v600 = vld [vmem:[#allocation5 + $0xf18] sm:$0xff]
    %v601 = vld [vmem:[#allocation5 + $0xf20] sm:$0xff]
    %v602 = vld [vmem:[#allocation5 + $0xf28] sm:$0xff]
    %v603 = vld [vmem:[#allocation5 + $0xf30] sm:$0xff]
    %v604 = vld [vmem:[#allocation5 + $0xf38] sm:$0xff]
    %v605 = vld [vmem:[#allocation5 + $0xf40] sm:$0xff]
    %v606 = vld [vmem:[#allocation5 + $0xf48] sm:$0xff]
    %v607 = vld [vmem:[#allocation5 + $0xf50] sm:$0xff]
    %v608 = vld [vmem:[#allocation5 + $0xf58] sm:$0xff]
    %v609 = vld [vmem:[#allocation5 + $0xf60] sm:$0xff]
    %v610 = vld [vmem:[#allocation5 + $0xf68] sm:$0xff]
    %v611 = vld [vmem:[#allocation5 + $0xf70] sm:$0xff]
    %v612 = vld [vmem:[#allocation5 + $0xf78] sm:$0xff]
    %v613 = vld [vmem:[#allocation5 + $0xf80] sm:$0xff]
    %v614 = vld [vmem:[#allocation5 + $0xf88] sm:$0xff]
    %v615 = vld [vmem:[#allocation5 + $0xf90] sm:$0xff]
    %v616 = vld [vmem:[#allocation5 + $0xf98] sm:$0xff]
    %v617 = vld [vmem:[#allocation5 + $0xfa0] sm:$0xff]
    %v618 = vld [vmem:[#allocation5 + $0xfa8] sm:$0xff]
    %v619 = vld [vmem:[#allocation5 + $0xfb0] sm:$0xff]
    %v620 = vld [vmem:[#allocation5 + $0xfb8] sm:$0xff]
    %v621 = vld [vmem:[#allocation5 + $0xfc0] sm:$0xff]
    %v622 = vld [vmem:[#allocation5 + $0xfc8] sm:$0xff]
    %v623 = vld [vmem:[#allocation5 + $0xfd0] sm:$0xff]
    %v624 = vld [vmem:[#allocation5 + $0xfd8] sm:$0xff]
    %v625 = vld [vmem:[#allocation5 + $0xfe0] sm:$0xff]
    %v626 = vld [vmem:[#allocation5 + $0xfe8] sm:$0xff]
    %v627 = vld [vmem:[#allocation5 + $0xff0] sm:$0xff]
    %v628 = vld [vmem:[#allocation5 + $0xff8] sm:$0xff]
    %v629 = vld [vmem:[#allocation7] sm:$0xff]
    %v630 = vld [vmem:[#allocation7 + $0x8] sm:$0xff]
    %v633 = vlaneseq
    %v634 = vshrl.u32 %v633, 7
    %v635 = vsub.s32 0, %v634
    %v636 = vrot.slane %v629, %v635
    %v637 = vlaneseq
    %v638 = vshrl.u32 %v637, 7
    %v639 = vsub.s32 1, %v638
    %v640 = vrot.slane %v629, %v639
    %v641 = vlaneseq
    %v642 = vshrl.u32 %v641, 7
    %v643 = vsub.s32 2, %v642
    %v644 = vrot.slane %v629, %v643
    %v645 = vlaneseq
    %v646 = vshrl.u32 %v645, 7
    %v647 = vsub.s32 3, %v646
    %v648 = vrot.slane %v629, %v647
    %v649 = vlaneseq
    %v650 = vshrl.u32 %v649, 7
    %v651 = vsub.s32 4, %v650
    %v652 = vrot.slane %v629, %v651
    %v653 = vlaneseq
    %v654 = vshrl.u32 %v653, 7
    %v655 = vsub.s32 5, %v654
    %v656 = vrot.slane %v629, %v655
    %v657 = vlaneseq
    %v658 = vshrl.u32 %v657, 7
    %v659 = vsub.s32 6, %v658
    %v660 = vrot.slane %v629, %v659
    %v661 = vlaneseq
    %v662 = vshrl.u32 %v661, 7
    %v663 = vsub.s32 7, %v662
    %v664 = vrot.slane %v629, %v663
    %v665 = vlaneseq
    %v666 = vshrl.u32 %v665, 7
    %v667 = vsub.s32 0, %v666
    %v668 = vrot.slane %v630, %v667
    %v669 = vlaneseq
    %v670 = vshrl.u32 %v669, 7
    %v671 = vsub.s32 1, %v670
    %v672 = vrot.slane %v630, %v671
    %v673 = vlaneseq
    %v674 = vshrl.u32 %v673, 7
    %v675 = vsub.s32 2, %v674
    %v676 = vrot.slane %v630, %v675
    %v677 = vlaneseq
    %v678 = vshrl.u32 %v677, 7
    %v679 = vsub.s32 3, %v678
    %v680 = vrot.slane %v630, %v679
    %v681 = vlaneseq
    %v682 = vshrl.u32 %v681, 7
    %v683 = vsub.s32 4, %v682
    %v684 = vrot.slane %v630, %v683
    %v685 = vlaneseq
    %v686 = vshrl.u32 %v685, 7
    %v687 = vsub.s32 5, %v686
    %v688 = vrot.slane %v630, %v687
    %v689 = vlaneseq
    %v690 = vshrl.u32 %v689, 7
    %v691 = vsub.s32 6, %v690
    %v692 = vrot.slane %v630, %v691
    %v693 = vlaneseq
    %v694 = vshrl.u32 %v693, 7
    %v695 = vsub.s32 7, %v694
    %v696 = vrot.slane %v630, %v695
    %v745 = vunpack.c.l.b16 %v85
    %v746 = vunpack.c.h.b16 %v85
    %v747 = vunpack.c.l.b16 %v86
    %v748 = vunpack.c.h.b16 %v86
    %v749 = vunpack.c.l.b16 %v87
    %v750 = vunpack.c.h.b16 %v87
    %v751 = vunpack.c.l.b16 %v88
    %v752 = vunpack.c.h.b16 %v88
    %v753 = vunpack.c.l.b16 %v89
    %v754 = vunpack.c.h.b16 %v89
    %v755 = vunpack.c.l.b16 %v90
    %v756 = vunpack.c.h.b16 %v90
    %v757 = vunpack.c.l.b16 %v91
    %v758 = vunpack.c.h.b16 %v91
    %v759 = vunpack.c.l.b16 %v92
    %v760 = vunpack.c.h.b16 %v92
    %v761 = vunpack.c.l.b16 %v93
    %v762 = vunpack.c.h.b16 %v93
    %v763 = vunpack.c.l.b16 %v94
    %v764 = vunpack.c.h.b16 %v94
    %v765 = vunpack.c.l.b16 %v95
    %v766 = vunpack.c.h.b16 %v95
    %v767 = vunpack.c.l.b16 %v96
    %v768 = vunpack.c.h.b16 %v96
    %v769 = vunpack.c.l.b16 %v97
    %v770 = vunpack.c.h.b16 %v97
    %v771 = vunpack.c.l.b16 %v98
    %v772 = vunpack.c.h.b16 %v98
    %v773 = vunpack.c.l.b16 %v99
    %v774 = vunpack.c.h.b16 %v99
    %v775 = vunpack.c.l.b16 %v100
    %v776 = vunpack.c.h.b16 %v100
    %v777 = vunpack.c.l.b16 %v101
    %v778 = vunpack.c.h.b16 %v101
    %v779 = vunpack.c.l.b16 %v102
    %v780 = vunpack.c.h.b16 %v102
    %v781 = vunpack.c.l.b16 %v103
    %v782 = vunpack.c.h.b16 %v103
    %v783 = vunpack.c.l.b16 %v104
    %v784 = vunpack.c.h.b16 %v104
    %v785 = vunpack.c.l.b16 %v105
    %v786 = vunpack.c.h.b16 %v105
    %v787 = vunpack.c.l.b16 %v106
    %v788 = vunpack.c.h.b16 %v106
    %v789 = vunpack.c.l.b16 %v107
    %v790 = vunpack.c.h.b16 %v107
    %v791 = vunpack.c.l.b16 %v108
    %v792 = vunpack.c.h.b16 %v108
    %v793 = vunpack.c.l.b16 %v109
    %v794 = vunpack.c.h.b16 %v109
    %v795 = vunpack.c.l.b16 %v110
    %v796 = vunpack.c.h.b16 %v110
    %v797 = vunpack.c.l.b16 %v111
    %v798 = vunpack.c.h.b16 %v111
    %v799 = vunpack.c.l.b16 %v112
    %v800 = vunpack.c.h.b16 %v112
    %v801 = vunpack.c.l.b16 %v113
    %v802 = vunpack.c.h.b16 %v113
    %v803 = vunpack.c.l.b16 %v114
    %v804 = vunpack.c.h.b16 %v114
    %v805 = vunpack.c.l.b16 %v115
    %v806 = vunpack.c.h.b16 %v115
    %v807 = vunpack.c.l.b16 %v116
    %v808 = vunpack.c.h.b16 %v116
    %v809 = vpack.c.b16 %v749, %v745
    %v810 = vpack.c.b16 %v750, %v746
    %v811 = vpack.c.b16 %v751, %v747
    %v812 = vpack.c.b16 %v752, %v748
    %v813 = vpack.c.b16 %v757, %v753
    %v814 = vpack.c.b16 %v758, %v754
    %v815 = vpack.c.b16 %v759, %v755
    %v816 = vpack.c.b16 %v760, %v756
    %v817 = vpack.c.b16 %v765, %v761
    %v818 = vpack.c.b16 %v766, %v762
    %v819 = vpack.c.b16 %v767, %v763
    %v820 = vpack.c.b16 %v768, %v764
    %v821 = vpack.c.b16 %v773, %v769
    %v822 = vpack.c.b16 %v774, %v770
    %v823 = vpack.c.b16 %v775, %v771
    %v824 = vpack.c.b16 %v776, %v772
    %v825 = vpack.c.b16 %v781, %v777
    %v826 = vpack.c.b16 %v782, %v778
    %v827 = vpack.c.b16 %v783, %v779
    %v828 = vpack.c.b16 %v784, %v780
    %v829 = vpack.c.b16 %v789, %v785
    %v830 = vpack.c.b16 %v790, %v786
    %v831 = vpack.c.b16 %v791, %v787
    %v832 = vpack.c.b16 %v792, %v788
    %v833 = vpack.c.b16 %v797, %v793
    %v834 = vpack.c.b16 %v798, %v794
    %v835 = vpack.c.b16 %v799, %v795
    %v836 = vpack.c.b16 %v800, %v796
    %v837 = vpack.c.b16 %v805, %v801
    %v838 = vpack.c.b16 %v806, %v802
    %v839 = vpack.c.b16 %v807, %v803
    %v840 = vpack.c.b16 %v808, %v804
    %v1385 = vunpack.c.l.b16 %v117
    %v1386 = vunpack.c.h.b16 %v117
    %v1387 = vunpack.c.l.b16 %v118
    %v1388 = vunpack.c.h.b16 %v118
    %v1389 = vunpack.c.l.b16 %v119
    %v1390 = vunpack.c.h.b16 %v119
    %v1391 = vunpack.c.l.b16 %v120
    %v1392 = vunpack.c.h.b16 %v120
    %v1393 = vunpack.c.l.b16 %v121
    %v1394 = vunpack.c.h.b16 %v121
    %v1395 = vunpack.c.l.b16 %v122
    %v1396 = vunpack.c.h.b16 %v122
    %v1397 = vunpack.c.l.b16 %v123
    %v1398 = vunpack.c.h.b16 %v123
    %v1399 = vunpack.c.l.b16 %v124
    %v1400 = vunpack.c.h.b16 %v124
    %v1401 = vunpack.c.l.b16 %v125
    %v1402 = vunpack.c.h.b16 %v125
    %v1403 = vunpack.c.l.b16 %v126
    %v1404 = vunpack.c.h.b16 %v126
    %v1405 = vunpack.c.l.b16 %v127
    %v1406 = vunpack.c.h.b16 %v127
    %v1407 = vunpack.c.l.b16 %v128
    %v1408 = vunpack.c.h.b16 %v128
    %v1409 = vunpack.c.l.b16 %v129
    %v1410 = vunpack.c.h.b16 %v129
    %v1411 = vunpack.c.l.b16 %v130
    %v1412 = vunpack.c.h.b16 %v130
    %v1413 = vunpack.c.l.b16 %v131
    %v1414 = vunpack.c.h.b16 %v131
    %v1415 = vunpack.c.l.b16 %v132
    %v1416 = vunpack.c.h.b16 %v132
    %v1417 = vunpack.c.l.b16 %v133
    %v1418 = vunpack.c.h.b16 %v133
    %v1419 = vunpack.c.l.b16 %v134
    %v1420 = vunpack.c.h.b16 %v134
    %v1421 = vunpack.c.l.b16 %v135
    %v1422 = vunpack.c.h.b16 %v135
    %v1423 = vunpack.c.l.b16 %v136
    %v1424 = vunpack.c.h.b16 %v136
    %v1425 = vunpack.c.l.b16 %v137
    %v1426 = vunpack.c.h.b16 %v137
    %v1427 = vunpack.c.l.b16 %v138
    %v1428 = vunpack.c.h.b16 %v138
    %v1429 = vunpack.c.l.b16 %v139
    %v1430 = vunpack.c.h.b16 %v139
    %v1431 = vunpack.c.l.b16 %v140
    %v1432 = vunpack.c.h.b16 %v140
    %v1433 = vunpack.c.l.b16 %v141
    %v1434 = vunpack.c.h.b16 %v141
    %v1435 = vunpack.c.l.b16 %v142
    %v1436 = vunpack.c.h.b16 %v142
    %v1437 = vunpack.c.l.b16 %v143
    %v1438 = vunpack.c.h.b16 %v143
    %v1439 = vunpack.c.l.b16 %v144
    %v1440 = vunpack.c.h.b16 %v144
    %v1441 = vunpack.c.l.b16 %v145
    %v1442 = vunpack.c.h.b16 %v145
    %v1443 = vunpack.c.l.b16 %v146
    %v1444 = vunpack.c.h.b16 %v146
    %v1445 = vunpack.c.l.b16 %v147
    %v1446 = vunpack.c.h.b16 %v147
    %v1447 = vunpack.c.l.b16 %v148
    %v1448 = vunpack.c.h.b16 %v148
    %v1449 = vunpack.c.l.b16 %v149
    %v1450 = vunpack.c.h.b16 %v149
    %v1451 = vunpack.c.l.b16 %v150
    %v1452 = vunpack.c.h.b16 %v150
    %v1453 = vunpack.c.l.b16 %v151
    %v1454 = vunpack.c.h.b16 %v151
    %v1455 = vunpack.c.l.b16 %v152
    %v1456 = vunpack.c.h.b16 %v152
    %v1457 = vunpack.c.l.b16 %v153
    %v1458 = vunpack.c.h.b16 %v153
    %v1459 = vunpack.c.l.b16 %v154
    %v1460 = vunpack.c.h.b16 %v154
    %v1461 = vunpack.c.l.b16 %v155
    %v1462 = vunpack.c.h.b16 %v155
    %v1463 = vunpack.c.l.b16 %v156
    %v1464 = vunpack.c.h.b16 %v156
    %v1465 = vunpack.c.l.b16 %v157
    %v1466 = vunpack.c.h.b16 %v157
    %v1467 = vunpack.c.l.b16 %v158
    %v1468 = vunpack.c.h.b16 %v158
    %v1469 = vunpack.c.l.b16 %v159
    %v1470 = vunpack.c.h.b16 %v159
    %v1471 = vunpack.c.l.b16 %v160
    %v1472 = vunpack.c.h.b16 %v160
    %v1473 = vunpack.c.l.b16 %v161
    %v1474 = vunpack.c.h.b16 %v161
    %v1475 = vunpack.c.l.b16 %v162
    %v1476 = vunpack.c.h.b16 %v162
    %v1477 = vunpack.c.l.b16 %v163
    %v1478 = vunpack.c.h.b16 %v163
    %v1479 = vunpack.c.l.b16 %v164
    %v1480 = vunpack.c.h.b16 %v164
    %v1481 = vunpack.c.l.b16 %v165
    %v1482 = vunpack.c.h.b16 %v165
    %v1483 = vunpack.c.l.b16 %v166
    %v1484 = vunpack.c.h.b16 %v166
    %v1485 = vunpack.c.l.b16 %v167
    %v1486 = vunpack.c.h.b16 %v167
    %v1487 = vunpack.c.l.b16 %v168
    %v1488 = vunpack.c.h.b16 %v168
    %v1489 = vunpack.c.l.b16 %v169
    %v1490 = vunpack.c.h.b16 %v169
    %v1491 = vunpack.c.l.b16 %v170
    %v1492 = vunpack.c.h.b16 %v170
    %v1493 = vunpack.c.l.b16 %v171
    %v1494 = vunpack.c.h.b16 %v171
    %v1495 = vunpack.c.l.b16 %v172
    %v1496 = vunpack.c.h.b16 %v172
    %v1497 = vunpack.c.l.b16 %v173
    %v1498 = vunpack.c.h.b16 %v173
    %v1499 = vunpack.c.l.b16 %v174
    %v1500 = vunpack.c.h.b16 %v174
    %v1501 = vunpack.c.l.b16 %v175
    %v1502 = vunpack.c.h.b16 %v175
    %v1503 = vunpack.c.l.b16 %v176
    %v1504 = vunpack.c.h.b16 %v176
    %v1505 = vunpack.c.l.b16 %v177
    %v1506 = vunpack.c.h.b16 %v177
    %v1507 = vunpack.c.l.b16 %v178
    %v1508 = vunpack.c.h.b16 %v178
    %v1509 = vunpack.c.l.b16 %v179
    %v1510 = vunpack.c.h.b16 %v179
    %v1511 = vunpack.c.l.b16 %v180
    %v1512 = vunpack.c.h.b16 %v180
    %v1513 = vunpack.c.l.b16 %v181
    %v1514 = vunpack.c.h.b16 %v181
    %v1515 = vunpack.c.l.b16 %v182
    %v1516 = vunpack.c.h.b16 %v182
    %v1517 = vunpack.c.l.b16 %v183
    %v1518 = vunpack.c.h.b16 %v183
    %v1519 = vunpack.c.l.b16 %v184
    %v1520 = vunpack.c.h.b16 %v184
    %v1521 = vunpack.c.l.b16 %v185
    %v1522 = vunpack.c.h.b16 %v185
    %v1523 = vunpack.c.l.b16 %v186
    %v1524 = vunpack.c.h.b16 %v186
    %v1525 = vunpack.c.l.b16 %v187
    %v1526 = vunpack.c.h.b16 %v187
    %v1527 = vunpack.c.l.b16 %v188
    %v1528 = vunpack.c.h.b16 %v188
    %v1529 = vunpack.c.l.b16 %v189
    %v1530 = vunpack.c.h.b16 %v189
    %v1531 = vunpack.c.l.b16 %v190
    %v1532 = vunpack.c.h.b16 %v190
    %v1533 = vunpack.c.l.b16 %v191
    %v1534 = vunpack.c.h.b16 %v191
    %v1535 = vunpack.c.l.b16 %v192
    %v1536 = vunpack.c.h.b16 %v192
    %v1537 = vunpack.c.l.b16 %v193
    %v1538 = vunpack.c.h.b16 %v193
    %v1539 = vunpack.c.l.b16 %v194
    %v1540 = vunpack.c.h.b16 %v194
    %v1541 = vunpack.c.l.b16 %v195
    %v1542 = vunpack.c.h.b16 %v195
    %v1543 = vunpack.c.l.b16 %v196
    %v1544 = vunpack.c.h.b16 %v196
    %v1545 = vunpack.c.l.b16 %v197
    %v1546 = vunpack.c.h.b16 %v197
    %v1547 = vunpack.c.l.b16 %v198
    %v1548 = vunpack.c.h.b16 %v198
    %v1549 = vunpack.c.l.b16 %v199
    %v1550 = vunpack.c.h.b16 %v199
    %v1551 = vunpack.c.l.b16 %v200
    %v1552 = vunpack.c.h.b16 %v200
    %v1553 = vunpack.c.l.b16 %v201
    %v1554 = vunpack.c.h.b16 %v201
    %v1555 = vunpack.c.l.b16 %v202
    %v1556 = vunpack.c.h.b16 %v202
    %v1557 = vunpack.c.l.b16 %v203
    %v1558 = vunpack.c.h.b16 %v203
    %v1559 = vunpack.c.l.b16 %v204
    %v1560 = vunpack.c.h.b16 %v204
    %v1561 = vunpack.c.l.b16 %v205
    %v1562 = vunpack.c.h.b16 %v205
    %v1563 = vunpack.c.l.b16 %v206
    %v1564 = vunpack.c.h.b16 %v206
    %v1565 = vunpack.c.l.b16 %v207
    %v1566 = vunpack.c.h.b16 %v207
    %v1567 = vunpack.c.l.b16 %v208
    %v1568 = vunpack.c.h.b16 %v208
    %v1569 = vunpack.c.l.b16 %v209
    %v1570 = vunpack.c.h.b16 %v209
    %v1571 = vunpack.c.l.b16 %v210
    %v1572 = vunpack.c.h.b16 %v210
    %v1573 = vunpack.c.l.b16 %v211
    %v1574 = vunpack.c.h.b16 %v211
    %v1575 = vunpack.c.l.b16 %v212
    %v1576 = vunpack.c.h.b16 %v212
    %v1577 = vunpack.c.l.b16 %v213
    %v1578 = vunpack.c.h.b16 %v213
    %v1579 = vunpack.c.l.b16 %v214
    %v1580 = vunpack.c.h.b16 %v214
    %v1581 = vunpack.c.l.b16 %v215
    %v1582 = vunpack.c.h.b16 %v215
    %v1583 = vunpack.c.l.b16 %v216
    %v1584 = vunpack.c.h.b16 %v216
    %v1585 = vunpack.c.l.b16 %v217
    %v1586 = vunpack.c.h.b16 %v217
    %v1587 = vunpack.c.l.b16 %v218
    %v1588 = vunpack.c.h.b16 %v218
    %v1589 = vunpack.c.l.b16 %v219
    %v1590 = vunpack.c.h.b16 %v219
    %v1591 = vunpack.c.l.b16 %v220
    %v1592 = vunpack.c.h.b16 %v220
    %v1593 = vunpack.c.l.b16 %v221
    %v1594 = vunpack.c.h.b16 %v221
    %v1595 = vunpack.c.l.b16 %v222
    %v1596 = vunpack.c.h.b16 %v222
    %v1597 = vunpack.c.l.b16 %v223
    %v1598 = vunpack.c.h.b16 %v223
    %v1599 = vunpack.c.l.b16 %v224
    %v1600 = vunpack.c.h.b16 %v224
    %v1601 = vunpack.c.l.b16 %v225
    %v1602 = vunpack.c.h.b16 %v225
    %v1603 = vunpack.c.l.b16 %v226
    %v1604 = vunpack.c.h.b16 %v226
    %v1605 = vunpack.c.l.b16 %v227
    %v1606 = vunpack.c.h.b16 %v227
    %v1607 = vunpack.c.l.b16 %v228
    %v1608 = vunpack.c.h.b16 %v228
    %v1609 = vunpack.c.l.b16 %v229
    %v1610 = vunpack.c.h.b16 %v229
    %v1611 = vunpack.c.l.b16 %v230
    %v1612 = vunpack.c.h.b16 %v230
    %v1613 = vunpack.c.l.b16 %v231
    %v1614 = vunpack.c.h.b16 %v231
    %v1615 = vunpack.c.l.b16 %v232
    %v1616 = vunpack.c.h.b16 %v232
    %v1617 = vunpack.c.l.b16 %v233
    %v1618 = vunpack.c.h.b16 %v233
    %v1619 = vunpack.c.l.b16 %v234
    %v1620 = vunpack.c.h.b16 %v234
    %v1621 = vunpack.c.l.b16 %v235
    %v1622 = vunpack.c.h.b16 %v235
    %v1623 = vunpack.c.l.b16 %v236
    %v1624 = vunpack.c.h.b16 %v236
    %v1625 = vunpack.c.l.b16 %v237
    %v1626 = vunpack.c.h.b16 %v237
    %v1627 = vunpack.c.l.b16 %v238
    %v1628 = vunpack.c.h.b16 %v238
    %v1629 = vunpack.c.l.b16 %v239
    %v1630 = vunpack.c.h.b16 %v239
    %v1631 = vunpack.c.l.b16 %v240
    %v1632 = vunpack.c.h.b16 %v240
    %v1633 = vunpack.c.l.b16 %v241
    %v1634 = vunpack.c.h.b16 %v241
    %v1635 = vunpack.c.l.b16 %v242
    %v1636 = vunpack.c.h.b16 %v242
    %v1637 = vunpack.c.l.b16 %v243
    %v1638 = vunpack.c.h.b16 %v243
    %v1639 = vunpack.c.l.b16 %v244
    %v1640 = vunpack.c.h.b16 %v244
    %v1641 = vunpack.c.l.b16 %v245
    %v1642 = vunpack.c.h.b16 %v245
    %v1643 = vunpack.c.l.b16 %v246
    %v1644 = vunpack.c.h.b16 %v246
    %v1645 = vunpack.c.l.b16 %v247
    %v1646 = vunpack.c.h.b16 %v247
    %v1647 = vunpack.c.l.b16 %v248
    %v1648 = vunpack.c.h.b16 %v248
    %v1649 = vunpack.c.l.b16 %v249
    %v1650 = vunpack.c.h.b16 %v249
    %v1651 = vunpack.c.l.b16 %v250
    %v1652 = vunpack.c.h.b16 %v250
    %v1653 = vunpack.c.l.b16 %v251
    %v1654 = vunpack.c.h.b16 %v251
    %v1655 = vunpack.c.l.b16 %v252
    %v1656 = vunpack.c.h.b16 %v252
    %v1657 = vunpack.c.l.b16 %v253
    %v1658 = vunpack.c.h.b16 %v253
    %v1659 = vunpack.c.l.b16 %v254
    %v1660 = vunpack.c.h.b16 %v254
    %v1661 = vunpack.c.l.b16 %v255
    %v1662 = vunpack.c.h.b16 %v255
    %v1663 = vunpack.c.l.b16 %v256
    %v1664 = vunpack.c.h.b16 %v256
    %v1665 = vunpack.c.l.b16 %v257
    %v1666 = vunpack.c.h.b16 %v257
    %v1667 = vunpack.c.l.b16 %v258
    %v1668 = vunpack.c.h.b16 %v258
    %v1669 = vunpack.c.l.b16 %v259
    %v1670 = vunpack.c.h.b16 %v259
    %v1671 = vunpack.c.l.b16 %v260
    %v1672 = vunpack.c.h.b16 %v260
    %v1673 = vunpack.c.l.b16 %v261
    %v1674 = vunpack.c.h.b16 %v261
    %v1675 = vunpack.c.l.b16 %v262
    %v1676 = vunpack.c.h.b16 %v262
    %v1677 = vunpack.c.l.b16 %v263
    %v1678 = vunpack.c.h.b16 %v263
    %v1679 = vunpack.c.l.b16 %v264
    %v1680 = vunpack.c.h.b16 %v264
    %v1681 = vunpack.c.l.b16 %v265
    %v1682 = vunpack.c.h.b16 %v265
    %v1683 = vunpack.c.l.b16 %v266
    %v1684 = vunpack.c.h.b16 %v266
    %v1685 = vunpack.c.l.b16 %v267
    %v1686 = vunpack.c.h.b16 %v267
    %v1687 = vunpack.c.l.b16 %v268
    %v1688 = vunpack.c.h.b16 %v268
    %v1689 = vunpack.c.l.b16 %v269
    %v1690 = vunpack.c.h.b16 %v269
    %v1691 = vunpack.c.l.b16 %v270
    %v1692 = vunpack.c.h.b16 %v270
    %v1693 = vunpack.c.l.b16 %v271
    %v1694 = vunpack.c.h.b16 %v271
    %v1695 = vunpack.c.l.b16 %v272
    %v1696 = vunpack.c.h.b16 %v272
    %v1697 = vunpack.c.l.b16 %v273
    %v1698 = vunpack.c.h.b16 %v273
    %v1699 = vunpack.c.l.b16 %v274
    %v1700 = vunpack.c.h.b16 %v274
    %v1701 = vunpack.c.l.b16 %v275
    %v1702 = vunpack.c.h.b16 %v275
    %v1703 = vunpack.c.l.b16 %v276
    %v1704 = vunpack.c.h.b16 %v276
    %v1705 = vunpack.c.l.b16 %v277
    %v1706 = vunpack.c.h.b16 %v277
    %v1707 = vunpack.c.l.b16 %v278
    %v1708 = vunpack.c.h.b16 %v278
    %v1709 = vunpack.c.l.b16 %v279
    %v1710 = vunpack.c.h.b16 %v279
    %v1711 = vunpack.c.l.b16 %v280
    %v1712 = vunpack.c.h.b16 %v280
    %v1713 = vunpack.c.l.b16 %v281
    %v1714 = vunpack.c.h.b16 %v281
    %v1715 = vunpack.c.l.b16 %v282
    %v1716 = vunpack.c.h.b16 %v282
    %v1717 = vunpack.c.l.b16 %v283
    %v1718 = vunpack.c.h.b16 %v283
    %v1719 = vunpack.c.l.b16 %v284
    %v1720 = vunpack.c.h.b16 %v284
    %v1721 = vunpack.c.l.b16 %v285
    %v1722 = vunpack.c.h.b16 %v285
    %v1723 = vunpack.c.l.b16 %v286
    %v1724 = vunpack.c.h.b16 %v286
    %v1725 = vunpack.c.l.b16 %v287
    %v1726 = vunpack.c.h.b16 %v287
    %v1727 = vunpack.c.l.b16 %v288
    %v1728 = vunpack.c.h.b16 %v288
    %v1729 = vunpack.c.l.b16 %v289
    %v1730 = vunpack.c.h.b16 %v289
    %v1731 = vunpack.c.l.b16 %v290
    %v1732 = vunpack.c.h.b16 %v290
    %v1733 = vunpack.c.l.b16 %v291
    %v1734 = vunpack.c.h.b16 %v291
    %v1735 = vunpack.c.l.b16 %v292
    %v1736 = vunpack.c.h.b16 %v292
    %v1737 = vunpack.c.l.b16 %v293
    %v1738 = vunpack.c.h.b16 %v293
    %v1739 = vunpack.c.l.b16 %v294
    %v1740 = vunpack.c.h.b16 %v294
    %v1741 = vunpack.c.l.b16 %v295
    %v1742 = vunpack.c.h.b16 %v295
    %v1743 = vunpack.c.l.b16 %v296
    %v1744 = vunpack.c.h.b16 %v296
    %v1745 = vunpack.c.l.b16 %v297
    %v1746 = vunpack.c.h.b16 %v297
    %v1747 = vunpack.c.l.b16 %v298
    %v1748 = vunpack.c.h.b16 %v298
    %v1749 = vunpack.c.l.b16 %v299
    %v1750 = vunpack.c.h.b16 %v299
    %v1751 = vunpack.c.l.b16 %v300
    %v1752 = vunpack.c.h.b16 %v300
    %v1753 = vunpack.c.l.b16 %v301
    %v1754 = vunpack.c.h.b16 %v301
    %v1755 = vunpack.c.l.b16 %v302
    %v1756 = vunpack.c.h.b16 %v302
    %v1757 = vunpack.c.l.b16 %v303
    %v1758 = vunpack.c.h.b16 %v303
    %v1759 = vunpack.c.l.b16 %v304
    %v1760 = vunpack.c.h.b16 %v304
    %v1761 = vunpack.c.l.b16 %v305
    %v1762 = vunpack.c.h.b16 %v305
    %v1763 = vunpack.c.l.b16 %v306
    %v1764 = vunpack.c.h.b16 %v306
    %v1765 = vunpack.c.l.b16 %v307
    %v1766 = vunpack.c.h.b16 %v307
    %v1767 = vunpack.c.l.b16 %v308
    %v1768 = vunpack.c.h.b16 %v308
    %v1769 = vunpack.c.l.b16 %v309
    %v1770 = vunpack.c.h.b16 %v309
    %v1771 = vunpack.c.l.b16 %v310
    %v1772 = vunpack.c.h.b16 %v310
    %v1773 = vunpack.c.l.b16 %v311
    %v1774 = vunpack.c.h.b16 %v311
    %v1775 = vunpack.c.l.b16 %v312
    %v1776 = vunpack.c.h.b16 %v312
    %v1777 = vunpack.c.l.b16 %v313
    %v1778 = vunpack.c.h.b16 %v313
    %v1779 = vunpack.c.l.b16 %v314
    %v1780 = vunpack.c.h.b16 %v314
    %v1781 = vunpack.c.l.b16 %v315
    %v1782 = vunpack.c.h.b16 %v315
    %v1783 = vunpack.c.l.b16 %v316
    %v1784 = vunpack.c.h.b16 %v316
    %v1785 = vunpack.c.l.b16 %v317
    %v1786 = vunpack.c.h.b16 %v317
    %v1787 = vunpack.c.l.b16 %v318
    %v1788 = vunpack.c.h.b16 %v318
    %v1789 = vunpack.c.l.b16 %v319
    %v1790 = vunpack.c.h.b16 %v319
    %v1791 = vunpack.c.l.b16 %v320
    %v1792 = vunpack.c.h.b16 %v320
    %v1793 = vunpack.c.l.b16 %v321
    %v1794 = vunpack.c.h.b16 %v321
    %v1795 = vunpack.c.l.b16 %v322
    %v1796 = vunpack.c.h.b16 %v322
    %v1797 = vunpack.c.l.b16 %v323
    %v1798 = vunpack.c.h.b16 %v323
    %v1799 = vunpack.c.l.b16 %v324
    %v1800 = vunpack.c.h.b16 %v324
    %v1801 = vunpack.c.l.b16 %v325
    %v1802 = vunpack.c.h.b16 %v325
    %v1803 = vunpack.c.l.b16 %v326
    %v1804 = vunpack.c.h.b16 %v326
    %v1805 = vunpack.c.l.b16 %v327
    %v1806 = vunpack.c.h.b16 %v327
    %v1807 = vunpack.c.l.b16 %v328
    %v1808 = vunpack.c.h.b16 %v328
    %v1809 = vunpack.c.l.b16 %v329
    %v1810 = vunpack.c.h.b16 %v329
    %v1811 = vunpack.c.l.b16 %v330
    %v1812 = vunpack.c.h.b16 %v330
    %v1813 = vunpack.c.l.b16 %v331
    %v1814 = vunpack.c.h.b16 %v331
    %v1815 = vunpack.c.l.b16 %v332
    %v1816 = vunpack.c.h.b16 %v332
    %v1817 = vunpack.c.l.b16 %v333
    %v1818 = vunpack.c.h.b16 %v333
    %v1819 = vunpack.c.l.b16 %v334
    %v1820 = vunpack.c.h.b16 %v334
    %v1821 = vunpack.c.l.b16 %v335
    %v1822 = vunpack.c.h.b16 %v335
    %v1823 = vunpack.c.l.b16 %v336
    %v1824 = vunpack.c.h.b16 %v336
    %v1825 = vunpack.c.l.b16 %v337
    %v1826 = vunpack.c.h.b16 %v337
    %v1827 = vunpack.c.l.b16 %v338
    %v1828 = vunpack.c.h.b16 %v338
    %v1829 = vunpack.c.l.b16 %v339
    %v1830 = vunpack.c.h.b16 %v339
    %v1831 = vunpack.c.l.b16 %v340
    %v1832 = vunpack.c.h.b16 %v340
    %v1833 = vunpack.c.l.b16 %v341
    %v1834 = vunpack.c.h.b16 %v341
    %v1835 = vunpack.c.l.b16 %v342
    %v1836 = vunpack.c.h.b16 %v342
    %v1837 = vunpack.c.l.b16 %v343
    %v1838 = vunpack.c.h.b16 %v343
    %v1839 = vunpack.c.l.b16 %v344
    %v1840 = vunpack.c.h.b16 %v344
    %v1841 = vunpack.c.l.b16 %v345
    %v1842 = vunpack.c.h.b16 %v345
    %v1843 = vunpack.c.l.b16 %v346
    %v1844 = vunpack.c.h.b16 %v346
    %v1845 = vunpack.c.l.b16 %v347
    %v1846 = vunpack.c.h.b16 %v347
    %v1847 = vunpack.c.l.b16 %v348
    %v1848 = vunpack.c.h.b16 %v348
    %v1849 = vunpack.c.l.b16 %v349
    %v1850 = vunpack.c.h.b16 %v349
    %v1851 = vunpack.c.l.b16 %v350
    %v1852 = vunpack.c.h.b16 %v350
    %v1853 = vunpack.c.l.b16 %v351
    %v1854 = vunpack.c.h.b16 %v351
    %v1855 = vunpack.c.l.b16 %v352
    %v1856 = vunpack.c.h.b16 %v352
    %v1857 = vunpack.c.l.b16 %v353
    %v1858 = vunpack.c.h.b16 %v353
    %v1859 = vunpack.c.l.b16 %v354
    %v1860 = vunpack.c.h.b16 %v354
    %v1861 = vunpack.c.l.b16 %v355
    %v1862 = vunpack.c.h.b16 %v355
    %v1863 = vunpack.c.l.b16 %v356
    %v1864 = vunpack.c.h.b16 %v356
    %v1865 = vunpack.c.l.b16 %v357
    %v1866 = vunpack.c.h.b16 %v357
    %v1867 = vunpack.c.l.b16 %v358
    %v1868 = vunpack.c.h.b16 %v358
    %v1869 = vunpack.c.l.b16 %v359
    %v1870 = vunpack.c.h.b16 %v359
    %v1871 = vunpack.c.l.b16 %v360
    %v1872 = vunpack.c.h.b16 %v360
    %v1873 = vunpack.c.l.b16 %v361
    %v1874 = vunpack.c.h.b16 %v361
    %v1875 = vunpack.c.l.b16 %v362
    %v1876 = vunpack.c.h.b16 %v362
    %v1877 = vunpack.c.l.b16 %v363
    %v1878 = vunpack.c.h.b16 %v363
    %v1879 = vunpack.c.l.b16 %v364
    %v1880 = vunpack.c.h.b16 %v364
    %v1881 = vunpack.c.l.b16 %v365
    %v1882 = vunpack.c.h.b16 %v365
    %v1883 = vunpack.c.l.b16 %v366
    %v1884 = vunpack.c.h.b16 %v366
    %v1885 = vunpack.c.l.b16 %v367
    %v1886 = vunpack.c.h.b16 %v367
    %v1887 = vunpack.c.l.b16 %v368
    %v1888 = vunpack.c.h.b16 %v368
    %v1889 = vunpack.c.l.b16 %v369
    %v1890 = vunpack.c.h.b16 %v369
    %v1891 = vunpack.c.l.b16 %v370
    %v1892 = vunpack.c.h.b16 %v370
    %v1893 = vunpack.c.l.b16 %v371
    %v1894 = vunpack.c.h.b16 %v371
    %v1895 = vunpack.c.l.b16 %v372
    %v1896 = vunpack.c.h.b16 %v372
    %v1897 = vunpack.c.l.b16 %v373
    %v1898 = vunpack.c.h.b16 %v373
    %v1899 = vunpack.c.l.b16 %v374
    %v1900 = vunpack.c.h.b16 %v374
    %v1901 = vunpack.c.l.b16 %v375
    %v1902 = vunpack.c.h.b16 %v375
    %v1903 = vunpack.c.l.b16 %v376
    %v1904 = vunpack.c.h.b16 %v376
    %v1905 = vunpack.c.l.b16 %v377
    %v1906 = vunpack.c.h.b16 %v377
    %v1907 = vunpack.c.l.b16 %v378
    %v1908 = vunpack.c.h.b16 %v378
    %v1909 = vunpack.c.l.b16 %v379
    %v1910 = vunpack.c.h.b16 %v379
    %v1911 = vunpack.c.l.b16 %v380
    %v1912 = vunpack.c.h.b16 %v380
    %v1913 = vunpack.c.l.b16 %v381
    %v1914 = vunpack.c.h.b16 %v381
    %v1915 = vunpack.c.l.b16 %v382
    %v1916 = vunpack.c.h.b16 %v382
    %v1917 = vunpack.c.l.b16 %v383
    %v1918 = vunpack.c.h.b16 %v383
    %v1919 = vunpack.c.l.b16 %v384
    %v1920 = vunpack.c.h.b16 %v384
    %v1921 = vunpack.c.l.b16 %v385
    %v1922 = vunpack.c.h.b16 %v385
    %v1923 = vunpack.c.l.b16 %v386
    %v1924 = vunpack.c.h.b16 %v386
    %v1925 = vunpack.c.l.b16 %v387
    %v1926 = vunpack.c.h.b16 %v387
    %v1927 = vunpack.c.l.b16 %v388
    %v1928 = vunpack.c.h.b16 %v388
    %v1929 = vunpack.c.l.b16 %v389
    %v1930 = vunpack.c.h.b16 %v389
    %v1931 = vunpack.c.l.b16 %v390
    %v1932 = vunpack.c.h.b16 %v390
    %v1933 = vunpack.c.l.b16 %v391
    %v1934 = vunpack.c.h.b16 %v391
    %v1935 = vunpack.c.l.b16 %v392
    %v1936 = vunpack.c.h.b16 %v392
    %v1937 = vunpack.c.l.b16 %v393
    %v1938 = vunpack.c.h.b16 %v393
    %v1939 = vunpack.c.l.b16 %v394
    %v1940 = vunpack.c.h.b16 %v394
    %v1941 = vunpack.c.l.b16 %v395
    %v1942 = vunpack.c.h.b16 %v395
    %v1943 = vunpack.c.l.b16 %v396
    %v1944 = vunpack.c.h.b16 %v396
    %v1945 = vunpack.c.l.b16 %v397
    %v1946 = vunpack.c.h.b16 %v397
    %v1947 = vunpack.c.l.b16 %v398
    %v1948 = vunpack.c.h.b16 %v398
    %v1949 = vunpack.c.l.b16 %v399
    %v1950 = vunpack.c.h.b16 %v399
    %v1951 = vunpack.c.l.b16 %v400
    %v1952 = vunpack.c.h.b16 %v400
    %v1953 = vunpack.c.l.b16 %v401
    %v1954 = vunpack.c.h.b16 %v401
    %v1955 = vunpack.c.l.b16 %v402
    %v1956 = vunpack.c.h.b16 %v402
    %v1957 = vunpack.c.l.b16 %v403
    %v1958 = vunpack.c.h.b16 %v403
    %v1959 = vunpack.c.l.b16 %v404
    %v1960 = vunpack.c.h.b16 %v404
    %v1961 = vunpack.c.l.b16 %v405
    %v1962 = vunpack.c.h.b16 %v405
    %v1963 = vunpack.c.l.b16 %v406
    %v1964 = vunpack.c.h.b16 %v406
    %v1965 = vunpack.c.l.b16 %v407
    %v1966 = vunpack.c.h.b16 %v407
    %v1967 = vunpack.c.l.b16 %v408
    %v1968 = vunpack.c.h.b16 %v408
    %v1969 = vunpack.c.l.b16 %v409
    %v1970 = vunpack.c.h.b16 %v409
    %v1971 = vunpack.c.l.b16 %v410
    %v1972 = vunpack.c.h.b16 %v410
    %v1973 = vunpack.c.l.b16 %v411
    %v1974 = vunpack.c.h.b16 %v411
    %v1975 = vunpack.c.l.b16 %v412
    %v1976 = vunpack.c.h.b16 %v412
    %v1977 = vunpack.c.l.b16 %v413
    %v1978 = vunpack.c.h.b16 %v413
    %v1979 = vunpack.c.l.b16 %v414
    %v1980 = vunpack.c.h.b16 %v414
    %v1981 = vunpack.c.l.b16 %v415
    %v1982 = vunpack.c.h.b16 %v415
    %v1983 = vunpack.c.l.b16 %v416
    %v1984 = vunpack.c.h.b16 %v416
    %v1985 = vunpack.c.l.b16 %v417
    %v1986 = vunpack.c.h.b16 %v417
    %v1987 = vunpack.c.l.b16 %v418
    %v1988 = vunpack.c.h.b16 %v418
    %v1989 = vunpack.c.l.b16 %v419
    %v1990 = vunpack.c.h.b16 %v419
    %v1991 = vunpack.c.l.b16 %v420
    %v1992 = vunpack.c.h.b16 %v420
    %v1993 = vunpack.c.l.b16 %v421
    %v1994 = vunpack.c.h.b16 %v421
    %v1995 = vunpack.c.l.b16 %v422
    %v1996 = vunpack.c.h.b16 %v422
    %v1997 = vunpack.c.l.b16 %v423
    %v1998 = vunpack.c.h.b16 %v423
    %v1999 = vunpack.c.l.b16 %v424
    %v2000 = vunpack.c.h.b16 %v424
    %v2001 = vunpack.c.l.b16 %v425
    %v2002 = vunpack.c.h.b16 %v425
    %v2003 = vunpack.c.l.b16 %v426
    %v2004 = vunpack.c.h.b16 %v426
    %v2005 = vunpack.c.l.b16 %v427
    %v2006 = vunpack.c.h.b16 %v427
    %v2007 = vunpack.c.l.b16 %v428
    %v2008 = vunpack.c.h.b16 %v428
    %v2009 = vunpack.c.l.b16 %v429
    %v2010 = vunpack.c.h.b16 %v429
    %v2011 = vunpack.c.l.b16 %v430
    %v2012 = vunpack.c.h.b16 %v430
    %v2013 = vunpack.c.l.b16 %v431
    %v2014 = vunpack.c.h.b16 %v431
    %v2015 = vunpack.c.l.b16 %v432
    %v2016 = vunpack.c.h.b16 %v432
    %v2017 = vunpack.c.l.b16 %v433
    %v2018 = vunpack.c.h.b16 %v433
    %v2019 = vunpack.c.l.b16 %v434
    %v2020 = vunpack.c.h.b16 %v434
    %v2021 = vunpack.c.l.b16 %v435
    %v2022 = vunpack.c.h.b16 %v435
    %v2023 = vunpack.c.l.b16 %v436
    %v2024 = vunpack.c.h.b16 %v436
    %v2025 = vunpack.c.l.b16 %v437
    %v2026 = vunpack.c.h.b16 %v437
    %v2027 = vunpack.c.l.b16 %v438
    %v2028 = vunpack.c.h.b16 %v438
    %v2029 = vunpack.c.l.b16 %v439
    %v2030 = vunpack.c.h.b16 %v439
    %v2031 = vunpack.c.l.b16 %v440
    %v2032 = vunpack.c.h.b16 %v440
    %v2033 = vunpack.c.l.b16 %v441
    %v2034 = vunpack.c.h.b16 %v441
    %v2035 = vunpack.c.l.b16 %v442
    %v2036 = vunpack.c.h.b16 %v442
    %v2037 = vunpack.c.l.b16 %v443
    %v2038 = vunpack.c.h.b16 %v443
    %v2039 = vunpack.c.l.b16 %v444
    %v2040 = vunpack.c.h.b16 %v444
    %v2041 = vunpack.c.l.b16 %v445
    %v2042 = vunpack.c.h.b16 %v445
    %v2043 = vunpack.c.l.b16 %v446
    %v2044 = vunpack.c.h.b16 %v446
    %v2045 = vunpack.c.l.b16 %v447
    %v2046 = vunpack.c.h.b16 %v447
    %v2047 = vunpack.c.l.b16 %v448
    %v2048 = vunpack.c.h.b16 %v448
    %v2049 = vunpack.c.l.b16 %v449
    %v2050 = vunpack.c.h.b16 %v449
    %v2051 = vunpack.c.l.b16 %v450
    %v2052 = vunpack.c.h.b16 %v450
    %v2053 = vunpack.c.l.b16 %v451
    %v2054 = vunpack.c.h.b16 %v451
    %v2055 = vunpack.c.l.b16 %v452
    %v2056 = vunpack.c.h.b16 %v452
    %v2057 = vunpack.c.l.b16 %v453
    %v2058 = vunpack.c.h.b16 %v453
    %v2059 = vunpack.c.l.b16 %v454
    %v2060 = vunpack.c.h.b16 %v454
    %v2061 = vunpack.c.l.b16 %v455
    %v2062 = vunpack.c.h.b16 %v455
    %v2063 = vunpack.c.l.b16 %v456
    %v2064 = vunpack.c.h.b16 %v456
    %v2065 = vunpack.c.l.b16 %v457
    %v2066 = vunpack.c.h.b16 %v457
    %v2067 = vunpack.c.l.b16 %v458
    %v2068 = vunpack.c.h.b16 %v458
    %v2069 = vunpack.c.l.b16 %v459
    %v2070 = vunpack.c.h.b16 %v459
    %v2071 = vunpack.c.l.b16 %v460
    %v2072 = vunpack.c.h.b16 %v460
    %v2073 = vunpack.c.l.b16 %v461
    %v2074 = vunpack.c.h.b16 %v461
    %v2075 = vunpack.c.l.b16 %v462
    %v2076 = vunpack.c.h.b16 %v462
    %v2077 = vunpack.c.l.b16 %v463
    %v2078 = vunpack.c.h.b16 %v463
    %v2079 = vunpack.c.l.b16 %v464
    %v2080 = vunpack.c.h.b16 %v464
    %v2081 = vunpack.c.l.b16 %v465
    %v2082 = vunpack.c.h.b16 %v465
    %v2083 = vunpack.c.l.b16 %v466
    %v2084 = vunpack.c.h.b16 %v466
    %v2085 = vunpack.c.l.b16 %v467
    %v2086 = vunpack.c.h.b16 %v467
    %v2087 = vunpack.c.l.b16 %v468
    %v2088 = vunpack.c.h.b16 %v468
    %v2089 = vunpack.c.l.b16 %v469
    %v2090 = vunpack.c.h.b16 %v469
    %v2091 = vunpack.c.l.b16 %v470
    %v2092 = vunpack.c.h.b16 %v470
    %v2093 = vunpack.c.l.b16 %v471
    %v2094 = vunpack.c.h.b16 %v471
    %v2095 = vunpack.c.l.b16 %v472
    %v2096 = vunpack.c.h.b16 %v472
    %v2097 = vunpack.c.l.b16 %v473
    %v2098 = vunpack.c.h.b16 %v473
    %v2099 = vunpack.c.l.b16 %v474
    %v2100 = vunpack.c.h.b16 %v474
    %v2101 = vunpack.c.l.b16 %v475
    %v2102 = vunpack.c.h.b16 %v475
    %v2103 = vunpack.c.l.b16 %v476
    %v2104 = vunpack.c.h.b16 %v476
    %v2105 = vunpack.c.l.b16 %v477
    %v2106 = vunpack.c.h.b16 %v477
    %v2107 = vunpack.c.l.b16 %v478
    %v2108 = vunpack.c.h.b16 %v478
    %v2109 = vunpack.c.l.b16 %v479
    %v2110 = vunpack.c.h.b16 %v479
    %v2111 = vunpack.c.l.b16 %v480
    %v2112 = vunpack.c.h.b16 %v480
    %v2113 = vunpack.c.l.b16 %v481
    %v2114 = vunpack.c.h.b16 %v481
    %v2115 = vunpack.c.l.b16 %v482
    %v2116 = vunpack.c.h.b16 %v482
    %v2117 = vunpack.c.l.b16 %v483
    %v2118 = vunpack.c.h.b16 %v483
    %v2119 = vunpack.c.l.b16 %v484
    %v2120 = vunpack.c.h.b16 %v484
    %v2121 = vunpack.c.l.b16 %v485
    %v2122 = vunpack.c.h.b16 %v485
    %v2123 = vunpack.c.l.b16 %v486
    %v2124 = vunpack.c.h.b16 %v486
    %v2125 = vunpack.c.l.b16 %v487
    %v2126 = vunpack.c.h.b16 %v487
    %v2127 = vunpack.c.l.b16 %v488
    %v2128 = vunpack.c.h.b16 %v488
    %v2129 = vunpack.c.l.b16 %v489
    %v2130 = vunpack.c.h.b16 %v489
    %v2131 = vunpack.c.l.b16 %v490
    %v2132 = vunpack.c.h.b16 %v490
    %v2133 = vunpack.c.l.b16 %v491
    %v2134 = vunpack.c.h.b16 %v491
    %v2135 = vunpack.c.l.b16 %v492
    %v2136 = vunpack.c.h.b16 %v492
    %v2137 = vunpack.c.l.b16 %v493
    %v2138 = vunpack.c.h.b16 %v493
    %v2139 = vunpack.c.l.b16 %v494
    %v2140 = vunpack.c.h.b16 %v494
    %v2141 = vunpack.c.l.b16 %v495
    %v2142 = vunpack.c.h.b16 %v495
    %v2143 = vunpack.c.l.b16 %v496
    %v2144 = vunpack.c.h.b16 %v496
    %v2145 = vunpack.c.l.b16 %v497
    %v2146 = vunpack.c.h.b16 %v497
    %v2147 = vunpack.c.l.b16 %v498
    %v2148 = vunpack.c.h.b16 %v498
    %v2149 = vunpack.c.l.b16 %v499
    %v2150 = vunpack.c.h.b16 %v499
    %v2151 = vunpack.c.l.b16 %v500
    %v2152 = vunpack.c.h.b16 %v500
    %v2153 = vunpack.c.l.b16 %v501
    %v2154 = vunpack.c.h.b16 %v501
    %v2155 = vunpack.c.l.b16 %v502
    %v2156 = vunpack.c.h.b16 %v502
    %v2157 = vunpack.c.l.b16 %v503
    %v2158 = vunpack.c.h.b16 %v503
    %v2159 = vunpack.c.l.b16 %v504
    %v2160 = vunpack.c.h.b16 %v504
    %v2161 = vunpack.c.l.b16 %v505
    %v2162 = vunpack.c.h.b16 %v505
    %v2163 = vunpack.c.l.b16 %v506
    %v2164 = vunpack.c.h.b16 %v506
    %v2165 = vunpack.c.l.b16 %v507
    %v2166 = vunpack.c.h.b16 %v507
    %v2167 = vunpack.c.l.b16 %v508
    %v2168 = vunpack.c.h.b16 %v508
    %v2169 = vunpack.c.l.b16 %v509
    %v2170 = vunpack.c.h.b16 %v509
    %v2171 = vunpack.c.l.b16 %v510
    %v2172 = vunpack.c.h.b16 %v510
    %v2173 = vunpack.c.l.b16 %v511
    %v2174 = vunpack.c.h.b16 %v511
    %v2175 = vunpack.c.l.b16 %v512
    %v2176 = vunpack.c.h.b16 %v512
    %v2177 = vunpack.c.l.b16 %v513
    %v2178 = vunpack.c.h.b16 %v513
    %v2179 = vunpack.c.l.b16 %v514
    %v2180 = vunpack.c.h.b16 %v514
    %v2181 = vunpack.c.l.b16 %v515
    %v2182 = vunpack.c.h.b16 %v515
    %v2183 = vunpack.c.l.b16 %v516
    %v2184 = vunpack.c.h.b16 %v516
    %v2185 = vunpack.c.l.b16 %v517
    %v2186 = vunpack.c.h.b16 %v517
    %v2187 = vunpack.c.l.b16 %v518
    %v2188 = vunpack.c.h.b16 %v518
    %v2189 = vunpack.c.l.b16 %v519
    %v2190 = vunpack.c.h.b16 %v519
    %v2191 = vunpack.c.l.b16 %v520
    %v2192 = vunpack.c.h.b16 %v520
    %v2193 = vunpack.c.l.b16 %v521
    %v2194 = vunpack.c.h.b16 %v521
    %v2195 = vunpack.c.l.b16 %v522
    %v2196 = vunpack.c.h.b16 %v522
    %v2197 = vunpack.c.l.b16 %v523
    %v2198 = vunpack.c.h.b16 %v523
    %v2199 = vunpack.c.l.b16 %v524
    %v2200 = vunpack.c.h.b16 %v524
    %v2201 = vunpack.c.l.b16 %v525
    %v2202 = vunpack.c.h.b16 %v525
    %v2203 = vunpack.c.l.b16 %v526
    %v2204 = vunpack.c.h.b16 %v526
    %v2205 = vunpack.c.l.b16 %v527
    %v2206 = vunpack.c.h.b16 %v527
    %v2207 = vunpack.c.l.b16 %v528
    %v2208 = vunpack.c.h.b16 %v528
    %v2209 = vunpack.c.l.b16 %v529
    %v2210 = vunpack.c.h.b16 %v529
    %v2211 = vunpack.c.l.b16 %v530
    %v2212 = vunpack.c.h.b16 %v530
    %v2213 = vunpack.c.l.b16 %v531
    %v2214 = vunpack.c.h.b16 %v531
    %v2215 = vunpack.c.l.b16 %v532
    %v2216 = vunpack.c.h.b16 %v532
    %v2217 = vunpack.c.l.b16 %v533
    %v2218 = vunpack.c.h.b16 %v533
    %v2219 = vunpack.c.l.b16 %v534
    %v2220 = vunpack.c.h.b16 %v534
    %v2221 = vunpack.c.l.b16 %v535
    %v2222 = vunpack.c.h.b16 %v535
    %v2223 = vunpack.c.l.b16 %v536
    %v2224 = vunpack.c.h.b16 %v536
    %v2225 = vunpack.c.l.b16 %v537
    %v2226 = vunpack.c.h.b16 %v537
    %v2227 = vunpack.c.l.b16 %v538
    %v2228 = vunpack.c.h.b16 %v538
    %v2229 = vunpack.c.l.b16 %v539
    %v2230 = vunpack.c.h.b16 %v539
    %v2231 = vunpack.c.l.b16 %v540
    %v2232 = vunpack.c.h.b16 %v540
    %v2233 = vunpack.c.l.b16 %v541
    %v2234 = vunpack.c.h.b16 %v541
    %v2235 = vunpack.c.l.b16 %v542
    %v2236 = vunpack.c.h.b16 %v542
    %v2237 = vunpack.c.l.b16 %v543
    %v2238 = vunpack.c.h.b16 %v543
    %v2239 = vunpack.c.l.b16 %v544
    %v2240 = vunpack.c.h.b16 %v544
    %v2241 = vunpack.c.l.b16 %v545
    %v2242 = vunpack.c.h.b16 %v545
    %v2243 = vunpack.c.l.b16 %v546
    %v2244 = vunpack.c.h.b16 %v546
    %v2245 = vunpack.c.l.b16 %v547
    %v2246 = vunpack.c.h.b16 %v547
    %v2247 = vunpack.c.l.b16 %v548
    %v2248 = vunpack.c.h.b16 %v548
    %v2249 = vunpack.c.l.b16 %v549
    %v2250 = vunpack.c.h.b16 %v549
    %v2251 = vunpack.c.l.b16 %v550
    %v2252 = vunpack.c.h.b16 %v550
    %v2253 = vunpack.c.l.b16 %v551
    %v2254 = vunpack.c.h.b16 %v551
    %v2255 = vunpack.c.l.b16 %v552
    %v2256 = vunpack.c.h.b16 %v552
    %v2257 = vunpack.c.l.b16 %v553
    %v2258 = vunpack.c.h.b16 %v553
    %v2259 = vunpack.c.l.b16 %v554
    %v2260 = vunpack.c.h.b16 %v554
    %v2261 = vunpack.c.l.b16 %v555
    %v2262 = vunpack.c.h.b16 %v555
    %v2263 = vunpack.c.l.b16 %v556
    %v2264 = vunpack.c.h.b16 %v556
    %v2265 = vunpack.c.l.b16 %v557
    %v2266 = vunpack.c.h.b16 %v557
    %v2267 = vunpack.c.l.b16 %v558
    %v2268 = vunpack.c.h.b16 %v558
    %v2269 = vunpack.c.l.b16 %v559
    %v2270 = vunpack.c.h.b16 %v559
    %v2271 = vunpack.c.l.b16 %v560
    %v2272 = vunpack.c.h.b16 %v560
    %v2273 = vunpack.c.l.b16 %v561
    %v2274 = vunpack.c.h.b16 %v561
    %v2275 = vunpack.c.l.b16 %v562
    %v2276 = vunpack.c.h.b16 %v562
    %v2277 = vunpack.c.l.b16 %v563
    %v2278 = vunpack.c.h.b16 %v563
    %v2279 = vunpack.c.l.b16 %v564
    %v2280 = vunpack.c.h.b16 %v564
    %v2281 = vunpack.c.l.b16 %v565
    %v2282 = vunpack.c.h.b16 %v565
    %v2283 = vunpack.c.l.b16 %v566
    %v2284 = vunpack.c.h.b16 %v566
    %v2285 = vunpack.c.l.b16 %v567
    %v2286 = vunpack.c.h.b16 %v567
    %v2287 = vunpack.c.l.b16 %v568
    %v2288 = vunpack.c.h.b16 %v568
    %v2289 = vunpack.c.l.b16 %v569
    %v2290 = vunpack.c.h.b16 %v569
    %v2291 = vunpack.c.l.b16 %v570
    %v2292 = vunpack.c.h.b16 %v570
    %v2293 = vunpack.c.l.b16 %v571
    %v2294 = vunpack.c.h.b16 %v571
    %v2295 = vunpack.c.l.b16 %v572
    %v2296 = vunpack.c.h.b16 %v572
    %v2297 = vunpack.c.l.b16 %v573
    %v2298 = vunpack.c.h.b16 %v573
    %v2299 = vunpack.c.l.b16 %v574
    %v2300 = vunpack.c.h.b16 %v574
    %v2301 = vunpack.c.l.b16 %v575
    %v2302 = vunpack.c.h.b16 %v575
    %v2303 = vunpack.c.l.b16 %v576
    %v2304 = vunpack.c.h.b16 %v576
    %v2305 = vunpack.c.l.b16 %v577
    %v2306 = vunpack.c.h.b16 %v577
    %v2307 = vunpack.c.l.b16 %v578
    %v2308 = vunpack.c.h.b16 %v578
    %v2309 = vunpack.c.l.b16 %v579
    %v2310 = vunpack.c.h.b16 %v579
    %v2311 = vunpack.c.l.b16 %v580
    %v2312 = vunpack.c.h.b16 %v580
    %v2313 = vunpack.c.l.b16 %v581
    %v2314 = vunpack.c.h.b16 %v581
    %v2315 = vunpack.c.l.b16 %v582
    %v2316 = vunpack.c.h.b16 %v582
    %v2317 = vunpack.c.l.b16 %v583
    %v2318 = vunpack.c.h.b16 %v583
    %v2319 = vunpack.c.l.b16 %v584
    %v2320 = vunpack.c.h.b16 %v584
    %v2321 = vunpack.c.l.b16 %v585
    %v2322 = vunpack.c.h.b16 %v585
    %v2323 = vunpack.c.l.b16 %v586
    %v2324 = vunpack.c.h.b16 %v586
    %v2325 = vunpack.c.l.b16 %v587
    %v2326 = vunpack.c.h.b16 %v587
    %v2327 = vunpack.c.l.b16 %v588
    %v2328 = vunpack.c.h.b16 %v588
    %v2329 = vunpack.c.l.b16 %v589
    %v2330 = vunpack.c.h.b16 %v589
    %v2331 = vunpack.c.l.b16 %v590
    %v2332 = vunpack.c.h.b16 %v590
    %v2333 = vunpack.c.l.b16 %v591
    %v2334 = vunpack.c.h.b16 %v591
    %v2335 = vunpack.c.l.b16 %v592
    %v2336 = vunpack.c.h.b16 %v592
    %v2337 = vunpack.c.l.b16 %v593
    %v2338 = vunpack.c.h.b16 %v593
    %v2339 = vunpack.c.l.b16 %v594
    %v2340 = vunpack.c.h.b16 %v594
    %v2341 = vunpack.c.l.b16 %v595
    %v2342 = vunpack.c.h.b16 %v595
    %v2343 = vunpack.c.l.b16 %v596
    %v2344 = vunpack.c.h.b16 %v596
    %v2345 = vunpack.c.l.b16 %v597
    %v2346 = vunpack.c.h.b16 %v597
    %v2347 = vunpack.c.l.b16 %v598
    %v2348 = vunpack.c.h.b16 %v598
    %v2349 = vunpack.c.l.b16 %v599
    %v2350 = vunpack.c.h.b16 %v599
    %v2351 = vunpack.c.l.b16 %v600
    %v2352 = vunpack.c.h.b16 %v600
    %v2353 = vunpack.c.l.b16 %v601
    %v2354 = vunpack.c.h.b16 %v601
    %v2355 = vunpack.c.l.b16 %v602
    %v2356 = vunpack.c.h.b16 %v602
    %v2357 = vunpack.c.l.b16 %v603
    %v2358 = vunpack.c.h.b16 %v603
    %v2359 = vunpack.c.l.b16 %v604
    %v2360 = vunpack.c.h.b16 %v604
    %v2361 = vunpack.c.l.b16 %v605
    %v2362 = vunpack.c.h.b16 %v605
    %v2363 = vunpack.c.l.b16 %v606
    %v2364 = vunpack.c.h.b16 %v606
    %v2365 = vunpack.c.l.b16 %v607
    %v2366 = vunpack.c.h.b16 %v607
    %v2367 = vunpack.c.l.b16 %v608
    %v2368 = vunpack.c.h.b16 %v608
    %v2369 = vunpack.c.l.b16 %v609
    %v2370 = vunpack.c.h.b16 %v609
    %v2371 = vunpack.c.l.b16 %v610
    %v2372 = vunpack.c.h.b16 %v610
    %v2373 = vunpack.c.l.b16 %v611
    %v2374 = vunpack.c.h.b16 %v611
    %v2375 = vunpack.c.l.b16 %v612
    %v2376 = vunpack.c.h.b16 %v612
    %v2377 = vunpack.c.l.b16 %v613
    %v2378 = vunpack.c.h.b16 %v613
    %v2379 = vunpack.c.l.b16 %v614
    %v2380 = vunpack.c.h.b16 %v614
    %v2381 = vunpack.c.l.b16 %v615
    %v2382 = vunpack.c.h.b16 %v615
    %v2383 = vunpack.c.l.b16 %v616
    %v2384 = vunpack.c.h.b16 %v616
    %v2385 = vunpack.c.l.b16 %v617
    %v2386 = vunpack.c.h.b16 %v617
    %v2387 = vunpack.c.l.b16 %v618
    %v2388 = vunpack.c.h.b16 %v618
    %v2389 = vunpack.c.l.b16 %v619
    %v2390 = vunpack.c.h.b16 %v619
    %v2391 = vunpack.c.l.b16 %v620
    %v2392 = vunpack.c.h.b16 %v620
    %v2393 = vunpack.c.l.b16 %v621
    %v2394 = vunpack.c.h.b16 %v621
    %v2395 = vunpack.c.l.b16 %v622
    %v2396 = vunpack.c.h.b16 %v622
    %v2397 = vunpack.c.l.b16 %v623
    %v2398 = vunpack.c.h.b16 %v623
    %v2399 = vunpack.c.l.b16 %v624
    %v2400 = vunpack.c.h.b16 %v624
    %v2401 = vunpack.c.l.b16 %v625
    %v2402 = vunpack.c.h.b16 %v625
    %v2403 = vunpack.c.l.b16 %v626
    %v2404 = vunpack.c.h.b16 %v626
    %v2405 = vunpack.c.l.b16 %v627
    %v2406 = vunpack.c.h.b16 %v627
    %v2407 = vunpack.c.l.b16 %v628
    %v2408 = vunpack.c.h.b16 %v628
    %v2409 = vpack.c.b16 %v1401, %v1385
    %v2410 = vpack.c.b16 %v1402, %v1386
    %v2411 = vpack.c.b16 %v1403, %v1387
    %v2412 = vpack.c.b16 %v1404, %v1388
    %v2413 = vpack.c.b16 %v1405, %v1389
    %v2414 = vpack.c.b16 %v1406, %v1390
    %v2415 = vpack.c.b16 %v1407, %v1391
    %v2416 = vpack.c.b16 %v1408, %v1392
    %v2417 = vpack.c.b16 %v1409, %v1393
    %v2418 = vpack.c.b16 %v1410, %v1394
    %v2419 = vpack.c.b16 %v1411, %v1395
    %v2420 = vpack.c.b16 %v1412, %v1396
    %v2421 = vpack.c.b16 %v1413, %v1397
    %v2422 = vpack.c.b16 %v1414, %v1398
    %v2423 = vpack.c.b16 %v1415, %v1399
    %v2424 = vpack.c.b16 %v1416, %v1400
    %v2425 = vpack.c.b16 %v1433, %v1417
    %v2426 = vpack.c.b16 %v1434, %v1418
    %v2427 = vpack.c.b16 %v1435, %v1419
    %v2428 = vpack.c.b16 %v1436, %v1420
    %v2429 = vpack.c.b16 %v1437, %v1421
    %v2430 = vpack.c.b16 %v1438, %v1422
    %v2431 = vpack.c.b16 %v1439, %v1423
    %v2432 = vpack.c.b16 %v1440, %v1424
    %v2433 = vpack.c.b16 %v1441, %v1425
    %v2434 = vpack.c.b16 %v1442, %v1426
    %v2435 = vpack.c.b16 %v1443, %v1427
    %v2436 = vpack.c.b16 %v1444, %v1428
    %v2437 = vpack.c.b16 %v1445, %v1429
    %v2438 = vpack.c.b16 %v1446, %v1430
    %v2439 = vpack.c.b16 %v1447, %v1431
    %v2440 = vpack.c.b16 %v1448, %v1432
    %v2441 = vpack.c.b16 %v1465, %v1449
    %v2442 = vpack.c.b16 %v1466, %v1450
    %v2443 = vpack.c.b16 %v1467, %v1451
    %v2444 = vpack.c.b16 %v1468, %v1452
    %v2445 = vpack.c.b16 %v1469, %v1453
    %v2446 = vpack.c.b16 %v1470, %v1454
    %v2447 = vpack.c.b16 %v1471, %v1455
    %v2448 = vpack.c.b16 %v1472, %v1456
    %v2449 = vpack.c.b16 %v1473, %v1457
    %v2450 = vpack.c.b16 %v1474, %v1458
    %v2451 = vpack.c.b16 %v1475, %v1459
    %v2452 = vpack.c.b16 %v1476, %v1460
    %v2453 = vpack.c.b16 %v1477, %v1461
    %v2454 = vpack.c.b16 %v1478, %v1462
    %v2455 = vpack.c.b16 %v1479, %v1463
    %v2456 = vpack.c.b16 %v1480, %v1464
    %v2457 = vpack.c.b16 %v1497, %v1481
    %v2458 = vpack.c.b16 %v1498, %v1482
    %v2459 = vpack.c.b16 %v1499, %v1483
    %v2460 = vpack.c.b16 %v1500, %v1484
    %v2461 = vpack.c.b16 %v1501, %v1485
    %v2462 = vpack.c.b16 %v1502, %v1486
    %v2463 = vpack.c.b16 %v1503, %v1487
    %v2464 = vpack.c.b16 %v1504, %v1488
    %v2465 = vpack.c.b16 %v1505, %v1489
    %v2466 = vpack.c.b16 %v1506, %v1490
    %v2467 = vpack.c.b16 %v1507, %v1491
    %v2468 = vpack.c.b16 %v1508, %v1492
    %v2469 = vpack.c.b16 %v1509, %v1493
    %v2470 = vpack.c.b16 %v1510, %v1494
    %v2471 = vpack.c.b16 %v1511, %v1495
    %v2472 = vpack.c.b16 %v1512, %v1496
    %v2473 = vpack.c.b16 %v1529, %v1513
    %v2474 = vpack.c.b16 %v1530, %v1514
    %v2475 = vpack.c.b16 %v1531, %v1515
    %v2476 = vpack.c.b16 %v1532, %v1516
    %v2477 = vpack.c.b16 %v1533, %v1517
    %v2478 = vpack.c.b16 %v1534, %v1518
    %v2479 = vpack.c.b16 %v1535, %v1519
    %v2480 = vpack.c.b16 %v1536, %v1520
    %v2481 = vpack.c.b16 %v1537, %v1521
    %v2482 = vpack.c.b16 %v1538, %v1522
    %v2483 = vpack.c.b16 %v1539, %v1523
    %v2484 = vpack.c.b16 %v1540, %v1524
    %v2485 = vpack.c.b16 %v1541, %v1525
    %v2486 = vpack.c.b16 %v1542, %v1526
    %v2487 = vpack.c.b16 %v1543, %v1527
    %v2488 = vpack.c.b16 %v1544, %v1528
    %v2489 = vpack.c.b16 %v1561, %v1545
    %v2490 = vpack.c.b16 %v1562, %v1546
    %v2491 = vpack.c.b16 %v1563, %v1547
    %v2492 = vpack.c.b16 %v1564, %v1548
    %v2493 = vpack.c.b16 %v1565, %v1549
    %v2494 = vpack.c.b16 %v1566, %v1550
    %v2495 = vpack.c.b16 %v1567, %v1551
    %v2496 = vpack.c.b16 %v1568, %v1552
    %v2497 = vpack.c.b16 %v1569, %v1553
    %v2498 = vpack.c.b16 %v1570, %v1554
    %v2499 = vpack.c.b16 %v1571, %v1555
    %v2500 = vpack.c.b16 %v1572, %v1556
    %v2501 = vpack.c.b16 %v1573, %v1557
    %v2502 = vpack.c.b16 %v1574, %v1558
    %v2503 = vpack.c.b16 %v1575, %v1559
    %v2504 = vpack.c.b16 %v1576, %v1560
    %v2505 = vpack.c.b16 %v1593, %v1577
    %v2506 = vpack.c.b16 %v1594, %v1578
    %v2507 = vpack.c.b16 %v1595, %v1579
    %v2508 = vpack.c.b16 %v1596, %v1580
    %v2509 = vpack.c.b16 %v1597, %v1581
    %v2510 = vpack.c.b16 %v1598, %v1582
    %v2511 = vpack.c.b16 %v1599, %v1583
    %v2512 = vpack.c.b16 %v1600, %v1584
    %v2513 = vpack.c.b16 %v1601, %v1585
    %v2514 = vpack.c.b16 %v1602, %v1586
    %v2515 = vpack.c.b16 %v1603, %v1587
    %v2516 = vpack.c.b16 %v1604, %v1588
    %v2517 = vpack.c.b16 %v1605, %v1589
    %v2518 = vpack.c.b16 %v1606, %v1590
    %v2519 = vpack.c.b16 %v1607, %v1591
    %v2520 = vpack.c.b16 %v1608, %v1592
    %v2521 = vpack.c.b16 %v1625, %v1609
    %v2522 = vpack.c.b16 %v1626, %v1610
    %v2523 = vpack.c.b16 %v1627, %v1611
    %v2524 = vpack.c.b16 %v1628, %v1612
    %v2525 = vpack.c.b16 %v1629, %v1613
    %v2526 = vpack.c.b16 %v1630, %v1614
    %v2527 = vpack.c.b16 %v1631, %v1615
    %v2528 = vpack.c.b16 %v1632, %v1616
    %v2529 = vpack.c.b16 %v1633, %v1617
    %v2530 = vpack.c.b16 %v1634, %v1618
    %v2531 = vpack.c.b16 %v1635, %v1619
    %v2532 = vpack.c.b16 %v1636, %v1620
    %v2533 = vpack.c.b16 %v1637, %v1621
    %v2534 = vpack.c.b16 %v1638, %v1622
    %v2535 = vpack.c.b16 %v1639, %v1623
    %v2536 = vpack.c.b16 %v1640, %v1624
    %v2537 = vpack.c.b16 %v1657, %v1641
    %v2538 = vpack.c.b16 %v1658, %v1642
    %v2539 = vpack.c.b16 %v1659, %v1643
    %v2540 = vpack.c.b16 %v1660, %v1644
    %v2541 = vpack.c.b16 %v1661, %v1645
    %v2542 = vpack.c.b16 %v1662, %v1646
    %v2543 = vpack.c.b16 %v1663, %v1647
    %v2544 = vpack.c.b16 %v1664, %v1648
    %v2545 = vpack.c.b16 %v1665, %v1649
    %v2546 = vpack.c.b16 %v1666, %v1650
    %v2547 = vpack.c.b16 %v1667, %v1651
    %v2548 = vpack.c.b16 %v1668, %v1652
    %v2549 = vpack.c.b16 %v1669, %v1653
    %v2550 = vpack.c.b16 %v1670, %v1654
    %v2551 = vpack.c.b16 %v1671, %v1655
    %v2552 = vpack.c.b16 %v1672, %v1656
    %v2553 = vpack.c.b16 %v1689, %v1673
    %v2554 = vpack.c.b16 %v1690, %v1674
    %v2555 = vpack.c.b16 %v1691, %v1675
    %v2556 = vpack.c.b16 %v1692, %v1676
    %v2557 = vpack.c.b16 %v1693, %v1677
    %v2558 = vpack.c.b16 %v1694, %v1678
    %v2559 = vpack.c.b16 %v1695, %v1679
    %v2560 = vpack.c.b16 %v1696, %v1680
    %v2561 = vpack.c.b16 %v1697, %v1681
    %v2562 = vpack.c.b16 %v1698, %v1682
    %v2563 = vpack.c.b16 %v1699, %v1683
    %v2564 = vpack.c.b16 %v1700, %v1684
    %v2565 = vpack.c.b16 %v1701, %v1685
    %v2566 = vpack.c.b16 %v1702, %v1686
    %v2567 = vpack.c.b16 %v1703, %v1687
    %v2568 = vpack.c.b16 %v1704, %v1688
    %v2569 = vpack.c.b16 %v1721, %v1705
    %v2570 = vpack.c.b16 %v1722, %v1706
    %v2571 = vpack.c.b16 %v1723, %v1707
    %v2572 = vpack.c.b16 %v1724, %v1708
    %v2573 = vpack.c.b16 %v1725, %v1709
    %v2574 = vpack.c.b16 %v1726, %v1710
    %v2575 = vpack.c.b16 %v1727, %v1711
    %v2576 = vpack.c.b16 %v1728, %v1712
    %v2577 = vpack.c.b16 %v1729, %v1713
    %v2578 = vpack.c.b16 %v1730, %v1714
    %v2579 = vpack.c.b16 %v1731, %v1715
    %v2580 = vpack.c.b16 %v1732, %v1716
    %v2581 = vpack.c.b16 %v1733, %v1717
    %v2582 = vpack.c.b16 %v1734, %v1718
    %v2583 = vpack.c.b16 %v1735, %v1719
    %v2584 = vpack.c.b16 %v1736, %v1720
    %v2585 = vpack.c.b16 %v1753, %v1737
    %v2586 = vpack.c.b16 %v1754, %v1738
    %v2587 = vpack.c.b16 %v1755, %v1739
    %v2588 = vpack.c.b16 %v1756, %v1740
    %v2589 = vpack.c.b16 %v1757, %v1741
    %v2590 = vpack.c.b16 %v1758, %v1742
    %v2591 = vpack.c.b16 %v1759, %v1743
    %v2592 = vpack.c.b16 %v1760, %v1744
    %v2593 = vpack.c.b16 %v1761, %v1745
    %v2594 = vpack.c.b16 %v1762, %v1746
    %v2595 = vpack.c.b16 %v1763, %v1747
    %v2596 = vpack.c.b16 %v1764, %v1748
    %v2597 = vpack.c.b16 %v1765, %v1749
    %v2598 = vpack.c.b16 %v1766, %v1750
    %v2599 = vpack.c.b16 %v1767, %v1751
    %v2600 = vpack.c.b16 %v1768, %v1752
    %v2601 = vpack.c.b16 %v1785, %v1769
    %v2602 = vpack.c.b16 %v1786, %v1770
    %v2603 = vpack.c.b16 %v1787, %v1771
    %v2604 = vpack.c.b16 %v1788, %v1772
    %v2605 = vpack.c.b16 %v1789, %v1773
    %v2606 = vpack.c.b16 %v1790, %v1774
    %v2607 = vpack.c.b16 %v1791, %v1775
    %v2608 = vpack.c.b16 %v1792, %v1776
    %v2609 = vpack.c.b16 %v1793, %v1777
    %v2610 = vpack.c.b16 %v1794, %v1778
    %v2611 = vpack.c.b16 %v1795, %v1779
    %v2612 = vpack.c.b16 %v1796, %v1780
    %v2613 = vpack.c.b16 %v1797, %v1781
    %v2614 = vpack.c.b16 %v1798, %v1782
    %v2615 = vpack.c.b16 %v1799, %v1783
    %v2616 = vpack.c.b16 %v1800, %v1784
    %v2617 = vpack.c.b16 %v1817, %v1801
    %v2618 = vpack.c.b16 %v1818, %v1802
    %v2619 = vpack.c.b16 %v1819, %v1803
    %v2620 = vpack.c.b16 %v1820, %v1804
    %v2621 = vpack.c.b16 %v1821, %v1805
    %v2622 = vpack.c.b16 %v1822, %v1806
    %v2623 = vpack.c.b16 %v1823, %v1807
    %v2624 = vpack.c.b16 %v1824, %v1808
    %v2625 = vpack.c.b16 %v1825, %v1809
    %v2626 = vpack.c.b16 %v1826, %v1810
    %v2627 = vpack.c.b16 %v1827, %v1811
    %v2628 = vpack.c.b16 %v1828, %v1812
    %v2629 = vpack.c.b16 %v1829, %v1813
    %v2630 = vpack.c.b16 %v1830, %v1814
    %v2631 = vpack.c.b16 %v1831, %v1815
    %v2632 = vpack.c.b16 %v1832, %v1816
    %v2633 = vpack.c.b16 %v1849, %v1833
    %v2634 = vpack.c.b16 %v1850, %v1834
    %v2635 = vpack.c.b16 %v1851, %v1835
    %v2636 = vpack.c.b16 %v1852, %v1836
    %v2637 = vpack.c.b16 %v1853, %v1837
    %v2638 = vpack.c.b16 %v1854, %v1838
    %v2639 = vpack.c.b16 %v1855, %v1839
    %v2640 = vpack.c.b16 %v1856, %v1840
    %v2641 = vpack.c.b16 %v1857, %v1841
    %v2642 = vpack.c.b16 %v1858, %v1842
    %v2643 = vpack.c.b16 %v1859, %v1843
    %v2644 = vpack.c.b16 %v1860, %v1844
    %v2645 = vpack.c.b16 %v1861, %v1845
    %v2646 = vpack.c.b16 %v1862, %v1846
    %v2647 = vpack.c.b16 %v1863, %v1847
    %v2648 = vpack.c.b16 %v1864, %v1848
    %v2649 = vpack.c.b16 %v1881, %v1865
    %v2650 = vpack.c.b16 %v1882, %v1866
    %v2651 = vpack.c.b16 %v1883, %v1867
    %v2652 = vpack.c.b16 %v1884, %v1868
    %v2653 = vpack.c.b16 %v1885, %v1869
    %v2654 = vpack.c.b16 %v1886, %v1870
    %v2655 = vpack.c.b16 %v1887, %v1871
    %v2656 = vpack.c.b16 %v1888, %v1872
    %v2657 = vpack.c.b16 %v1889, %v1873
    %v2658 = vpack.c.b16 %v1890, %v1874
    %v2659 = vpack.c.b16 %v1891, %v1875
    %v2660 = vpack.c.b16 %v1892, %v1876
    %v2661 = vpack.c.b16 %v1893, %v1877
    %v2662 = vpack.c.b16 %v1894, %v1878
    %v2663 = vpack.c.b16 %v1895, %v1879
    %v2664 = vpack.c.b16 %v1896, %v1880
    %v2665 = vpack.c.b16 %v1913, %v1897
    %v2666 = vpack.c.b16 %v1914, %v1898
    %v2667 = vpack.c.b16 %v1915, %v1899
    %v2668 = vpack.c.b16 %v1916, %v1900
    %v2669 = vpack.c.b16 %v1917, %v1901
    %v2670 = vpack.c.b16 %v1918, %v1902
    %v2671 = vpack.c.b16 %v1919, %v1903
    %v2672 = vpack.c.b16 %v1920, %v1904
    %v2673 = vpack.c.b16 %v1921, %v1905
    %v2674 = vpack.c.b16 %v1922, %v1906
    %v2675 = vpack.c.b16 %v1923, %v1907
    %v2676 = vpack.c.b16 %v1924, %v1908
    %v2677 = vpack.c.b16 %v1925, %v1909
    %v2678 = vpack.c.b16 %v1926, %v1910
    %v2679 = vpack.c.b16 %v1927, %v1911
    %v2680 = vpack.c.b16 %v1928, %v1912
    %v2681 = vpack.c.b16 %v1945, %v1929
    %v2682 = vpack.c.b16 %v1946, %v1930
    %v2683 = vpack.c.b16 %v1947, %v1931
    %v2684 = vpack.c.b16 %v1948, %v1932
    %v2685 = vpack.c.b16 %v1949, %v1933
    %v2686 = vpack.c.b16 %v1950, %v1934
    %v2687 = vpack.c.b16 %v1951, %v1935
    %v2688 = vpack.c.b16 %v1952, %v1936
    %v2689 = vpack.c.b16 %v1953, %v1937
    %v2690 = vpack.c.b16 %v1954, %v1938
    %v2691 = vpack.c.b16 %v1955, %v1939
    %v2692 = vpack.c.b16 %v1956, %v1940
    %v2693 = vpack.c.b16 %v1957, %v1941
    %v2694 = vpack.c.b16 %v1958, %v1942
    %v2695 = vpack.c.b16 %v1959, %v1943
    %v2696 = vpack.c.b16 %v1960, %v1944
    %v2697 = vpack.c.b16 %v1977, %v1961
    %v2698 = vpack.c.b16 %v1978, %v1962
    %v2699 = vpack.c.b16 %v1979, %v1963
    %v2700 = vpack.c.b16 %v1980, %v1964
    %v2701 = vpack.c.b16 %v1981, %v1965
    %v2702 = vpack.c.b16 %v1982, %v1966
    %v2703 = vpack.c.b16 %v1983, %v1967
    %v2704 = vpack.c.b16 %v1984, %v1968
    %v2705 = vpack.c.b16 %v1985, %v1969
    %v2706 = vpack.c.b16 %v1986, %v1970
    %v2707 = vpack.c.b16 %v1987, %v1971
    %v2708 = vpack.c.b16 %v1988, %v1972
    %v2709 = vpack.c.b16 %v1989, %v1973
    %v2710 = vpack.c.b16 %v1990, %v1974
    %v2711 = vpack.c.b16 %v1991, %v1975
    %v2712 = vpack.c.b16 %v1992, %v1976
    %v2713 = vpack.c.b16 %v2009, %v1993
    %v2714 = vpack.c.b16 %v2010, %v1994
    %v2715 = vpack.c.b16 %v2011, %v1995
    %v2716 = vpack.c.b16 %v2012, %v1996
    %v2717 = vpack.c.b16 %v2013, %v1997
    %v2718 = vpack.c.b16 %v2014, %v1998
    %v2719 = vpack.c.b16 %v2015, %v1999
    %v2720 = vpack.c.b16 %v2016, %v2000
    %v2721 = vpack.c.b16 %v2017, %v2001
    %v2722 = vpack.c.b16 %v2018, %v2002
    %v2723 = vpack.c.b16 %v2019, %v2003
    %v2724 = vpack.c.b16 %v2020, %v2004
    %v2725 = vpack.c.b16 %v2021, %v2005
    %v2726 = vpack.c.b16 %v2022, %v2006
    %v2727 = vpack.c.b16 %v2023, %v2007
    %v2728 = vpack.c.b16 %v2024, %v2008
    %v2729 = vpack.c.b16 %v2041, %v2025
    %v2730 = vpack.c.b16 %v2042, %v2026
    %v2731 = vpack.c.b16 %v2043, %v2027
    %v2732 = vpack.c.b16 %v2044, %v2028
    %v2733 = vpack.c.b16 %v2045, %v2029
    %v2734 = vpack.c.b16 %v2046, %v2030
    %v2735 = vpack.c.b16 %v2047, %v2031
    %v2736 = vpack.c.b16 %v2048, %v2032
    %v2737 = vpack.c.b16 %v2049, %v2033
    %v2738 = vpack.c.b16 %v2050, %v2034
    %v2739 = vpack.c.b16 %v2051, %v2035
    %v2740 = vpack.c.b16 %v2052, %v2036
    %v2741 = vpack.c.b16 %v2053, %v2037
    %v2742 = vpack.c.b16 %v2054, %v2038
    %v2743 = vpack.c.b16 %v2055, %v2039
    %v2744 = vpack.c.b16 %v2056, %v2040
    %v2745 = vpack.c.b16 %v2073, %v2057
    %v2746 = vpack.c.b16 %v2074, %v2058
    %v2747 = vpack.c.b16 %v2075, %v2059
    %v2748 = vpack.c.b16 %v2076, %v2060
    %v2749 = vpack.c.b16 %v2077, %v2061
    %v2750 = vpack.c.b16 %v2078, %v2062
    %v2751 = vpack.c.b16 %v2079, %v2063
    %v2752 = vpack.c.b16 %v2080, %v2064
    %v2753 = vpack.c.b16 %v2081, %v2065
    %v2754 = vpack.c.b16 %v2082, %v2066
    %v2755 = vpack.c.b16 %v2083, %v2067
    %v2756 = vpack.c.b16 %v2084, %v2068
    %v2757 = vpack.c.b16 %v2085, %v2069
    %v2758 = vpack.c.b16 %v2086, %v2070
    %v2759 = vpack.c.b16 %v2087, %v2071
    %v2760 = vpack.c.b16 %v2088, %v2072
    %v2761 = vpack.c.b16 %v2105, %v2089
    %v2762 = vpack.c.b16 %v2106, %v2090
    %v2763 = vpack.c.b16 %v2107, %v2091
    %v2764 = vpack.c.b16 %v2108, %v2092
    %v2765 = vpack.c.b16 %v2109, %v2093
    %v2766 = vpack.c.b16 %v2110, %v2094
    %v2767 = vpack.c.b16 %v2111, %v2095
    %v2768 = vpack.c.b16 %v2112, %v2096
    %v2769 = vpack.c.b16 %v2113, %v2097
    %v2770 = vpack.c.b16 %v2114, %v2098
    %v2771 = vpack.c.b16 %v2115, %v2099
    %v2772 = vpack.c.b16 %v2116, %v2100
    %v2773 = vpack.c.b16 %v2117, %v2101
    %v2774 = vpack.c.b16 %v2118, %v2102
    %v2775 = vpack.c.b16 %v2119, %v2103
    %v2776 = vpack.c.b16 %v2120, %v2104
    %v2777 = vpack.c.b16 %v2137, %v2121
    %v2778 = vpack.c.b16 %v2138, %v2122
    %v2779 = vpack.c.b16 %v2139, %v2123
    %v2780 = vpack.c.b16 %v2140, %v2124
    %v2781 = vpack.c.b16 %v2141, %v2125
    %v2782 = vpack.c.b16 %v2142, %v2126
    %v2783 = vpack.c.b16 %v2143, %v2127
    %v2784 = vpack.c.b16 %v2144, %v2128
    %v2785 = vpack.c.b16 %v2145, %v2129
    %v2786 = vpack.c.b16 %v2146, %v2130
    %v2787 = vpack.c.b16 %v2147, %v2131
    %v2788 = vpack.c.b16 %v2148, %v2132
    %v2789 = vpack.c.b16 %v2149, %v2133
    %v2790 = vpack.c.b16 %v2150, %v2134
    %v2791 = vpack.c.b16 %v2151, %v2135
    %v2792 = vpack.c.b16 %v2152, %v2136
    %v2793 = vpack.c.b16 %v2169, %v2153
    %v2794 = vpack.c.b16 %v2170, %v2154
    %v2795 = vpack.c.b16 %v2171, %v2155
    %v2796 = vpack.c.b16 %v2172, %v2156
    %v2797 = vpack.c.b16 %v2173, %v2157
    %v2798 = vpack.c.b16 %v2174, %v2158
    %v2799 = vpack.c.b16 %v2175, %v2159
    %v2800 = vpack.c.b16 %v2176, %v2160
    %v2801 = vpack.c.b16 %v2177, %v2161
    %v2802 = vpack.c.b16 %v2178, %v2162
    %v2803 = vpack.c.b16 %v2179, %v2163
    %v2804 = vpack.c.b16 %v2180, %v2164
    %v2805 = vpack.c.b16 %v2181, %v2165
    %v2806 = vpack.c.b16 %v2182, %v2166
    %v2807 = vpack.c.b16 %v2183, %v2167
    %v2808 = vpack.c.b16 %v2184, %v2168
    %v2809 = vpack.c.b16 %v2201, %v2185
    %v2810 = vpack.c.b16 %v2202, %v2186
    %v2811 = vpack.c.b16 %v2203, %v2187
    %v2812 = vpack.c.b16 %v2204, %v2188
    %v2813 = vpack.c.b16 %v2205, %v2189
    %v2814 = vpack.c.b16 %v2206, %v2190
    %v2815 = vpack.c.b16 %v2207, %v2191
    %v2816 = vpack.c.b16 %v2208, %v2192
    %v2817 = vpack.c.b16 %v2209, %v2193
    %v2818 = vpack.c.b16 %v2210, %v2194
    %v2819 = vpack.c.b16 %v2211, %v2195
    %v2820 = vpack.c.b16 %v2212, %v2196
    %v2821 = vpack.c.b16 %v2213, %v2197
    %v2822 = vpack.c.b16 %v2214, %v2198
    %v2823 = vpack.c.b16 %v2215, %v2199
    %v2824 = vpack.c.b16 %v2216, %v2200
    %v2825 = vpack.c.b16 %v2233, %v2217
    %v2826 = vpack.c.b16 %v2234, %v2218
    %v2827 = vpack.c.b16 %v2235, %v2219
    %v2828 = vpack.c.b16 %v2236, %v2220
    %v2829 = vpack.c.b16 %v2237, %v2221
    %v2830 = vpack.c.b16 %v2238, %v2222
    %v2831 = vpack.c.b16 %v2239, %v2223
    %v2832 = vpack.c.b16 %v2240, %v2224
    %v2833 = vpack.c.b16 %v2241, %v2225
    %v2834 = vpack.c.b16 %v2242, %v2226
    %v2835 = vpack.c.b16 %v2243, %v2227
    %v2836 = vpack.c.b16 %v2244, %v2228
    %v2837 = vpack.c.b16 %v2245, %v2229
    %v2838 = vpack.c.b16 %v2246, %v2230
    %v2839 = vpack.c.b16 %v2247, %v2231
    %v2840 = vpack.c.b16 %v2248, %v2232
    %v2841 = vpack.c.b16 %v2265, %v2249
    %v2842 = vpack.c.b16 %v2266, %v2250
    %v2843 = vpack.c.b16 %v2267, %v2251
    %v2844 = vpack.c.b16 %v2268, %v2252
    %v2845 = vpack.c.b16 %v2269, %v2253
    %v2846 = vpack.c.b16 %v2270, %v2254
    %v2847 = vpack.c.b16 %v2271, %v2255
    %v2848 = vpack.c.b16 %v2272, %v2256
    %v2849 = vpack.c.b16 %v2273, %v2257
    %v2850 = vpack.c.b16 %v2274, %v2258
    %v2851 = vpack.c.b16 %v2275, %v2259
    %v2852 = vpack.c.b16 %v2276, %v2260
    %v2853 = vpack.c.b16 %v2277, %v2261
    %v2854 = vpack.c.b16 %v2278, %v2262
    %v2855 = vpack.c.b16 %v2279, %v2263
    %v2856 = vpack.c.b16 %v2280, %v2264
    %v2857 = vpack.c.b16 %v2297, %v2281
    %v2858 = vpack.c.b16 %v2298, %v2282
    %v2859 = vpack.c.b16 %v2299, %v2283
    %v2860 = vpack.c.b16 %v2300, %v2284
    %v2861 = vpack.c.b16 %v2301, %v2285
    %v2862 = vpack.c.b16 %v2302, %v2286
    %v2863 = vpack.c.b16 %v2303, %v2287
    %v2864 = vpack.c.b16 %v2304, %v2288
    %v2865 = vpack.c.b16 %v2305, %v2289
    %v2866 = vpack.c.b16 %v2306, %v2290
    %v2867 = vpack.c.b16 %v2307, %v2291
    %v2868 = vpack.c.b16 %v2308, %v2292
    %v2869 = vpack.c.b16 %v2309, %v2293
    %v2870 = vpack.c.b16 %v2310, %v2294
    %v2871 = vpack.c.b16 %v2311, %v2295
    %v2872 = vpack.c.b16 %v2312, %v2296
    %v2873 = vpack.c.b16 %v2329, %v2313
    %v2874 = vpack.c.b16 %v2330, %v2314
    %v2875 = vpack.c.b16 %v2331, %v2315
    %v2876 = vpack.c.b16 %v2332, %v2316
    %v2877 = vpack.c.b16 %v2333, %v2317
    %v2878 = vpack.c.b16 %v2334, %v2318
    %v2879 = vpack.c.b16 %v2335, %v2319
    %v2880 = vpack.c.b16 %v2336, %v2320
    %v2881 = vpack.c.b16 %v2337, %v2321
    %v2882 = vpack.c.b16 %v2338, %v2322
    %v2883 = vpack.c.b16 %v2339, %v2323
    %v2884 = vpack.c.b16 %v2340, %v2324
    %v2885 = vpack.c.b16 %v2341, %v2325
    %v2886 = vpack.c.b16 %v2342, %v2326
    %v2887 = vpack.c.b16 %v2343, %v2327
    %v2888 = vpack.c.b16 %v2344, %v2328
    %v2889 = vpack.c.b16 %v2361, %v2345
    %v2890 = vpack.c.b16 %v2362, %v2346
    %v2891 = vpack.c.b16 %v2363, %v2347
    %v2892 = vpack.c.b16 %v2364, %v2348
    %v2893 = vpack.c.b16 %v2365, %v2349
    %v2894 = vpack.c.b16 %v2366, %v2350
    %v2895 = vpack.c.b16 %v2367, %v2351
    %v2896 = vpack.c.b16 %v2368, %v2352
    %v2897 = vpack.c.b16 %v2369, %v2353
    %v2898 = vpack.c.b16 %v2370, %v2354
    %v2899 = vpack.c.b16 %v2371, %v2355
    %v2900 = vpack.c.b16 %v2372, %v2356
    %v2901 = vpack.c.b16 %v2373, %v2357
    %v2902 = vpack.c.b16 %v2374, %v2358
    %v2903 = vpack.c.b16 %v2375, %v2359
    %v2904 = vpack.c.b16 %v2376, %v2360
    %v2905 = vpack.c.b16 %v2393, %v2377
    %v2906 = vpack.c.b16 %v2394, %v2378
    %v2907 = vpack.c.b16 %v2395, %v2379
    %v2908 = vpack.c.b16 %v2396, %v2380
    %v2909 = vpack.c.b16 %v2397, %v2381
    %v2910 = vpack.c.b16 %v2398, %v2382
    %v2911 = vpack.c.b16 %v2399, %v2383
    %v2912 = vpack.c.b16 %v2400, %v2384
    %v2913 = vpack.c.b16 %v2401, %v2385
    %v2914 = vpack.c.b16 %v2402, %v2386
    %v2915 = vpack.c.b16 %v2403, %v2387
    %v2916 = vpack.c.b16 %v2404, %v2388
    %v2917 = vpack.c.b16 %v2405, %v2389
    %v2918 = vpack.c.b16 %v2406, %v2390
    %v2919 = vpack.c.b16 %v2407, %v2391
    %v2920 = vpack.c.b16 %v2408, %v2392
    %3433 = vmatprep.subr.bf16.mxu0 %v2410
    %3434 = vmatpush1.bf16.msra.mxu0 %v2409
    %3435 = vmatprep.subr.bf16.mxu0 %v2426
    %3436 = vmatpush1.bf16.msra.mxu0 %v2425
    %3437 = vmatprep.subr.bf16.mxu0 %v2442
    %3438 = vmatpush1.bf16.msra.mxu0 %v2441
    %3439 = vmatprep.subr.bf16.mxu0 %v2458
    %3440 = vmatpush1.bf16.msra.mxu0 %v2457
    %3441 = vmatprep.subr.bf16.mxu0 %v2474
    %3442 = vmatpush1.bf16.msra.mxu0 %v2473
    %3443 = vmatprep.subr.bf16.mxu0 %v2490
    %3444 = vmatpush1.bf16.msra.mxu0 %v2489
    %3445 = vmatprep.subr.bf16.mxu0 %v2506
    %3446 = vmatpush1.bf16.msra.mxu0 %v2505
    %3447 = vmatprep.subr.bf16.mxu0 %v2522
    %3448 = vmatpush1.bf16.msra.mxu0 %v2521
    %3449 = vmatprep.subr.bf16.mxu0 %v2538
    %3450 = vmatpush1.bf16.msra.mxu0 %v2537
    %3451 = vmatprep.subr.bf16.mxu0 %v2554
    %3452 = vmatpush1.bf16.msra.mxu0 %v2553
    %3453 = vmatprep.subr.bf16.mxu0 %v2570
    %3454 = vmatpush1.bf16.msra.mxu0 %v2569
    %3455 = vmatprep.subr.bf16.mxu0 %v2586
    %3456 = vmatpush1.bf16.msra.mxu0 %v2585
    %3457 = vmatprep.subr.bf16.mxu0 %v2602
    %3458 = vmatpush1.bf16.msra.mxu0 %v2601
    %3459 = vmatprep.subr.bf16.mxu0 %v2618
    %3460 = vmatpush1.bf16.msra.mxu0 %v2617
    %3461 = vmatprep.subr.bf16.mxu0 %v2634
    %3462 = vmatpush1.bf16.msra.mxu0 %v2633
    %3463 = vmatprep.subr.bf16.mxu0 %v2650
    %3464 = vmatpush1.bf16.msra.mxu0 %v2649
    %3465 = vmatprep.mubr.bf16.mxu0 %v810
    %3466 = vmatmul.mubr.bf16.gmra.mrb[0].mxu0 %v809
    %v3467 = vpop.f32.mrb[0].mxu0
    %v3468 = vadd.f32 %v636, %v3467
    %v3469 = vpop.f32.mrb[0].mxu0
    %v3470 = vadd.f32 %v640, %v3469
    %v3471 = vpop.f32.mrb[0].mxu0
    %v3472 = vadd.f32 %v636, %v3471
    %v3473 = vpop.f32.mrb[0].mxu0
    %v3474 = vadd.f32 %v640, %v3473
    %3475 = vmatprep.mubr.bf16.mxu0 %v814
    %3476 = vmatmul.mubr.bf16.gmra.mrb[0].mxu0 %v813
    %v3477 = vpop.f32.mrb[0].mxu0
    %v3478 = vadd.f32 %v636, %v3477
    %v3479 = vpop.f32.mrb[0].mxu0
    %v3480 = vadd.f32 %v640, %v3479
    %v3481 = vpop.f32.mrb[0].mxu0
    %v3482 = vadd.f32 %v636, %v3481
    %v3483 = vpop.f32.mrb[0].mxu0
    %v3484 = vadd.f32 %v640, %v3483
    %3485 = vmatprep.mubr.bf16.mxu0 %v818
    %3486 = vmatmul.mubr.bf16.gmra.mrb[0].mxu0 %v817
    %v3487 = vpop.f32.mrb[0].mxu0
    %v3488 = vadd.f32 %v636, %v3487
    %v3489 = vpop.f32.mrb[0].mxu0
    %v3490 = vadd.f32 %v640, %v3489
    %v3491 = vpop.f32.mrb[0].mxu0
    %v3492 = vadd.f32 %v636, %v3491
    %v3493 = vpop.f32.mrb[0].mxu0
    %v3494 = vadd.f32 %v640, %v3493
    %3495 = vmatprep.mubr.bf16.mxu0 %v822
    %3496 = vmatmul.mubr.bf16.gmra.mrb[0].mxu0 %v821
    %v3497 = vpop.f32.mrb[0].mxu0
    %v3498 = vadd.f32 %v636, %v3497
    %v3499 = vpop.f32.mrb[0].mxu0
    %v3500 = vadd.f32 %v640, %v3499
    %v3501 = vpop.f32.mrb[0].mxu0
    %v3502 = vadd.f32 %v636, %v3501
    %v3503 = vpop.f32.mrb[0].mxu0
    %v3504 = vadd.f32 %v640, %v3503
    %3505 = vmatprep.mubr.bf16.mxu0 %v826
    %3506 = vmatmul.mubr.bf16.gmra.mrb[0].mxu0 %v825
    %v3507 = vpop.f32.mrb[0].mxu0
    %v3508 = vadd.f32 %v636, %v3507
    %v3509 = vpop.f32.mrb[0].mxu0
    %v3510 = vadd.f32 %v640, %v3509
    %v3511 = vpop.f32.mrb[0].mxu0
    %v3512 = vadd.f32 %v636, %v3511
    %v3513 = vpop.f32.mrb[0].mxu0
    %v3514 = vadd.f32 %v640, %v3513
    %3515 = vmatprep.mubr.bf16.mxu0 %v830
    %3516 = vmatmul.mubr.bf16.gmra.mrb[0].mxu0 %v829
    %v3517 = vpop.f32.mrb[0].mxu0
    %v3518 = vadd.f32 %v636, %v3517
    %v3519 = vpop.f32.mrb[0].mxu0
    %v3520 = vadd.f32 %v640, %v3519
    %v3521 = vpop.f32.mrb[0].mxu0
    %v3522 = vadd.f32 %v636, %v3521
    %v3523 = vpop.f32.mrb[0].mxu0
    %v3524 = vadd.f32 %v640, %v3523
    %3525 = vmatprep.mubr.bf16.mxu0 %v834
    %3526 = vmatmul.mubr.bf16.gmra.mrb[0].mxu0 %v833
    %v3527 = vpop.f32.mrb[0].mxu0
    %v3528 = vadd.f32 %v636, %v3527
    %v3529 = vpop.f32.mrb[0].mxu0
    %v3530 = vadd.f32 %v640, %v3529
    %v3531 = vpop.f32.mrb[0].mxu0
    %v3532 = vadd.f32 %v636, %v3531
    %v3533 = vpop.f32.mrb[0].mxu0
    %v3534 = vadd.f32 %v640, %v3533
    %3535 = vmatprep.mubr.bf16.mxu0 %v838
    %3536 = vmatmul.mubr.bf16.gmra.mrb[0].mxu0 %v837
    %v3537 = vpop.f32.mrb[0].mxu0
    %v3538 = vadd.f32 %v636, %v3537
    %v3539 = vpop.f32.mrb[0].mxu0
    %v3540 = vadd.f32 %v640, %v3539
    %v3541 = vpop.f32.mrb[0].mxu0
    %v3542 = vadd.f32 %v636, %v3541
    %v3543 = vpop.f32.mrb[0].mxu0
    %v3544 = vadd.f32 %v640, %v3543
    %3545 = vdwg.mxu0
    %3546 = vmatprep.subr.bf16.mxu0 %v2666
    %3547 = vmatpush1.bf16.msra.mxu0 %v2665
    %3548 = vmatprep.subr.bf16.mxu0 %v2682
    %3549 = vmatpush1.bf16.msra.mxu0 %v2681
    %3550 = vmatprep.subr.bf16.mxu0 %v2698
    %3551 = vmatpush1.bf16.msra.mxu0 %v2697
    %3552 = vmatprep.subr.bf16.mxu0 %v2714
    %3553 = vmatpush1.bf16.msra.mxu0 %v2713
    %3554 = vmatprep.subr.bf16.mxu0 %v2730
    %3555 = vmatpush1.bf16.msra.mxu0 %v2729
    %3556 = vmatprep.subr.bf16.mxu0 %v2746
    %3557 = vmatpush1.bf16.msra.mxu0 %v2745
    %3558 = vmatprep.subr.bf16.mxu0 %v2762
    %3559 = vmatpush1.bf16.msra.mxu0 %v2761
    %3560 = vmatprep.subr.bf16.mxu0 %v2778
    %3561 = vmatpush1.bf16.msra.mxu0 %v2777
    %3562 = vmatprep.subr.bf16.mxu0 %v2794
    %3563 = vmatpush1.bf16.msra.mxu0 %v2793
    %3564 = vmatprep.subr.bf16.mxu0 %v2810
    %3565 = vmatpush1.bf16.msra.mxu0 %v2809
    %3566 = vmatprep.subr.bf16.mxu0 %v2826
    %3567 = vmatpush1.bf16.msra.mxu0 %v2825
    %3568 = vmatprep.subr.bf16.mxu0 %v2842
    %3569 = vmatpush1.bf16.msra.mxu0 %v2841
    %3570 = vmatprep.subr.bf16.mxu0 %v2858
    %3571 = vmatpush1.bf16.msra.mxu0 %v2857
    %3572 = vmatprep.subr.bf16.mxu0 %v2874
    %3573 = vmatpush1.bf16.msra.mxu0 %v2873
    %3574 = vmatprep.subr.bf16.mxu0 %v2890
    %3575 = vmatpush1.bf16.msra.mxu0 %v2889
    %3576 = vmatprep.subr.bf16.mxu0 %v2906
    %3577 = vmatpush1.bf16.msra.mxu0 %v2905
    %3578 = vmatprep.mubr.bf16.mxu0 %v812
    %3579 = vmatmul.mubr.bf16.gmra.mrb[0].mxu0 %v811
    %v3580 = vpop.f32.mrb[0].mxu0
    %v3581 = vadd.f32 %v3468, %v3580
    %v3582 = vpop.f32.mrb[0].mxu0
    %v3583 = vadd.f32 %v3470, %v3582
    %v3584 = vpop.f32.mrb[0].mxu0
    %v3585 = vadd.f32 %v3472, %v3584
    %v3586 = vpop.f32.mrb[0].mxu0
    %v3587 = vadd.f32 %v3474, %v3586
    %3588 = vmatprep.mubr.bf16.mxu0 %v816
    %3589 = vmatmul.mubr.bf16.gmra.mrb[0].mxu0 %v815
    %v3590 = vpop.f32.mrb[0].mxu0
    %v3591 = vadd.f32 %v3478, %v3590
    %v3592 = vpop.f32.mrb[0].mxu0
    %v3593 = vadd.f32 %v3480, %v3592
    %v3594 = vpop.f32.mrb[0].mxu0
    %v3595 = vadd.f32 %v3482, %v3594
    %v3596 = vpop.f32.mrb[0].mxu0
    %v3597 = vadd.f32 %v3484, %v3596
    %3598 = vmatprep.mubr.bf16.mxu0 %v820
    %3599 = vmatmul.mubr.bf16.gmra.mrb[0].mxu0 %v819
    %v3600 = vpop.f32.mrb[0].mxu0
    %v3601 = vadd.f32 %v3488, %v3600
    %v3602 = vpop.f32.mrb[0].mxu0
    %v3603 = vadd.f32 %v3490, %v3602
    %v3604 = vpop.f32.mrb[0].mxu0
    %v3605 = vadd.f32 %v3492, %v3604
    %v3606 = vpop.f32.mrb[0].mxu0
    %v3607 = vadd.f32 %v3494, %v3606
    %3608 = vmatprep.mubr.bf16.mxu0 %v824
    %3609 = vmatmul.mubr.bf16.gmra.mrb[0].mxu0 %v823
    %v3610 = vpop.f32.mrb[0].mxu0
    %v3611 = vadd.f32 %v3498, %v3610
    %v3612 = vpop.f32.mrb[0].mxu0
    %v3613 = vadd.f32 %v3500, %v3612
    %v3614 = vpop.f32.mrb[0].mxu0
    %v3615 = vadd.f32 %v3502, %v3614
    %v3616 = vpop.f32.mrb[0].mxu0
    %v3617 = vadd.f32 %v3504, %v3616
    %3618 = vmatprep.mubr.bf16.mxu0 %v828
    %3619 = vmatmul.mubr.bf16.gmra.mrb[0].mxu0 %v827
    %v3620 = vpop.f32.mrb[0].mxu0
    %v3621 = vadd.f32 %v3508, %v3620
    %v3622 = vpop.f32.mrb[0].mxu0
    %v3623 = vadd.f32 %v3510, %v3622
    %v3624 = vpop.f32.mrb[0].mxu0
    %v3625 = vadd.f32 %v3512, %v3624
    %v3626 = vpop.f32.mrb[0].mxu0
    %v3627 = vadd.f32 %v3514, %v3626
    %3628 = vmatprep.mubr.bf16.mxu0 %v832
    %3629 = vmatmul.mubr.bf16.gmra.mrb[0].mxu0 %v831
    %v3630 = vpop.f32.mrb[0].mxu0
    %v3631 = vadd.f32 %v3518, %v3630
    %v3632 = vpop.f32.mrb[0].mxu0
    %v3633 = vadd.f32 %v3520, %v3632
    %v3634 = vpop.f32.mrb[0].mxu0
    %v3635 = vadd.f32 %v3522, %v3634
    %v3636 = vpop.f32.mrb[0].mxu0
    %v3637 = vadd.f32 %v3524, %v3636
    %3638 = vmatprep.mubr.bf16.mxu0 %v836
    %3639 = vmatmul.mubr.bf16.gmra.mrb[0].mxu0 %v835
    %v3640 = vpop.f32.mrb[0].mxu0
    %v3641 = vadd.f32 %v3528, %v3640
    %v3642 = vpop.f32.mrb[0].mxu0
    %v3643 = vadd.f32 %v3530, %v3642
    %v3644 = vpop.f32.mrb[0].mxu0
    %v3645 = vadd.f32 %v3532, %v3644
    %v3646 = vpop.f32.mrb[0].mxu0
    %v3647 = vadd.f32 %v3534, %v3646
    %3648 = vmatprep.mubr.bf16.mxu0 %v840
    %3649 = vmatmul.mubr.bf16.gmra.mrb[0].mxu0 %v839
    %v3650 = vpop.f32.mrb[0].mxu0
    %v3651 = vadd.f32 %v3538, %v3650
    %v3652 = vpop.f32.mrb[0].mxu0
    %v3653 = vadd.f32 %v3540, %v3652
    %v3654 = vpop.f32.mrb[0].mxu0
    %v3655 = vadd.f32 %v3542, %v3654
    %v3656 = vpop.f32.mrb[0].mxu0
    %v3657 = vadd.f32 %v3544, %v3656
    %3658 = vdwg.mxu0
    %3659 = vmatprep.subr.bf16.mxu0 %v2412
    %3660 = vmatpush1.bf16.msra.mxu0 %v2411
    %3661 = vmatprep.subr.bf16.mxu0 %v2428
    %3662 = vmatpush1.bf16.msra.mxu0 %v2427
    %3663 = vmatprep.subr.bf16.mxu0 %v2444
    %3664 = vmatpush1.bf16.msra.mxu0 %v2443
    %3665 = vmatprep.subr.bf16.mxu0 %v2460
    %3666 = vmatpush1.bf16.msra.mxu0 %v2459
    %3667 = vmatprep.subr.bf16.mxu0 %v2476
    %3668 = vmatpush1.bf16.msra.mxu0 %v2475
    %3669 = vmatprep.subr.bf16.mxu0 %v2492
    %3670 = vmatpush1.bf16.msra.mxu0 %v2491
    %3671 = vmatprep.subr.bf16.mxu0 %v2508
    %3672 = vmatpush1.bf16.msra.mxu0 %v2507
    %3673 = vmatprep.subr.bf16.mxu0 %v2524
    %3674 = vmatpush1.bf16.msra.mxu0 %v2523
    %3675 = vmatprep.subr.bf16.mxu0 %v2540
    %3676 = vmatpush1.bf16.msra.mxu0 %v2539
    %3677 = vmatprep.subr.bf16.mxu0 %v2556
    %3678 = vmatpush1.bf16.msra.mxu0 %v2555
    %3679 = vmatprep.subr.bf16.mxu0 %v2572
    %3680 = vmatpush1.bf16.msra.mxu0 %v2571
    %3681 = vmatprep.subr.bf16.mxu0 %v2588
    %3682 = vmatpush1.bf16.msra.mxu0 %v2587
    %3683 = vmatprep.subr.bf16.mxu0 %v2604
    %3684 = vmatpush1.bf16.msra.mxu0 %v2603
    %3685 = vmatprep.subr.bf16.mxu0 %v2620
    %3686 = vmatpush1.bf16.msra.mxu0 %v2619
    %3687 = vmatprep.subr.bf16.mxu0 %v2636
    %3688 = vmatpush1.bf16.msra.mxu0 %v2635
    %3689 = vmatprep.subr.bf16.mxu0 %v2652
    %3690 = vmatpush1.bf16.msra.mxu0 %v2651
    %3691 = vmatprep.mubr.bf16.mxu0 %v810
    %3692 = vmatmul.mubr.bf16.gmra.mrb[0].mxu0 %v809
    %v3693 = vpop.f32.mrb[0].mxu0
    %v3694 = vadd.f32 %v644, %v3693
    %v3695 = vpop.f32.mrb[0].mxu0
    %v3696 = vadd.f32 %v648, %v3695
    %v3697 = vpop.f32.mrb[0].mxu0
    %v3698 = vadd.f32 %v644, %v3697
    %v3699 = vpop.f32.mrb[0].mxu0
    %v3700 = vadd.f32 %v648, %v3699
    %3701 = vmatprep.mubr.bf16.mxu0 %v814
    %3702 = vmatmul.mubr.bf16.gmra.mrb[0].mxu0 %v813
    %v3703 = vpop.f32.mrb[0].mxu0
    %v3704 = vadd.f32 %v644, %v3703
    %v3705 = vpop.f32.mrb[0].mxu0
    %v3706 = vadd.f32 %v648, %v3705
    %v3707 = vpop.f32.mrb[0].mxu0
    %v3708 = vadd.f32 %v644, %v3707
    %v3709 = vpop.f32.mrb[0].mxu0
    %v3710 = vadd.f32 %v648, %v3709
    %3711 = vmatprep.mubr.bf16.mxu0 %v818
    %3712 = vmatmul.mubr.bf16.gmra.mrb[0].mxu0 %v817
    %v3713 = vpop.f32.mrb[0].mxu0
    %v3714 = vadd.f32 %v644, %v3713
    %v3715 = vpop.f32.mrb[0].mxu0
    %v3716 = vadd.f32 %v648, %v3715
    %v3717 = vpop.f32.mrb[0].mxu0
    %v3718 = vadd.f32 %v644, %v3717
    %v3719 = vpop.f32.mrb[0].mxu0
    %v3720 = vadd.f32 %v648, %v3719
    %3721 = vmatprep.mubr.bf16.mxu0 %v822
    %3722 = vmatmul.mubr.bf16.gmra.mrb[0].mxu0 %v821
    %v3723 = vpop.f32.mrb[0].mxu0
    %v3724 = vadd.f32 %v644, %v3723
    %v3725 = vpop.f32.mrb[0].mxu0
    %v3726 = vadd.f32 %v648, %v3725
    %v3727 = vpop.f32.mrb[0].mxu0
    %v3728 = vadd.f32 %v644, %v3727
    %v3729 = vpop.f32.mrb[0].mxu0
    %v3730 = vadd.f32 %v648, %v3729
    %3731 = vmatprep.mubr.bf16.mxu0 %v826
    %3732 = vmatmul.mubr.bf16.gmra.mrb[0].mxu0 %v825
    %v3733 = vpop.f32.mrb[0].mxu0
    %v3734 = vadd.f32 %v644, %v3733
    %v3735 = vpop.f32.mrb[0].mxu0
    %v3736 = vadd.f32 %v648, %v3735
    %v3737 = vpop.f32.mrb[0].mxu0
    %v3738 = vadd.f32 %v644, %v3737
    %v3739 = vpop.f32.mrb[0].mxu0
    %v3740 = vadd.f32 %v648, %v3739
    %3741 = vmatprep.mubr.bf16.mxu0 %v830
    %3742 = vmatmul.mubr.bf16.gmra.mrb[0].mxu0 %v829
    %v3743 = vpop.f32.mrb[0].mxu0
    %v3744 = vadd.f32 %v644, %v3743
    %v3745 = vpop.f32.mrb[0].mxu0
    %v3746 = vadd.f32 %v648, %v3745
    %v3747 = vpop.f32.mrb[0].mxu0
    %v3748 = vadd.f32 %v644, %v3747
    %v3749 = vpop.f32.mrb[0].mxu0
    %v3750 = vadd.f32 %v648, %v3749
    %3751 = vmatprep.mubr.bf16.mxu0 %v834
    %3752 = vmatmul.mubr.bf16.gmra.mrb[0].mxu0 %v833
    %v3753 = vpop.f32.mrb[0].mxu0
    %v3754 = vadd.f32 %v644, %v3753
    %v3755 = vpop.f32.mrb[0].mxu0
    %v3756 = vadd.f32 %v648, %v3755
    %v3757 = vpop.f32.mrb[0].mxu0
    %v3758 = vadd.f32 %v644, %v3757
    %v3759 = vpop.f32.mrb[0].mxu0
    %v3760 = vadd.f32 %v648, %v3759
    %3761 = vmatprep.mubr.bf16.mxu0 %v838
    %3762 = vmatmul.mubr.bf16.gmra.mrb[0].mxu0 %v837
    %v3763 = vpop.f32.mrb[0].mxu0
    %v3764 = vadd.f32 %v644, %v3763
    %v3765 = vpop.f32.mrb[0].mxu0
    %v3766 = vadd.f32 %v648, %v3765
    %v3767 = vpop.f32.mrb[0].mxu0
    %v3768 = vadd.f32 %v644, %v3767
    %v3769 = vpop.f32.mrb[0].mxu0
    %v3770 = vadd.f32 %v648, %v3769
    %3771 = vdwg.mxu0
    %3772 = vmatprep.subr.bf16.mxu0 %v2668
    %3773 = vmatpush1.bf16.msra.mxu0 %v2667
    %3774 = vmatprep.subr.bf16.mxu0 %v2684
    %3775 = vmatpush1.bf16.msra.mxu0 %v2683
    %3776 = vmatprep.subr.bf16.mxu0 %v2700
    %3777 = vmatpush1.bf16.msra.mxu0 %v2699
    %3778 = vmatprep.subr.bf16.mxu0 %v2716
    %3779 = vmatpush1.bf16.msra.mxu0 %v2715
    %3780 = vmatprep.subr.bf16.mxu0 %v2732
    %3781 = vmatpush1.bf16.msra.mxu0 %v2731
    %3782 = vmatprep.subr.bf16.mxu0 %v2748
    %3783 = vmatpush1.bf16.msra.mxu0 %v2747
    %3784 = vmatprep.subr.bf16.mxu0 %v2764
    %3785 = vmatpush1.bf16.msra.mxu0 %v2763
    %3786 = vmatprep.subr.bf16.mxu0 %v2780
    %3787 = vmatpush1.bf16.msra.mxu0 %v2779
    %3788 = vmatprep.subr.bf16.mxu0 %v2796
    %3789 = vmatpush1.bf16.msra.mxu0 %v2795
    %3790 = vmatprep.subr.bf16.mxu0 %v2812
    %3791 = vmatpush1.bf16.msra.mxu0 %v2811
    %3792 = vmatprep.subr.bf16.mxu0 %v2828
    %3793 = vmatpush1.bf16.msra.mxu0 %v2827
    %3794 = vmatprep.subr.bf16.mxu0 %v2844
    %3795 = vmatpush1.bf16.msra.mxu0 %v2843
    %3796 = vmatprep.subr.bf16.mxu0 %v2860
    %3797 = vmatpush1.bf16.msra.mxu0 %v2859
    %3798 = vmatprep.subr.bf16.mxu0 %v2876
    %3799 = vmatpush1.bf16.msra.mxu0 %v2875
    %3800 = vmatprep.subr.bf16.mxu0 %v2892
    %3801 = vmatpush1.bf16.msra.mxu0 %v2891
    %3802 = vmatprep.subr.bf16.mxu0 %v2908
    %3803 = vmatpush1.bf16.msra.mxu0 %v2907
    %3804 = vmatprep.mubr.bf16.mxu0 %v812
    %3805 = vmatmul.mubr.bf16.gmra.mrb[0].mxu0 %v811
    %v3806 = vpop.f32.mrb[0].mxu0
    %v3807 = vadd.f32 %v3694, %v3806
    %v3808 = vpop.f32.mrb[0].mxu0
    %v3809 = vadd.f32 %v3696, %v3808
    %v3810 = vpop.f32.mrb[0].mxu0
    %v3811 = vadd.f32 %v3698, %v3810
    %v3812 = vpop.f32.mrb[0].mxu0
    %v3813 = vadd.f32 %v3700, %v3812
    %3814 = vmatprep.mubr.bf16.mxu0 %v816
    %3815 = vmatmul.mubr.bf16.gmra.mrb[0].mxu0 %v815
    %v3816 = vpop.f32.mrb[0].mxu0
    %v3817 = vadd.f32 %v3704, %v3816
    %v3818 = vpop.f32.mrb[0].mxu0
    %v3819 = vadd.f32 %v3706, %v3818
    %v3820 = vpop.f32.mrb[0].mxu0
    %v3821 = vadd.f32 %v3708, %v3820
    %v3822 = vpop.f32.mrb[0].mxu0
    %v3823 = vadd.f32 %v3710, %v3822
    %3824 = vmatprep.mubr.bf16.mxu0 %v820
    %3825 = vmatmul.mubr.bf16.gmra.mrb[0].mxu0 %v819
    %v3826 = vpop.f32.mrb[0].mxu0
    %v3827 = vadd.f32 %v3714, %v3826
    %v3828 = vpop.f32.mrb[0].mxu0
    %v3829 = vadd.f32 %v3716, %v3828
    %v3830 = vpop.f32.mrb[0].mxu0
    %v3831 = vadd.f32 %v3718, %v3830
    %v3832 = vpop.f32.mrb[0].mxu0
    %v3833 = vadd.f32 %v3720, %v3832
    %3834 = vmatprep.mubr.bf16.mxu0 %v824
    %3835 = vmatmul.mubr.bf16.gmra.mrb[0].mxu0 %v823
    %v3836 = vpop.f32.mrb[0].mxu0
    %v3837 = vadd.f32 %v3724, %v3836
    %v3838 = vpop.f32.mrb[0].mxu0
    %v3839 = vadd.f32 %v3726, %v3838
    %v3840 = vpop.f32.mrb[0].mxu0
    %v3841 = vadd.f32 %v3728, %v3840
    %v3842 = vpop.f32.mrb[0].mxu0
    %v3843 = vadd.f32 %v3730, %v3842
    %3844 = vmatprep.mubr.bf16.mxu0 %v828
    %3845 = vmatmul.mubr.bf16.gmra.mrb[0].mxu0 %v827
    %v3846 = vpop.f32.mrb[0].mxu0
    %v3847 = vadd.f32 %v3734, %v3846
    %v3848 = vpop.f32.mrb[0].mxu0
    %v3849 = vadd.f32 %v3736, %v3848
    %v3850 = vpop.f32.mrb[0].mxu0
    %v3851 = vadd.f32 %v3738, %v3850
    %v3852 = vpop.f32.mrb[0].mxu0
    %v3853 = vadd.f32 %v3740, %v3852
    %3854 = vmatprep.mubr.bf16.mxu0 %v832
    %3855 = vmatmul.mubr.bf16.gmra.mrb[0].mxu0 %v831
    %v3856 = vpop.f32.mrb[0].mxu0
    %v3857 = vadd.f32 %v3744, %v3856
    %v3858 = vpop.f32.mrb[0].mxu0
    %v3859 = vadd.f32 %v3746, %v3858
    %v3860 = vpop.f32.mrb[0].mxu0
    %v3861 = vadd.f32 %v3748, %v3860
    %v3862 = vpop.f32.mrb[0].mxu0
    %v3863 = vadd.f32 %v3750, %v3862
    %3864 = vmatprep.mubr.bf16.mxu0 %v836
    %3865 = vmatmul.mubr.bf16.gmra.mrb[0].mxu0 %v835
    %v3866 = vpop.f32.mrb[0].mxu0
    %v3867 = vadd.f32 %v3754, %v3866
    %v3868 = vpop.f32.mrb[0].mxu0
    %v3869 = vadd.f32 %v3756, %v3868
    %v3870 = vpop.f32.mrb[0].mxu0
    %v3871 = vadd.f32 %v3758, %v3870
    %v3872 = vpop.f32.mrb[0].mxu0
    %v3873 = vadd.f32 %v3760, %v3872
    %3874 = vmatprep.mubr.bf16.mxu0 %v840
    %3875 = vmatmul.mubr.bf16.gmra.mrb[0].mxu0 %v839
    %v3876 = vpop.f32.mrb[0].mxu0
    %v3877 = vadd.f32 %v3764, %v3876
    %v3878 = vpop.f32.mrb[0].mxu0
    %v3879 = vadd.f32 %v3766, %v3878
    %v3880 = vpop.f32.mrb[0].mxu0
    %v3881 = vadd.f32 %v3768, %v3880
    %v3882 = vpop.f32.mrb[0].mxu0
    %v3883 = vadd.f32 %v3770, %v3882
    %3884 = vdwg.mxu0
    %3885 = vmatprep.subr.bf16.mxu0 %v2414
    %3886 = vmatpush1.bf16.msra.mxu0 %v2413
    %3887 = vmatprep.subr.bf16.mxu0 %v2430
    %3888 = vmatpush1.bf16.msra.mxu0 %v2429
    %3889 = vmatprep.subr.bf16.mxu0 %v2446
    %3890 = vmatpush1.bf16.msra.mxu0 %v2445
    %3891 = vmatprep.subr.bf16.mxu0 %v2462
    %3892 = vmatpush1.bf16.msra.mxu0 %v2461
    %3893 = vmatprep.subr.bf16.mxu0 %v2478
    %3894 = vmatpush1.bf16.msra.mxu0 %v2477
    %3895 = vmatprep.subr.bf16.mxu0 %v2494
    %3896 = vmatpush1.bf16.msra.mxu0 %v2493
    %3897 = vmatprep.subr.bf16.mxu0 %v2510
    %3898 = vmatpush1.bf16.msra.mxu0 %v2509
    %3899 = vmatprep.subr.bf16.mxu0 %v2526
    %3900 = vmatpush1.bf16.msra.mxu0 %v2525
    %3901 = vmatprep.subr.bf16.mxu0 %v2542
    %3902 = vmatpush1.bf16.msra.mxu0 %v2541
    %3903 = vmatprep.subr.bf16.mxu0 %v2558
    %3904 = vmatpush1.bf16.msra.mxu0 %v2557
    %3905 = vmatprep.subr.bf16.mxu0 %v2574
    %3906 = vmatpush1.bf16.msra.mxu0 %v2573
    %3907 = vmatprep.subr.bf16.mxu0 %v2590
    %3908 = vmatpush1.bf16.msra.mxu0 %v2589
    %3909 = vmatprep.subr.bf16.mxu0 %v2606
    %3910 = vmatpush1.bf16.msra.mxu0 %v2605
    %3911 = vmatprep.subr.bf16.mxu0 %v2622
    %3912 = vmatpush1.bf16.msra.mxu0 %v2621
    %3913 = vmatprep.subr.bf16.mxu0 %v2638
    %3914 = vmatpush1.bf16.msra.mxu0 %v2637
    %3915 = vmatprep.subr.bf16.mxu0 %v2654
    %3916 = vmatpush1.bf16.msra.mxu0 %v2653
    %3917 = vmatprep.mubr.bf16.mxu0 %v810
    %3918 = vmatmul.mubr.bf16.gmra.mrb[0].mxu0 %v809
    %v3919 = vpop.f32.mrb[0].mxu0
    %v3920 = vadd.f32 %v652, %v3919
    %v3921 = vpop.f32.mrb[0].mxu0
    %v3922 = vadd.f32 %v656, %v3921
    %v3923 = vpop.f32.mrb[0].mxu0
    %v3924 = vadd.f32 %v652, %v3923
    %v3925 = vpop.f32.mrb[0].mxu0
    %v3926 = vadd.f32 %v656, %v3925
    %3927 = vmatprep.mubr.bf16.mxu0 %v814
    %3928 = vmatmul.mubr.bf16.gmra.mrb[0].mxu0 %v813
    %v3929 = vpop.f32.mrb[0].mxu0
    %v3930 = vadd.f32 %v652, %v3929
    %v3931 = vpop.f32.mrb[0].mxu0
    %v3932 = vadd.f32 %v656, %v3931
    %v3933 = vpop.f32.mrb[0].mxu0
    %v3934 = vadd.f32 %v652, %v3933
    %v3935 = vpop.f32.mrb[0].mxu0
    %v3936 = vadd.f32 %v656, %v3935
    %3937 = vmatprep.mubr.bf16.mxu0 %v818
    %3938 = vmatmul.mubr.bf16.gmra.mrb[0].mxu0 %v817
    %v3939 = vpop.f32.mrb[0].mxu0
    %v3940 = vadd.f32 %v652, %v3939
    %v3941 = vpop.f32.mrb[0].mxu0
    %v3942 = vadd.f32 %v656, %v3941
    %v3943 = vpop.f32.mrb[0].mxu0
    %v3944 = vadd.f32 %v652, %v3943
    %v3945 = vpop.f32.mrb[0].mxu0
    %v3946 = vadd.f32 %v656, %v3945
    %3947 = vmatprep.mubr.bf16.mxu0 %v822
    %3948 = vmatmul.mubr.bf16.gmra.mrb[0].mxu0 %v821
    %v3949 = vpop.f32.mrb[0].mxu0
    %v3950 = vadd.f32 %v652, %v3949
    %v3951 = vpop.f32.mrb[0].mxu0
    %v3952 = vadd.f32 %v656, %v3951
    %v3953 = vpop.f32.mrb[0].mxu0
    %v3954 = vadd.f32 %v652, %v3953
    %v3955 = vpop.f32.mrb[0].mxu0
    %v3956 = vadd.f32 %v656, %v3955
    %3957 = vmatprep.mubr.bf16.mxu0 %v826
    %3958 = vmatmul.mubr.bf16.gmra.mrb[0].mxu0 %v825
    %v3959 = vpop.f32.mrb[0].mxu0
    %v3960 = vadd.f32 %v652, %v3959
    %v3961 = vpop.f32.mrb[0].mxu0
    %v3962 = vadd.f32 %v656, %v3961
    %v3963 = vpop.f32.mrb[0].mxu0
    %v3964 = vadd.f32 %v652, %v3963
    %v3965 = vpop.f32.mrb[0].mxu0
    %v3966 = vadd.f32 %v656, %v3965
    %3967 = vmatprep.mubr.bf16.mxu0 %v830
    %3968 = vmatmul.mubr.bf16.gmra.mrb[0].mxu0 %v829
    %v3969 = vpop.f32.mrb[0].mxu0
    %v3970 = vadd.f32 %v652, %v3969
    %v3971 = vpop.f32.mrb[0].mxu0
    %v3972 = vadd.f32 %v656, %v3971
    %v3973 = vpop.f32.mrb[0].mxu0
    %v3974 = vadd.f32 %v652, %v3973
    %v3975 = vpop.f32.mrb[0].mxu0
    %v3976 = vadd.f32 %v656, %v3975
    %3977 = vmatprep.mubr.bf16.mxu0 %v834
    %3978 = vmatmul.mubr.bf16.gmra.mrb[0].mxu0 %v833
    %v3979 = vpop.f32.mrb[0].mxu0
    %v3980 = vadd.f32 %v652, %v3979
    %v3981 = vpop.f32.mrb[0].mxu0
    %v3982 = vadd.f32 %v656, %v3981
    %v3983 = vpop.f32.mrb[0].mxu0
    %v3984 = vadd.f32 %v652, %v3983
    %v3985 = vpop.f32.mrb[0].mxu0
    %v3986 = vadd.f32 %v656, %v3985
    %3987 = vmatprep.mubr.bf16.mxu0 %v838
    %3988 = vmatmul.mubr.bf16.gmra.mrb[0].mxu0 %v837
    %v3989 = vpop.f32.mrb[0].mxu0
    %v3990 = vadd.f32 %v652, %v3989
    %v3991 = vpop.f32.mrb[0].mxu0
    %v3992 = vadd.f32 %v656, %v3991
    %v3993 = vpop.f32.mrb[0].mxu0
    %v3994 = vadd.f32 %v652, %v3993
    %v3995 = vpop.f32.mrb[0].mxu0
    %v3996 = vadd.f32 %v656, %v3995
    %3997 = vdwg.mxu0
    %3998 = vmatprep.subr.bf16.mxu0 %v2670
    %3999 = vmatpush1.bf16.msra.mxu0 %v2669
    %4000 = vmatprep.subr.bf16.mxu0 %v2686
    %4001 = vmatpush1.bf16.msra.mxu0 %v2685
    %4002 = vmatprep.subr.bf16.mxu0 %v2702
    %4003 = vmatpush1.bf16.msra.mxu0 %v2701
    %4004 = vmatprep.subr.bf16.mxu0 %v2718
    %4005 = vmatpush1.bf16.msra.mxu0 %v2717
    %4006 = vmatprep.subr.bf16.mxu0 %v2734
    %4007 = vmatpush1.bf16.msra.mxu0 %v2733
    %4008 = vmatprep.subr.bf16.mxu0 %v2750
    %4009 = vmatpush1.bf16.msra.mxu0 %v2749
    %4010 = vmatprep.subr.bf16.mxu0 %v2766
    %4011 = vmatpush1.bf16.msra.mxu0 %v2765
    %4012 = vmatprep.subr.bf16.mxu0 %v2782
    %4013 = vmatpush1.bf16.msra.mxu0 %v2781
    %4014 = vmatprep.subr.bf16.mxu0 %v2798
    %4015 = vmatpush1.bf16.msra.mxu0 %v2797
    %4016 = vmatprep.subr.bf16.mxu0 %v2814
    %4017 = vmatpush1.bf16.msra.mxu0 %v2813
    %4018 = vmatprep.subr.bf16.mxu0 %v2830
    %4019 = vmatpush1.bf16.msra.mxu0 %v2829
    %4020 = vmatprep.subr.bf16.mxu0 %v2846
    %4021 = vmatpush1.bf16.msra.mxu0 %v2845
    %4022 = vmatprep.subr.bf16.mxu0 %v2862
    %4023 = vmatpush1.bf16.msra.mxu0 %v2861
    %4024 = vmatprep.subr.bf16.mxu0 %v2878
    %4025 = vmatpush1.bf16.msra.mxu0 %v2877
    %4026 = vmatprep.subr.bf16.mxu0 %v2894
    %4027 = vmatpush1.bf16.msra.mxu0 %v2893
    %4028 = vmatprep.subr.bf16.mxu0 %v2910
    %4029 = vmatpush1.bf16.msra.mxu0 %v2909
    %4030 = vmatprep.mubr.bf16.mxu0 %v812
    %4031 = vmatmul.mubr.bf16.gmra.mrb[0].mxu0 %v811
    %v4032 = vpop.f32.mrb[0].mxu0
    %v4033 = vadd.f32 %v3920, %v4032
    %v4034 = vpop.f32.mrb[0].mxu0
    %v4035 = vadd.f32 %v3922, %v4034
    %v4036 = vpop.f32.mrb[0].mxu0
    %v4037 = vadd.f32 %v3924, %v4036
    %v4038 = vpop.f32.mrb[0].mxu0
    %v4039 = vadd.f32 %v3926, %v4038
    %4040 = vmatprep.mubr.bf16.mxu0 %v816
    %4041 = vmatmul.mubr.bf16.gmra.mrb[0].mxu0 %v815
    %v4042 = vpop.f32.mrb[0].mxu0
    %v4043 = vadd.f32 %v3930, %v4042
    %v4044 = vpop.f32.mrb[0].mxu0
    %v4045 = vadd.f32 %v3932, %v4044
    %v4046 = vpop.f32.mrb[0].mxu0
    %v4047 = vadd.f32 %v3934, %v4046
    %v4048 = vpop.f32.mrb[0].mxu0
    %v4049 = vadd.f32 %v3936, %v4048
    %4050 = vmatprep.mubr.bf16.mxu0 %v820
    %4051 = vmatmul.mubr.bf16.gmra.mrb[0].mxu0 %v819
    %v4052 = vpop.f32.mrb[0].mxu0
    %v4053 = vadd.f32 %v3940, %v4052
    %v4054 = vpop.f32.mrb[0].mxu0
    %v4055 = vadd.f32 %v3942, %v4054
    %v4056 = vpop.f32.mrb[0].mxu0
    %v4057 = vadd.f32 %v3944, %v4056
    %v4058 = vpop.f32.mrb[0].mxu0
    %v4059 = vadd.f32 %v3946, %v4058
    %4060 = vmatprep.mubr.bf16.mxu0 %v824
    %4061 = vmatmul.mubr.bf16.gmra.mrb[0].mxu0 %v823
    %v4062 = vpop.f32.mrb[0].mxu0
    %v4063 = vadd.f32 %v3950, %v4062
    %v4064 = vpop.f32.mrb[0].mxu0
    %v4065 = vadd.f32 %v3952, %v4064
    %v4066 = vpop.f32.mrb[0].mxu0
    %v4067 = vadd.f32 %v3954, %v4066
    %v4068 = vpop.f32.mrb[0].mxu0
    %v4069 = vadd.f32 %v3956, %v4068
    %4070 = vmatprep.mubr.bf16.mxu0 %v828
    %4071 = vmatmul.mubr.bf16.gmra.mrb[0].mxu0 %v827
    %v4072 = vpop.f32.mrb[0].mxu0
    %v4073 = vadd.f32 %v3960, %v4072
    %v4074 = vpop.f32.mrb[0].mxu0
    %v4075 = vadd.f32 %v3962, %v4074
    %v4076 = vpop.f32.mrb[0].mxu0
    %v4077 = vadd.f32 %v3964, %v4076
    %v4078 = vpop.f32.mrb[0].mxu0
    %v4079 = vadd.f32 %v3966, %v4078
    %4080 = vmatprep.mubr.bf16.mxu0 %v832
    %4081 = vmatmul.mubr.bf16.gmra.mrb[0].mxu0 %v831
    %v4082 = vpop.f32.mrb[0].mxu0
    %v4083 = vadd.f32 %v3970, %v4082
    %v4084 = vpop.f32.mrb[0].mxu0
    %v4085 = vadd.f32 %v3972, %v4084
    %v4086 = vpop.f32.mrb[0].mxu0
    %v4087 = vadd.f32 %v3974, %v4086
    %v4088 = vpop.f32.mrb[0].mxu0
    %v4089 = vadd.f32 %v3976, %v4088
    %4090 = vmatprep.mubr.bf16.mxu0 %v836
    %4091 = vmatmul.mubr.bf16.gmra.mrb[0].mxu0 %v835
    %v4092 = vpop.f32.mrb[0].mxu0
    %v4093 = vadd.f32 %v3980, %v4092
    %v4094 = vpop.f32.mrb[0].mxu0
    %v4095 = vadd.f32 %v3982, %v4094
    %v4096 = vpop.f32.mrb[0].mxu0
    %v4097 = vadd.f32 %v3984, %v4096
    %v4098 = vpop.f32.mrb[0].mxu0
    %v4099 = vadd.f32 %v3986, %v4098
    %4100 = vmatprep.mubr.bf16.mxu0 %v840
    %4101 = vmatmul.mubr.bf16.gmra.mrb[0].mxu0 %v839
    %v4102 = vpop.f32.mrb[0].mxu0
    %v4103 = vadd.f32 %v3990, %v4102
    %v4104 = vpop.f32.mrb[0].mxu0
    %v4105 = vadd.f32 %v3992, %v4104
    %v4106 = vpop.f32.mrb[0].mxu0
    %v4107 = vadd.f32 %v3994, %v4106
    %v4108 = vpop.f32.mrb[0].mxu0
    %v4109 = vadd.f32 %v3996, %v4108
    %4110 = vdwg.mxu0
    %4111 = vmatprep.subr.bf16.mxu0 %v2416
    %4112 = vmatpush1.bf16.msra.mxu0 %v2415
    %4113 = vmatprep.subr.bf16.mxu0 %v2432
    %4114 = vmatpush1.bf16.msra.mxu0 %v2431
    %4115 = vmatprep.subr.bf16.mxu0 %v2448
    %4116 = vmatpush1.bf16.msra.mxu0 %v2447
    %4117 = vmatprep.subr.bf16.mxu0 %v2464
    %4118 = vmatpush1.bf16.msra.mxu0 %v2463
    %4119 = vmatprep.subr.bf16.mxu0 %v2480
    %4120 = vmatpush1.bf16.msra.mxu0 %v2479
    %4121 = vmatprep.subr.bf16.mxu0 %v2496
    %4122 = vmatpush1.bf16.msra.mxu0 %v2495
    %4123 = vmatprep.subr.bf16.mxu0 %v2512
    %4124 = vmatpush1.bf16.msra.mxu0 %v2511
    %4125 = vmatprep.subr.bf16.mxu0 %v2528
    %4126 = vmatpush1.bf16.msra.mxu0 %v2527
    %4127 = vmatprep.subr.bf16.mxu0 %v2544
    %4128 = vmatpush1.bf16.msra.mxu0 %v2543
    %4129 = vmatprep.subr.bf16.mxu0 %v2560
    %4130 = vmatpush1.bf16.msra.mxu0 %v2559
    %4131 = vmatprep.subr.bf16.mxu0 %v2576
    %4132 = vmatpush1.bf16.msra.mxu0 %v2575
    %4133 = vmatprep.subr.bf16.mxu0 %v2592
    %4134 = vmatpush1.bf16.msra.mxu0 %v2591
    %4135 = vmatprep.subr.bf16.mxu0 %v2608
    %4136 = vmatpush1.bf16.msra.mxu0 %v2607
    %4137 = vmatprep.subr.bf16.mxu0 %v2624
    %4138 = vmatpush1.bf16.msra.mxu0 %v2623
    %4139 = vmatprep.subr.bf16.mxu0 %v2640
    %4140 = vmatpush1.bf16.msra.mxu0 %v2639
    %4141 = vmatprep.subr.bf16.mxu0 %v2656
    %4142 = vmatpush1.bf16.msra.mxu0 %v2655
    %4143 = vmatprep.mubr.bf16.mxu0 %v810
    %4144 = vmatmul.mubr.bf16.gmra.mrb[0].mxu0 %v809
    %v4145 = vpop.f32.mrb[0].mxu0
    %v4146 = vadd.f32 %v660, %v4145
    %v4147 = vpop.f32.mrb[0].mxu0
    %v4148 = vadd.f32 %v664, %v4147
    %v4149 = vpop.f32.mrb[0].mxu0
    %v4150 = vadd.f32 %v660, %v4149
    %v4151 = vpop.f32.mrb[0].mxu0
    %v4152 = vadd.f32 %v664, %v4151
    %4153 = vmatprep.mubr.bf16.mxu0 %v814
    %4154 = vmatmul.mubr.bf16.gmra.mrb[0].mxu0 %v813
    %v4155 = vpop.f32.mrb[0].mxu0
    %v4156 = vadd.f32 %v660, %v4155
    %v4157 = vpop.f32.mrb[0].mxu0
    %v4158 = vadd.f32 %v664, %v4157
    %v4159 = vpop.f32.mrb[0].mxu0
    %v4160 = vadd.f32 %v660, %v4159
    %v4161 = vpop.f32.mrb[0].mxu0
    %v4162 = vadd.f32 %v664, %v4161
    %4163 = vmatprep.mubr.bf16.mxu0 %v818
    %4164 = vmatmul.mubr.bf16.gmra.mrb[0].mxu0 %v817
    %v4165 = vpop.f32.mrb[0].mxu0
    %v4166 = vadd.f32 %v660, %v4165
    %v4167 = vpop.f32.mrb[0].mxu0
    %v4168 = vadd.f32 %v664, %v4167
    %v4169 = vpop.f32.mrb[0].mxu0
    %v4170 = vadd.f32 %v660, %v4169
    %v4171 = vpop.f32.mrb[0].mxu0
    %v4172 = vadd.f32 %v664, %v4171
    %4173 = vmatprep.mubr.bf16.mxu0 %v822
    %4174 = vmatmul.mubr.bf16.gmra.mrb[0].mxu0 %v821
    %v4175 = vpop.f32.mrb[0].mxu0
    %v4176 = vadd.f32 %v660, %v4175
    %v4177 = vpop.f32.mrb[0].mxu0
    %v4178 = vadd.f32 %v664, %v4177
    %v4179 = vpop.f32.mrb[0].mxu0
    %v4180 = vadd.f32 %v660, %v4179
    %v4181 = vpop.f32.mrb[0].mxu0
    %v4182 = vadd.f32 %v664, %v4181
    %4183 = vmatprep.mubr.bf16.mxu0 %v826
    %4184 = vmatmul.mubr.bf16.gmra.mrb[0].mxu0 %v825
    %v4185 = vpop.f32.mrb[0].mxu0
    %v4186 = vadd.f32 %v660, %v4185
    %v4187 = vpop.f32.mrb[0].mxu0
    %v4188 = vadd.f32 %v664, %v4187
    %v4189 = vpop.f32.mrb[0].mxu0
    %v4190 = vadd.f32 %v660, %v4189
    %v4191 = vpop.f32.mrb[0].mxu0
    %v4192 = vadd.f32 %v664, %v4191
    %4193 = vmatprep.mubr.bf16.mxu0 %v830
    %4194 = vmatmul.mubr.bf16.gmra.mrb[0].mxu0 %v829
    %v4195 = vpop.f32.mrb[0].mxu0
    %v4196 = vadd.f32 %v660, %v4195
    %v4197 = vpop.f32.mrb[0].mxu0
    %v4198 = vadd.f32 %v664, %v4197
    %v4199 = vpop.f32.mrb[0].mxu0
    %v4200 = vadd.f32 %v660, %v4199
    %v4201 = vpop.f32.mrb[0].mxu0
    %v4202 = vadd.f32 %v664, %v4201
    %4203 = vmatprep.mubr.bf16.mxu0 %v834
    %4204 = vmatmul.mubr.bf16.gmra.mrb[0].mxu0 %v833
    %v4205 = vpop.f32.mrb[0].mxu0
    %v4206 = vadd.f32 %v660, %v4205
    %v4207 = vpop.f32.mrb[0].mxu0
    %v4208 = vadd.f32 %v664, %v4207
    %v4209 = vpop.f32.mrb[0].mxu0
    %v4210 = vadd.f32 %v660, %v4209
    %v4211 = vpop.f32.mrb[0].mxu0
    %v4212 = vadd.f32 %v664, %v4211
    %4213 = vmatprep.mubr.bf16.mxu0 %v838
    %4214 = vmatmul.mubr.bf16.gmra.mrb[0].mxu0 %v837
    %v4215 = vpop.f32.mrb[0].mxu0
    %v4216 = vadd.f32 %v660, %v4215
    %v4217 = vpop.f32.mrb[0].mxu0
    %v4218 = vadd.f32 %v664, %v4217
    %v4219 = vpop.f32.mrb[0].mxu0
    %v4220 = vadd.f32 %v660, %v4219
    %v4221 = vpop.f32.mrb[0].mxu0
    %v4222 = vadd.f32 %v664, %v4221
    %4223 = vdwg.mxu0
    %4224 = vmatprep.subr.bf16.mxu0 %v2672
    %4225 = vmatpush1.bf16.msra.mxu0 %v2671
    %4226 = vmatprep.subr.bf16.mxu0 %v2688
    %4227 = vmatpush1.bf16.msra.mxu0 %v2687
    %4228 = vmatprep.subr.bf16.mxu0 %v2704
    %4229 = vmatpush1.bf16.msra.mxu0 %v2703
    %4230 = vmatprep.subr.bf16.mxu0 %v2720
    %4231 = vmatpush1.bf16.msra.mxu0 %v2719
    %4232 = vmatprep.subr.bf16.mxu0 %v2736
    %4233 = vmatpush1.bf16.msra.mxu0 %v2735
    %4234 = vmatprep.subr.bf16.mxu0 %v2752
    %4235 = vmatpush1.bf16.msra.mxu0 %v2751
    %4236 = vmatprep.subr.bf16.mxu0 %v2768
    %4237 = vmatpush1.bf16.msra.mxu0 %v2767
    %4238 = vmatprep.subr.bf16.mxu0 %v2784
    %4239 = vmatpush1.bf16.msra.mxu0 %v2783
    %4240 = vmatprep.subr.bf16.mxu0 %v2800
    %4241 = vmatpush1.bf16.msra.mxu0 %v2799
    %4242 = vmatprep.subr.bf16.mxu0 %v2816
    %4243 = vmatpush1.bf16.msra.mxu0 %v2815
    %4244 = vmatprep.subr.bf16.mxu0 %v2832
    %4245 = vmatpush1.bf16.msra.mxu0 %v2831
    %4246 = vmatprep.subr.bf16.mxu0 %v2848
    %4247 = vmatpush1.bf16.msra.mxu0 %v2847
    %4248 = vmatprep.subr.bf16.mxu0 %v2864
    %4249 = vmatpush1.bf16.msra.mxu0 %v2863
    %4250 = vmatprep.subr.bf16.mxu0 %v2880
    %4251 = vmatpush1.bf16.msra.mxu0 %v2879
    %4252 = vmatprep.subr.bf16.mxu0 %v2896
    %4253 = vmatpush1.bf16.msra.mxu0 %v2895
    %4254 = vmatprep.subr.bf16.mxu0 %v2912
    %4255 = vmatpush1.bf16.msra.mxu0 %v2911
    %4256 = vmatprep.mubr.bf16.mxu0 %v812
    %4257 = vmatmul.mubr.bf16.gmra.mrb[0].mxu0 %v811
    %v4258 = vpop.f32.mrb[0].mxu0
    %v4259 = vadd.f32 %v4146, %v4258
    %v4260 = vpop.f32.mrb[0].mxu0
    %v4261 = vadd.f32 %v4148, %v4260
    %v4262 = vpop.f32.mrb[0].mxu0
    %v4263 = vadd.f32 %v4150, %v4262
    %v4264 = vpop.f32.mrb[0].mxu0
    %v4265 = vadd.f32 %v4152, %v4264
    %4266 = vmatprep.mubr.bf16.mxu0 %v816
    %4267 = vmatmul.mubr.bf16.gmra.mrb[0].mxu0 %v815
    %v4268 = vpop.f32.mrb[0].mxu0
    %v4269 = vadd.f32 %v4156, %v4268
    %v4270 = vpop.f32.mrb[0].mxu0
    %v4271 = vadd.f32 %v4158, %v4270
    %v4272 = vpop.f32.mrb[0].mxu0
    %v4273 = vadd.f32 %v4160, %v4272
    %v4274 = vpop.f32.mrb[0].mxu0
    %v4275 = vadd.f32 %v4162, %v4274
    %4276 = vmatprep.mubr.bf16.mxu0 %v820
    %4277 = vmatmul.mubr.bf16.gmra.mrb[0].mxu0 %v819
    %v4278 = vpop.f32.mrb[0].mxu0
    %v4279 = vadd.f32 %v4166, %v4278
    %v4280 = vpop.f32.mrb[0].mxu0
    %v4281 = vadd.f32 %v4168, %v4280
    %v4282 = vpop.f32.mrb[0].mxu0
    %v4283 = vadd.f32 %v4170, %v4282
    %v4284 = vpop.f32.mrb[0].mxu0
    %v4285 = vadd.f32 %v4172, %v4284
    %4286 = vmatprep.mubr.bf16.mxu0 %v824
    %4287 = vmatmul.mubr.bf16.gmra.mrb[0].mxu0 %v823
    %v4288 = vpop.f32.mrb[0].mxu0
    %v4289 = vadd.f32 %v4176, %v4288
    %v4290 = vpop.f32.mrb[0].mxu0
    %v4291 = vadd.f32 %v4178, %v4290
    %v4292 = vpop.f32.mrb[0].mxu0
    %v4293 = vadd.f32 %v4180, %v4292
    %v4294 = vpop.f32.mrb[0].mxu0
    %v4295 = vadd.f32 %v4182, %v4294
    %4296 = vmatprep.mubr.bf16.mxu0 %v828
    %4297 = vmatmul.mubr.bf16.gmra.mrb[0].mxu0 %v827
    %v4298 = vpop.f32.mrb[0].mxu0
    %v4299 = vadd.f32 %v4186, %v4298
    %v4300 = vpop.f32.mrb[0].mxu0
    %v4301 = vadd.f32 %v4188, %v4300
    %v4302 = vpop.f32.mrb[0].mxu0
    %v4303 = vadd.f32 %v4190, %v4302
    %v4304 = vpop.f32.mrb[0].mxu0
    %v4305 = vadd.f32 %v4192, %v4304
    %4306 = vmatprep.mubr.bf16.mxu0 %v832
    %4307 = vmatmul.mubr.bf16.gmra.mrb[0].mxu0 %v831
    %v4308 = vpop.f32.mrb[0].mxu0
    %v4309 = vadd.f32 %v4196, %v4308
    %v4310 = vpop.f32.mrb[0].mxu0
    %v4311 = vadd.f32 %v4198, %v4310
    %v4312 = vpop.f32.mrb[0].mxu0
    %v4313 = vadd.f32 %v4200, %v4312
    %v4314 = vpop.f32.mrb[0].mxu0
    %v4315 = vadd.f32 %v4202, %v4314
    %4316 = vmatprep.mubr.bf16.mxu0 %v836
    %4317 = vmatmul.mubr.bf16.gmra.mrb[0].mxu0 %v835
    %v4318 = vpop.f32.mrb[0].mxu0
    %v4319 = vadd.f32 %v4206, %v4318
    %v4320 = vpop.f32.mrb[0].mxu0
    %v4321 = vadd.f32 %v4208, %v4320
    %v4322 = vpop.f32.mrb[0].mxu0
    %v4323 = vadd.f32 %v4210, %v4322
    %v4324 = vpop.f32.mrb[0].mxu0
    %v4325 = vadd.f32 %v4212, %v4324
    %4326 = vmatprep.mubr.bf16.mxu0 %v840
    %4327 = vmatmul.mubr.bf16.gmra.mrb[0].mxu0 %v839
    %v4328 = vpop.f32.mrb[0].mxu0
    %v4329 = vadd.f32 %v4216, %v4328
    %v4330 = vpop.f32.mrb[0].mxu0
    %v4331 = vadd.f32 %v4218, %v4330
    %v4332 = vpop.f32.mrb[0].mxu0
    %v4333 = vadd.f32 %v4220, %v4332
    %v4334 = vpop.f32.mrb[0].mxu0
    %v4335 = vadd.f32 %v4222, %v4334
    %4336 = vdwg.mxu0
    %4337 = vmatprep.subr.bf16.mxu0 %v2418
    %4338 = vmatpush1.bf16.msra.mxu0 %v2417
    %4339 = vmatprep.subr.bf16.mxu0 %v2434
    %4340 = vmatpush1.bf16.msra.mxu0 %v2433
    %4341 = vmatprep.subr.bf16.mxu0 %v2450
    %4342 = vmatpush1.bf16.msra.mxu0 %v2449
    %4343 = vmatprep.subr.bf16.mxu0 %v2466
    %4344 = vmatpush1.bf16.msra.mxu0 %v2465
    %4345 = vmatprep.subr.bf16.mxu0 %v2482
    %4346 = vmatpush1.bf16.msra.mxu0 %v2481
    %4347 = vmatprep.subr.bf16.mxu0 %v2498
    %4348 = vmatpush1.bf16.msra.mxu0 %v2497
    %4349 = vmatprep.subr.bf16.mxu0 %v2514
    %4350 = vmatpush1.bf16.msra.mxu0 %v2513
    %4351 = vmatprep.subr.bf16.mxu0 %v2530
    %4352 = vmatpush1.bf16.msra.mxu0 %v2529
    %4353 = vmatprep.subr.bf16.mxu0 %v2546
    %4354 = vmatpush1.bf16.msra.mxu0 %v2545
    %4355 = vmatprep.subr.bf16.mxu0 %v2562
    %4356 = vmatpush1.bf16.msra.mxu0 %v2561
    %4357 = vmatprep.subr.bf16.mxu0 %v2578
    %4358 = vmatpush1.bf16.msra.mxu0 %v2577
    %4359 = vmatprep.subr.bf16.mxu0 %v2594
    %4360 = vmatpush1.bf16.msra.mxu0 %v2593
    %4361 = vmatprep.subr.bf16.mxu0 %v2610
    %4362 = vmatpush1.bf16.msra.mxu0 %v2609
    %4363 = vmatprep.subr.bf16.mxu0 %v2626
    %4364 = vmatpush1.bf16.msra.mxu0 %v2625
    %4365 = vmatprep.subr.bf16.mxu0 %v2642
    %4366 = vmatpush1.bf16.msra.mxu0 %v2641
    %4367 = vmatprep.subr.bf16.mxu0 %v2658
    %4368 = vmatpush1.bf16.msra.mxu0 %v2657
    %4369 = vmatprep.mubr.bf16.mxu0 %v810
    %4370 = vmatmul.mubr.bf16.gmra.mrb[0].mxu0 %v809
    %v4371 = vpop.f32.mrb[0].mxu0
    %v4372 = vadd.f32 %v668, %v4371
    %v4373 = vpop.f32.mrb[0].mxu0
    %v4374 = vadd.f32 %v672, %v4373
    %v4375 = vpop.f32.mrb[0].mxu0
    %v4376 = vadd.f32 %v668, %v4375
    %v4377 = vpop.f32.mrb[0].mxu0
    %v4378 = vadd.f32 %v672, %v4377
    %4379 = vmatprep.mubr.bf16.mxu0 %v814
    %4380 = vmatmul.mubr.bf16.gmra.mrb[0].mxu0 %v813
    %v4381 = vpop.f32.mrb[0].mxu0
    %v4382 = vadd.f32 %v668, %v4381
    %v4383 = vpop.f32.mrb[0].mxu0
    %v4384 = vadd.f32 %v672, %v4383
    %v4385 = vpop.f32.mrb[0].mxu0
    %v4386 = vadd.f32 %v668, %v4385
    %v4387 = vpop.f32.mrb[0].mxu0
    %v4388 = vadd.f32 %v672, %v4387
    %4389 = vmatprep.mubr.bf16.mxu0 %v818
    %4390 = vmatmul.mubr.bf16.gmra.mrb[0].mxu0 %v817
    %v4391 = vpop.f32.mrb[0].mxu0
    %v4392 = vadd.f32 %v668, %v4391
    %v4393 = vpop.f32.mrb[0].mxu0
    %v4394 = vadd.f32 %v672, %v4393
    %v4395 = vpop.f32.mrb[0].mxu0
    %v4396 = vadd.f32 %v668, %v4395
    %v4397 = vpop.f32.mrb[0].mxu0
    %v4398 = vadd.f32 %v672, %v4397
    %4399 = vmatprep.mubr.bf16.mxu0 %v822
    %4400 = vmatmul.mubr.bf16.gmra.mrb[0].mxu0 %v821
    %v4401 = vpop.f32.mrb[0].mxu0
    %v4402 = vadd.f32 %v668, %v4401
    %v4403 = vpop.f32.mrb[0].mxu0
    %v4404 = vadd.f32 %v672, %v4403
    %v4405 = vpop.f32.mrb[0].mxu0
    %v4406 = vadd.f32 %v668, %v4405
    %v4407 = vpop.f32.mrb[0].mxu0
    %v4408 = vadd.f32 %v672, %v4407
    %4409 = vmatprep.mubr.bf16.mxu0 %v826
    %4410 = vmatmul.mubr.bf16.gmra.mrb[0].mxu0 %v825
    %v4411 = vpop.f32.mrb[0].mxu0
    %v4412 = vadd.f32 %v668, %v4411
    %v4413 = vpop.f32.mrb[0].mxu0
    %v4414 = vadd.f32 %v672, %v4413
    %v4415 = vpop.f32.mrb[0].mxu0
    %v4416 = vadd.f32 %v668, %v4415
    %v4417 = vpop.f32.mrb[0].mxu0
    %v4418 = vadd.f32 %v672, %v4417
    %4419 = vmatprep.mubr.bf16.mxu0 %v830
    %4420 = vmatmul.mubr.bf16.gmra.mrb[0].mxu0 %v829
    %v4421 = vpop.f32.mrb[0].mxu0
    %v4422 = vadd.f32 %v668, %v4421
    %v4423 = vpop.f32.mrb[0].mxu0
    %v4424 = vadd.f32 %v672, %v4423
    %v4425 = vpop.f32.mrb[0].mxu0
    %v4426 = vadd.f32 %v668, %v4425
    %v4427 = vpop.f32.mrb[0].mxu0
    %v4428 = vadd.f32 %v672, %v4427
    %4429 = vmatprep.mubr.bf16.mxu0 %v834
    %4430 = vmatmul.mubr.bf16.gmra.mrb[0].mxu0 %v833
    %v4431 = vpop.f32.mrb[0].mxu0
    %v4432 = vadd.f32 %v668, %v4431
    %v4433 = vpop.f32.mrb[0].mxu0
    %v4434 = vadd.f32 %v672, %v4433
    %v4435 = vpop.f32.mrb[0].mxu0
    %v4436 = vadd.f32 %v668, %v4435
    %v4437 = vpop.f32.mrb[0].mxu0
    %v4438 = vadd.f32 %v672, %v4437
    %4439 = vmatprep.mubr.bf16.mxu0 %v838
    %4440 = vmatmul.mubr.bf16.gmra.mrb[0].mxu0 %v837
    %v4441 = vpop.f32.mrb[0].mxu0
    %v4442 = vadd.f32 %v668, %v4441
    %v4443 = vpop.f32.mrb[0].mxu0
    %v4444 = vadd.f32 %v672, %v4443
    %v4445 = vpop.f32.mrb[0].mxu0
    %v4446 = vadd.f32 %v668, %v4445
    %v4447 = vpop.f32.mrb[0].mxu0
    %v4448 = vadd.f32 %v672, %v4447
    %4449 = vdwg.mxu0
    %4450 = vmatprep.subr.bf16.mxu0 %v2674
    %4451 = vmatpush1.bf16.msra.mxu0 %v2673
    %4452 = vmatprep.subr.bf16.mxu0 %v2690
    %4453 = vmatpush1.bf16.msra.mxu0 %v2689
    %4454 = vmatprep.subr.bf16.mxu0 %v2706
    %4455 = vmatpush1.bf16.msra.mxu0 %v2705
    %4456 = vmatprep.subr.bf16.mxu0 %v2722
    %4457 = vmatpush1.bf16.msra.mxu0 %v2721
    %4458 = vmatprep.subr.bf16.mxu0 %v2738
    %4459 = vmatpush1.bf16.msra.mxu0 %v2737
    %4460 = vmatprep.subr.bf16.mxu0 %v2754
    %4461 = vmatpush1.bf16.msra.mxu0 %v2753
    %4462 = vmatprep.subr.bf16.mxu0 %v2770
    %4463 = vmatpush1.bf16.msra.mxu0 %v2769
    %4464 = vmatprep.subr.bf16.mxu0 %v2786
    %4465 = vmatpush1.bf16.msra.mxu0 %v2785
    %4466 = vmatprep.subr.bf16.mxu0 %v2802
    %4467 = vmatpush1.bf16.msra.mxu0 %v2801
    %4468 = vmatprep.subr.bf16.mxu0 %v2818
    %4469 = vmatpush1.bf16.msra.mxu0 %v2817
    %4470 = vmatprep.subr.bf16.mxu0 %v2834
    %4471 = vmatpush1.bf16.msra.mxu0 %v2833
    %4472 = vmatprep.subr.bf16.mxu0 %v2850
    %4473 = vmatpush1.bf16.msra.mxu0 %v2849
    %4474 = vmatprep.subr.bf16.mxu0 %v2866
    %4475 = vmatpush1.bf16.msra.mxu0 %v2865
    %4476 = vmatprep.subr.bf16.mxu0 %v2882
    %4477 = vmatpush1.bf16.msra.mxu0 %v2881
    %4478 = vmatprep.subr.bf16.mxu0 %v2898
    %4479 = vmatpush1.bf16.msra.mxu0 %v2897
    %4480 = vmatprep.subr.bf16.mxu0 %v2914
    %4481 = vmatpush1.bf16.msra.mxu0 %v2913
    %4482 = vmatprep.mubr.bf16.mxu0 %v812
    %4483 = vmatmul.mubr.bf16.gmra.mrb[0].mxu0 %v811
    %v4484 = vpop.f32.mrb[0].mxu0
    %v4485 = vadd.f32 %v4372, %v4484
    %v4486 = vpop.f32.mrb[0].mxu0
    %v4487 = vadd.f32 %v4374, %v4486
    %v4488 = vpop.f32.mrb[0].mxu0
    %v4489 = vadd.f32 %v4376, %v4488
    %v4490 = vpop.f32.mrb[0].mxu0
    %v4491 = vadd.f32 %v4378, %v4490
    %4492 = vmatprep.mubr.bf16.mxu0 %v816
    %4493 = vmatmul.mubr.bf16.gmra.mrb[0].mxu0 %v815
    %v4494 = vpop.f32.mrb[0].mxu0
    %v4495 = vadd.f32 %v4382, %v4494
    %v4496 = vpop.f32.mrb[0].mxu0
    %v4497 = vadd.f32 %v4384, %v4496
    %v4498 = vpop.f32.mrb[0].mxu0
    %v4499 = vadd.f32 %v4386, %v4498
    %v4500 = vpop.f32.mrb[0].mxu0
    %v4501 = vadd.f32 %v4388, %v4500
    %4502 = vmatprep.mubr.bf16.mxu0 %v820
    %4503 = vmatmul.mubr.bf16.gmra.mrb[0].mxu0 %v819
    %v4504 = vpop.f32.mrb[0].mxu0
    %v4505 = vadd.f32 %v4392, %v4504
    %v4506 = vpop.f32.mrb[0].mxu0
    %v4507 = vadd.f32 %v4394, %v4506
    %v4508 = vpop.f32.mrb[0].mxu0
    %v4509 = vadd.f32 %v4396, %v4508
    %v4510 = vpop.f32.mrb[0].mxu0
    %v4511 = vadd.f32 %v4398, %v4510
    %4512 = vmatprep.mubr.bf16.mxu0 %v824
    %4513 = vmatmul.mubr.bf16.gmra.mrb[0].mxu0 %v823
    %v4514 = vpop.f32.mrb[0].mxu0
    %v4515 = vadd.f32 %v4402, %v4514
    %v4516 = vpop.f32.mrb[0].mxu0
    %v4517 = vadd.f32 %v4404, %v4516
    %v4518 = vpop.f32.mrb[0].mxu0
    %v4519 = vadd.f32 %v4406, %v4518
    %v4520 = vpop.f32.mrb[0].mxu0
    %v4521 = vadd.f32 %v4408, %v4520
    %4522 = vmatprep.mubr.bf16.mxu0 %v828
    %4523 = vmatmul.mubr.bf16.gmra.mrb[0].mxu0 %v827
    %v4524 = vpop.f32.mrb[0].mxu0
    %v4525 = vadd.f32 %v4412, %v4524
    %v4526 = vpop.f32.mrb[0].mxu0
    %v4527 = vadd.f32 %v4414, %v4526
    %v4528 = vpop.f32.mrb[0].mxu0
    %v4529 = vadd.f32 %v4416, %v4528
    %v4530 = vpop.f32.mrb[0].mxu0
    %v4531 = vadd.f32 %v4418, %v4530
    %4532 = vmatprep.mubr.bf16.mxu0 %v832
    %4533 = vmatmul.mubr.bf16.gmra.mrb[0].mxu0 %v831
    %v4534 = vpop.f32.mrb[0].mxu0
    %v4535 = vadd.f32 %v4422, %v4534
    %v4536 = vpop.f32.mrb[0].mxu0
    %v4537 = vadd.f32 %v4424, %v4536
    %v4538 = vpop.f32.mrb[0].mxu0
    %v4539 = vadd.f32 %v4426, %v4538
    %v4540 = vpop.f32.mrb[0].mxu0
    %v4541 = vadd.f32 %v4428, %v4540
    %4542 = vmatprep.mubr.bf16.mxu0 %v836
    %4543 = vmatmul.mubr.bf16.gmra.mrb[0].mxu0 %v835
    %v4544 = vpop.f32.mrb[0].mxu0
    %v4545 = vadd.f32 %v4432, %v4544
    %v4546 = vpop.f32.mrb[0].mxu0
    %v4547 = vadd.f32 %v4434, %v4546
    %v4548 = vpop.f32.mrb[0].mxu0
    %v4549 = vadd.f32 %v4436, %v4548
    %v4550 = vpop.f32.mrb[0].mxu0
    %v4551 = vadd.f32 %v4438, %v4550
    %4552 = vmatprep.mubr.bf16.mxu0 %v840
    %4553 = vmatmul.mubr.bf16.gmra.mrb[0].mxu0 %v839
    %v4554 = vpop.f32.mrb[0].mxu0
    %v4555 = vadd.f32 %v4442, %v4554
    %v4556 = vpop.f32.mrb[0].mxu0
    %v4557 = vadd.f32 %v4444, %v4556
    %v4558 = vpop.f32.mrb[0].mxu0
    %v4559 = vadd.f32 %v4446, %v4558
    %v4560 = vpop.f32.mrb[0].mxu0
    %v4561 = vadd.f32 %v4448, %v4560
    %4562 = vdwg.mxu0
    %4563 = vmatprep.subr.bf16.mxu0 %v2420
    %4564 = vmatpush1.bf16.msra.mxu0 %v2419
    %4565 = vmatprep.subr.bf16.mxu0 %v2436
    %4566 = vmatpush1.bf16.msra.mxu0 %v2435
    %4567 = vmatprep.subr.bf16.mxu0 %v2452
    %4568 = vmatpush1.bf16.msra.mxu0 %v2451
    %4569 = vmatprep.subr.bf16.mxu0 %v2468
    %4570 = vmatpush1.bf16.msra.mxu0 %v2467
    %4571 = vmatprep.subr.bf16.mxu0 %v2484
    %4572 = vmatpush1.bf16.msra.mxu0 %v2483
    %4573 = vmatprep.subr.bf16.mxu0 %v2500
    %4574 = vmatpush1.bf16.msra.mxu0 %v2499
    %4575 = vmatprep.subr.bf16.mxu0 %v2516
    %4576 = vmatpush1.bf16.msra.mxu0 %v2515
    %4577 = vmatprep.subr.bf16.mxu0 %v2532
    %4578 = vmatpush1.bf16.msra.mxu0 %v2531
    %4579 = vmatprep.subr.bf16.mxu0 %v2548
    %4580 = vmatpush1.bf16.msra.mxu0 %v2547
    %4581 = vmatprep.subr.bf16.mxu0 %v2564
    %4582 = vmatpush1.bf16.msra.mxu0 %v2563
    %4583 = vmatprep.subr.bf16.mxu0 %v2580
    %4584 = vmatpush1.bf16.msra.mxu0 %v2579
    %4585 = vmatprep.subr.bf16.mxu0 %v2596
    %4586 = vmatpush1.bf16.msra.mxu0 %v2595
    %4587 = vmatprep.subr.bf16.mxu0 %v2612
    %4588 = vmatpush1.bf16.msra.mxu0 %v2611
    %4589 = vmatprep.subr.bf16.mxu0 %v2628
    %4590 = vmatpush1.bf16.msra.mxu0 %v2627
    %4591 = vmatprep.subr.bf16.mxu0 %v2644
    %4592 = vmatpush1.bf16.msra.mxu0 %v2643
    %4593 = vmatprep.subr.bf16.mxu0 %v2660
    %4594 = vmatpush1.bf16.msra.mxu0 %v2659
    %4595 = vmatprep.mubr.bf16.mxu0 %v810
    %4596 = vmatmul.mubr.bf16.gmra.mrb[0].mxu0 %v809
    %v4597 = vpop.f32.mrb[0].mxu0
    %v4598 = vadd.f32 %v676, %v4597
    %v4599 = vpop.f32.mrb[0].mxu0
    %v4600 = vadd.f32 %v680, %v4599
    %v4601 = vpop.f32.mrb[0].mxu0
    %v4602 = vadd.f32 %v676, %v4601
    %v4603 = vpop.f32.mrb[0].mxu0
    %v4604 = vadd.f32 %v680, %v4603
    %4605 = vmatprep.mubr.bf16.mxu0 %v814
    %4606 = vmatmul.mubr.bf16.gmra.mrb[0].mxu0 %v813
    %v4607 = vpop.f32.mrb[0].mxu0
    %v4608 = vadd.f32 %v676, %v4607
    %v4609 = vpop.f32.mrb[0].mxu0
    %v4610 = vadd.f32 %v680, %v4609
    %v4611 = vpop.f32.mrb[0].mxu0
    %v4612 = vadd.f32 %v676, %v4611
    %v4613 = vpop.f32.mrb[0].mxu0
    %v4614 = vadd.f32 %v680, %v4613
    %4615 = vmatprep.mubr.bf16.mxu0 %v818
    %4616 = vmatmul.mubr.bf16.gmra.mrb[0].mxu0 %v817
    %v4617 = vpop.f32.mrb[0].mxu0
    %v4618 = vadd.f32 %v676, %v4617
    %v4619 = vpop.f32.mrb[0].mxu0
    %v4620 = vadd.f32 %v680, %v4619
    %v4621 = vpop.f32.mrb[0].mxu0
    %v4622 = vadd.f32 %v676, %v4621
    %v4623 = vpop.f32.mrb[0].mxu0
    %v4624 = vadd.f32 %v680, %v4623
    %4625 = vmatprep.mubr.bf16.mxu0 %v822
    %4626 = vmatmul.mubr.bf16.gmra.mrb[0].mxu0 %v821
    %v4627 = vpop.f32.mrb[0].mxu0
    %v4628 = vadd.f32 %v676, %v4627
    %v4629 = vpop.f32.mrb[0].mxu0
    %v4630 = vadd.f32 %v680, %v4629
    %v4631 = vpop.f32.mrb[0].mxu0
    %v4632 = vadd.f32 %v676, %v4631
    %v4633 = vpop.f32.mrb[0].mxu0
    %v4634 = vadd.f32 %v680, %v4633
    %4635 = vmatprep.mubr.bf16.mxu0 %v826
    %4636 = vmatmul.mubr.bf16.gmra.mrb[0].mxu0 %v825
    %v4637 = vpop.f32.mrb[0].mxu0
    %v4638 = vadd.f32 %v676, %v4637
    %v4639 = vpop.f32.mrb[0].mxu0
    %v4640 = vadd.f32 %v680, %v4639
    %v4641 = vpop.f32.mrb[0].mxu0
    %v4642 = vadd.f32 %v676, %v4641
    %v4643 = vpop.f32.mrb[0].mxu0
    %v4644 = vadd.f32 %v680, %v4643
    %4645 = vmatprep.mubr.bf16.mxu0 %v830
    %4646 = vmatmul.mubr.bf16.gmra.mrb[0].mxu0 %v829
    %v4647 = vpop.f32.mrb[0].mxu0
    %v4648 = vadd.f32 %v676, %v4647
    %v4649 = vpop.f32.mrb[0].mxu0
    %v4650 = vadd.f32 %v680, %v4649
    %v4651 = vpop.f32.mrb[0].mxu0
    %v4652 = vadd.f32 %v676, %v4651
    %v4653 = vpop.f32.mrb[0].mxu0
    %v4654 = vadd.f32 %v680, %v4653
    %4655 = vmatprep.mubr.bf16.mxu0 %v834
    %4656 = vmatmul.mubr.bf16.gmra.mrb[0].mxu0 %v833
    %v4657 = vpop.f32.mrb[0].mxu0
    %v4658 = vadd.f32 %v676, %v4657
    %v4659 = vpop.f32.mrb[0].mxu0
    %v4660 = vadd.f32 %v680, %v4659
    %v4661 = vpop.f32.mrb[0].mxu0
    %v4662 = vadd.f32 %v676, %v4661
    %v4663 = vpop.f32.mrb[0].mxu0
    %v4664 = vadd.f32 %v680, %v4663
    %4665 = vmatprep.mubr.bf16.mxu0 %v838
    %4666 = vmatmul.mubr.bf16.gmra.mrb[0].mxu0 %v837
    %v4667 = vpop.f32.mrb[0].mxu0
    %v4668 = vadd.f32 %v676, %v4667
    %v4669 = vpop.f32.mrb[0].mxu0
    %v4670 = vadd.f32 %v680, %v4669
    %v4671 = vpop.f32.mrb[0].mxu0
    %v4672 = vadd.f32 %v676, %v4671
    %v4673 = vpop.f32.mrb[0].mxu0
    %v4674 = vadd.f32 %v680, %v4673
    %4675 = vdwg.mxu0
    %4676 = vmatprep.subr.bf16.mxu0 %v2676
    %4677 = vmatpush1.bf16.msra.mxu0 %v2675
    %4678 = vmatprep.subr.bf16.mxu0 %v2692
    %4679 = vmatpush1.bf16.msra.mxu0 %v2691
    %4680 = vmatprep.subr.bf16.mxu0 %v2708
    %4681 = vmatpush1.bf16.msra.mxu0 %v2707
    %4682 = vmatprep.subr.bf16.mxu0 %v2724
    %4683 = vmatpush1.bf16.msra.mxu0 %v2723
    %4684 = vmatprep.subr.bf16.mxu0 %v2740
    %4685 = vmatpush1.bf16.msra.mxu0 %v2739
    %4686 = vmatprep.subr.bf16.mxu0 %v2756
    %4687 = vmatpush1.bf16.msra.mxu0 %v2755
    %4688 = vmatprep.subr.bf16.mxu0 %v2772
    %4689 = vmatpush1.bf16.msra.mxu0 %v2771
    %4690 = vmatprep.subr.bf16.mxu0 %v2788
    %4691 = vmatpush1.bf16.msra.mxu0 %v2787
    %4692 = vmatprep.subr.bf16.mxu0 %v2804
    %4693 = vmatpush1.bf16.msra.mxu0 %v2803
    %4694 = vmatprep.subr.bf16.mxu0 %v2820
    %4695 = vmatpush1.bf16.msra.mxu0 %v2819
    %4696 = vmatprep.subr.bf16.mxu0 %v2836
    %4697 = vmatpush1.bf16.msra.mxu0 %v2835
    %4698 = vmatprep.subr.bf16.mxu0 %v2852
    %4699 = vmatpush1.bf16.msra.mxu0 %v2851
    %4700 = vmatprep.subr.bf16.mxu0 %v2868
    %4701 = vmatpush1.bf16.msra.mxu0 %v2867
    %4702 = vmatprep.subr.bf16.mxu0 %v2884
    %4703 = vmatpush1.bf16.msra.mxu0 %v2883
    %4704 = vmatprep.subr.bf16.mxu0 %v2900
    %4705 = vmatpush1.bf16.msra.mxu0 %v2899
    %4706 = vmatprep.subr.bf16.mxu0 %v2916
    %4707 = vmatpush1.bf16.msra.mxu0 %v2915
    %4708 = vmatprep.mubr.bf16.mxu0 %v812
    %4709 = vmatmul.mubr.bf16.gmra.mrb[0].mxu0 %v811
    %v4710 = vpop.f32.mrb[0].mxu0
    %v4711 = vadd.f32 %v4598, %v4710
    %v4712 = vpop.f32.mrb[0].mxu0
    %v4713 = vadd.f32 %v4600, %v4712
    %v4714 = vpop.f32.mrb[0].mxu0
    %v4715 = vadd.f32 %v4602, %v4714
    %v4716 = vpop.f32.mrb[0].mxu0
    %v4717 = vadd.f32 %v4604, %v4716
    %4718 = vmatprep.mubr.bf16.mxu0 %v816
    %4719 = vmatmul.mubr.bf16.gmra.mrb[0].mxu0 %v815
    %v4720 = vpop.f32.mrb[0].mxu0
    %v4721 = vadd.f32 %v4608, %v4720
    %v4722 = vpop.f32.mrb[0].mxu0
    %v4723 = vadd.f32 %v4610, %v4722
    %v4724 = vpop.f32.mrb[0].mxu0
    %v4725 = vadd.f32 %v4612, %v4724
    %v4726 = vpop.f32.mrb[0].mxu0
    %v4727 = vadd.f32 %v4614, %v4726
    %4728 = vmatprep.mubr.bf16.mxu0 %v820
    %4729 = vmatmul.mubr.bf16.gmra.mrb[0].mxu0 %v819
    %v4730 = vpop.f32.mrb[0].mxu0
    %v4731 = vadd.f32 %v4618, %v4730
    %v4732 = vpop.f32.mrb[0].mxu0
    %v4733 = vadd.f32 %v4620, %v4732
    %v4734 = vpop.f32.mrb[0].mxu0
    %v4735 = vadd.f32 %v4622, %v4734
    %v4736 = vpop.f32.mrb[0].mxu0
    %v4737 = vadd.f32 %v4624, %v4736
    %4738 = vmatprep.mubr.bf16.mxu0 %v824
    %4739 = vmatmul.mubr.bf16.gmra.mrb[0].mxu0 %v823
    %v4740 = vpop.f32.mrb[0].mxu0
    %v4741 = vadd.f32 %v4628, %v4740
    %v4742 = vpop.f32.mrb[0].mxu0
    %v4743 = vadd.f32 %v4630, %v4742
    %v4744 = vpop.f32.mrb[0].mxu0
    %v4745 = vadd.f32 %v4632, %v4744
    %v4746 = vpop.f32.mrb[0].mxu0
    %v4747 = vadd.f32 %v4634, %v4746
    %4748 = vmatprep.mubr.bf16.mxu0 %v828
    %4749 = vmatmul.mubr.bf16.gmra.mrb[0].mxu0 %v827
    %v4750 = vpop.f32.mrb[0].mxu0
    %v4751 = vadd.f32 %v4638, %v4750
    %v4752 = vpop.f32.mrb[0].mxu0
    %v4753 = vadd.f32 %v4640, %v4752
    %v4754 = vpop.f32.mrb[0].mxu0
    %v4755 = vadd.f32 %v4642, %v4754
    %v4756 = vpop.f32.mrb[0].mxu0
    %v4757 = vadd.f32 %v4644, %v4756
    %4758 = vmatprep.mubr.bf16.mxu0 %v832
    %4759 = vmatmul.mubr.bf16.gmra.mrb[0].mxu0 %v831
    %v4760 = vpop.f32.mrb[0].mxu0
    %v4761 = vadd.f32 %v4648, %v4760
    %v4762 = vpop.f32.mrb[0].mxu0
    %v4763 = vadd.f32 %v4650, %v4762
    %v4764 = vpop.f32.mrb[0].mxu0
    %v4765 = vadd.f32 %v4652, %v4764
    %v4766 = vpop.f32.mrb[0].mxu0
    %v4767 = vadd.f32 %v4654, %v4766
    %4768 = vmatprep.mubr.bf16.mxu0 %v836
    %4769 = vmatmul.mubr.bf16.gmra.mrb[0].mxu0 %v835
    %v4770 = vpop.f32.mrb[0].mxu0
    %v4771 = vadd.f32 %v4658, %v4770
    %v4772 = vpop.f32.mrb[0].mxu0
    %v4773 = vadd.f32 %v4660, %v4772
    %v4774 = vpop.f32.mrb[0].mxu0
    %v4775 = vadd.f32 %v4662, %v4774
    %v4776 = vpop.f32.mrb[0].mxu0
    %v4777 = vadd.f32 %v4664, %v4776
    %4778 = vmatprep.mubr.bf16.mxu0 %v840
    %4779 = vmatmul.mubr.bf16.gmra.mrb[0].mxu0 %v839
    %v4780 = vpop.f32.mrb[0].mxu0
    %v4781 = vadd.f32 %v4668, %v4780
    %v4782 = vpop.f32.mrb[0].mxu0
    %v4783 = vadd.f32 %v4670, %v4782
    %v4784 = vpop.f32.mrb[0].mxu0
    %v4785 = vadd.f32 %v4672, %v4784
    %v4786 = vpop.f32.mrb[0].mxu0
    %v4787 = vadd.f32 %v4674, %v4786
    %4788 = vdwg.mxu0
    %4789 = vmatprep.subr.bf16.mxu0 %v2422
    %4790 = vmatpush1.bf16.msra.mxu0 %v2421
    %4791 = vmatprep.subr.bf16.mxu0 %v2438
    %4792 = vmatpush1.bf16.msra.mxu0 %v2437
    %4793 = vmatprep.subr.bf16.mxu0 %v2454
    %4794 = vmatpush1.bf16.msra.mxu0 %v2453
    %4795 = vmatprep.subr.bf16.mxu0 %v2470
    %4796 = vmatpush1.bf16.msra.mxu0 %v2469
    %4797 = vmatprep.subr.bf16.mxu0 %v2486
    %4798 = vmatpush1.bf16.msra.mxu0 %v2485
    %4799 = vmatprep.subr.bf16.mxu0 %v2502
    %4800 = vmatpush1.bf16.msra.mxu0 %v2501
    %4801 = vmatprep.subr.bf16.mxu0 %v2518
    %4802 = vmatpush1.bf16.msra.mxu0 %v2517
    %4803 = vmatprep.subr.bf16.mxu0 %v2534
    %4804 = vmatpush1.bf16.msra.mxu0 %v2533
    %4805 = vmatprep.subr.bf16.mxu0 %v2550
    %4806 = vmatpush1.bf16.msra.mxu0 %v2549
    %4807 = vmatprep.subr.bf16.mxu0 %v2566
    %4808 = vmatpush1.bf16.msra.mxu0 %v2565
    %4809 = vmatprep.subr.bf16.mxu0 %v2582
    %4810 = vmatpush1.bf16.msra.mxu0 %v2581
    %4811 = vmatprep.subr.bf16.mxu0 %v2598
    %4812 = vmatpush1.bf16.msra.mxu0 %v2597
    %4813 = vmatprep.subr.bf16.mxu0 %v2614
    %4814 = vmatpush1.bf16.msra.mxu0 %v2613
    %4815 = vmatprep.subr.bf16.mxu0 %v2630
    %4816 = vmatpush1.bf16.msra.mxu0 %v2629
    %4817 = vmatprep.subr.bf16.mxu0 %v2646
    %4818 = vmatpush1.bf16.msra.mxu0 %v2645
    %4819 = vmatprep.subr.bf16.mxu0 %v2662
    %4820 = vmatpush1.bf16.msra.mxu0 %v2661
    %4821 = vmatprep.mubr.bf16.mxu0 %v810
    %4822 = vmatmul.mubr.bf16.gmra.mrb[0].mxu0 %v809
    %v4823 = vpop.f32.mrb[0].mxu0
    %v4824 = vadd.f32 %v684, %v4823
    %v4825 = vpop.f32.mrb[0].mxu0
    %v4826 = vadd.f32 %v688, %v4825
    %v4827 = vpop.f32.mrb[0].mxu0
    %v4828 = vadd.f32 %v684, %v4827
    %v4829 = vpop.f32.mrb[0].mxu0
    %v4830 = vadd.f32 %v688, %v4829
    %4831 = vmatprep.mubr.bf16.mxu0 %v814
    %4832 = vmatmul.mubr.bf16.gmra.mrb[0].mxu0 %v813
    %v4833 = vpop.f32.mrb[0].mxu0
    %v4834 = vadd.f32 %v684, %v4833
    %v4835 = vpop.f32.mrb[0].mxu0
    %v4836 = vadd.f32 %v688, %v4835
    %v4837 = vpop.f32.mrb[0].mxu0
    %v4838 = vadd.f32 %v684, %v4837
    %v4839 = vpop.f32.mrb[0].mxu0
    %v4840 = vadd.f32 %v688, %v4839
    %4841 = vmatprep.mubr.bf16.mxu0 %v818
    %4842 = vmatmul.mubr.bf16.gmra.mrb[0].mxu0 %v817
    %v4843 = vpop.f32.mrb[0].mxu0
    %v4844 = vadd.f32 %v684, %v4843
    %v4845 = vpop.f32.mrb[0].mxu0
    %v4846 = vadd.f32 %v688, %v4845
    %v4847 = vpop.f32.mrb[0].mxu0
    %v4848 = vadd.f32 %v684, %v4847
    %v4849 = vpop.f32.mrb[0].mxu0
    %v4850 = vadd.f32 %v688, %v4849
    %4851 = vmatprep.mubr.bf16.mxu0 %v822
    %4852 = vmatmul.mubr.bf16.gmra.mrb[0].mxu0 %v821
    %v4853 = vpop.f32.mrb[0].mxu0
    %v4854 = vadd.f32 %v684, %v4853
    %v4855 = vpop.f32.mrb[0].mxu0
    %v4856 = vadd.f32 %v688, %v4855
    %v4857 = vpop.f32.mrb[0].mxu0
    %v4858 = vadd.f32 %v684, %v4857
    %v4859 = vpop.f32.mrb[0].mxu0
    %v4860 = vadd.f32 %v688, %v4859
    %4861 = vmatprep.mubr.bf16.mxu0 %v826
    %4862 = vmatmul.mubr.bf16.gmra.mrb[0].mxu0 %v825
    %v4863 = vpop.f32.mrb[0].mxu0
    %v4864 = vadd.f32 %v684, %v4863
    %v4865 = vpop.f32.mrb[0].mxu0
    %v4866 = vadd.f32 %v688, %v4865
    %v4867 = vpop.f32.mrb[0].mxu0
    %v4868 = vadd.f32 %v684, %v4867
    %v4869 = vpop.f32.mrb[0].mxu0
    %v4870 = vadd.f32 %v688, %v4869
    %4871 = vmatprep.mubr.bf16.mxu0 %v830
    %4872 = vmatmul.mubr.bf16.gmra.mrb[0].mxu0 %v829
    %v4873 = vpop.f32.mrb[0].mxu0
    %v4874 = vadd.f32 %v684, %v4873
    %v4875 = vpop.f32.mrb[0].mxu0
    %v4876 = vadd.f32 %v688, %v4875
    %v4877 = vpop.f32.mrb[0].mxu0
    %v4878 = vadd.f32 %v684, %v4877
    %v4879 = vpop.f32.mrb[0].mxu0
    %v4880 = vadd.f32 %v688, %v4879
    %4881 = vmatprep.mubr.bf16.mxu0 %v834
    %4882 = vmatmul.mubr.bf16.gmra.mrb[0].mxu0 %v833
    %v4883 = vpop.f32.mrb[0].mxu0
    %v4884 = vadd.f32 %v684, %v4883
    %v4885 = vpop.f32.mrb[0].mxu0
    %v4886 = vadd.f32 %v688, %v4885
    %v4887 = vpop.f32.mrb[0].mxu0
    %v4888 = vadd.f32 %v684, %v4887
    %v4889 = vpop.f32.mrb[0].mxu0
    %v4890 = vadd.f32 %v688, %v4889
    %4891 = vmatprep.mubr.bf16.mxu0 %v838
    %4892 = vmatmul.mubr.bf16.gmra.mrb[0].mxu0 %v837
    %v4893 = vpop.f32.mrb[0].mxu0
    %v4894 = vadd.f32 %v684, %v4893
    %v4895 = vpop.f32.mrb[0].mxu0
    %v4896 = vadd.f32 %v688, %v4895
    %v4897 = vpop.f32.mrb[0].mxu0
    %v4898 = vadd.f32 %v684, %v4897
    %v4899 = vpop.f32.mrb[0].mxu0
    %v4900 = vadd.f32 %v688, %v4899
    %4901 = vdwg.mxu0
    %4902 = vmatprep.subr.bf16.mxu0 %v2678
    %4903 = vmatpush1.bf16.msra.mxu0 %v2677
    %4904 = vmatprep.subr.bf16.mxu0 %v2694
    %4905 = vmatpush1.bf16.msra.mxu0 %v2693
    %4906 = vmatprep.subr.bf16.mxu0 %v2710
    %4907 = vmatpush1.bf16.msra.mxu0 %v2709
    %4908 = vmatprep.subr.bf16.mxu0 %v2726
    %4909 = vmatpush1.bf16.msra.mxu0 %v2725
    %4910 = vmatprep.subr.bf16.mxu0 %v2742
    %4911 = vmatpush1.bf16.msra.mxu0 %v2741
    %4912 = vmatprep.subr.bf16.mxu0 %v2758
    %4913 = vmatpush1.bf16.msra.mxu0 %v2757
    %4914 = vmatprep.subr.bf16.mxu0 %v2774
    %4915 = vmatpush1.bf16.msra.mxu0 %v2773
    %4916 = vmatprep.subr.bf16.mxu0 %v2790
    %4917 = vmatpush1.bf16.msra.mxu0 %v2789
    %4918 = vmatprep.subr.bf16.mxu0 %v2806
    %4919 = vmatpush1.bf16.msra.mxu0 %v2805
    %4920 = vmatprep.subr.bf16.mxu0 %v2822
    %4921 = vmatpush1.bf16.msra.mxu0 %v2821
    %4922 = vmatprep.subr.bf16.mxu0 %v2838
    %4923 = vmatpush1.bf16.msra.mxu0 %v2837
    %4924 = vmatprep.subr.bf16.mxu0 %v2854
    %4925 = vmatpush1.bf16.msra.mxu0 %v2853
    %4926 = vmatprep.subr.bf16.mxu0 %v2870
    %4927 = vmatpush1.bf16.msra.mxu0 %v2869
    %4928 = vmatprep.subr.bf16.mxu0 %v2886
    %4929 = vmatpush1.bf16.msra.mxu0 %v2885
    %4930 = vmatprep.subr.bf16.mxu0 %v2902
    %4931 = vmatpush1.bf16.msra.mxu0 %v2901
    %4932 = vmatprep.subr.bf16.mxu0 %v2918
    %4933 = vmatpush1.bf16.msra.mxu0 %v2917
    %4934 = vmatprep.mubr.bf16.mxu0 %v812
    %4935 = vmatmul.mubr.bf16.gmra.mrb[0].mxu0 %v811
    %v4936 = vpop.f32.mrb[0].mxu0
    %v4937 = vadd.f32 %v4824, %v4936
    %v4938 = vpop.f32.mrb[0].mxu0
    %v4939 = vadd.f32 %v4826, %v4938
    %v4940 = vpop.f32.mrb[0].mxu0
    %v4941 = vadd.f32 %v4828, %v4940
    %v4942 = vpop.f32.mrb[0].mxu0
    %v4943 = vadd.f32 %v4830, %v4942
    %4944 = vmatprep.mubr.bf16.mxu0 %v816
    %4945 = vmatmul.mubr.bf16.gmra.mrb[0].mxu0 %v815
    %v4946 = vpop.f32.mrb[0].mxu0
    %v4947 = vadd.f32 %v4834, %v4946
    %v4948 = vpop.f32.mrb[0].mxu0
    %v4949 = vadd.f32 %v4836, %v4948
    %v4950 = vpop.f32.mrb[0].mxu0
    %v4951 = vadd.f32 %v4838, %v4950
    %v4952 = vpop.f32.mrb[0].mxu0
    %v4953 = vadd.f32 %v4840, %v4952
    %4954 = vmatprep.mubr.bf16.mxu0 %v820
    %4955 = vmatmul.mubr.bf16.gmra.mrb[0].mxu0 %v819
    %v4956 = vpop.f32.mrb[0].mxu0
    %v4957 = vadd.f32 %v4844, %v4956
    %v4958 = vpop.f32.mrb[0].mxu0
    %v4959 = vadd.f32 %v4846, %v4958
    %v4960 = vpop.f32.mrb[0].mxu0
    %v4961 = vadd.f32 %v4848, %v4960
    %v4962 = vpop.f32.mrb[0].mxu0
    %v4963 = vadd.f32 %v4850, %v4962
    %4964 = vmatprep.mubr.bf16.mxu0 %v824
    %4965 = vmatmul.mubr.bf16.gmra.mrb[0].mxu0 %v823
    %v4966 = vpop.f32.mrb[0].mxu0
    %v4967 = vadd.f32 %v4854, %v4966
    %v4968 = vpop.f32.mrb[0].mxu0
    %v4969 = vadd.f32 %v4856, %v4968
    %v4970 = vpop.f32.mrb[0].mxu0
    %v4971 = vadd.f32 %v4858, %v4970
    %v4972 = vpop.f32.mrb[0].mxu0
    %v4973 = vadd.f32 %v4860, %v4972
    %4974 = vmatprep.mubr.bf16.mxu0 %v828
    %4975 = vmatmul.mubr.bf16.gmra.mrb[0].mxu0 %v827
    %v4976 = vpop.f32.mrb[0].mxu0
    %v4977 = vadd.f32 %v4864, %v4976
    %v4978 = vpop.f32.mrb[0].mxu0
    %v4979 = vadd.f32 %v4866, %v4978
    %v4980 = vpop.f32.mrb[0].mxu0
    %v4981 = vadd.f32 %v4868, %v4980
    %v4982 = vpop.f32.mrb[0].mxu0
    %v4983 = vadd.f32 %v4870, %v4982
    %4984 = vmatprep.mubr.bf16.mxu0 %v832
    %4985 = vmatmul.mubr.bf16.gmra.mrb[0].mxu0 %v831
    %v4986 = vpop.f32.mrb[0].mxu0
    %v4987 = vadd.f32 %v4874, %v4986
    %v4988 = vpop.f32.mrb[0].mxu0
    %v4989 = vadd.f32 %v4876, %v4988
    %v4990 = vpop.f32.mrb[0].mxu0
    %v4991 = vadd.f32 %v4878, %v4990
    %v4992 = vpop.f32.mrb[0].mxu0
    %v4993 = vadd.f32 %v4880, %v4992
    %4994 = vmatprep.mubr.bf16.mxu0 %v836
    %4995 = vmatmul.mubr.bf16.gmra.mrb[0].mxu0 %v835
    %v4996 = vpop.f32.mrb[0].mxu0
    %v4997 = vadd.f32 %v4884, %v4996
    %v4998 = vpop.f32.mrb[0].mxu0
    %v4999 = vadd.f32 %v4886, %v4998
    %v5000 = vpop.f32.mrb[0].mxu0
    %v5001 = vadd.f32 %v4888, %v5000
    %v5002 = vpop.f32.mrb[0].mxu0
    %v5003 = vadd.f32 %v4890, %v5002
    %5004 = vmatprep.mubr.bf16.mxu0 %v840
    %5005 = vmatmul.mubr.bf16.gmra.mrb[0].mxu0 %v839
    %v5006 = vpop.f32.mrb[0].mxu0
    %v5007 = vadd.f32 %v4894, %v5006
    %v5008 = vpop.f32.mrb[0].mxu0
    %v5009 = vadd.f32 %v4896, %v5008
    %v5010 = vpop.f32.mrb[0].mxu0
    %v5011 = vadd.f32 %v4898, %v5010
    %v5012 = vpop.f32.mrb[0].mxu0
    %v5013 = vadd.f32 %v4900, %v5012
    %5014 = vdwg.mxu0
    %5015 = vmatprep.subr.bf16.mxu0 %v2424
    %5016 = vmatpush1.bf16.msra.mxu0 %v2423
    %5017 = vmatprep.subr.bf16.mxu0 %v2440
    %5018 = vmatpush1.bf16.msra.mxu0 %v2439
    %5019 = vmatprep.subr.bf16.mxu0 %v2456
    %5020 = vmatpush1.bf16.msra.mxu0 %v2455
    %5021 = vmatprep.subr.bf16.mxu0 %v2472
    %5022 = vmatpush1.bf16.msra.mxu0 %v2471
    %5023 = vmatprep.subr.bf16.mxu0 %v2488
    %5024 = vmatpush1.bf16.msra.mxu0 %v2487
    %5025 = vmatprep.subr.bf16.mxu0 %v2504
    %5026 = vmatpush1.bf16.msra.mxu0 %v2503
    %5027 = vmatprep.subr.bf16.mxu0 %v2520
    %5028 = vmatpush1.bf16.msra.mxu0 %v2519
    %5029 = vmatprep.subr.bf16.mxu0 %v2536
    %5030 = vmatpush1.bf16.msra.mxu0 %v2535
    %5031 = vmatprep.subr.bf16.mxu0 %v2552
    %5032 = vmatpush1.bf16.msra.mxu0 %v2551
    %5033 = vmatprep.subr.bf16.mxu0 %v2568
    %5034 = vmatpush1.bf16.msra.mxu0 %v2567
    %5035 = vmatprep.subr.bf16.mxu0 %v2584
    %5036 = vmatpush1.bf16.msra.mxu0 %v2583
    %5037 = vmatprep.subr.bf16.mxu0 %v2600
    %5038 = vmatpush1.bf16.msra.mxu0 %v2599
    %5039 = vmatprep.subr.bf16.mxu0 %v2616
    %5040 = vmatpush1.bf16.msra.mxu0 %v2615
    %5041 = vmatprep.subr.bf16.mxu0 %v2632
    %5042 = vmatpush1.bf16.msra.mxu0 %v2631
    %5043 = vmatprep.subr.bf16.mxu0 %v2648
    %5044 = vmatpush1.bf16.msra.mxu0 %v2647
    %5045 = vmatprep.subr.bf16.mxu0 %v2664
    %5046 = vmatpush1.bf16.msra.mxu0 %v2663
    %5047 = vmatprep.mubr.bf16.mxu0 %v810
    %5048 = vmatmul.mubr.bf16.gmra.mrb[0].mxu0 %v809
    %v5049 = vpop.f32.mrb[0].mxu0
    %v5050 = vadd.f32 %v692, %v5049
    %v5051 = vpop.f32.mrb[0].mxu0
    %v5052 = vadd.f32 %v696, %v5051
    %v5053 = vpop.f32.mrb[0].mxu0
    %v5054 = vadd.f32 %v692, %v5053
    %v5055 = vpop.f32.mrb[0].mxu0
    %v5056 = vadd.f32 %v696, %v5055
    %5057 = vmatprep.mubr.bf16.mxu0 %v814
    %5058 = vmatmul.mubr.bf16.gmra.mrb[0].mxu0 %v813
    %v5059 = vpop.f32.mrb[0].mxu0
    %v5060 = vadd.f32 %v692, %v5059
    %v5061 = vpop.f32.mrb[0].mxu0
    %v5062 = vadd.f32 %v696, %v5061
    %v5063 = vpop.f32.mrb[0].mxu0
    %v5064 = vadd.f32 %v692, %v5063
    %v5065 = vpop.f32.mrb[0].mxu0
    %v5066 = vadd.f32 %v696, %v5065
    %5067 = vmatprep.mubr.bf16.mxu0 %v818
    %5068 = vmatmul.mubr.bf16.gmra.mrb[0].mxu0 %v817
    %v5069 = vpop.f32.mrb[0].mxu0
    %v5070 = vadd.f32 %v692, %v5069
    %v5071 = vpop.f32.mrb[0].mxu0
    %v5072 = vadd.f32 %v696, %v5071
    %v5073 = vpop.f32.mrb[0].mxu0
    %v5074 = vadd.f32 %v692, %v5073
    %v5075 = vpop.f32.mrb[0].mxu0
    %v5076 = vadd.f32 %v696, %v5075
    %5077 = vmatprep.mubr.bf16.mxu0 %v822
    %5078 = vmatmul.mubr.bf16.gmra.mrb[0].mxu0 %v821
    %v5079 = vpop.f32.mrb[0].mxu0
    %v5080 = vadd.f32 %v692, %v5079
    %v5081 = vpop.f32.mrb[0].mxu0
    %v5082 = vadd.f32 %v696, %v5081
    %v5083 = vpop.f32.mrb[0].mxu0
    %v5084 = vadd.f32 %v692, %v5083
    %v5085 = vpop.f32.mrb[0].mxu0
    %v5086 = vadd.f32 %v696, %v5085
    %5087 = vmatprep.mubr.bf16.mxu0 %v826
    %5088 = vmatmul.mubr.bf16.gmra.mrb[0].mxu0 %v825
    %v5089 = vpop.f32.mrb[0].mxu0
    %v5090 = vadd.f32 %v692, %v5089
    %v5091 = vpop.f32.mrb[0].mxu0
    %v5092 = vadd.f32 %v696, %v5091
    %v5093 = vpop.f32.mrb[0].mxu0
    %v5094 = vadd.f32 %v692, %v5093
    %v5095 = vpop.f32.mrb[0].mxu0
    %v5096 = vadd.f32 %v696, %v5095
    %5097 = vmatprep.mubr.bf16.mxu0 %v830
    %5098 = vmatmul.mubr.bf16.gmra.mrb[0].mxu0 %v829
    %v5099 = vpop.f32.mrb[0].mxu0
    %v5100 = vadd.f32 %v692, %v5099
    %v5101 = vpop.f32.mrb[0].mxu0
    %v5102 = vadd.f32 %v696, %v5101
    %v5103 = vpop.f32.mrb[0].mxu0
    %v5104 = vadd.f32 %v692, %v5103
    %v5105 = vpop.f32.mrb[0].mxu0
    %v5106 = vadd.f32 %v696, %v5105
    %5107 = vmatprep.mubr.bf16.mxu0 %v834
    %5108 = vmatmul.mubr.bf16.gmra.mrb[0].mxu0 %v833
    %v5109 = vpop.f32.mrb[0].mxu0
    %v5110 = vadd.f32 %v692, %v5109
    %v5111 = vpop.f32.mrb[0].mxu0
    %v5112 = vadd.f32 %v696, %v5111
    %v5113 = vpop.f32.mrb[0].mxu0
    %v5114 = vadd.f32 %v692, %v5113
    %v5115 = vpop.f32.mrb[0].mxu0
    %v5116 = vadd.f32 %v696, %v5115
    %5117 = vmatprep.mubr.bf16.mxu0 %v838
    %5118 = vmatmul.mubr.bf16.gmra.mrb[0].mxu0 %v837
    %v5119 = vpop.f32.mrb[0].mxu0
    %v5120 = vadd.f32 %v692, %v5119
    %v5121 = vpop.f32.mrb[0].mxu0
    %v5122 = vadd.f32 %v696, %v5121
    %v5123 = vpop.f32.mrb[0].mxu0
    %v5124 = vadd.f32 %v692, %v5123
    %v5125 = vpop.f32.mrb[0].mxu0
    %v5126 = vadd.f32 %v696, %v5125
    %5127 = vdwg.mxu0
    %5128 = vmatprep.subr.bf16.mxu0 %v2680
    %5129 = vmatpush1.bf16.msra.mxu0 %v2679
    %5130 = vmatprep.subr.bf16.mxu0 %v2696
    %5131 = vmatpush1.bf16.msra.mxu0 %v2695
    %5132 = vmatprep.subr.bf16.mxu0 %v2712
    %5133 = vmatpush1.bf16.msra.mxu0 %v2711
    %5134 = vmatprep.subr.bf16.mxu0 %v2728
    %5135 = vmatpush1.bf16.msra.mxu0 %v2727
    %5136 = vmatprep.subr.bf16.mxu0 %v2744
    %5137 = vmatpush1.bf16.msra.mxu0 %v2743
    %5138 = vmatprep.subr.bf16.mxu0 %v2760
    %5139 = vmatpush1.bf16.msra.mxu0 %v2759
    %5140 = vmatprep.subr.bf16.mxu0 %v2776
    %5141 = vmatpush1.bf16.msra.mxu0 %v2775
    %5142 = vmatprep.subr.bf16.mxu0 %v2792
    %5143 = vmatpush1.bf16.msra.mxu0 %v2791
    %5144 = vmatprep.subr.bf16.mxu0 %v2808
    %5145 = vmatpush1.bf16.msra.mxu0 %v2807
    %5146 = vmatprep.subr.bf16.mxu0 %v2824
    %5147 = vmatpush1.bf16.msra.mxu0 %v2823
    %5148 = vmatprep.subr.bf16.mxu0 %v2840
    %5149 = vmatpush1.bf16.msra.mxu0 %v2839
    %5150 = vmatprep.subr.bf16.mxu0 %v2856
    %5151 = vmatpush1.bf16.msra.mxu0 %v2855
    %5152 = vmatprep.subr.bf16.mxu0 %v2872
    %5153 = vmatpush1.bf16.msra.mxu0 %v2871
    %5154 = vmatprep.subr.bf16.mxu0 %v2888
    %5155 = vmatpush1.bf16.msra.mxu0 %v2887
    %5156 = vmatprep.subr.bf16.mxu0 %v2904
    %5157 = vmatpush1.bf16.msra.mxu0 %v2903
    %5158 = vmatprep.subr.bf16.mxu0 %v2920
    %5159 = vmatpush1.bf16.msra.mxu0 %v2919
    %5160 = vmatprep.mubr.bf16.mxu0 %v812
    %5161 = vmatmul.mubr.bf16.gmra.mrb[0].mxu0 %v811
    %v5162 = vpop.f32.mrb[0].mxu0
    %v5163 = vadd.f32 %v5050, %v5162
    %v5164 = vpop.f32.mrb[0].mxu0
    %v5165 = vadd.f32 %v5052, %v5164
    %v5166 = vpop.f32.mrb[0].mxu0
    %v5167 = vadd.f32 %v5054, %v5166
    %v5168 = vpop.f32.mrb[0].mxu0
    %v5169 = vadd.f32 %v5056, %v5168
    %5170 = vmatprep.mubr.bf16.mxu0 %v816
    %5171 = vmatmul.mubr.bf16.gmra.mrb[0].mxu0 %v815
    %v5172 = vpop.f32.mrb[0].mxu0
    %v5173 = vadd.f32 %v5060, %v5172
    %v5174 = vpop.f32.mrb[0].mxu0
    %v5175 = vadd.f32 %v5062, %v5174
    %v5176 = vpop.f32.mrb[0].mxu0
    %v5177 = vadd.f32 %v5064, %v5176
    %v5178 = vpop.f32.mrb[0].mxu0
    %v5179 = vadd.f32 %v5066, %v5178
    %5180 = vmatprep.mubr.bf16.mxu0 %v820
    %5181 = vmatmul.mubr.bf16.gmra.mrb[0].mxu0 %v819
    %v5182 = vpop.f32.mrb[0].mxu0
    %v5183 = vadd.f32 %v5070, %v5182
    %v5184 = vpop.f32.mrb[0].mxu0
    %v5185 = vadd.f32 %v5072, %v5184
    %v5186 = vpop.f32.mrb[0].mxu0
    %v5187 = vadd.f32 %v5074, %v5186
    %v5188 = vpop.f32.mrb[0].mxu0
    %v5189 = vadd.f32 %v5076, %v5188
    %5190 = vmatprep.mubr.bf16.mxu0 %v824
    %5191 = vmatmul.mubr.bf16.gmra.mrb[0].mxu0 %v823
    %v5192 = vpop.f32.mrb[0].mxu0
    %v5193 = vadd.f32 %v5080, %v5192
    %v5194 = vpop.f32.mrb[0].mxu0
    %v5195 = vadd.f32 %v5082, %v5194
    %v5196 = vpop.f32.mrb[0].mxu0
    %v5197 = vadd.f32 %v5084, %v5196
    %v5198 = vpop.f32.mrb[0].mxu0
    %v5199 = vadd.f32 %v5086, %v5198
    %5200 = vmatprep.mubr.bf16.mxu0 %v828
    %5201 = vmatmul.mubr.bf16.gmra.mrb[0].mxu0 %v827
    %v5202 = vpop.f32.mrb[0].mxu0
    %v5203 = vadd.f32 %v5090, %v5202
    %v5204 = vpop.f32.mrb[0].mxu0
    %v5205 = vadd.f32 %v5092, %v5204
    %v5206 = vpop.f32.mrb[0].mxu0
    %v5207 = vadd.f32 %v5094, %v5206
    %v5208 = vpop.f32.mrb[0].mxu0
    %v5209 = vadd.f32 %v5096, %v5208
    %5210 = vmatprep.mubr.bf16.mxu0 %v832
    %5211 = vmatmul.mubr.bf16.gmra.mrb[0].mxu0 %v831
    %v5212 = vpop.f32.mrb[0].mxu0
    %v5213 = vadd.f32 %v5100, %v5212
    %v5214 = vpop.f32.mrb[0].mxu0
    %v5215 = vadd.f32 %v5102, %v5214
    %v5216 = vpop.f32.mrb[0].mxu0
    %v5217 = vadd.f32 %v5104, %v5216
    %v5218 = vpop.f32.mrb[0].mxu0
    %v5219 = vadd.f32 %v5106, %v5218
    %5220 = vmatprep.mubr.bf16.mxu0 %v836
    %5221 = vmatmul.mubr.bf16.gmra.mrb[0].mxu0 %v835
    %v5222 = vpop.f32.mrb[0].mxu0
    %v5223 = vadd.f32 %v5110, %v5222
    %v5224 = vpop.f32.mrb[0].mxu0
    %v5225 = vadd.f32 %v5112, %v5224
    %v5226 = vpop.f32.mrb[0].mxu0
    %v5227 = vadd.f32 %v5114, %v5226
    %v5228 = vpop.f32.mrb[0].mxu0
    %v5229 = vadd.f32 %v5116, %v5228
    %5230 = vmatprep.mubr.bf16.mxu0 %v840
    %5231 = vmatmul.mubr.bf16.gmra.mrb[0].mxu0 %v839
    %v5232 = vpop.f32.mrb[0].mxu0
    %v5233 = vadd.f32 %v5120, %v5232
    %v5234 = vpop.f32.mrb[0].mxu0
    %v5235 = vadd.f32 %v5122, %v5234
    %v5236 = vpop.f32.mrb[0].mxu0
    %v5237 = vadd.f32 %v5124, %v5236
    %v5238 = vpop.f32.mrb[0].mxu0
    %v5239 = vadd.f32 %v5126, %v5238
    %5240 = vdwg.mxu0
    %v5241 = vmax.f32 %v3581, 0.0
    %v5242 = vmax.f32 %v3583, 0.0
    %v5243 = vmax.f32 %v3807, 0.0
    %v5244 = vmax.f32 %v3809, 0.0
    %v5245 = vmax.f32 %v4033, 0.0
    %v5246 = vmax.f32 %v4035, 0.0
    %v5247 = vmax.f32 %v4259, 0.0
    %v5248 = vmax.f32 %v4261, 0.0
    %v5249 = vmax.f32 %v4485, 0.0
    %v5250 = vmax.f32 %v4487, 0.0
    %v5251 = vmax.f32 %v4711, 0.0
    %v5252 = vmax.f32 %v4713, 0.0
    %v5253 = vmax.f32 %v4937, 0.0
    %v5254 = vmax.f32 %v4939, 0.0
    %v5255 = vmax.f32 %v5163, 0.0
    %v5256 = vmax.f32 %v5165, 0.0
    %v5257 = vmax.f32 %v3585, 0.0
    %v5258 = vmax.f32 %v3587, 0.0
    %v5259 = vmax.f32 %v3811, 0.0
    %v5260 = vmax.f32 %v3813, 0.0
    %v5261 = vmax.f32 %v4037, 0.0
    %v5262 = vmax.f32 %v4039, 0.0
    %v5263 = vmax.f32 %v4263, 0.0
    %v5264 = vmax.f32 %v4265, 0.0
    %v5265 = vmax.f32 %v4489, 0.0
    %v5266 = vmax.f32 %v4491, 0.0
    %v5267 = vmax.f32 %v4715, 0.0
    %v5268 = vmax.f32 %v4717, 0.0
    %v5269 = vmax.f32 %v4941, 0.0
    %v5270 = vmax.f32 %v4943, 0.0
    %v5271 = vmax.f32 %v5167, 0.0
    %v5272 = vmax.f32 %v5169, 0.0
    %v5273 = vmax.f32 %v3591, 0.0
    %v5274 = vmax.f32 %v3593, 0.0
    %v5275 = vmax.f32 %v3817, 0.0
    %v5276 = vmax.f32 %v3819, 0.0
    %v5277 = vmax.f32 %v4043, 0.0
    %v5278 = vmax.f32 %v4045, 0.0
    %v5279 = vmax.f32 %v4269, 0.0
    %v5280 = vmax.f32 %v4271, 0.0
    %v5281 = vmax.f32 %v4495, 0.0
    %v5282 = vmax.f32 %v4497, 0.0
    %v5283 = vmax.f32 %v4721, 0.0
    %v5284 = vmax.f32 %v4723, 0.0
    %v5285 = vmax.f32 %v4947, 0.0
    %v5286 = vmax.f32 %v4949, 0.0
    %v5287 = vmax.f32 %v5173, 0.0
    %v5288 = vmax.f32 %v5175, 0.0
    %v5289 = vmax.f32 %v3595, 0.0
    %v5290 = vmax.f32 %v3597, 0.0
    %v5291 = vmax.f32 %v3821, 0.0
    %v5292 = vmax.f32 %v3823, 0.0
    %v5293 = vmax.f32 %v4047, 0.0
    %v5294 = vmax.f32 %v4049, 0.0
    %v5295 = vmax.f32 %v4273, 0.0
    %v5296 = vmax.f32 %v4275, 0.0
    %v5297 = vmax.f32 %v4499, 0.0
    %v5298 = vmax.f32 %v4501, 0.0
    %v5299 = vmax.f32 %v4725, 0.0
    %v5300 = vmax.f32 %v4727, 0.0
    %v5301 = vmax.f32 %v4951, 0.0
    %v5302 = vmax.f32 %v4953, 0.0
    %v5303 = vmax.f32 %v5177, 0.0
    %v5304 = vmax.f32 %v5179, 0.0
    %v5305 = vmax.f32 %v3601, 0.0
    %v5306 = vmax.f32 %v3603, 0.0
    %v5307 = vmax.f32 %v3827, 0.0
    %v5308 = vmax.f32 %v3829, 0.0
    %v5309 = vmax.f32 %v4053, 0.0
    %v5310 = vmax.f32 %v4055, 0.0
    %v5311 = vmax.f32 %v4279, 0.0
    %v5312 = vmax.f32 %v4281, 0.0
    %v5313 = vmax.f32 %v4505, 0.0
    %v5314 = vmax.f32 %v4507, 0.0
    %v5315 = vmax.f32 %v4731, 0.0
    %v5316 = vmax.f32 %v4733, 0.0
    %v5317 = vmax.f32 %v4957, 0.0
    %v5318 = vmax.f32 %v4959, 0.0
    %v5319 = vmax.f32 %v5183, 0.0
    %v5320 = vmax.f32 %v5185, 0.0
    %v5321 = vmax.f32 %v3605, 0.0
    %v5322 = vmax.f32 %v3607, 0.0
    %v5323 = vmax.f32 %v3831, 0.0
    %v5324 = vmax.f32 %v3833, 0.0
    %v5325 = vmax.f32 %v4057, 0.0
    %v5326 = vmax.f32 %v4059, 0.0
    %v5327 = vmax.f32 %v4283, 0.0
    %v5328 = vmax.f32 %v4285, 0.0
    %v5329 = vmax.f32 %v4509, 0.0
    %v5330 = vmax.f32 %v4511, 0.0
    %v5331 = vmax.f32 %v4735, 0.0
    %v5332 = vmax.f32 %v4737, 0.0
    %v5333 = vmax.f32 %v4961, 0.0
    %v5334 = vmax.f32 %v4963, 0.0
    %v5335 = vmax.f32 %v5187, 0.0
    %v5336 = vmax.f32 %v5189, 0.0
    %v5337 = vmax.f32 %v3611, 0.0
    %v5338 = vmax.f32 %v3613, 0.0
    %v5339 = vmax.f32 %v3837, 0.0
    %v5340 = vmax.f32 %v3839, 0.0
    %v5341 = vmax.f32 %v4063, 0.0
    %v5342 = vmax.f32 %v4065, 0.0
    %v5343 = vmax.f32 %v4289, 0.0
    %v5344 = vmax.f32 %v4291, 0.0
    %v5345 = vmax.f32 %v4515, 0.0
    %v5346 = vmax.f32 %v4517, 0.0
    %v5347 = vmax.f32 %v4741, 0.0
    %v5348 = vmax.f32 %v4743, 0.0
    %v5349 = vmax.f32 %v4967, 0.0
    %v5350 = vmax.f32 %v4969, 0.0
    %v5351 = vmax.f32 %v5193, 0.0
    %v5352 = vmax.f32 %v5195, 0.0
    %v5353 = vmax.f32 %v3615, 0.0
    %v5354 = vmax.f32 %v3617, 0.0
    %v5355 = vmax.f32 %v3841, 0.0
    %v5356 = vmax.f32 %v3843, 0.0
    %v5357 = vmax.f32 %v4067, 0.0
    %v5358 = vmax.f32 %v4069, 0.0
    %v5359 = vmax.f32 %v4293, 0.0
    %v5360 = vmax.f32 %v4295, 0.0
    %v5361 = vmax.f32 %v4519, 0.0
    %v5362 = vmax.f32 %v4521, 0.0
    %v5363 = vmax.f32 %v4745, 0.0
    %v5364 = vmax.f32 %v4747, 0.0
    %v5365 = vmax.f32 %v4971, 0.0
    %v5366 = vmax.f32 %v4973, 0.0
    %v5367 = vmax.f32 %v5197, 0.0
    %v5368 = vmax.f32 %v5199, 0.0
    %v5369 = vmax.f32 %v3621, 0.0
    %v5370 = vmax.f32 %v3623, 0.0
    %v5371 = vmax.f32 %v3847, 0.0
    %v5372 = vmax.f32 %v3849, 0.0
    %v5373 = vmax.f32 %v4073, 0.0
    %v5374 = vmax.f32 %v4075, 0.0
    %v5375 = vmax.f32 %v4299, 0.0
    %v5376 = vmax.f32 %v4301, 0.0
    %v5377 = vmax.f32 %v4525, 0.0
    %v5378 = vmax.f32 %v4527, 0.0
    %v5379 = vmax.f32 %v4751, 0.0
    %v5380 = vmax.f32 %v4753, 0.0
    %v5381 = vmax.f32 %v4977, 0.0
    %v5382 = vmax.f32 %v4979, 0.0
    %v5383 = vmax.f32 %v5203, 0.0
    %v5384 = vmax.f32 %v5205, 0.0
    %v5385 = vmax.f32 %v3625, 0.0
    %v5386 = vmax.f32 %v3627, 0.0
    %v5387 = vmax.f32 %v3851, 0.0
    %v5388 = vmax.f32 %v3853, 0.0
    %v5389 = vmax.f32 %v4077, 0.0
    %v5390 = vmax.f32 %v4079, 0.0
    %v5391 = vmax.f32 %v4303, 0.0
    %v5392 = vmax.f32 %v4305, 0.0
    %v5393 = vmax.f32 %v4529, 0.0
    %v5394 = vmax.f32 %v4531, 0.0
    %v5395 = vmax.f32 %v4755, 0.0
    %v5396 = vmax.f32 %v4757, 0.0
    %v5397 = vmax.f32 %v4981, 0.0
    %v5398 = vmax.f32 %v4983, 0.0
    %v5399 = vmax.f32 %v5207, 0.0
    %v5400 = vmax.f32 %v5209, 0.0
    %v5401 = vmax.f32 %v3631, 0.0
    %v5402 = vmax.f32 %v3633, 0.0
    %v5403 = vmax.f32 %v3857, 0.0
    %v5404 = vmax.f32 %v3859, 0.0
    %v5405 = vmax.f32 %v4083, 0.0
    %v5406 = vmax.f32 %v4085, 0.0
    %v5407 = vmax.f32 %v4309, 0.0
    %v5408 = vmax.f32 %v4311, 0.0
    %v5409 = vmax.f32 %v4535, 0.0
    %v5410 = vmax.f32 %v4537, 0.0
    %v5411 = vmax.f32 %v4761, 0.0
    %v5412 = vmax.f32 %v4763, 0.0
    %v5413 = vmax.f32 %v4987, 0.0
    %v5414 = vmax.f32 %v4989, 0.0
    %v5415 = vmax.f32 %v5213, 0.0
    %v5416 = vmax.f32 %v5215, 0.0
    %v5417 = vmax.f32 %v3635, 0.0
    %v5418 = vmax.f32 %v3637, 0.0
    %v5419 = vmax.f32 %v3861, 0.0
    %v5420 = vmax.f32 %v3863, 0.0
    %v5421 = vmax.f32 %v4087, 0.0
    %v5422 = vmax.f32 %v4089, 0.0
    %v5423 = vmax.f32 %v4313, 0.0
    %v5424 = vmax.f32 %v4315, 0.0
    %v5425 = vmax.f32 %v4539, 0.0
    %v5426 = vmax.f32 %v4541, 0.0
    %v5427 = vmax.f32 %v4765, 0.0
    %v5428 = vmax.f32 %v4767, 0.0
    %v5429 = vmax.f32 %v4991, 0.0
    %v5430 = vmax.f32 %v4993, 0.0
    %v5431 = vmax.f32 %v5217, 0.0
    %v5432 = vmax.f32 %v5219, 0.0
    %v5433 = vmax.f32 %v3641, 0.0
    %v5434 = vmax.f32 %v3643, 0.0
    %v5435 = vmax.f32 %v3867, 0.0
    %v5436 = vmax.f32 %v3869, 0.0
    %v5437 = vmax.f32 %v4093, 0.0
    %v5438 = vmax.f32 %v4095, 0.0
    %v5439 = vmax.f32 %v4319, 0.0
    %v5440 = vmax.f32 %v4321, 0.0
    %v5441 = vmax.f32 %v4545, 0.0
    %v5442 = vmax.f32 %v4547, 0.0
    %v5443 = vmax.f32 %v4771, 0.0
    %v5444 = vmax.f32 %v4773, 0.0
    %v5445 = vmax.f32 %v4997, 0.0
    %v5446 = vmax.f32 %v4999, 0.0
    %v5447 = vmax.f32 %v5223, 0.0
    %v5448 = vmax.f32 %v5225, 0.0
    %v5449 = vmax.f32 %v3645, 0.0
    %v5450 = vmax.f32 %v3647, 0.0
    %v5451 = vmax.f32 %v3871, 0.0
    %v5452 = vmax.f32 %v3873, 0.0
    %v5453 = vmax.f32 %v4097, 0.0
    %v5454 = vmax.f32 %v4099, 0.0
    %v5455 = vmax.f32 %v4323, 0.0
    %v5456 = vmax.f32 %v4325, 0.0
    %v5457 = vmax.f32 %v4549, 0.0
    %v5458 = vmax.f32 %v4551, 0.0
    %v5459 = vmax.f32 %v4775, 0.0
    %v5460 = vmax.f32 %v4777, 0.0
    %v5461 = vmax.f32 %v5001, 0.0
    %v5462 = vmax.f32 %v5003, 0.0
    %v5463 = vmax.f32 %v5227, 0.0
    %v5464 = vmax.f32 %v5229, 0.0
    %v5465 = vmax.f32 %v3651, 0.0
    %v5466 = vmax.f32 %v3653, 0.0
    %v5467 = vmax.f32 %v3877, 0.0
    %v5468 = vmax.f32 %v3879, 0.0
    %v5469 = vmax.f32 %v4103, 0.0
    %v5470 = vmax.f32 %v4105, 0.0
    %v5471 = vmax.f32 %v4329, 0.0
    %v5472 = vmax.f32 %v4331, 0.0
    %v5473 = vmax.f32 %v4555, 0.0
    %v5474 = vmax.f32 %v4557, 0.0
    %v5475 = vmax.f32 %v4781, 0.0
    %v5476 = vmax.f32 %v4783, 0.0
    %v5477 = vmax.f32 %v5007, 0.0
    %v5478 = vmax.f32 %v5009, 0.0
    %v5479 = vmax.f32 %v5233, 0.0
    %v5480 = vmax.f32 %v5235, 0.0
    %v5481 = vmax.f32 %v3655, 0.0
    %v5482 = vmax.f32 %v3657, 0.0
    %v5483 = vmax.f32 %v3881, 0.0
    %v5484 = vmax.f32 %v3883, 0.0
    %v5485 = vmax.f32 %v4107, 0.0
    %v5486 = vmax.f32 %v4109, 0.0
    %v5487 = vmax.f32 %v4333, 0.0
    %v5488 = vmax.f32 %v4335, 0.0
    %v5489 = vmax.f32 %v4559, 0.0
    %v5490 = vmax.f32 %v4561, 0.0
    %v5491 = vmax.f32 %v4785, 0.0
    %v5492 = vmax.f32 %v4787, 0.0
    %v5493 = vmax.f32 %v5011, 0.0
    %v5494 = vmax.f32 %v5013, 0.0
    %v5495 = vmax.f32 %v5237, 0.0
    %v5496 = vmax.f32 %v5239, 0.0
    %v5497 = vpack.c.bf16 %v5257, %v5241
    %v5498 = vpack.c.bf16 %v5258, %v5242
    %v5499 = vpack.c.bf16 %v5259, %v5243
    %v5500 = vpack.c.bf16 %v5260, %v5244
    %v5501 = vpack.c.bf16 %v5261, %v5245
    %v5502 = vpack.c.bf16 %v5262, %v5246
    %v5503 = vpack.c.bf16 %v5263, %v5247
    %v5504 = vpack.c.bf16 %v5264, %v5248
    %v5505 = vpack.c.bf16 %v5265, %v5249
    %v5506 = vpack.c.bf16 %v5266, %v5250
    %v5507 = vpack.c.bf16 %v5267, %v5251
    %v5508 = vpack.c.bf16 %v5268, %v5252
    %v5509 = vpack.c.bf16 %v5269, %v5253
    %v5510 = vpack.c.bf16 %v5270, %v5254
    %v5511 = vpack.c.bf16 %v5271, %v5255
    %v5512 = vpack.c.bf16 %v5272, %v5256
    %v5513 = vpack.c.bf16 %v5289, %v5273
    %v5514 = vpack.c.bf16 %v5290, %v5274
    %v5515 = vpack.c.bf16 %v5291, %v5275
    %v5516 = vpack.c.bf16 %v5292, %v5276
    %v5517 = vpack.c.bf16 %v5293, %v5277
    %v5518 = vpack.c.bf16 %v5294, %v5278
    %v5519 = vpack.c.bf16 %v5295, %v5279
    %v5520 = vpack.c.bf16 %v5296, %v5280
    %v5521 = vpack.c.bf16 %v5297, %v5281
    %v5522 = vpack.c.bf16 %v5298, %v5282
    %v5523 = vpack.c.bf16 %v5299, %v5283
    %v5524 = vpack.c.bf16 %v5300, %v5284
    %v5525 = vpack.c.bf16 %v5301, %v5285
    %v5526 = vpack.c.bf16 %v5302, %v5286
    %v5527 = vpack.c.bf16 %v5303, %v5287
    %v5528 = vpack.c.bf16 %v5304, %v5288
    %v5529 = vpack.c.bf16 %v5321, %v5305
    %v5530 = vpack.c.bf16 %v5322, %v5306
    %v5531 = vpack.c.bf16 %v5323, %v5307
    %v5532 = vpack.c.bf16 %v5324, %v5308
    %v5533 = vpack.c.bf16 %v5325, %v5309
    %v5534 = vpack.c.bf16 %v5326, %v5310
    %v5535 = vpack.c.bf16 %v5327, %v5311
    %v5536 = vpack.c.bf16 %v5328, %v5312
    %v5537 = vpack.c.bf16 %v5329, %v5313
    %v5538 = vpack.c.bf16 %v5330, %v5314
    %v5539 = vpack.c.bf16 %v5331, %v5315
    %v5540 = vpack.c.bf16 %v5332, %v5316
    %v5541 = vpack.c.bf16 %v5333, %v5317
    %v5542 = vpack.c.bf16 %v5334, %v5318
    %v5543 = vpack.c.bf16 %v5335, %v5319
    %v5544 = vpack.c.bf16 %v5336, %v5320
    %v5545 = vpack.c.bf16 %v5353, %v5337
    %v5546 = vpack.c.bf16 %v5354, %v5338
    %v5547 = vpack.c.bf16 %v5355, %v5339
    %v5548 = vpack.c.bf16 %v5356, %v5340
    %v5549 = vpack.c.bf16 %v5357, %v5341
    %v5550 = vpack.c.bf16 %v5358, %v5342
    %v5551 = vpack.c.bf16 %v5359, %v5343
    %v5552 = vpack.c.bf16 %v5360, %v5344
    %v5553 = vpack.c.bf16 %v5361, %v5345
    %v5554 = vpack.c.bf16 %v5362, %v5346
    %v5555 = vpack.c.bf16 %v5363, %v5347
    %v5556 = vpack.c.bf16 %v5364, %v5348
    %v5557 = vpack.c.bf16 %v5365, %v5349
    %v5558 = vpack.c.bf16 %v5366, %v5350
    %v5559 = vpack.c.bf16 %v5367, %v5351
    %v5560 = vpack.c.bf16 %v5368, %v5352
    %v5561 = vpack.c.bf16 %v5385, %v5369
    %v5562 = vpack.c.bf16 %v5386, %v5370
    %v5563 = vpack.c.bf16 %v5387, %v5371
    %v5564 = vpack.c.bf16 %v5388, %v5372
    %v5565 = vpack.c.bf16 %v5389, %v5373
    %v5566 = vpack.c.bf16 %v5390, %v5374
    %v5567 = vpack.c.bf16 %v5391, %v5375
    %v5568 = vpack.c.bf16 %v5392, %v5376
    %v5569 = vpack.c.bf16 %v5393, %v5377
    %v5570 = vpack.c.bf16 %v5394, %v5378
    %v5571 = vpack.c.bf16 %v5395, %v5379
    %v5572 = vpack.c.bf16 %v5396, %v5380
    %v5573 = vpack.c.bf16 %v5397, %v5381
    %v5574 = vpack.c.bf16 %v5398, %v5382
    %v5575 = vpack.c.bf16 %v5399, %v5383
    %v5576 = vpack.c.bf16 %v5400, %v5384
    %v5577 = vpack.c.bf16 %v5417, %v5401
    %v5578 = vpack.c.bf16 %v5418, %v5402
    %v5579 = vpack.c.bf16 %v5419, %v5403
    %v5580 = vpack.c.bf16 %v5420, %v5404
    %v5581 = vpack.c.bf16 %v5421, %v5405
    %v5582 = vpack.c.bf16 %v5422, %v5406
    %v5583 = vpack.c.bf16 %v5423, %v5407
    %v5584 = vpack.c.bf16 %v5424, %v5408
    %v5585 = vpack.c.bf16 %v5425, %v5409
    %v5586 = vpack.c.bf16 %v5426, %v5410
    %v5587 = vpack.c.bf16 %v5427, %v5411
    %v5588 = vpack.c.bf16 %v5428, %v5412
    %v5589 = vpack.c.bf16 %v5429, %v5413
    %v5590 = vpack.c.bf16 %v5430, %v5414
    %v5591 = vpack.c.bf16 %v5431, %v5415
    %v5592 = vpack.c.bf16 %v5432, %v5416
    %v5593 = vpack.c.bf16 %v5449, %v5433
    %v5594 = vpack.c.bf16 %v5450, %v5434
    %v5595 = vpack.c.bf16 %v5451, %v5435
    %v5596 = vpack.c.bf16 %v5452, %v5436
    %v5597 = vpack.c.bf16 %v5453, %v5437
    %v5598 = vpack.c.bf16 %v5454, %v5438
    %v5599 = vpack.c.bf16 %v5455, %v5439
    %v5600 = vpack.c.bf16 %v5456, %v5440
    %v5601 = vpack.c.bf16 %v5457, %v5441
    %v5602 = vpack.c.bf16 %v5458, %v5442
    %v5603 = vpack.c.bf16 %v5459, %v5443
    %v5604 = vpack.c.bf16 %v5460, %v5444
    %v5605 = vpack.c.bf16 %v5461, %v5445
    %v5606 = vpack.c.bf16 %v5462, %v5446
    %v5607 = vpack.c.bf16 %v5463, %v5447
    %v5608 = vpack.c.bf16 %v5464, %v5448
    %v5609 = vpack.c.bf16 %v5481, %v5465
    %v5610 = vpack.c.bf16 %v5482, %v5466
    %v5611 = vpack.c.bf16 %v5483, %v5467
    %v5612 = vpack.c.bf16 %v5484, %v5468
    %v5613 = vpack.c.bf16 %v5485, %v5469
    %v5614 = vpack.c.bf16 %v5486, %v5470
    %v5615 = vpack.c.bf16 %v5487, %v5471
    %v5616 = vpack.c.bf16 %v5488, %v5472
    %v5617 = vpack.c.bf16 %v5489, %v5473
    %v5618 = vpack.c.bf16 %v5490, %v5474
    %v5619 = vpack.c.bf16 %v5491, %v5475
    %v5620 = vpack.c.bf16 %v5492, %v5476
    %v5621 = vpack.c.bf16 %v5493, %v5477
    %v5622 = vpack.c.bf16 %v5494, %v5478
    %v5623 = vpack.c.bf16 %v5495, %v5479
    %v5624 = vpack.c.bf16 %v5496, %v5480
    %v5625 = vld [vmem:[#allocation8] sm:$0xff]
    %v5626 = vld [vmem:[#allocation8 + $0x8] sm:$0xff]
    %v5627 = vld [vmem:[#allocation8 + $0x10] sm:$0xff]
    %v5628 = vld [vmem:[#allocation8 + $0x18] sm:$0xff]
    %v5629 = vld [vmem:[#allocation8 + $0x20] sm:$0xff]
    %v5630 = vld [vmem:[#allocation8 + $0x28] sm:$0xff]
    %v5631 = vld [vmem:[#allocation8 + $0x30] sm:$0xff]
    %v5632 = vld [vmem:[#allocation8 + $0x38] sm:$0xff]
    %v5633 = vld [vmem:[#allocation8 + $0x40] sm:$0xff]
    %v5634 = vld [vmem:[#allocation8 + $0x48] sm:$0xff]
    %v5635 = vld [vmem:[#allocation8 + $0x50] sm:$0xff]
    %v5636 = vld [vmem:[#allocation8 + $0x58] sm:$0xff]
    %v5637 = vld [vmem:[#allocation8 + $0x60] sm:$0xff]
    %v5638 = vld [vmem:[#allocation8 + $0x68] sm:$0xff]
    %v5639 = vld [vmem:[#allocation8 + $0x70] sm:$0xff]
    %v5640 = vld [vmem:[#allocation8 + $0x78] sm:$0xff]
    %v5641 = vld [vmem:[#allocation8 + $0x80] sm:$0xff]
    %v5642 = vld [vmem:[#allocation8 + $0x88] sm:$0xff]
    %v5643 = vld [vmem:[#allocation8 + $0x90] sm:$0xff]
    %v5644 = vld [vmem:[#allocation8 + $0x98] sm:$0xff]
    %v5645 = vld [vmem:[#allocation8 + $0xa0] sm:$0xff]
    %v5646 = vld [vmem:[#allocation8 + $0xa8] sm:$0xff]
    %v5647 = vld [vmem:[#allocation8 + $0xb0] sm:$0xff]
    %v5648 = vld [vmem:[#allocation8 + $0xb8] sm:$0xff]
    %v5649 = vld [vmem:[#allocation8 + $0xc0] sm:$0xff]
    %v5650 = vld [vmem:[#allocation8 + $0xc8] sm:$0xff]
    %v5651 = vld [vmem:[#allocation8 + $0xd0] sm:$0xff]
    %v5652 = vld [vmem:[#allocation8 + $0xd8] sm:$0xff]
    %v5653 = vld [vmem:[#allocation8 + $0xe0] sm:$0xff]
    %v5654 = vld [vmem:[#allocation8 + $0xe8] sm:$0xff]
    %v5655 = vld [vmem:[#allocation8 + $0xf0] sm:$0xff]
    %v5656 = vld [vmem:[#allocation8 + $0xf8] sm:$0xff]
    %v5657 = vld [vmem:[#allocation8 + $0x100] sm:$0xff]
    %v5658 = vld [vmem:[#allocation8 + $0x108] sm:$0xff]
    %v5659 = vld [vmem:[#allocation8 + $0x110] sm:$0xff]
    %v5660 = vld [vmem:[#allocation8 + $0x118] sm:$0xff]
    %v5661 = vld [vmem:[#allocation8 + $0x120] sm:$0xff]
    %v5662 = vld [vmem:[#allocation8 + $0x128] sm:$0xff]
    %v5663 = vld [vmem:[#allocation8 + $0x130] sm:$0xff]
    %v5664 = vld [vmem:[#allocation8 + $0x138] sm:$0xff]
    %v5665 = vld [vmem:[#allocation8 + $0x140] sm:$0xff]
    %v5666 = vld [vmem:[#allocation8 + $0x148] sm:$0xff]
    %v5667 = vld [vmem:[#allocation8 + $0x150] sm:$0xff]
    %v5668 = vld [vmem:[#allocation8 + $0x158] sm:$0xff]
    %v5669 = vld [vmem:[#allocation8 + $0x160] sm:$0xff]
    %v5670 = vld [vmem:[#allocation8 + $0x168] sm:$0xff]
    %v5671 = vld [vmem:[#allocation8 + $0x170] sm:$0xff]
    %v5672 = vld [vmem:[#allocation8 + $0x178] sm:$0xff]
    %v5673 = vld [vmem:[#allocation8 + $0x180] sm:$0xff]
    %v5674 = vld [vmem:[#allocation8 + $0x188] sm:$0xff]
    %v5675 = vld [vmem:[#allocation8 + $0x190] sm:$0xff]
    %v5676 = vld [vmem:[#allocation8 + $0x198] sm:$0xff]
    %v5677 = vld [vmem:[#allocation8 + $0x1a0] sm:$0xff]
    %v5678 = vld [vmem:[#allocation8 + $0x1a8] sm:$0xff]
    %v5679 = vld [vmem:[#allocation8 + $0x1b0] sm:$0xff]
    %v5680 = vld [vmem:[#allocation8 + $0x1b8] sm:$0xff]
    %v5681 = vld [vmem:[#allocation8 + $0x1c0] sm:$0xff]
    %v5682 = vld [vmem:[#allocation8 + $0x1c8] sm:$0xff]
    %v5683 = vld [vmem:[#allocation8 + $0x1d0] sm:$0xff]
    %v5684 = vld [vmem:[#allocation8 + $0x1d8] sm:$0xff]
    %v5685 = vld [vmem:[#allocation8 + $0x1e0] sm:$0xff]
    %v5686 = vld [vmem:[#allocation8 + $0x1e8] sm:$0xff]
    %v5687 = vld [vmem:[#allocation8 + $0x1f0] sm:$0xff]
    %v5688 = vld [vmem:[#allocation8 + $0x1f8] sm:$0xff]
    %v5689 = vld [vmem:[#allocation8 + $0x200] sm:$0xff]
    %v5690 = vld [vmem:[#allocation8 + $0x208] sm:$0xff]
    %v5691 = vld [vmem:[#allocation8 + $0x210] sm:$0xff]
    %v5692 = vld [vmem:[#allocation8 + $0x218] sm:$0xff]
    %v5693 = vld [vmem:[#allocation8 + $0x220] sm:$0xff]
    %v5694 = vld [vmem:[#allocation8 + $0x228] sm:$0xff]
    %v5695 = vld [vmem:[#allocation8 + $0x230] sm:$0xff]
    %v5696 = vld [vmem:[#allocation8 + $0x238] sm:$0xff]
    %v5697 = vld [vmem:[#allocation8 + $0x240] sm:$0xff]
    %v5698 = vld [vmem:[#allocation8 + $0x248] sm:$0xff]
    %v5699 = vld [vmem:[#allocation8 + $0x250] sm:$0xff]
    %v5700 = vld [vmem:[#allocation8 + $0x258] sm:$0xff]
    %v5701 = vld [vmem:[#allocation8 + $0x260] sm:$0xff]
    %v5702 = vld [vmem:[#allocation8 + $0x268] sm:$0xff]
    %v5703 = vld [vmem:[#allocation8 + $0x270] sm:$0xff]
    %v5704 = vld [vmem:[#allocation8 + $0x278] sm:$0xff]
    %v5705 = vld [vmem:[#allocation8 + $0x280] sm:$0xff]
    %v5706 = vld [vmem:[#allocation8 + $0x288] sm:$0xff]
    %v5707 = vld [vmem:[#allocation8 + $0x290] sm:$0xff]
    %v5708 = vld [vmem:[#allocation8 + $0x298] sm:$0xff]
    %v5709 = vld [vmem:[#allocation8 + $0x2a0] sm:$0xff]
    %v5710 = vld [vmem:[#allocation8 + $0x2a8] sm:$0xff]
    %v5711 = vld [vmem:[#allocation8 + $0x2b0] sm:$0xff]
    %v5712 = vld [vmem:[#allocation8 + $0x2b8] sm:$0xff]
    %v5713 = vld [vmem:[#allocation8 + $0x2c0] sm:$0xff]
    %v5714 = vld [vmem:[#allocation8 + $0x2c8] sm:$0xff]
    %v5715 = vld [vmem:[#allocation8 + $0x2d0] sm:$0xff]
    %v5716 = vld [vmem:[#allocation8 + $0x2d8] sm:$0xff]
    %v5717 = vld [vmem:[#allocation8 + $0x2e0] sm:$0xff]
    %v5718 = vld [vmem:[#allocation8 + $0x2e8] sm:$0xff]
    %v5719 = vld [vmem:[#allocation8 + $0x2f0] sm:$0xff]
    %v5720 = vld [vmem:[#allocation8 + $0x2f8] sm:$0xff]
    %v5721 = vld [vmem:[#allocation8 + $0x300] sm:$0xff]
    %v5722 = vld [vmem:[#allocation8 + $0x308] sm:$0xff]
    %v5723 = vld [vmem:[#allocation8 + $0x310] sm:$0xff]
    %v5724 = vld [vmem:[#allocation8 + $0x318] sm:$0xff]
    %v5725 = vld [vmem:[#allocation8 + $0x320] sm:$0xff]
    %v5726 = vld [vmem:[#allocation8 + $0x328] sm:$0xff]
    %v5727 = vld [vmem:[#allocation8 + $0x330] sm:$0xff]
    %v5728 = vld [vmem:[#allocation8 + $0x338] sm:$0xff]
    %v5729 = vld [vmem:[#allocation8 + $0x340] sm:$0xff]
    %v5730 = vld [vmem:[#allocation8 + $0x348] sm:$0xff]
    %v5731 = vld [vmem:[#allocation8 + $0x350] sm:$0xff]
    %v5732 = vld [vmem:[#allocation8 + $0x358] sm:$0xff]
    %v5733 = vld [vmem:[#allocation8 + $0x360] sm:$0xff]
    %v5734 = vld [vmem:[#allocation8 + $0x368] sm:$0xff]
    %v5735 = vld [vmem:[#allocation8 + $0x370] sm:$0xff]
    %v5736 = vld [vmem:[#allocation8 + $0x378] sm:$0xff]
    %v5737 = vld [vmem:[#allocation8 + $0x380] sm:$0xff]
    %v5738 = vld [vmem:[#allocation8 + $0x388] sm:$0xff]
    %v5739 = vld [vmem:[#allocation8 + $0x390] sm:$0xff]
    %v5740 = vld [vmem:[#allocation8 + $0x398] sm:$0xff]
    %v5741 = vld [vmem:[#allocation8 + $0x3a0] sm:$0xff]
    %v5742 = vld [vmem:[#allocation8 + $0x3a8] sm:$0xff]
    %v5743 = vld [vmem:[#allocation8 + $0x3b0] sm:$0xff]
    %v5744 = vld [vmem:[#allocation8 + $0x3b8] sm:$0xff]
    %v5745 = vld [vmem:[#allocation8 + $0x3c0] sm:$0xff]
    %v5746 = vld [vmem:[#allocation8 + $0x3c8] sm:$0xff]
    %v5747 = vld [vmem:[#allocation8 + $0x3d0] sm:$0xff]
    %v5748 = vld [vmem:[#allocation8 + $0x3d8] sm:$0xff]
    %v5749 = vld [vmem:[#allocation8 + $0x3e0] sm:$0xff]
    %v5750 = vld [vmem:[#allocation8 + $0x3e8] sm:$0xff]
    %v5751 = vld [vmem:[#allocation8 + $0x3f0] sm:$0xff]
    %v5752 = vld [vmem:[#allocation8 + $0x3f8] sm:$0xff]
    %v5753 = vld [vmem:[#allocation8 + $0x400] sm:$0xff]
    %v5754 = vld [vmem:[#allocation8 + $0x408] sm:$0xff]
    %v5755 = vld [vmem:[#allocation8 + $0x410] sm:$0xff]
    %v5756 = vld [vmem:[#allocation8 + $0x418] sm:$0xff]
    %v5757 = vld [vmem:[#allocation8 + $0x420] sm:$0xff]
    %v5758 = vld [vmem:[#allocation8 + $0x428] sm:$0xff]
    %v5759 = vld [vmem:[#allocation8 + $0x430] sm:$0xff]
    %v5760 = vld [vmem:[#allocation8 + $0x438] sm:$0xff]
    %v5761 = vld [vmem:[#allocation8 + $0x440] sm:$0xff]
    %v5762 = vld [vmem:[#allocation8 + $0x448] sm:$0xff]
    %v5763 = vld [vmem:[#allocation8 + $0x450] sm:$0xff]
    %v5764 = vld [vmem:[#allocation8 + $0x458] sm:$0xff]
    %v5765 = vld [vmem:[#allocation8 + $0x460] sm:$0xff]
    %v5766 = vld [vmem:[#allocation8 + $0x468] sm:$0xff]
    %v5767 = vld [vmem:[#allocation8 + $0x470] sm:$0xff]
    %v5768 = vld [vmem:[#allocation8 + $0x478] sm:$0xff]
    %v5769 = vld [vmem:[#allocation8 + $0x480] sm:$0xff]
    %v5770 = vld [vmem:[#allocation8 + $0x488] sm:$0xff]
    %v5771 = vld [vmem:[#allocation8 + $0x490] sm:$0xff]
    %v5772 = vld [vmem:[#allocation8 + $0x498] sm:$0xff]
    %v5773 = vld [vmem:[#allocation8 + $0x4a0] sm:$0xff]
    %v5774 = vld [vmem:[#allocation8 + $0x4a8] sm:$0xff]
    %v5775 = vld [vmem:[#allocation8 + $0x4b0] sm:$0xff]
    %v5776 = vld [vmem:[#allocation8 + $0x4b8] sm:$0xff]
    %v5777 = vld [vmem:[#allocation8 + $0x4c0] sm:$0xff]
    %v5778 = vld [vmem:[#allocation8 + $0x4c8] sm:$0xff]
    %v5779 = vld [vmem:[#allocation8 + $0x4d0] sm:$0xff]
    %v5780 = vld [vmem:[#allocation8 + $0x4d8] sm:$0xff]
    %v5781 = vld [vmem:[#allocation8 + $0x4e0] sm:$0xff]
    %v5782 = vld [vmem:[#allocation8 + $0x4e8] sm:$0xff]
    %v5783 = vld [vmem:[#allocation8 + $0x4f0] sm:$0xff]
    %v5784 = vld [vmem:[#allocation8 + $0x4f8] sm:$0xff]
    %v5785 = vld [vmem:[#allocation8 + $0x500] sm:$0xff]
    %v5786 = vld [vmem:[#allocation8 + $0x508] sm:$0xff]
    %v5787 = vld [vmem:[#allocation8 + $0x510] sm:$0xff]
    %v5788 = vld [vmem:[#allocation8 + $0x518] sm:$0xff]
    %v5789 = vld [vmem:[#allocation8 + $0x520] sm:$0xff]
    %v5790 = vld [vmem:[#allocation8 + $0x528] sm:$0xff]
    %v5791 = vld [vmem:[#allocation8 + $0x530] sm:$0xff]
    %v5792 = vld [vmem:[#allocation8 + $0x538] sm:$0xff]
    %v5793 = vld [vmem:[#allocation8 + $0x540] sm:$0xff]
    %v5794 = vld [vmem:[#allocation8 + $0x548] sm:$0xff]
    %v5795 = vld [vmem:[#allocation8 + $0x550] sm:$0xff]
    %v5796 = vld [vmem:[#allocation8 + $0x558] sm:$0xff]
    %v5797 = vld [vmem:[#allocation8 + $0x560] sm:$0xff]
    %v5798 = vld [vmem:[#allocation8 + $0x568] sm:$0xff]
    %v5799 = vld [vmem:[#allocation8 + $0x570] sm:$0xff]
    %v5800 = vld [vmem:[#allocation8 + $0x578] sm:$0xff]
    %v5801 = vld [vmem:[#allocation8 + $0x580] sm:$0xff]
    %v5802 = vld [vmem:[#allocation8 + $0x588] sm:$0xff]
    %v5803 = vld [vmem:[#allocation8 + $0x590] sm:$0xff]
    %v5804 = vld [vmem:[#allocation8 + $0x598] sm:$0xff]
    %v5805 = vld [vmem:[#allocation8 + $0x5a0] sm:$0xff]
    %v5806 = vld [vmem:[#allocation8 + $0x5a8] sm:$0xff]
    %v5807 = vld [vmem:[#allocation8 + $0x5b0] sm:$0xff]
    %v5808 = vld [vmem:[#allocation8 + $0x5b8] sm:$0xff]
    %v5809 = vld [vmem:[#allocation8 + $0x5c0] sm:$0xff]
    %v5810 = vld [vmem:[#allocation8 + $0x5c8] sm:$0xff]
    %v5811 = vld [vmem:[#allocation8 + $0x5d0] sm:$0xff]
    %v5812 = vld [vmem:[#allocation8 + $0x5d8] sm:$0xff]
    %v5813 = vld [vmem:[#allocation8 + $0x5e0] sm:$0xff]
    %v5814 = vld [vmem:[#allocation8 + $0x5e8] sm:$0xff]
    %v5815 = vld [vmem:[#allocation8 + $0x5f0] sm:$0xff]
    %v5816 = vld [vmem:[#allocation8 + $0x5f8] sm:$0xff]
    %v5817 = vld [vmem:[#allocation8 + $0x600] sm:$0xff]
    %v5818 = vld [vmem:[#allocation8 + $0x608] sm:$0xff]
    %v5819 = vld [vmem:[#allocation8 + $0x610] sm:$0xff]
    %v5820 = vld [vmem:[#allocation8 + $0x618] sm:$0xff]
    %v5821 = vld [vmem:[#allocation8 + $0x620] sm:$0xff]
    %v5822 = vld [vmem:[#allocation8 + $0x628] sm:$0xff]
    %v5823 = vld [vmem:[#allocation8 + $0x630] sm:$0xff]
    %v5824 = vld [vmem:[#allocation8 + $0x638] sm:$0xff]
    %v5825 = vld [vmem:[#allocation8 + $0x640] sm:$0xff]
    %v5826 = vld [vmem:[#allocation8 + $0x648] sm:$0xff]
    %v5827 = vld [vmem:[#allocation8 + $0x650] sm:$0xff]
    %v5828 = vld [vmem:[#allocation8 + $0x658] sm:$0xff]
    %v5829 = vld [vmem:[#allocation8 + $0x660] sm:$0xff]
    %v5830 = vld [vmem:[#allocation8 + $0x668] sm:$0xff]
    %v5831 = vld [vmem:[#allocation8 + $0x670] sm:$0xff]
    %v5832 = vld [vmem:[#allocation8 + $0x678] sm:$0xff]
    %v5833 = vld [vmem:[#allocation8 + $0x680] sm:$0xff]
    %v5834 = vld [vmem:[#allocation8 + $0x688] sm:$0xff]
    %v5835 = vld [vmem:[#allocation8 + $0x690] sm:$0xff]
    %v5836 = vld [vmem:[#allocation8 + $0x698] sm:$0xff]
    %v5837 = vld [vmem:[#allocation8 + $0x6a0] sm:$0xff]
    %v5838 = vld [vmem:[#allocation8 + $0x6a8] sm:$0xff]
    %v5839 = vld [vmem:[#allocation8 + $0x6b0] sm:$0xff]
    %v5840 = vld [vmem:[#allocation8 + $0x6b8] sm:$0xff]
    %v5841 = vld [vmem:[#allocation8 + $0x6c0] sm:$0xff]
    %v5842 = vld [vmem:[#allocation8 + $0x6c8] sm:$0xff]
    %v5843 = vld [vmem:[#allocation8 + $0x6d0] sm:$0xff]
    %v5844 = vld [vmem:[#allocation8 + $0x6d8] sm:$0xff]
    %v5845 = vld [vmem:[#allocation8 + $0x6e0] sm:$0xff]
    %v5846 = vld [vmem:[#allocation8 + $0x6e8] sm:$0xff]
    %v5847 = vld [vmem:[#allocation8 + $0x6f0] sm:$0xff]
    %v5848 = vld [vmem:[#allocation8 + $0x6f8] sm:$0xff]
    %v5849 = vld [vmem:[#allocation8 + $0x700] sm:$0xff]
    %v5850 = vld [vmem:[#allocation8 + $0x708] sm:$0xff]
    %v5851 = vld [vmem:[#allocation8 + $0x710] sm:$0xff]
    %v5852 = vld [vmem:[#allocation8 + $0x718] sm:$0xff]
    %v5853 = vld [vmem:[#allocation8 + $0x720] sm:$0xff]
    %v5854 = vld [vmem:[#allocation8 + $0x728] sm:$0xff]
    %v5855 = vld [vmem:[#allocation8 + $0x730] sm:$0xff]
    %v5856 = vld [vmem:[#allocation8 + $0x738] sm:$0xff]
    %v5857 = vld [vmem:[#allocation8 + $0x740] sm:$0xff]
    %v5858 = vld [vmem:[#allocation8 + $0x748] sm:$0xff]
    %v5859 = vld [vmem:[#allocation8 + $0x750] sm:$0xff]
    %v5860 = vld [vmem:[#allocation8 + $0x758] sm:$0xff]
    %v5861 = vld [vmem:[#allocation8 + $0x760] sm:$0xff]
    %v5862 = vld [vmem:[#allocation8 + $0x768] sm:$0xff]
    %v5863 = vld [vmem:[#allocation8 + $0x770] sm:$0xff]
    %v5864 = vld [vmem:[#allocation8 + $0x778] sm:$0xff]
    %v5865 = vld [vmem:[#allocation8 + $0x780] sm:$0xff]
    %v5866 = vld [vmem:[#allocation8 + $0x788] sm:$0xff]
    %v5867 = vld [vmem:[#allocation8 + $0x790] sm:$0xff]
    %v5868 = vld [vmem:[#allocation8 + $0x798] sm:$0xff]
    %v5869 = vld [vmem:[#allocation8 + $0x7a0] sm:$0xff]
    %v5870 = vld [vmem:[#allocation8 + $0x7a8] sm:$0xff]
    %v5871 = vld [vmem:[#allocation8 + $0x7b0] sm:$0xff]
    %v5872 = vld [vmem:[#allocation8 + $0x7b8] sm:$0xff]
    %v5873 = vld [vmem:[#allocation8 + $0x7c0] sm:$0xff]
    %v5874 = vld [vmem:[#allocation8 + $0x7c8] sm:$0xff]
    %v5875 = vld [vmem:[#allocation8 + $0x7d0] sm:$0xff]
    %v5876 = vld [vmem:[#allocation8 + $0x7d8] sm:$0xff]
    %v5877 = vld [vmem:[#allocation8 + $0x7e0] sm:$0xff]
    %v5878 = vld [vmem:[#allocation8 + $0x7e8] sm:$0xff]
    %v5879 = vld [vmem:[#allocation8 + $0x7f0] sm:$0xff]
    %v5880 = vld [vmem:[#allocation8 + $0x7f8] sm:$0xff]
    %v5881 = vld [vmem:[#allocation8 + $0x800] sm:$0xff]
    %v5882 = vld [vmem:[#allocation8 + $0x808] sm:$0xff]
    %v5883 = vld [vmem:[#allocation8 + $0x810] sm:$0xff]
    %v5884 = vld [vmem:[#allocation8 + $0x818] sm:$0xff]
    %v5885 = vld [vmem:[#allocation8 + $0x820] sm:$0xff]
    %v5886 = vld [vmem:[#allocation8 + $0x828] sm:$0xff]
    %v5887 = vld [vmem:[#allocation8 + $0x830] sm:$0xff]
    %v5888 = vld [vmem:[#allocation8 + $0x838] sm:$0xff]
    %v5889 = vld [vmem:[#allocation8 + $0x840] sm:$0xff]
    %v5890 = vld [vmem:[#allocation8 + $0x848] sm:$0xff]
    %v5891 = vld [vmem:[#allocation8 + $0x850] sm:$0xff]
    %v5892 = vld [vmem:[#allocation8 + $0x858] sm:$0xff]
    %v5893 = vld [vmem:[#allocation8 + $0x860] sm:$0xff]
    %v5894 = vld [vmem:[#allocation8 + $0x868] sm:$0xff]
    %v5895 = vld [vmem:[#allocation8 + $0x870] sm:$0xff]
    %v5896 = vld [vmem:[#allocation8 + $0x878] sm:$0xff]
    %v5897 = vld [vmem:[#allocation8 + $0x880] sm:$0xff]
    %v5898 = vld [vmem:[#allocation8 + $0x888] sm:$0xff]
    %v5899 = vld [vmem:[#allocation8 + $0x890] sm:$0xff]
    %v5900 = vld [vmem:[#allocation8 + $0x898] sm:$0xff]
    %v5901 = vld [vmem:[#allocation8 + $0x8a0] sm:$0xff]
    %v5902 = vld [vmem:[#allocation8 + $0x8a8] sm:$0xff]
    %v5903 = vld [vmem:[#allocation8 + $0x8b0] sm:$0xff]
    %v5904 = vld [vmem:[#allocation8 + $0x8b8] sm:$0xff]
    %v5905 = vld [vmem:[#allocation8 + $0x8c0] sm:$0xff]
    %v5906 = vld [vmem:[#allocation8 + $0x8c8] sm:$0xff]
    %v5907 = vld [vmem:[#allocation8 + $0x8d0] sm:$0xff]
    %v5908 = vld [vmem:[#allocation8 + $0x8d8] sm:$0xff]
    %v5909 = vld [vmem:[#allocation8 + $0x8e0] sm:$0xff]
    %v5910 = vld [vmem:[#allocation8 + $0x8e8] sm:$0xff]
    %v5911 = vld [vmem:[#allocation8 + $0x8f0] sm:$0xff]
    %v5912 = vld [vmem:[#allocation8 + $0x8f8] sm:$0xff]
    %v5913 = vld [vmem:[#allocation8 + $0x900] sm:$0xff]
    %v5914 = vld [vmem:[#allocation8 + $0x908] sm:$0xff]
    %v5915 = vld [vmem:[#allocation8 + $0x910] sm:$0xff]
    %v5916 = vld [vmem:[#allocation8 + $0x918] sm:$0xff]
    %v5917 = vld [vmem:[#allocation8 + $0x920] sm:$0xff]
    %v5918 = vld [vmem:[#allocation8 + $0x928] sm:$0xff]
    %v5919 = vld [vmem:[#allocation8 + $0x930] sm:$0xff]
    %v5920 = vld [vmem:[#allocation8 + $0x938] sm:$0xff]
    %v5921 = vld [vmem:[#allocation8 + $0x940] sm:$0xff]
    %v5922 = vld [vmem:[#allocation8 + $0x948] sm:$0xff]
    %v5923 = vld [vmem:[#allocation8 + $0x950] sm:$0xff]
    %v5924 = vld [vmem:[#allocation8 + $0x958] sm:$0xff]
    %v5925 = vld [vmem:[#allocation8 + $0x960] sm:$0xff]
    %v5926 = vld [vmem:[#allocation8 + $0x968] sm:$0xff]
    %v5927 = vld [vmem:[#allocation8 + $0x970] sm:$0xff]
    %v5928 = vld [vmem:[#allocation8 + $0x978] sm:$0xff]
    %v5929 = vld [vmem:[#allocation8 + $0x980] sm:$0xff]
    %v5930 = vld [vmem:[#allocation8 + $0x988] sm:$0xff]
    %v5931 = vld [vmem:[#allocation8 + $0x990] sm:$0xff]
    %v5932 = vld [vmem:[#allocation8 + $0x998] sm:$0xff]
    %v5933 = vld [vmem:[#allocation8 + $0x9a0] sm:$0xff]
    %v5934 = vld [vmem:[#allocation8 + $0x9a8] sm:$0xff]
    %v5935 = vld [vmem:[#allocation8 + $0x9b0] sm:$0xff]
    %v5936 = vld [vmem:[#allocation8 + $0x9b8] sm:$0xff]
    %v5937 = vld [vmem:[#allocation8 + $0x9c0] sm:$0xff]
    %v5938 = vld [vmem:[#allocation8 + $0x9c8] sm:$0xff]
    %v5939 = vld [vmem:[#allocation8 + $0x9d0] sm:$0xff]
    %v5940 = vld [vmem:[#allocation8 + $0x9d8] sm:$0xff]
    %v5941 = vld [vmem:[#allocation8 + $0x9e0] sm:$0xff]
    %v5942 = vld [vmem:[#allocation8 + $0x9e8] sm:$0xff]
    %v5943 = vld [vmem:[#allocation8 + $0x9f0] sm:$0xff]
    %v5944 = vld [vmem:[#allocation8 + $0x9f8] sm:$0xff]
    %v5945 = vld [vmem:[#allocation8 + $0xa00] sm:$0xff]
    %v5946 = vld [vmem:[#allocation8 + $0xa08] sm:$0xff]
    %v5947 = vld [vmem:[#allocation8 + $0xa10] sm:$0xff]
    %v5948 = vld [vmem:[#allocation8 + $0xa18] sm:$0xff]
    %v5949 = vld [vmem:[#allocation8 + $0xa20] sm:$0xff]
    %v5950 = vld [vmem:[#allocation8 + $0xa28] sm:$0xff]
    %v5951 = vld [vmem:[#allocation8 + $0xa30] sm:$0xff]
    %v5952 = vld [vmem:[#allocation8 + $0xa38] sm:$0xff]
    %v5953 = vld [vmem:[#allocation8 + $0xa40] sm:$0xff]
    %v5954 = vld [vmem:[#allocation8 + $0xa48] sm:$0xff]
    %v5955 = vld [vmem:[#allocation8 + $0xa50] sm:$0xff]
    %v5956 = vld [vmem:[#allocation8 + $0xa58] sm:$0xff]
    %v5957 = vld [vmem:[#allocation8 + $0xa60] sm:$0xff]
    %v5958 = vld [vmem:[#allocation8 + $0xa68] sm:$0xff]
    %v5959 = vld [vmem:[#allocation8 + $0xa70] sm:$0xff]
    %v5960 = vld [vmem:[#allocation8 + $0xa78] sm:$0xff]
    %v5961 = vld [vmem:[#allocation8 + $0xa80] sm:$0xff]
    %v5962 = vld [vmem:[#allocation8 + $0xa88] sm:$0xff]
    %v5963 = vld [vmem:[#allocation8 + $0xa90] sm:$0xff]
    %v5964 = vld [vmem:[#allocation8 + $0xa98] sm:$0xff]
    %v5965 = vld [vmem:[#allocation8 + $0xaa0] sm:$0xff]
    %v5966 = vld [vmem:[#allocation8 + $0xaa8] sm:$0xff]
    %v5967 = vld [vmem:[#allocation8 + $0xab0] sm:$0xff]
    %v5968 = vld [vmem:[#allocation8 + $0xab8] sm:$0xff]
    %v5969 = vld [vmem:[#allocation8 + $0xac0] sm:$0xff]
    %v5970 = vld [vmem:[#allocation8 + $0xac8] sm:$0xff]
    %v5971 = vld [vmem:[#allocation8 + $0xad0] sm:$0xff]
    %v5972 = vld [vmem:[#allocation8 + $0xad8] sm:$0xff]
    %v5973 = vld [vmem:[#allocation8 + $0xae0] sm:$0xff]
    %v5974 = vld [vmem:[#allocation8 + $0xae8] sm:$0xff]
    %v5975 = vld [vmem:[#allocation8 + $0xaf0] sm:$0xff]
    %v5976 = vld [vmem:[#allocation8 + $0xaf8] sm:$0xff]
    %v5977 = vld [vmem:[#allocation8 + $0xb00] sm:$0xff]
    %v5978 = vld [vmem:[#allocation8 + $0xb08] sm:$0xff]
    %v5979 = vld [vmem:[#allocation8 + $0xb10] sm:$0xff]
    %v5980 = vld [vmem:[#allocation8 + $0xb18] sm:$0xff]
    %v5981 = vld [vmem:[#allocation8 + $0xb20] sm:$0xff]
    %v5982 = vld [vmem:[#allocation8 + $0xb28] sm:$0xff]
    %v5983 = vld [vmem:[#allocation8 + $0xb30] sm:$0xff]
    %v5984 = vld [vmem:[#allocation8 + $0xb38] sm:$0xff]
    %v5985 = vld [vmem:[#allocation8 + $0xb40] sm:$0xff]
    %v5986 = vld [vmem:[#allocation8 + $0xb48] sm:$0xff]
    %v5987 = vld [vmem:[#allocation8 + $0xb50] sm:$0xff]
    %v5988 = vld [vmem:[#allocation8 + $0xb58] sm:$0xff]
    %v5989 = vld [vmem:[#allocation8 + $0xb60] sm:$0xff]
    %v5990 = vld [vmem:[#allocation8 + $0xb68] sm:$0xff]
    %v5991 = vld [vmem:[#allocation8 + $0xb70] sm:$0xff]
    %v5992 = vld [vmem:[#allocation8 + $0xb78] sm:$0xff]
    %v5993 = vld [vmem:[#allocation8 + $0xb80] sm:$0xff]
    %v5994 = vld [vmem:[#allocation8 + $0xb88] sm:$0xff]
    %v5995 = vld [vmem:[#allocation8 + $0xb90] sm:$0xff]
    %v5996 = vld [vmem:[#allocation8 + $0xb98] sm:$0xff]
    %v5997 = vld [vmem:[#allocation8 + $0xba0] sm:$0xff]
    %v5998 = vld [vmem:[#allocation8 + $0xba8] sm:$0xff]
    %v5999 = vld [vmem:[#allocation8 + $0xbb0] sm:$0xff]
    %v6000 = vld [vmem:[#allocation8 + $0xbb8] sm:$0xff]
    %v6001 = vld [vmem:[#allocation8 + $0xbc0] sm:$0xff]
    %v6002 = vld [vmem:[#allocation8 + $0xbc8] sm:$0xff]
    %v6003 = vld [vmem:[#allocation8 + $0xbd0] sm:$0xff]
    %v6004 = vld [vmem:[#allocation8 + $0xbd8] sm:$0xff]
    %v6005 = vld [vmem:[#allocation8 + $0xbe0] sm:$0xff]
    %v6006 = vld [vmem:[#allocation8 + $0xbe8] sm:$0xff]
    %v6007 = vld [vmem:[#allocation8 + $0xbf0] sm:$0xff]
    %v6008 = vld [vmem:[#allocation8 + $0xbf8] sm:$0xff]
    %v6009 = vld [vmem:[#allocation8 + $0xc00] sm:$0xff]
    %v6010 = vld [vmem:[#allocation8 + $0xc08] sm:$0xff]
    %v6011 = vld [vmem:[#allocation8 + $0xc10] sm:$0xff]
    %v6012 = vld [vmem:[#allocation8 + $0xc18] sm:$0xff]
    %v6013 = vld [vmem:[#allocation8 + $0xc20] sm:$0xff]
    %v6014 = vld [vmem:[#allocation8 + $0xc28] sm:$0xff]
    %v6015 = vld [vmem:[#allocation8 + $0xc30] sm:$0xff]
    %v6016 = vld [vmem:[#allocation8 + $0xc38] sm:$0xff]
    %v6017 = vld [vmem:[#allocation8 + $0xc40] sm:$0xff]
    %v6018 = vld [vmem:[#allocation8 + $0xc48] sm:$0xff]
    %v6019 = vld [vmem:[#allocation8 + $0xc50] sm:$0xff]
    %v6020 = vld [vmem:[#allocation8 + $0xc58] sm:$0xff]
    %v6021 = vld [vmem:[#allocation8 + $0xc60] sm:$0xff]
    %v6022 = vld [vmem:[#allocation8 + $0xc68] sm:$0xff]
    %v6023 = vld [vmem:[#allocation8 + $0xc70] sm:$0xff]
    %v6024 = vld [vmem:[#allocation8 + $0xc78] sm:$0xff]
    %v6025 = vld [vmem:[#allocation8 + $0xc80] sm:$0xff]
    %v6026 = vld [vmem:[#allocation8 + $0xc88] sm:$0xff]
    %v6027 = vld [vmem:[#allocation8 + $0xc90] sm:$0xff]
    %v6028 = vld [vmem:[#allocation8 + $0xc98] sm:$0xff]
    %v6029 = vld [vmem:[#allocation8 + $0xca0] sm:$0xff]
    %v6030 = vld [vmem:[#allocation8 + $0xca8] sm:$0xff]
    %v6031 = vld [vmem:[#allocation8 + $0xcb0] sm:$0xff]
    %v6032 = vld [vmem:[#allocation8 + $0xcb8] sm:$0xff]
    %v6033 = vld [vmem:[#allocation8 + $0xcc0] sm:$0xff]
    %v6034 = vld [vmem:[#allocation8 + $0xcc8] sm:$0xff]
    %v6035 = vld [vmem:[#allocation8 + $0xcd0] sm:$0xff]
    %v6036 = vld [vmem:[#allocation8 + $0xcd8] sm:$0xff]
    %v6037 = vld [vmem:[#allocation8 + $0xce0] sm:$0xff]
    %v6038 = vld [vmem:[#allocation8 + $0xce8] sm:$0xff]
    %v6039 = vld [vmem:[#allocation8 + $0xcf0] sm:$0xff]
    %v6040 = vld [vmem:[#allocation8 + $0xcf8] sm:$0xff]
    %v6041 = vld [vmem:[#allocation8 + $0xd00] sm:$0xff]
    %v6042 = vld [vmem:[#allocation8 + $0xd08] sm:$0xff]
    %v6043 = vld [vmem:[#allocation8 + $0xd10] sm:$0xff]
    %v6044 = vld [vmem:[#allocation8 + $0xd18] sm:$0xff]
    %v6045 = vld [vmem:[#allocation8 + $0xd20] sm:$0xff]
    %v6046 = vld [vmem:[#allocation8 + $0xd28] sm:$0xff]
    %v6047 = vld [vmem:[#allocation8 + $0xd30] sm:$0xff]
    %v6048 = vld [vmem:[#allocation8 + $0xd38] sm:$0xff]
    %v6049 = vld [vmem:[#allocation8 + $0xd40] sm:$0xff]
    %v6050 = vld [vmem:[#allocation8 + $0xd48] sm:$0xff]
    %v6051 = vld [vmem:[#allocation8 + $0xd50] sm:$0xff]
    %v6052 = vld [vmem:[#allocation8 + $0xd58] sm:$0xff]
    %v6053 = vld [vmem:[#allocation8 + $0xd60] sm:$0xff]
    %v6054 = vld [vmem:[#allocation8 + $0xd68] sm:$0xff]
    %v6055 = vld [vmem:[#allocation8 + $0xd70] sm:$0xff]
    %v6056 = vld [vmem:[#allocation8 + $0xd78] sm:$0xff]
    %v6057 = vld [vmem:[#allocation8 + $0xd80] sm:$0xff]
    %v6058 = vld [vmem:[#allocation8 + $0xd88] sm:$0xff]
    %v6059 = vld [vmem:[#allocation8 + $0xd90] sm:$0xff]
    %v6060 = vld [vmem:[#allocation8 + $0xd98] sm:$0xff]
    %v6061 = vld [vmem:[#allocation8 + $0xda0] sm:$0xff]
    %v6062 = vld [vmem:[#allocation8 + $0xda8] sm:$0xff]
    %v6063 = vld [vmem:[#allocation8 + $0xdb0] sm:$0xff]
    %v6064 = vld [vmem:[#allocation8 + $0xdb8] sm:$0xff]
    %v6065 = vld [vmem:[#allocation8 + $0xdc0] sm:$0xff]
    %v6066 = vld [vmem:[#allocation8 + $0xdc8] sm:$0xff]
    %v6067 = vld [vmem:[#allocation8 + $0xdd0] sm:$0xff]
    %v6068 = vld [vmem:[#allocation8 + $0xdd8] sm:$0xff]
    %v6069 = vld [vmem:[#allocation8 + $0xde0] sm:$0xff]
    %v6070 = vld [vmem:[#allocation8 + $0xde8] sm:$0xff]
    %v6071 = vld [vmem:[#allocation8 + $0xdf0] sm:$0xff]
    %v6072 = vld [vmem:[#allocation8 + $0xdf8] sm:$0xff]
    %v6073 = vld [vmem:[#allocation8 + $0xe00] sm:$0xff]
    %v6074 = vld [vmem:[#allocation8 + $0xe08] sm:$0xff]
    %v6075 = vld [vmem:[#allocation8 + $0xe10] sm:$0xff]
    %v6076 = vld [vmem:[#allocation8 + $0xe18] sm:$0xff]
    %v6077 = vld [vmem:[#allocation8 + $0xe20] sm:$0xff]
    %v6078 = vld [vmem:[#allocation8 + $0xe28] sm:$0xff]
    %v6079 = vld [vmem:[#allocation8 + $0xe30] sm:$0xff]
    %v6080 = vld [vmem:[#allocation8 + $0xe38] sm:$0xff]
    %v6081 = vld [vmem:[#allocation8 + $0xe40] sm:$0xff]
    %v6082 = vld [vmem:[#allocation8 + $0xe48] sm:$0xff]
    %v6083 = vld [vmem:[#allocation8 + $0xe50] sm:$0xff]
    %v6084 = vld [vmem:[#allocation8 + $0xe58] sm:$0xff]
    %v6085 = vld [vmem:[#allocation8 + $0xe60] sm:$0xff]
    %v6086 = vld [vmem:[#allocation8 + $0xe68] sm:$0xff]
    %v6087 = vld [vmem:[#allocation8 + $0xe70] sm:$0xff]
    %v6088 = vld [vmem:[#allocation8 + $0xe78] sm:$0xff]
    %v6089 = vld [vmem:[#allocation8 + $0xe80] sm:$0xff]
    %v6090 = vld [vmem:[#allocation8 + $0xe88] sm:$0xff]
    %v6091 = vld [vmem:[#allocation8 + $0xe90] sm:$0xff]
    %v6092 = vld [vmem:[#allocation8 + $0xe98] sm:$0xff]
    %v6093 = vld [vmem:[#allocation8 + $0xea0] sm:$0xff]
    %v6094 = vld [vmem:[#allocation8 + $0xea8] sm:$0xff]
    %v6095 = vld [vmem:[#allocation8 + $0xeb0] sm:$0xff]
    %v6096 = vld [vmem:[#allocation8 + $0xeb8] sm:$0xff]
    %v6097 = vld [vmem:[#allocation8 + $0xec0] sm:$0xff]
    %v6098 = vld [vmem:[#allocation8 + $0xec8] sm:$0xff]
    %v6099 = vld [vmem:[#allocation8 + $0xed0] sm:$0xff]
    %v6100 = vld [vmem:[#allocation8 + $0xed8] sm:$0xff]
    %v6101 = vld [vmem:[#allocation8 + $0xee0] sm:$0xff]
    %v6102 = vld [vmem:[#allocation8 + $0xee8] sm:$0xff]
    %v6103 = vld [vmem:[#allocation8 + $0xef0] sm:$0xff]
    %v6104 = vld [vmem:[#allocation8 + $0xef8] sm:$0xff]
    %v6105 = vld [vmem:[#allocation8 + $0xf00] sm:$0xff]
    %v6106 = vld [vmem:[#allocation8 + $0xf08] sm:$0xff]
    %v6107 = vld [vmem:[#allocation8 + $0xf10] sm:$0xff]
    %v6108 = vld [vmem:[#allocation8 + $0xf18] sm:$0xff]
    %v6109 = vld [vmem:[#allocation8 + $0xf20] sm:$0xff]
    %v6110 = vld [vmem:[#allocation8 + $0xf28] sm:$0xff]
    %v6111 = vld [vmem:[#allocation8 + $0xf30] sm:$0xff]
    %v6112 = vld [vmem:[#allocation8 + $0xf38] sm:$0xff]
    %v6113 = vld [vmem:[#allocation8 + $0xf40] sm:$0xff]
    %v6114 = vld [vmem:[#allocation8 + $0xf48] sm:$0xff]
    %v6115 = vld [vmem:[#allocation8 + $0xf50] sm:$0xff]
    %v6116 = vld [vmem:[#allocation8 + $0xf58] sm:$0xff]
    %v6117 = vld [vmem:[#allocation8 + $0xf60] sm:$0xff]
    %v6118 = vld [vmem:[#allocation8 + $0xf68] sm:$0xff]
    %v6119 = vld [vmem:[#allocation8 + $0xf70] sm:$0xff]
    %v6120 = vld [vmem:[#allocation8 + $0xf78] sm:$0xff]
    %v6121 = vld [vmem:[#allocation8 + $0xf80] sm:$0xff]
    %v6122 = vld [vmem:[#allocation8 + $0xf88] sm:$0xff]
    %v6123 = vld [vmem:[#allocation8 + $0xf90] sm:$0xff]
    %v6124 = vld [vmem:[#allocation8 + $0xf98] sm:$0xff]
    %v6125 = vld [vmem:[#allocation8 + $0xfa0] sm:$0xff]
    %v6126 = vld [vmem:[#allocation8 + $0xfa8] sm:$0xff]
    %v6127 = vld [vmem:[#allocation8 + $0xfb0] sm:$0xff]
    %v6128 = vld [vmem:[#allocation8 + $0xfb8] sm:$0xff]
    %v6129 = vld [vmem:[#allocation8 + $0xfc0] sm:$0xff]
    %v6130 = vld [vmem:[#allocation8 + $0xfc8] sm:$0xff]
    %v6131 = vld [vmem:[#allocation8 + $0xfd0] sm:$0xff]
    %v6132 = vld [vmem:[#allocation8 + $0xfd8] sm:$0xff]
    %v6133 = vld [vmem:[#allocation8 + $0xfe0] sm:$0xff]
    %v6134 = vld [vmem:[#allocation8 + $0xfe8] sm:$0xff]
    %v6135 = vld [vmem:[#allocation8 + $0xff0] sm:$0xff]
    %v6136 = vld [vmem:[#allocation8 + $0xff8] sm:$0xff]
    %v6137 = vld [vmem:[#allocation10] sm:$0xf]
    %v6139 = vlaneseq
    %v6140 = vshrl.u32 %v6139, 7
    %v6141 = vsub.s32 0, %v6140
    %v6142 = vrot.slane %v6137, %v6141
    %v6143 = vlaneseq
    %v6144 = vshrl.u32 %v6143, 7
    %v6145 = vsub.s32 1, %v6144
    %v6146 = vrot.slane %v6137, %v6145
    %v6147 = vlaneseq
    %v6148 = vshrl.u32 %v6147, 7
    %v6149 = vsub.s32 2, %v6148
    %v6150 = vrot.slane %v6137, %v6149
    %v6151 = vlaneseq
    %v6152 = vshrl.u32 %v6151, 7
    %v6153 = vsub.s32 3, %v6152
    %v6154 = vrot.slane %v6137, %v6153
    %v6671 = vunpack.c.l.b16 %v5625
    %v6672 = vunpack.c.h.b16 %v5625
    %v6673 = vunpack.c.l.b16 %v5626
    %v6674 = vunpack.c.h.b16 %v5626
    %v6675 = vunpack.c.l.b16 %v5627
    %v6676 = vunpack.c.h.b16 %v5627
    %v6677 = vunpack.c.l.b16 %v5628
    %v6678 = vunpack.c.h.b16 %v5628
    %v6679 = vunpack.c.l.b16 %v5629
    %v6680 = vunpack.c.h.b16 %v5629
    %v6681 = vunpack.c.l.b16 %v5630
    %v6682 = vunpack.c.h.b16 %v5630
    %v6683 = vunpack.c.l.b16 %v5631
    %v6684 = vunpack.c.h.b16 %v5631
    %v6685 = vunpack.c.l.b16 %v5632
    %v6686 = vunpack.c.h.b16 %v5632
    %v6687 = vunpack.c.l.b16 %v5633
    %v6688 = vunpack.c.h.b16 %v5633
    %v6689 = vunpack.c.l.b16 %v5634
    %v6690 = vunpack.c.h.b16 %v5634
    %v6691 = vunpack.c.l.b16 %v5635
    %v6692 = vunpack.c.h.b16 %v5635
    %v6693 = vunpack.c.l.b16 %v5636
    %v6694 = vunpack.c.h.b16 %v5636
    %v6695 = vunpack.c.l.b16 %v5637
    %v6696 = vunpack.c.h.b16 %v5637
    %v6697 = vunpack.c.l.b16 %v5638
    %v6698 = vunpack.c.h.b16 %v5638
    %v6699 = vunpack.c.l.b16 %v5639
    %v6700 = vunpack.c.h.b16 %v5639
    %v6701 = vunpack.c.l.b16 %v5640
    %v6702 = vunpack.c.h.b16 %v5640
    %v6703 = vunpack.c.l.b16 %v5641
    %v6704 = vunpack.c.h.b16 %v5641
    %v6705 = vunpack.c.l.b16 %v5642
    %v6706 = vunpack.c.h.b16 %v5642
    %v6707 = vunpack.c.l.b16 %v5643
    %v6708 = vunpack.c.h.b16 %v5643
    %v6709 = vunpack.c.l.b16 %v5644
    %v6710 = vunpack.c.h.b16 %v5644
    %v6711 = vunpack.c.l.b16 %v5645
    %v6712 = vunpack.c.h.b16 %v5645
    %v6713 = vunpack.c.l.b16 %v5646
    %v6714 = vunpack.c.h.b16 %v5646
    %v6715 = vunpack.c.l.b16 %v5647
    %v6716 = vunpack.c.h.b16 %v5647
    %v6717 = vunpack.c.l.b16 %v5648
    %v6718 = vunpack.c.h.b16 %v5648
    %v6719 = vunpack.c.l.b16 %v5649
    %v6720 = vunpack.c.h.b16 %v5649
    %v6721 = vunpack.c.l.b16 %v5650
    %v6722 = vunpack.c.h.b16 %v5650
    %v6723 = vunpack.c.l.b16 %v5651
    %v6724 = vunpack.c.h.b16 %v5651
    %v6725 = vunpack.c.l.b16 %v5652
    %v6726 = vunpack.c.h.b16 %v5652
    %v6727 = vunpack.c.l.b16 %v5653
    %v6728 = vunpack.c.h.b16 %v5653
    %v6729 = vunpack.c.l.b16 %v5654
    %v6730 = vunpack.c.h.b16 %v5654
    %v6731 = vunpack.c.l.b16 %v5655
    %v6732 = vunpack.c.h.b16 %v5655
    %v6733 = vunpack.c.l.b16 %v5656
    %v6734 = vunpack.c.h.b16 %v5656
    %v6735 = vunpack.c.l.b16 %v5657
    %v6736 = vunpack.c.h.b16 %v5657
    %v6737 = vunpack.c.l.b16 %v5658
    %v6738 = vunpack.c.h.b16 %v5658
    %v6739 = vunpack.c.l.b16 %v5659
    %v6740 = vunpack.c.h.b16 %v5659
    %v6741 = vunpack.c.l.b16 %v5660
    %v6742 = vunpack.c.h.b16 %v5660
    %v6743 = vunpack.c.l.b16 %v5661
    %v6744 = vunpack.c.h.b16 %v5661
    %v6745 = vunpack.c.l.b16 %v5662
    %v6746 = vunpack.c.h.b16 %v5662
    %v6747 = vunpack.c.l.b16 %v5663
    %v6748 = vunpack.c.h.b16 %v5663
    %v6749 = vunpack.c.l.b16 %v5664
    %v6750 = vunpack.c.h.b16 %v5664
    %v6751 = vunpack.c.l.b16 %v5665
    %v6752 = vunpack.c.h.b16 %v5665
    %v6753 = vunpack.c.l.b16 %v5666
    %v6754 = vunpack.c.h.b16 %v5666
    %v6755 = vunpack.c.l.b16 %v5667
    %v6756 = vunpack.c.h.b16 %v5667
    %v6757 = vunpack.c.l.b16 %v5668
    %v6758 = vunpack.c.h.b16 %v5668
    %v6759 = vunpack.c.l.b16 %v5669
    %v6760 = vunpack.c.h.b16 %v5669
    %v6761 = vunpack.c.l.b16 %v5670
    %v6762 = vunpack.c.h.b16 %v5670
    %v6763 = vunpack.c.l.b16 %v5671
    %v6764 = vunpack.c.h.b16 %v5671
    %v6765 = vunpack.c.l.b16 %v5672
    %v6766 = vunpack.c.h.b16 %v5672
    %v6767 = vunpack.c.l.b16 %v5673
    %v6768 = vunpack.c.h.b16 %v5673
    %v6769 = vunpack.c.l.b16 %v5674
    %v6770 = vunpack.c.h.b16 %v5674
    %v6771 = vunpack.c.l.b16 %v5675
    %v6772 = vunpack.c.h.b16 %v5675
    %v6773 = vunpack.c.l.b16 %v5676
    %v6774 = vunpack.c.h.b16 %v5676
    %v6775 = vunpack.c.l.b16 %v5677
    %v6776 = vunpack.c.h.b16 %v5677
    %v6777 = vunpack.c.l.b16 %v5678
    %v6778 = vunpack.c.h.b16 %v5678
    %v6779 = vunpack.c.l.b16 %v5679
    %v6780 = vunpack.c.h.b16 %v5679
    %v6781 = vunpack.c.l.b16 %v5680
    %v6782 = vunpack.c.h.b16 %v5680
    %v6783 = vunpack.c.l.b16 %v5681
    %v6784 = vunpack.c.h.b16 %v5681
    %v6785 = vunpack.c.l.b16 %v5682
    %v6786 = vunpack.c.h.b16 %v5682
    %v6787 = vunpack.c.l.b16 %v5683
    %v6788 = vunpack.c.h.b16 %v5683
    %v6789 = vunpack.c.l.b16 %v5684
    %v6790 = vunpack.c.h.b16 %v5684
    %v6791 = vunpack.c.l.b16 %v5685
    %v6792 = vunpack.c.h.b16 %v5685
    %v6793 = vunpack.c.l.b16 %v5686
    %v6794 = vunpack.c.h.b16 %v5686
    %v6795 = vunpack.c.l.b16 %v5687
    %v6796 = vunpack.c.h.b16 %v5687
    %v6797 = vunpack.c.l.b16 %v5688
    %v6798 = vunpack.c.h.b16 %v5688
    %v6799 = vunpack.c.l.b16 %v5689
    %v6800 = vunpack.c.h.b16 %v5689
    %v6801 = vunpack.c.l.b16 %v5690
    %v6802 = vunpack.c.h.b16 %v5690
    %v6803 = vunpack.c.l.b16 %v5691
    %v6804 = vunpack.c.h.b16 %v5691
    %v6805 = vunpack.c.l.b16 %v5692
    %v6806 = vunpack.c.h.b16 %v5692
    %v6807 = vunpack.c.l.b16 %v5693
    %v6808 = vunpack.c.h.b16 %v5693
    %v6809 = vunpack.c.l.b16 %v5694
    %v6810 = vunpack.c.h.b16 %v5694
    %v6811 = vunpack.c.l.b16 %v5695
    %v6812 = vunpack.c.h.b16 %v5695
    %v6813 = vunpack.c.l.b16 %v5696
    %v6814 = vunpack.c.h.b16 %v5696
    %v6815 = vunpack.c.l.b16 %v5697
    %v6816 = vunpack.c.h.b16 %v5697
    %v6817 = vunpack.c.l.b16 %v5698
    %v6818 = vunpack.c.h.b16 %v5698
    %v6819 = vunpack.c.l.b16 %v5699
    %v6820 = vunpack.c.h.b16 %v5699
    %v6821 = vunpack.c.l.b16 %v5700
    %v6822 = vunpack.c.h.b16 %v5700
    %v6823 = vunpack.c.l.b16 %v5701
    %v6824 = vunpack.c.h.b16 %v5701
    %v6825 = vunpack.c.l.b16 %v5702
    %v6826 = vunpack.c.h.b16 %v5702
    %v6827 = vunpack.c.l.b16 %v5703
    %v6828 = vunpack.c.h.b16 %v5703
    %v6829 = vunpack.c.l.b16 %v5704
    %v6830 = vunpack.c.h.b16 %v5704
    %v6831 = vunpack.c.l.b16 %v5705
    %v6832 = vunpack.c.h.b16 %v5705
    %v6833 = vunpack.c.l.b16 %v5706
    %v6834 = vunpack.c.h.b16 %v5706
    %v6835 = vunpack.c.l.b16 %v5707
    %v6836 = vunpack.c.h.b16 %v5707
    %v6837 = vunpack.c.l.b16 %v5708
    %v6838 = vunpack.c.h.b16 %v5708
    %v6839 = vunpack.c.l.b16 %v5709
    %v6840 = vunpack.c.h.b16 %v5709
    %v6841 = vunpack.c.l.b16 %v5710
    %v6842 = vunpack.c.h.b16 %v5710
    %v6843 = vunpack.c.l.b16 %v5711
    %v6844 = vunpack.c.h.b16 %v5711
    %v6845 = vunpack.c.l.b16 %v5712
    %v6846 = vunpack.c.h.b16 %v5712
    %v6847 = vunpack.c.l.b16 %v5713
    %v6848 = vunpack.c.h.b16 %v5713
    %v6849 = vunpack.c.l.b16 %v5714
    %v6850 = vunpack.c.h.b16 %v5714
    %v6851 = vunpack.c.l.b16 %v5715
    %v6852 = vunpack.c.h.b16 %v5715
    %v6853 = vunpack.c.l.b16 %v5716
    %v6854 = vunpack.c.h.b16 %v5716
    %v6855 = vunpack.c.l.b16 %v5717
    %v6856 = vunpack.c.h.b16 %v5717
    %v6857 = vunpack.c.l.b16 %v5718
    %v6858 = vunpack.c.h.b16 %v5718
    %v6859 = vunpack.c.l.b16 %v5719
    %v6860 = vunpack.c.h.b16 %v5719
    %v6861 = vunpack.c.l.b16 %v5720
    %v6862 = vunpack.c.h.b16 %v5720
    %v6863 = vunpack.c.l.b16 %v5721
    %v6864 = vunpack.c.h.b16 %v5721
    %v6865 = vunpack.c.l.b16 %v5722
    %v6866 = vunpack.c.h.b16 %v5722
    %v6867 = vunpack.c.l.b16 %v5723
    %v6868 = vunpack.c.h.b16 %v5723
    %v6869 = vunpack.c.l.b16 %v5724
    %v6870 = vunpack.c.h.b16 %v5724
    %v6871 = vunpack.c.l.b16 %v5725
    %v6872 = vunpack.c.h.b16 %v5725
    %v6873 = vunpack.c.l.b16 %v5726
    %v6874 = vunpack.c.h.b16 %v5726
    %v6875 = vunpack.c.l.b16 %v5727
    %v6876 = vunpack.c.h.b16 %v5727
    %v6877 = vunpack.c.l.b16 %v5728
    %v6878 = vunpack.c.h.b16 %v5728
    %v6879 = vunpack.c.l.b16 %v5729
    %v6880 = vunpack.c.h.b16 %v5729
    %v6881 = vunpack.c.l.b16 %v5730
    %v6882 = vunpack.c.h.b16 %v5730
    %v6883 = vunpack.c.l.b16 %v5731
    %v6884 = vunpack.c.h.b16 %v5731
    %v6885 = vunpack.c.l.b16 %v5732
    %v6886 = vunpack.c.h.b16 %v5732
    %v6887 = vunpack.c.l.b16 %v5733
    %v6888 = vunpack.c.h.b16 %v5733
    %v6889 = vunpack.c.l.b16 %v5734
    %v6890 = vunpack.c.h.b16 %v5734
    %v6891 = vunpack.c.l.b16 %v5735
    %v6892 = vunpack.c.h.b16 %v5735
    %v6893 = vunpack.c.l.b16 %v5736
    %v6894 = vunpack.c.h.b16 %v5736
    %v6895 = vunpack.c.l.b16 %v5737
    %v6896 = vunpack.c.h.b16 %v5737
    %v6897 = vunpack.c.l.b16 %v5738
    %v6898 = vunpack.c.h.b16 %v5738
    %v6899 = vunpack.c.l.b16 %v5739
    %v6900 = vunpack.c.h.b16 %v5739
    %v6901 = vunpack.c.l.b16 %v5740
    %v6902 = vunpack.c.h.b16 %v5740
    %v6903 = vunpack.c.l.b16 %v5741
    %v6904 = vunpack.c.h.b16 %v5741
    %v6905 = vunpack.c.l.b16 %v5742
    %v6906 = vunpack.c.h.b16 %v5742
    %v6907 = vunpack.c.l.b16 %v5743
    %v6908 = vunpack.c.h.b16 %v5743
    %v6909 = vunpack.c.l.b16 %v5744
    %v6910 = vunpack.c.h.b16 %v5744
    %v6911 = vunpack.c.l.b16 %v5745
    %v6912 = vunpack.c.h.b16 %v5745
    %v6913 = vunpack.c.l.b16 %v5746
    %v6914 = vunpack.c.h.b16 %v5746
    %v6915 = vunpack.c.l.b16 %v5747
    %v6916 = vunpack.c.h.b16 %v5747
    %v6917 = vunpack.c.l.b16 %v5748
    %v6918 = vunpack.c.h.b16 %v5748
    %v6919 = vunpack.c.l.b16 %v5749
    %v6920 = vunpack.c.h.b16 %v5749
    %v6921 = vunpack.c.l.b16 %v5750
    %v6922 = vunpack.c.h.b16 %v5750
    %v6923 = vunpack.c.l.b16 %v5751
    %v6924 = vunpack.c.h.b16 %v5751
    %v6925 = vunpack.c.l.b16 %v5752
    %v6926 = vunpack.c.h.b16 %v5752
    %v6927 = vunpack.c.l.b16 %v5753
    %v6928 = vunpack.c.h.b16 %v5753
    %v6929 = vunpack.c.l.b16 %v5754
    %v6930 = vunpack.c.h.b16 %v5754
    %v6931 = vunpack.c.l.b16 %v5755
    %v6932 = vunpack.c.h.b16 %v5755
    %v6933 = vunpack.c.l.b16 %v5756
    %v6934 = vunpack.c.h.b16 %v5756
    %v6935 = vunpack.c.l.b16 %v5757
    %v6936 = vunpack.c.h.b16 %v5757
    %v6937 = vunpack.c.l.b16 %v5758
    %v6938 = vunpack.c.h.b16 %v5758
    %v6939 = vunpack.c.l.b16 %v5759
    %v6940 = vunpack.c.h.b16 %v5759
    %v6941 = vunpack.c.l.b16 %v5760
    %v6942 = vunpack.c.h.b16 %v5760
    %v6943 = vunpack.c.l.b16 %v5761
    %v6944 = vunpack.c.h.b16 %v5761
    %v6945 = vunpack.c.l.b16 %v5762
    %v6946 = vunpack.c.h.b16 %v5762
    %v6947 = vunpack.c.l.b16 %v5763
    %v6948 = vunpack.c.h.b16 %v5763
    %v6949 = vunpack.c.l.b16 %v5764
    %v6950 = vunpack.c.h.b16 %v5764
    %v6951 = vunpack.c.l.b16 %v5765
    %v6952 = vunpack.c.h.b16 %v5765
    %v6953 = vunpack.c.l.b16 %v5766
    %v6954 = vunpack.c.h.b16 %v5766
    %v6955 = vunpack.c.l.b16 %v5767
    %v6956 = vunpack.c.h.b16 %v5767
    %v6957 = vunpack.c.l.b16 %v5768
    %v6958 = vunpack.c.h.b16 %v5768
    %v6959 = vunpack.c.l.b16 %v5769
    %v6960 = vunpack.c.h.b16 %v5769
    %v6961 = vunpack.c.l.b16 %v5770
    %v6962 = vunpack.c.h.b16 %v5770
    %v6963 = vunpack.c.l.b16 %v5771
    %v6964 = vunpack.c.h.b16 %v5771
    %v6965 = vunpack.c.l.b16 %v5772
    %v6966 = vunpack.c.h.b16 %v5772
    %v6967 = vunpack.c.l.b16 %v5773
    %v6968 = vunpack.c.h.b16 %v5773
    %v6969 = vunpack.c.l.b16 %v5774
    %v6970 = vunpack.c.h.b16 %v5774
    %v6971 = vunpack.c.l.b16 %v5775
    %v6972 = vunpack.c.h.b16 %v5775
    %v6973 = vunpack.c.l.b16 %v5776
    %v6974 = vunpack.c.h.b16 %v5776
    %v6975 = vunpack.c.l.b16 %v5777
    %v6976 = vunpack.c.h.b16 %v5777
    %v6977 = vunpack.c.l.b16 %v5778
    %v6978 = vunpack.c.h.b16 %v5778
    %v6979 = vunpack.c.l.b16 %v5779
    %v6980 = vunpack.c.h.b16 %v5779
    %v6981 = vunpack.c.l.b16 %v5780
    %v6982 = vunpack.c.h.b16 %v5780
    %v6983 = vunpack.c.l.b16 %v5781
    %v6984 = vunpack.c.h.b16 %v5781
    %v6985 = vunpack.c.l.b16 %v5782
    %v6986 = vunpack.c.h.b16 %v5782
    %v6987 = vunpack.c.l.b16 %v5783
    %v6988 = vunpack.c.h.b16 %v5783
    %v6989 = vunpack.c.l.b16 %v5784
    %v6990 = vunpack.c.h.b16 %v5784
    %v6991 = vunpack.c.l.b16 %v5785
    %v6992 = vunpack.c.h.b16 %v5785
    %v6993 = vunpack.c.l.b16 %v5786
    %v6994 = vunpack.c.h.b16 %v5786
    %v6995 = vunpack.c.l.b16 %v5787
    %v6996 = vunpack.c.h.b16 %v5787
    %v6997 = vunpack.c.l.b16 %v5788
    %v6998 = vunpack.c.h.b16 %v5788
    %v6999 = vunpack.c.l.b16 %v5789
    %v7000 = vunpack.c.h.b16 %v5789
    %v7001 = vunpack.c.l.b16 %v5790
    %v7002 = vunpack.c.h.b16 %v5790
    %v7003 = vunpack.c.l.b16 %v5791
    %v7004 = vunpack.c.h.b16 %v5791
    %v7005 = vunpack.c.l.b16 %v5792
    %v7006 = vunpack.c.h.b16 %v5792
    %v7007 = vunpack.c.l.b16 %v5793
    %v7008 = vunpack.c.h.b16 %v5793
    %v7009 = vunpack.c.l.b16 %v5794
    %v7010 = vunpack.c.h.b16 %v5794
    %v7011 = vunpack.c.l.b16 %v5795
    %v7012 = vunpack.c.h.b16 %v5795
    %v7013 = vunpack.c.l.b16 %v5796
    %v7014 = vunpack.c.h.b16 %v5796
    %v7015 = vunpack.c.l.b16 %v5797
    %v7016 = vunpack.c.h.b16 %v5797
    %v7017 = vunpack.c.l.b16 %v5798
    %v7018 = vunpack.c.h.b16 %v5798
    %v7019 = vunpack.c.l.b16 %v5799
    %v7020 = vunpack.c.h.b16 %v5799
    %v7021 = vunpack.c.l.b16 %v5800
    %v7022 = vunpack.c.h.b16 %v5800
    %v7023 = vunpack.c.l.b16 %v5801
    %v7024 = vunpack.c.h.b16 %v5801
    %v7025 = vunpack.c.l.b16 %v5802
    %v7026 = vunpack.c.h.b16 %v5802
    %v7027 = vunpack.c.l.b16 %v5803
    %v7028 = vunpack.c.h.b16 %v5803
    %v7029 = vunpack.c.l.b16 %v5804
    %v7030 = vunpack.c.h.b16 %v5804
    %v7031 = vunpack.c.l.b16 %v5805
    %v7032 = vunpack.c.h.b16 %v5805
    %v7033 = vunpack.c.l.b16 %v5806
    %v7034 = vunpack.c.h.b16 %v5806
    %v7035 = vunpack.c.l.b16 %v5807
    %v7036 = vunpack.c.h.b16 %v5807
    %v7037 = vunpack.c.l.b16 %v5808
    %v7038 = vunpack.c.h.b16 %v5808
    %v7039 = vunpack.c.l.b16 %v5809
    %v7040 = vunpack.c.h.b16 %v5809
    %v7041 = vunpack.c.l.b16 %v5810
    %v7042 = vunpack.c.h.b16 %v5810
    %v7043 = vunpack.c.l.b16 %v5811
    %v7044 = vunpack.c.h.b16 %v5811
    %v7045 = vunpack.c.l.b16 %v5812
    %v7046 = vunpack.c.h.b16 %v5812
    %v7047 = vunpack.c.l.b16 %v5813
    %v7048 = vunpack.c.h.b16 %v5813
    %v7049 = vunpack.c.l.b16 %v5814
    %v7050 = vunpack.c.h.b16 %v5814
    %v7051 = vunpack.c.l.b16 %v5815
    %v7052 = vunpack.c.h.b16 %v5815
    %v7053 = vunpack.c.l.b16 %v5816
    %v7054 = vunpack.c.h.b16 %v5816
    %v7055 = vunpack.c.l.b16 %v5817
    %v7056 = vunpack.c.h.b16 %v5817
    %v7057 = vunpack.c.l.b16 %v5818
    %v7058 = vunpack.c.h.b16 %v5818
    %v7059 = vunpack.c.l.b16 %v5819
    %v7060 = vunpack.c.h.b16 %v5819
    %v7061 = vunpack.c.l.b16 %v5820
    %v7062 = vunpack.c.h.b16 %v5820
    %v7063 = vunpack.c.l.b16 %v5821
    %v7064 = vunpack.c.h.b16 %v5821
    %v7065 = vunpack.c.l.b16 %v5822
    %v7066 = vunpack.c.h.b16 %v5822
    %v7067 = vunpack.c.l.b16 %v5823
    %v7068 = vunpack.c.h.b16 %v5823
    %v7069 = vunpack.c.l.b16 %v5824
    %v7070 = vunpack.c.h.b16 %v5824
    %v7071 = vunpack.c.l.b16 %v5825
    %v7072 = vunpack.c.h.b16 %v5825
    %v7073 = vunpack.c.l.b16 %v5826
    %v7074 = vunpack.c.h.b16 %v5826
    %v7075 = vunpack.c.l.b16 %v5827
    %v7076 = vunpack.c.h.b16 %v5827
    %v7077 = vunpack.c.l.b16 %v5828
    %v7078 = vunpack.c.h.b16 %v5828
    %v7079 = vunpack.c.l.b16 %v5829
    %v7080 = vunpack.c.h.b16 %v5829
    %v7081 = vunpack.c.l.b16 %v5830
    %v7082 = vunpack.c.h.b16 %v5830
    %v7083 = vunpack.c.l.b16 %v5831
    %v7084 = vunpack.c.h.b16 %v5831
    %v7085 = vunpack.c.l.b16 %v5832
    %v7086 = vunpack.c.h.b16 %v5832
    %v7087 = vunpack.c.l.b16 %v5833
    %v7088 = vunpack.c.h.b16 %v5833
    %v7089 = vunpack.c.l.b16 %v5834
    %v7090 = vunpack.c.h.b16 %v5834
    %v7091 = vunpack.c.l.b16 %v5835
    %v7092 = vunpack.c.h.b16 %v5835
    %v7093 = vunpack.c.l.b16 %v5836
    %v7094 = vunpack.c.h.b16 %v5836
    %v7095 = vunpack.c.l.b16 %v5837
    %v7096 = vunpack.c.h.b16 %v5837
    %v7097 = vunpack.c.l.b16 %v5838
    %v7098 = vunpack.c.h.b16 %v5838
    %v7099 = vunpack.c.l.b16 %v5839
    %v7100 = vunpack.c.h.b16 %v5839
    %v7101 = vunpack.c.l.b16 %v5840
    %v7102 = vunpack.c.h.b16 %v5840
    %v7103 = vunpack.c.l.b16 %v5841
    %v7104 = vunpack.c.h.b16 %v5841
    %v7105 = vunpack.c.l.b16 %v5842
    %v7106 = vunpack.c.h.b16 %v5842
    %v7107 = vunpack.c.l.b16 %v5843
    %v7108 = vunpack.c.h.b16 %v5843
    %v7109 = vunpack.c.l.b16 %v5844
    %v7110 = vunpack.c.h.b16 %v5844
    %v7111 = vunpack.c.l.b16 %v5845
    %v7112 = vunpack.c.h.b16 %v5845
    %v7113 = vunpack.c.l.b16 %v5846
    %v7114 = vunpack.c.h.b16 %v5846
    %v7115 = vunpack.c.l.b16 %v5847
    %v7116 = vunpack.c.h.b16 %v5847
    %v7117 = vunpack.c.l.b16 %v5848
    %v7118 = vunpack.c.h.b16 %v5848
    %v7119 = vunpack.c.l.b16 %v5849
    %v7120 = vunpack.c.h.b16 %v5849
    %v7121 = vunpack.c.l.b16 %v5850
    %v7122 = vunpack.c.h.b16 %v5850
    %v7123 = vunpack.c.l.b16 %v5851
    %v7124 = vunpack.c.h.b16 %v5851
    %v7125 = vunpack.c.l.b16 %v5852
    %v7126 = vunpack.c.h.b16 %v5852
    %v7127 = vunpack.c.l.b16 %v5853
    %v7128 = vunpack.c.h.b16 %v5853
    %v7129 = vunpack.c.l.b16 %v5854
    %v7130 = vunpack.c.h.b16 %v5854
    %v7131 = vunpack.c.l.b16 %v5855
    %v7132 = vunpack.c.h.b16 %v5855
    %v7133 = vunpack.c.l.b16 %v5856
    %v7134 = vunpack.c.h.b16 %v5856
    %v7135 = vunpack.c.l.b16 %v5857
    %v7136 = vunpack.c.h.b16 %v5857
    %v7137 = vunpack.c.l.b16 %v5858
    %v7138 = vunpack.c.h.b16 %v5858
    %v7139 = vunpack.c.l.b16 %v5859
    %v7140 = vunpack.c.h.b16 %v5859
    %v7141 = vunpack.c.l.b16 %v5860
    %v7142 = vunpack.c.h.b16 %v5860
    %v7143 = vunpack.c.l.b16 %v5861
    %v7144 = vunpack.c.h.b16 %v5861
    %v7145 = vunpack.c.l.b16 %v5862
    %v7146 = vunpack.c.h.b16 %v5862
    %v7147 = vunpack.c.l.b16 %v5863
    %v7148 = vunpack.c.h.b16 %v5863
    %v7149 = vunpack.c.l.b16 %v5864
    %v7150 = vunpack.c.h.b16 %v5864
    %v7151 = vunpack.c.l.b16 %v5865
    %v7152 = vunpack.c.h.b16 %v5865
    %v7153 = vunpack.c.l.b16 %v5866
    %v7154 = vunpack.c.h.b16 %v5866
    %v7155 = vunpack.c.l.b16 %v5867
    %v7156 = vunpack.c.h.b16 %v5867
    %v7157 = vunpack.c.l.b16 %v5868
    %v7158 = vunpack.c.h.b16 %v5868
    %v7159 = vunpack.c.l.b16 %v5869
    %v7160 = vunpack.c.h.b16 %v5869
    %v7161 = vunpack.c.l.b16 %v5870
    %v7162 = vunpack.c.h.b16 %v5870
    %v7163 = vunpack.c.l.b16 %v5871
    %v7164 = vunpack.c.h.b16 %v5871
    %v7165 = vunpack.c.l.b16 %v5872
    %v7166 = vunpack.c.h.b16 %v5872
    %v7167 = vunpack.c.l.b16 %v5873
    %v7168 = vunpack.c.h.b16 %v5873
    %v7169 = vunpack.c.l.b16 %v5874
    %v7170 = vunpack.c.h.b16 %v5874
    %v7171 = vunpack.c.l.b16 %v5875
    %v7172 = vunpack.c.h.b16 %v5875
    %v7173 = vunpack.c.l.b16 %v5876
    %v7174 = vunpack.c.h.b16 %v5876
    %v7175 = vunpack.c.l.b16 %v5877
    %v7176 = vunpack.c.h.b16 %v5877
    %v7177 = vunpack.c.l.b16 %v5878
    %v7178 = vunpack.c.h.b16 %v5878
    %v7179 = vunpack.c.l.b16 %v5879
    %v7180 = vunpack.c.h.b16 %v5879
    %v7181 = vunpack.c.l.b16 %v5880
    %v7182 = vunpack.c.h.b16 %v5880
    %v7183 = vunpack.c.l.b16 %v5881
    %v7184 = vunpack.c.h.b16 %v5881
    %v7185 = vunpack.c.l.b16 %v5882
    %v7186 = vunpack.c.h.b16 %v5882
    %v7187 = vunpack.c.l.b16 %v5883
    %v7188 = vunpack.c.h.b16 %v5883
    %v7189 = vunpack.c.l.b16 %v5884
    %v7190 = vunpack.c.h.b16 %v5884
    %v7191 = vunpack.c.l.b16 %v5885
    %v7192 = vunpack.c.h.b16 %v5885
    %v7193 = vunpack.c.l.b16 %v5886
    %v7194 = vunpack.c.h.b16 %v5886
    %v7195 = vunpack.c.l.b16 %v5887
    %v7196 = vunpack.c.h.b16 %v5887
    %v7197 = vunpack.c.l.b16 %v5888
    %v7198 = vunpack.c.h.b16 %v5888
    %v7199 = vunpack.c.l.b16 %v5889
    %v7200 = vunpack.c.h.b16 %v5889
    %v7201 = vunpack.c.l.b16 %v5890
    %v7202 = vunpack.c.h.b16 %v5890
    %v7203 = vunpack.c.l.b16 %v5891
    %v7204 = vunpack.c.h.b16 %v5891
    %v7205 = vunpack.c.l.b16 %v5892
    %v7206 = vunpack.c.h.b16 %v5892
    %v7207 = vunpack.c.l.b16 %v5893
    %v7208 = vunpack.c.h.b16 %v5893
    %v7209 = vunpack.c.l.b16 %v5894
    %v7210 = vunpack.c.h.b16 %v5894
    %v7211 = vunpack.c.l.b16 %v5895
    %v7212 = vunpack.c.h.b16 %v5895
    %v7213 = vunpack.c.l.b16 %v5896
    %v7214 = vunpack.c.h.b16 %v5896
    %v7215 = vunpack.c.l.b16 %v5897
    %v7216 = vunpack.c.h.b16 %v5897
    %v7217 = vunpack.c.l.b16 %v5898
    %v7218 = vunpack.c.h.b16 %v5898
    %v7219 = vunpack.c.l.b16 %v5899
    %v7220 = vunpack.c.h.b16 %v5899
    %v7221 = vunpack.c.l.b16 %v5900
    %v7222 = vunpack.c.h.b16 %v5900
    %v7223 = vunpack.c.l.b16 %v5901
    %v7224 = vunpack.c.h.b16 %v5901
    %v7225 = vunpack.c.l.b16 %v5902
    %v7226 = vunpack.c.h.b16 %v5902
    %v7227 = vunpack.c.l.b16 %v5903
    %v7228 = vunpack.c.h.b16 %v5903
    %v7229 = vunpack.c.l.b16 %v5904
    %v7230 = vunpack.c.h.b16 %v5904
    %v7231 = vunpack.c.l.b16 %v5905
    %v7232 = vunpack.c.h.b16 %v5905
    %v7233 = vunpack.c.l.b16 %v5906
    %v7234 = vunpack.c.h.b16 %v5906
    %v7235 = vunpack.c.l.b16 %v5907
    %v7236 = vunpack.c.h.b16 %v5907
    %v7237 = vunpack.c.l.b16 %v5908
    %v7238 = vunpack.c.h.b16 %v5908
    %v7239 = vunpack.c.l.b16 %v5909
    %v7240 = vunpack.c.h.b16 %v5909
    %v7241 = vunpack.c.l.b16 %v5910
    %v7242 = vunpack.c.h.b16 %v5910
    %v7243 = vunpack.c.l.b16 %v5911
    %v7244 = vunpack.c.h.b16 %v5911
    %v7245 = vunpack.c.l.b16 %v5912
    %v7246 = vunpack.c.h.b16 %v5912
    %v7247 = vunpack.c.l.b16 %v5913
    %v7248 = vunpack.c.h.b16 %v5913
    %v7249 = vunpack.c.l.b16 %v5914
    %v7250 = vunpack.c.h.b16 %v5914
    %v7251 = vunpack.c.l.b16 %v5915
    %v7252 = vunpack.c.h.b16 %v5915
    %v7253 = vunpack.c.l.b16 %v5916
    %v7254 = vunpack.c.h.b16 %v5916
    %v7255 = vunpack.c.l.b16 %v5917
    %v7256 = vunpack.c.h.b16 %v5917
    %v7257 = vunpack.c.l.b16 %v5918
    %v7258 = vunpack.c.h.b16 %v5918
    %v7259 = vunpack.c.l.b16 %v5919
    %v7260 = vunpack.c.h.b16 %v5919
    %v7261 = vunpack.c.l.b16 %v5920
    %v7262 = vunpack.c.h.b16 %v5920
    %v7263 = vunpack.c.l.b16 %v5921
    %v7264 = vunpack.c.h.b16 %v5921
    %v7265 = vunpack.c.l.b16 %v5922
    %v7266 = vunpack.c.h.b16 %v5922
    %v7267 = vunpack.c.l.b16 %v5923
    %v7268 = vunpack.c.h.b16 %v5923
    %v7269 = vunpack.c.l.b16 %v5924
    %v7270 = vunpack.c.h.b16 %v5924
    %v7271 = vunpack.c.l.b16 %v5925
    %v7272 = vunpack.c.h.b16 %v5925
    %v7273 = vunpack.c.l.b16 %v5926
    %v7274 = vunpack.c.h.b16 %v5926
    %v7275 = vunpack.c.l.b16 %v5927
    %v7276 = vunpack.c.h.b16 %v5927
    %v7277 = vunpack.c.l.b16 %v5928
    %v7278 = vunpack.c.h.b16 %v5928
    %v7279 = vunpack.c.l.b16 %v5929
    %v7280 = vunpack.c.h.b16 %v5929
    %v7281 = vunpack.c.l.b16 %v5930
    %v7282 = vunpack.c.h.b16 %v5930
    %v7283 = vunpack.c.l.b16 %v5931
    %v7284 = vunpack.c.h.b16 %v5931
    %v7285 = vunpack.c.l.b16 %v5932
    %v7286 = vunpack.c.h.b16 %v5932
    %v7287 = vunpack.c.l.b16 %v5933
    %v7288 = vunpack.c.h.b16 %v5933
    %v7289 = vunpack.c.l.b16 %v5934
    %v7290 = vunpack.c.h.b16 %v5934
    %v7291 = vunpack.c.l.b16 %v5935
    %v7292 = vunpack.c.h.b16 %v5935
    %v7293 = vunpack.c.l.b16 %v5936
    %v7294 = vunpack.c.h.b16 %v5936
    %v7295 = vunpack.c.l.b16 %v5937
    %v7296 = vunpack.c.h.b16 %v5937
    %v7297 = vunpack.c.l.b16 %v5938
    %v7298 = vunpack.c.h.b16 %v5938
    %v7299 = vunpack.c.l.b16 %v5939
    %v7300 = vunpack.c.h.b16 %v5939
    %v7301 = vunpack.c.l.b16 %v5940
    %v7302 = vunpack.c.h.b16 %v5940
    %v7303 = vunpack.c.l.b16 %v5941
    %v7304 = vunpack.c.h.b16 %v5941
    %v7305 = vunpack.c.l.b16 %v5942
    %v7306 = vunpack.c.h.b16 %v5942
    %v7307 = vunpack.c.l.b16 %v5943
    %v7308 = vunpack.c.h.b16 %v5943
    %v7309 = vunpack.c.l.b16 %v5944
    %v7310 = vunpack.c.h.b16 %v5944
    %v7311 = vunpack.c.l.b16 %v5945
    %v7312 = vunpack.c.h.b16 %v5945
    %v7313 = vunpack.c.l.b16 %v5946
    %v7314 = vunpack.c.h.b16 %v5946
    %v7315 = vunpack.c.l.b16 %v5947
    %v7316 = vunpack.c.h.b16 %v5947
    %v7317 = vunpack.c.l.b16 %v5948
    %v7318 = vunpack.c.h.b16 %v5948
    %v7319 = vunpack.c.l.b16 %v5949
    %v7320 = vunpack.c.h.b16 %v5949
    %v7321 = vunpack.c.l.b16 %v5950
    %v7322 = vunpack.c.h.b16 %v5950
    %v7323 = vunpack.c.l.b16 %v5951
    %v7324 = vunpack.c.h.b16 %v5951
    %v7325 = vunpack.c.l.b16 %v5952
    %v7326 = vunpack.c.h.b16 %v5952
    %v7327 = vunpack.c.l.b16 %v5953
    %v7328 = vunpack.c.h.b16 %v5953
    %v7329 = vunpack.c.l.b16 %v5954
    %v7330 = vunpack.c.h.b16 %v5954
    %v7331 = vunpack.c.l.b16 %v5955
    %v7332 = vunpack.c.h.b16 %v5955
    %v7333 = vunpack.c.l.b16 %v5956
    %v7334 = vunpack.c.h.b16 %v5956
    %v7335 = vunpack.c.l.b16 %v5957
    %v7336 = vunpack.c.h.b16 %v5957
    %v7337 = vunpack.c.l.b16 %v5958
    %v7338 = vunpack.c.h.b16 %v5958
    %v7339 = vunpack.c.l.b16 %v5959
    %v7340 = vunpack.c.h.b16 %v5959
    %v7341 = vunpack.c.l.b16 %v5960
    %v7342 = vunpack.c.h.b16 %v5960
    %v7343 = vunpack.c.l.b16 %v5961
    %v7344 = vunpack.c.h.b16 %v5961
    %v7345 = vunpack.c.l.b16 %v5962
    %v7346 = vunpack.c.h.b16 %v5962
    %v7347 = vunpack.c.l.b16 %v5963
    %v7348 = vunpack.c.h.b16 %v5963
    %v7349 = vunpack.c.l.b16 %v5964
    %v7350 = vunpack.c.h.b16 %v5964
    %v7351 = vunpack.c.l.b16 %v5965
    %v7352 = vunpack.c.h.b16 %v5965
    %v7353 = vunpack.c.l.b16 %v5966
    %v7354 = vunpack.c.h.b16 %v5966
    %v7355 = vunpack.c.l.b16 %v5967
    %v7356 = vunpack.c.h.b16 %v5967
    %v7357 = vunpack.c.l.b16 %v5968
    %v7358 = vunpack.c.h.b16 %v5968
    %v7359 = vunpack.c.l.b16 %v5969
    %v7360 = vunpack.c.h.b16 %v5969
    %v7361 = vunpack.c.l.b16 %v5970
    %v7362 = vunpack.c.h.b16 %v5970
    %v7363 = vunpack.c.l.b16 %v5971
    %v7364 = vunpack.c.h.b16 %v5971
    %v7365 = vunpack.c.l.b16 %v5972
    %v7366 = vunpack.c.h.b16 %v5972
    %v7367 = vunpack.c.l.b16 %v5973
    %v7368 = vunpack.c.h.b16 %v5973
    %v7369 = vunpack.c.l.b16 %v5974
    %v7370 = vunpack.c.h.b16 %v5974
    %v7371 = vunpack.c.l.b16 %v5975
    %v7372 = vunpack.c.h.b16 %v5975
    %v7373 = vunpack.c.l.b16 %v5976
    %v7374 = vunpack.c.h.b16 %v5976
    %v7375 = vunpack.c.l.b16 %v5977
    %v7376 = vunpack.c.h.b16 %v5977
    %v7377 = vunpack.c.l.b16 %v5978
    %v7378 = vunpack.c.h.b16 %v5978
    %v7379 = vunpack.c.l.b16 %v5979
    %v7380 = vunpack.c.h.b16 %v5979
    %v7381 = vunpack.c.l.b16 %v5980
    %v7382 = vunpack.c.h.b16 %v5980
    %v7383 = vunpack.c.l.b16 %v5981
    %v7384 = vunpack.c.h.b16 %v5981
    %v7385 = vunpack.c.l.b16 %v5982
    %v7386 = vunpack.c.h.b16 %v5982
    %v7387 = vunpack.c.l.b16 %v5983
    %v7388 = vunpack.c.h.b16 %v5983
    %v7389 = vunpack.c.l.b16 %v5984
    %v7390 = vunpack.c.h.b16 %v5984
    %v7391 = vunpack.c.l.b16 %v5985
    %v7392 = vunpack.c.h.b16 %v5985
    %v7393 = vunpack.c.l.b16 %v5986
    %v7394 = vunpack.c.h.b16 %v5986
    %v7395 = vunpack.c.l.b16 %v5987
    %v7396 = vunpack.c.h.b16 %v5987
    %v7397 = vunpack.c.l.b16 %v5988
    %v7398 = vunpack.c.h.b16 %v5988
    %v7399 = vunpack.c.l.b16 %v5989
    %v7400 = vunpack.c.h.b16 %v5989
    %v7401 = vunpack.c.l.b16 %v5990
    %v7402 = vunpack.c.h.b16 %v5990
    %v7403 = vunpack.c.l.b16 %v5991
    %v7404 = vunpack.c.h.b16 %v5991
    %v7405 = vunpack.c.l.b16 %v5992
    %v7406 = vunpack.c.h.b16 %v5992
    %v7407 = vunpack.c.l.b16 %v5993
    %v7408 = vunpack.c.h.b16 %v5993
    %v7409 = vunpack.c.l.b16 %v5994
    %v7410 = vunpack.c.h.b16 %v5994
    %v7411 = vunpack.c.l.b16 %v5995
    %v7412 = vunpack.c.h.b16 %v5995
    %v7413 = vunpack.c.l.b16 %v5996
    %v7414 = vunpack.c.h.b16 %v5996
    %v7415 = vunpack.c.l.b16 %v5997
    %v7416 = vunpack.c.h.b16 %v5997
    %v7417 = vunpack.c.l.b16 %v5998
    %v7418 = vunpack.c.h.b16 %v5998
    %v7419 = vunpack.c.l.b16 %v5999
    %v7420 = vunpack.c.h.b16 %v5999
    %v7421 = vunpack.c.l.b16 %v6000
    %v7422 = vunpack.c.h.b16 %v6000
    %v7423 = vunpack.c.l.b16 %v6001
    %v7424 = vunpack.c.h.b16 %v6001
    %v7425 = vunpack.c.l.b16 %v6002
    %v7426 = vunpack.c.h.b16 %v6002
    %v7427 = vunpack.c.l.b16 %v6003
    %v7428 = vunpack.c.h.b16 %v6003
    %v7429 = vunpack.c.l.b16 %v6004
    %v7430 = vunpack.c.h.b16 %v6004
    %v7431 = vunpack.c.l.b16 %v6005
    %v7432 = vunpack.c.h.b16 %v6005
    %v7433 = vunpack.c.l.b16 %v6006
    %v7434 = vunpack.c.h.b16 %v6006
    %v7435 = vunpack.c.l.b16 %v6007
    %v7436 = vunpack.c.h.b16 %v6007
    %v7437 = vunpack.c.l.b16 %v6008
    %v7438 = vunpack.c.h.b16 %v6008
    %v7439 = vunpack.c.l.b16 %v6009
    %v7440 = vunpack.c.h.b16 %v6009
    %v7441 = vunpack.c.l.b16 %v6010
    %v7442 = vunpack.c.h.b16 %v6010
    %v7443 = vunpack.c.l.b16 %v6011
    %v7444 = vunpack.c.h.b16 %v6011
    %v7445 = vunpack.c.l.b16 %v6012
    %v7446 = vunpack.c.h.b16 %v6012
    %v7447 = vunpack.c.l.b16 %v6013
    %v7448 = vunpack.c.h.b16 %v6013
    %v7449 = vunpack.c.l.b16 %v6014
    %v7450 = vunpack.c.h.b16 %v6014
    %v7451 = vunpack.c.l.b16 %v6015
    %v7452 = vunpack.c.h.b16 %v6015
    %v7453 = vunpack.c.l.b16 %v6016
    %v7454 = vunpack.c.h.b16 %v6016
    %v7455 = vunpack.c.l.b16 %v6017
    %v7456 = vunpack.c.h.b16 %v6017
    %v7457 = vunpack.c.l.b16 %v6018
    %v7458 = vunpack.c.h.b16 %v6018
    %v7459 = vunpack.c.l.b16 %v6019
    %v7460 = vunpack.c.h.b16 %v6019
    %v7461 = vunpack.c.l.b16 %v6020
    %v7462 = vunpack.c.h.b16 %v6020
    %v7463 = vunpack.c.l.b16 %v6021
    %v7464 = vunpack.c.h.b16 %v6021
    %v7465 = vunpack.c.l.b16 %v6022
    %v7466 = vunpack.c.h.b16 %v6022
    %v7467 = vunpack.c.l.b16 %v6023
    %v7468 = vunpack.c.h.b16 %v6023
    %v7469 = vunpack.c.l.b16 %v6024
    %v7470 = vunpack.c.h.b16 %v6024
    %v7471 = vunpack.c.l.b16 %v6025
    %v7472 = vunpack.c.h.b16 %v6025
    %v7473 = vunpack.c.l.b16 %v6026
    %v7474 = vunpack.c.h.b16 %v6026
    %v7475 = vunpack.c.l.b16 %v6027
    %v7476 = vunpack.c.h.b16 %v6027
    %v7477 = vunpack.c.l.b16 %v6028
    %v7478 = vunpack.c.h.b16 %v6028
    %v7479 = vunpack.c.l.b16 %v6029
    %v7480 = vunpack.c.h.b16 %v6029
    %v7481 = vunpack.c.l.b16 %v6030
    %v7482 = vunpack.c.h.b16 %v6030
    %v7483 = vunpack.c.l.b16 %v6031
    %v7484 = vunpack.c.h.b16 %v6031
    %v7485 = vunpack.c.l.b16 %v6032
    %v7486 = vunpack.c.h.b16 %v6032
    %v7487 = vunpack.c.l.b16 %v6033
    %v7488 = vunpack.c.h.b16 %v6033
    %v7489 = vunpack.c.l.b16 %v6034
    %v7490 = vunpack.c.h.b16 %v6034
    %v7491 = vunpack.c.l.b16 %v6035
    %v7492 = vunpack.c.h.b16 %v6035
    %v7493 = vunpack.c.l.b16 %v6036
    %v7494 = vunpack.c.h.b16 %v6036
    %v7495 = vunpack.c.l.b16 %v6037
    %v7496 = vunpack.c.h.b16 %v6037
    %v7497 = vunpack.c.l.b16 %v6038
    %v7498 = vunpack.c.h.b16 %v6038
    %v7499 = vunpack.c.l.b16 %v6039
    %v7500 = vunpack.c.h.b16 %v6039
    %v7501 = vunpack.c.l.b16 %v6040
    %v7502 = vunpack.c.h.b16 %v6040
    %v7503 = vunpack.c.l.b16 %v6041
    %v7504 = vunpack.c.h.b16 %v6041
    %v7505 = vunpack.c.l.b16 %v6042
    %v7506 = vunpack.c.h.b16 %v6042
    %v7507 = vunpack.c.l.b16 %v6043
    %v7508 = vunpack.c.h.b16 %v6043
    %v7509 = vunpack.c.l.b16 %v6044
    %v7510 = vunpack.c.h.b16 %v6044
    %v7511 = vunpack.c.l.b16 %v6045
    %v7512 = vunpack.c.h.b16 %v6045
    %v7513 = vunpack.c.l.b16 %v6046
    %v7514 = vunpack.c.h.b16 %v6046
    %v7515 = vunpack.c.l.b16 %v6047
    %v7516 = vunpack.c.h.b16 %v6047
    %v7517 = vunpack.c.l.b16 %v6048
    %v7518 = vunpack.c.h.b16 %v6048
    %v7519 = vunpack.c.l.b16 %v6049
    %v7520 = vunpack.c.h.b16 %v6049
    %v7521 = vunpack.c.l.b16 %v6050
    %v7522 = vunpack.c.h.b16 %v6050
    %v7523 = vunpack.c.l.b16 %v6051
    %v7524 = vunpack.c.h.b16 %v6051
    %v7525 = vunpack.c.l.b16 %v6052
    %v7526 = vunpack.c.h.b16 %v6052
    %v7527 = vunpack.c.l.b16 %v6053
    %v7528 = vunpack.c.h.b16 %v6053
    %v7529 = vunpack.c.l.b16 %v6054
    %v7530 = vunpack.c.h.b16 %v6054
    %v7531 = vunpack.c.l.b16 %v6055
    %v7532 = vunpack.c.h.b16 %v6055
    %v7533 = vunpack.c.l.b16 %v6056
    %v7534 = vunpack.c.h.b16 %v6056
    %v7535 = vunpack.c.l.b16 %v6057
    %v7536 = vunpack.c.h.b16 %v6057
    %v7537 = vunpack.c.l.b16 %v6058
    %v7538 = vunpack.c.h.b16 %v6058
    %v7539 = vunpack.c.l.b16 %v6059
    %v7540 = vunpack.c.h.b16 %v6059
    %v7541 = vunpack.c.l.b16 %v6060
    %v7542 = vunpack.c.h.b16 %v6060
    %v7543 = vunpack.c.l.b16 %v6061
    %v7544 = vunpack.c.h.b16 %v6061
    %v7545 = vunpack.c.l.b16 %v6062
    %v7546 = vunpack.c.h.b16 %v6062
    %v7547 = vunpack.c.l.b16 %v6063
    %v7548 = vunpack.c.h.b16 %v6063
    %v7549 = vunpack.c.l.b16 %v6064
    %v7550 = vunpack.c.h.b16 %v6064
    %v7551 = vunpack.c.l.b16 %v6065
    %v7552 = vunpack.c.h.b16 %v6065
    %v7553 = vunpack.c.l.b16 %v6066
    %v7554 = vunpack.c.h.b16 %v6066
    %v7555 = vunpack.c.l.b16 %v6067
    %v7556 = vunpack.c.h.b16 %v6067
    %v7557 = vunpack.c.l.b16 %v6068
    %v7558 = vunpack.c.h.b16 %v6068
    %v7559 = vunpack.c.l.b16 %v6069
    %v7560 = vunpack.c.h.b16 %v6069
    %v7561 = vunpack.c.l.b16 %v6070
    %v7562 = vunpack.c.h.b16 %v6070
    %v7563 = vunpack.c.l.b16 %v6071
    %v7564 = vunpack.c.h.b16 %v6071
    %v7565 = vunpack.c.l.b16 %v6072
    %v7566 = vunpack.c.h.b16 %v6072
    %v7567 = vunpack.c.l.b16 %v6073
    %v7568 = vunpack.c.h.b16 %v6073
    %v7569 = vunpack.c.l.b16 %v6074
    %v7570 = vunpack.c.h.b16 %v6074
    %v7571 = vunpack.c.l.b16 %v6075
    %v7572 = vunpack.c.h.b16 %v6075
    %v7573 = vunpack.c.l.b16 %v6076
    %v7574 = vunpack.c.h.b16 %v6076
    %v7575 = vunpack.c.l.b16 %v6077
    %v7576 = vunpack.c.h.b16 %v6077
    %v7577 = vunpack.c.l.b16 %v6078
    %v7578 = vunpack.c.h.b16 %v6078
    %v7579 = vunpack.c.l.b16 %v6079
    %v7580 = vunpack.c.h.b16 %v6079
    %v7581 = vunpack.c.l.b16 %v6080
    %v7582 = vunpack.c.h.b16 %v6080
    %v7583 = vunpack.c.l.b16 %v6081
    %v7584 = vunpack.c.h.b16 %v6081
    %v7585 = vunpack.c.l.b16 %v6082
    %v7586 = vunpack.c.h.b16 %v6082
    %v7587 = vunpack.c.l.b16 %v6083
    %v7588 = vunpack.c.h.b16 %v6083
    %v7589 = vunpack.c.l.b16 %v6084
    %v7590 = vunpack.c.h.b16 %v6084
    %v7591 = vunpack.c.l.b16 %v6085
    %v7592 = vunpack.c.h.b16 %v6085
    %v7593 = vunpack.c.l.b16 %v6086
    %v7594 = vunpack.c.h.b16 %v6086
    %v7595 = vunpack.c.l.b16 %v6087
    %v7596 = vunpack.c.h.b16 %v6087
    %v7597 = vunpack.c.l.b16 %v6088
    %v7598 = vunpack.c.h.b16 %v6088
    %v7599 = vunpack.c.l.b16 %v6089
    %v7600 = vunpack.c.h.b16 %v6089
    %v7601 = vunpack.c.l.b16 %v6090
    %v7602 = vunpack.c.h.b16 %v6090
    %v7603 = vunpack.c.l.b16 %v6091
    %v7604 = vunpack.c.h.b16 %v6091
    %v7605 = vunpack.c.l.b16 %v6092
    %v7606 = vunpack.c.h.b16 %v6092
    %v7607 = vunpack.c.l.b16 %v6093
    %v7608 = vunpack.c.h.b16 %v6093
    %v7609 = vunpack.c.l.b16 %v6094
    %v7610 = vunpack.c.h.b16 %v6094
    %v7611 = vunpack.c.l.b16 %v6095
    %v7612 = vunpack.c.h.b16 %v6095
    %v7613 = vunpack.c.l.b16 %v6096
    %v7614 = vunpack.c.h.b16 %v6096
    %v7615 = vunpack.c.l.b16 %v6097
    %v7616 = vunpack.c.h.b16 %v6097
    %v7617 = vunpack.c.l.b16 %v6098
    %v7618 = vunpack.c.h.b16 %v6098
    %v7619 = vunpack.c.l.b16 %v6099
    %v7620 = vunpack.c.h.b16 %v6099
    %v7621 = vunpack.c.l.b16 %v6100
    %v7622 = vunpack.c.h.b16 %v6100
    %v7623 = vunpack.c.l.b16 %v6101
    %v7624 = vunpack.c.h.b16 %v6101
    %v7625 = vunpack.c.l.b16 %v6102
    %v7626 = vunpack.c.h.b16 %v6102
    %v7627 = vunpack.c.l.b16 %v6103
    %v7628 = vunpack.c.h.b16 %v6103
    %v7629 = vunpack.c.l.b16 %v6104
    %v7630 = vunpack.c.h.b16 %v6104
    %v7631 = vunpack.c.l.b16 %v6105
    %v7632 = vunpack.c.h.b16 %v6105
    %v7633 = vunpack.c.l.b16 %v6106
    %v7634 = vunpack.c.h.b16 %v6106
    %v7635 = vunpack.c.l.b16 %v6107
    %v7636 = vunpack.c.h.b16 %v6107
    %v7637 = vunpack.c.l.b16 %v6108
    %v7638 = vunpack.c.h.b16 %v6108
    %v7639 = vunpack.c.l.b16 %v6109
    %v7640 = vunpack.c.h.b16 %v6109
    %v7641 = vunpack.c.l.b16 %v6110
    %v7642 = vunpack.c.h.b16 %v6110
    %v7643 = vunpack.c.l.b16 %v6111
    %v7644 = vunpack.c.h.b16 %v6111
    %v7645 = vunpack.c.l.b16 %v6112
    %v7646 = vunpack.c.h.b16 %v6112
    %v7647 = vunpack.c.l.b16 %v6113
    %v7648 = vunpack.c.h.b16 %v6113
    %v7649 = vunpack.c.l.b16 %v6114
    %v7650 = vunpack.c.h.b16 %v6114
    %v7651 = vunpack.c.l.b16 %v6115
    %v7652 = vunpack.c.h.b16 %v6115
    %v7653 = vunpack.c.l.b16 %v6116
    %v7654 = vunpack.c.h.b16 %v6116
    %v7655 = vunpack.c.l.b16 %v6117
    %v7656 = vunpack.c.h.b16 %v6117
    %v7657 = vunpack.c.l.b16 %v6118
    %v7658 = vunpack.c.h.b16 %v6118
    %v7659 = vunpack.c.l.b16 %v6119
    %v7660 = vunpack.c.h.b16 %v6119
    %v7661 = vunpack.c.l.b16 %v6120
    %v7662 = vunpack.c.h.b16 %v6120
    %v7663 = vunpack.c.l.b16 %v6121
    %v7664 = vunpack.c.h.b16 %v6121
    %v7665 = vunpack.c.l.b16 %v6122
    %v7666 = vunpack.c.h.b16 %v6122
    %v7667 = vunpack.c.l.b16 %v6123
    %v7668 = vunpack.c.h.b16 %v6123
    %v7669 = vunpack.c.l.b16 %v6124
    %v7670 = vunpack.c.h.b16 %v6124
    %v7671 = vunpack.c.l.b16 %v6125
    %v7672 = vunpack.c.h.b16 %v6125
    %v7673 = vunpack.c.l.b16 %v6126
    %v7674 = vunpack.c.h.b16 %v6126
    %v7675 = vunpack.c.l.b16 %v6127
    %v7676 = vunpack.c.h.b16 %v6127
    %v7677 = vunpack.c.l.b16 %v6128
    %v7678 = vunpack.c.h.b16 %v6128
    %v7679 = vunpack.c.l.b16 %v6129
    %v7680 = vunpack.c.h.b16 %v6129
    %v7681 = vunpack.c.l.b16 %v6130
    %v7682 = vunpack.c.h.b16 %v6130
    %v7683 = vunpack.c.l.b16 %v6131
    %v7684 = vunpack.c.h.b16 %v6131
    %v7685 = vunpack.c.l.b16 %v6132
    %v7686 = vunpack.c.h.b16 %v6132
    %v7687 = vunpack.c.l.b16 %v6133
    %v7688 = vunpack.c.h.b16 %v6133
    %v7689 = vunpack.c.l.b16 %v6134
    %v7690 = vunpack.c.h.b16 %v6134
    %v7691 = vunpack.c.l.b16 %v6135
    %v7692 = vunpack.c.h.b16 %v6135
    %v7693 = vunpack.c.l.b16 %v6136
    %v7694 = vunpack.c.h.b16 %v6136
    %v7695 = vpack.c.b16 %v6675, %v6671
    %v7696 = vpack.c.b16 %v6676, %v6672
    %v7697 = vpack.c.b16 %v6677, %v6673
    %v7698 = vpack.c.b16 %v6678, %v6674
    %v7699 = vpack.c.b16 %v6683, %v6679
    %v7700 = vpack.c.b16 %v6684, %v6680
    %v7701 = vpack.c.b16 %v6685, %v6681
    %v7702 = vpack.c.b16 %v6686, %v6682
    %v7703 = vpack.c.b16 %v6691, %v6687
    %v7704 = vpack.c.b16 %v6692, %v6688
    %v7705 = vpack.c.b16 %v6693, %v6689
    %v7706 = vpack.c.b16 %v6694, %v6690
    %v7707 = vpack.c.b16 %v6699, %v6695
    %v7708 = vpack.c.b16 %v6700, %v6696
    %v7709 = vpack.c.b16 %v6701, %v6697
    %v7710 = vpack.c.b16 %v6702, %v6698
    %v7711 = vpack.c.b16 %v6707, %v6703
    %v7712 = vpack.c.b16 %v6708, %v6704
    %v7713 = vpack.c.b16 %v6709, %v6705
    %v7714 = vpack.c.b16 %v6710, %v6706
    %v7715 = vpack.c.b16 %v6715, %v6711
    %v7716 = vpack.c.b16 %v6716, %v6712
    %v7717 = vpack.c.b16 %v6717, %v6713
    %v7718 = vpack.c.b16 %v6718, %v6714
    %v7719 = vpack.c.b16 %v6723, %v6719
    %v7720 = vpack.c.b16 %v6724, %v6720
    %v7721 = vpack.c.b16 %v6725, %v6721
    %v7722 = vpack.c.b16 %v6726, %v6722
    %v7723 = vpack.c.b16 %v6731, %v6727
    %v7724 = vpack.c.b16 %v6732, %v6728
    %v7725 = vpack.c.b16 %v6733, %v6729
    %v7726 = vpack.c.b16 %v6734, %v6730
    %v7727 = vpack.c.b16 %v6739, %v6735
    %v7728 = vpack.c.b16 %v6740, %v6736
    %v7729 = vpack.c.b16 %v6741, %v6737
    %v7730 = vpack.c.b16 %v6742, %v6738
    %v7731 = vpack.c.b16 %v6747, %v6743
    %v7732 = vpack.c.b16 %v6748, %v6744
    %v7733 = vpack.c.b16 %v6749, %v6745
    %v7734 = vpack.c.b16 %v6750, %v6746
    %v7735 = vpack.c.b16 %v6755, %v6751
    %v7736 = vpack.c.b16 %v6756, %v6752
    %v7737 = vpack.c.b16 %v6757, %v6753
    %v7738 = vpack.c.b16 %v6758, %v6754
    %v7739 = vpack.c.b16 %v6763, %v6759
    %v7740 = vpack.c.b16 %v6764, %v6760
    %v7741 = vpack.c.b16 %v6765, %v6761
    %v7742 = vpack.c.b16 %v6766, %v6762
    %v7743 = vpack.c.b16 %v6771, %v6767
    %v7744 = vpack.c.b16 %v6772, %v6768
    %v7745 = vpack.c.b16 %v6773, %v6769
    %v7746 = vpack.c.b16 %v6774, %v6770
    %v7747 = vpack.c.b16 %v6779, %v6775
    %v7748 = vpack.c.b16 %v6780, %v6776
    %v7749 = vpack.c.b16 %v6781, %v6777
    %v7750 = vpack.c.b16 %v6782, %v6778
    %v7751 = vpack.c.b16 %v6787, %v6783
    %v7752 = vpack.c.b16 %v6788, %v6784
    %v7753 = vpack.c.b16 %v6789, %v6785
    %v7754 = vpack.c.b16 %v6790, %v6786
    %v7755 = vpack.c.b16 %v6795, %v6791
    %v7756 = vpack.c.b16 %v6796, %v6792
    %v7757 = vpack.c.b16 %v6797, %v6793
    %v7758 = vpack.c.b16 %v6798, %v6794
    %v7759 = vpack.c.b16 %v6803, %v6799
    %v7760 = vpack.c.b16 %v6804, %v6800
    %v7761 = vpack.c.b16 %v6805, %v6801
    %v7762 = vpack.c.b16 %v6806, %v6802
    %v7763 = vpack.c.b16 %v6811, %v6807
    %v7764 = vpack.c.b16 %v6812, %v6808
    %v7765 = vpack.c.b16 %v6813, %v6809
    %v7766 = vpack.c.b16 %v6814, %v6810
    %v7767 = vpack.c.b16 %v6819, %v6815
    %v7768 = vpack.c.b16 %v6820, %v6816
    %v7769 = vpack.c.b16 %v6821, %v6817
    %v7770 = vpack.c.b16 %v6822, %v6818
    %v7771 = vpack.c.b16 %v6827, %v6823
    %v7772 = vpack.c.b16 %v6828, %v6824
    %v7773 = vpack.c.b16 %v6829, %v6825
    %v7774 = vpack.c.b16 %v6830, %v6826
    %v7775 = vpack.c.b16 %v6835, %v6831
    %v7776 = vpack.c.b16 %v6836, %v6832
    %v7777 = vpack.c.b16 %v6837, %v6833
    %v7778 = vpack.c.b16 %v6838, %v6834
    %v7779 = vpack.c.b16 %v6843, %v6839
    %v7780 = vpack.c.b16 %v6844, %v6840
    %v7781 = vpack.c.b16 %v6845, %v6841
    %v7782 = vpack.c.b16 %v6846, %v6842
    %v7783 = vpack.c.b16 %v6851, %v6847
    %v7784 = vpack.c.b16 %v6852, %v6848
    %v7785 = vpack.c.b16 %v6853, %v6849
    %v7786 = vpack.c.b16 %v6854, %v6850
    %v7787 = vpack.c.b16 %v6859, %v6855
    %v7788 = vpack.c.b16 %v6860, %v6856
    %v7789 = vpack.c.b16 %v6861, %v6857
    %v7790 = vpack.c.b16 %v6862, %v6858
    %v7791 = vpack.c.b16 %v6867, %v6863
    %v7792 = vpack.c.b16 %v6868, %v6864
    %v7793 = vpack.c.b16 %v6869, %v6865
    %v7794 = vpack.c.b16 %v6870, %v6866
    %v7795 = vpack.c.b16 %v6875, %v6871
    %v7796 = vpack.c.b16 %v6876, %v6872
    %v7797 = vpack.c.b16 %v6877, %v6873
    %v7798 = vpack.c.b16 %v6878, %v6874
    %v7799 = vpack.c.b16 %v6883, %v6879
    %v7800 = vpack.c.b16 %v6884, %v6880
    %v7801 = vpack.c.b16 %v6885, %v6881
    %v7802 = vpack.c.b16 %v6886, %v6882
    %v7803 = vpack.c.b16 %v6891, %v6887
    %v7804 = vpack.c.b16 %v6892, %v6888
    %v7805 = vpack.c.b16 %v6893, %v6889
    %v7806 = vpack.c.b16 %v6894, %v6890
    %v7807 = vpack.c.b16 %v6899, %v6895
    %v7808 = vpack.c.b16 %v6900, %v6896
    %v7809 = vpack.c.b16 %v6901, %v6897
    %v7810 = vpack.c.b16 %v6902, %v6898
    %v7811 = vpack.c.b16 %v6907, %v6903
    %v7812 = vpack.c.b16 %v6908, %v6904
    %v7813 = vpack.c.b16 %v6909, %v6905
    %v7814 = vpack.c.b16 %v6910, %v6906
    %v7815 = vpack.c.b16 %v6915, %v6911
    %v7816 = vpack.c.b16 %v6916, %v6912
    %v7817 = vpack.c.b16 %v6917, %v6913
    %v7818 = vpack.c.b16 %v6918, %v6914
    %v7819 = vpack.c.b16 %v6923, %v6919
    %v7820 = vpack.c.b16 %v6924, %v6920
    %v7821 = vpack.c.b16 %v6925, %v6921
    %v7822 = vpack.c.b16 %v6926, %v6922
    %v7823 = vpack.c.b16 %v6931, %v6927
    %v7824 = vpack.c.b16 %v6932, %v6928
    %v7825 = vpack.c.b16 %v6933, %v6929
    %v7826 = vpack.c.b16 %v6934, %v6930
    %v7827 = vpack.c.b16 %v6939, %v6935
    %v7828 = vpack.c.b16 %v6940, %v6936
    %v7829 = vpack.c.b16 %v6941, %v6937
    %v7830 = vpack.c.b16 %v6942, %v6938
    %v7831 = vpack.c.b16 %v6947, %v6943
    %v7832 = vpack.c.b16 %v6948, %v6944
    %v7833 = vpack.c.b16 %v6949, %v6945
    %v7834 = vpack.c.b16 %v6950, %v6946
    %v7835 = vpack.c.b16 %v6955, %v6951
    %v7836 = vpack.c.b16 %v6956, %v6952
    %v7837 = vpack.c.b16 %v6957, %v6953
    %v7838 = vpack.c.b16 %v6958, %v6954
    %v7839 = vpack.c.b16 %v6963, %v6959
    %v7840 = vpack.c.b16 %v6964, %v6960
    %v7841 = vpack.c.b16 %v6965, %v6961
    %v7842 = vpack.c.b16 %v6966, %v6962
    %v7843 = vpack.c.b16 %v6971, %v6967
    %v7844 = vpack.c.b16 %v6972, %v6968
    %v7845 = vpack.c.b16 %v6973, %v6969
    %v7846 = vpack.c.b16 %v6974, %v6970
    %v7847 = vpack.c.b16 %v6979, %v6975
    %v7848 = vpack.c.b16 %v6980, %v6976
    %v7849 = vpack.c.b16 %v6981, %v6977
    %v7850 = vpack.c.b16 %v6982, %v6978
    %v7851 = vpack.c.b16 %v6987, %v6983
    %v7852 = vpack.c.b16 %v6988, %v6984
    %v7853 = vpack.c.b16 %v6989, %v6985
    %v7854 = vpack.c.b16 %v6990, %v6986
    %v7855 = vpack.c.b16 %v6995, %v6991
    %v7856 = vpack.c.b16 %v6996, %v6992
    %v7857 = vpack.c.b16 %v6997, %v6993
    %v7858 = vpack.c.b16 %v6998, %v6994
    %v7859 = vpack.c.b16 %v7003, %v6999
    %v7860 = vpack.c.b16 %v7004, %v7000
    %v7861 = vpack.c.b16 %v7005, %v7001
    %v7862 = vpack.c.b16 %v7006, %v7002
    %v7863 = vpack.c.b16 %v7011, %v7007
    %v7864 = vpack.c.b16 %v7012, %v7008
    %v7865 = vpack.c.b16 %v7013, %v7009
    %v7866 = vpack.c.b16 %v7014, %v7010
    %v7867 = vpack.c.b16 %v7019, %v7015
    %v7868 = vpack.c.b16 %v7020, %v7016
    %v7869 = vpack.c.b16 %v7021, %v7017
    %v7870 = vpack.c.b16 %v7022, %v7018
    %v7871 = vpack.c.b16 %v7027, %v7023
    %v7872 = vpack.c.b16 %v7028, %v7024
    %v7873 = vpack.c.b16 %v7029, %v7025
    %v7874 = vpack.c.b16 %v7030, %v7026
    %v7875 = vpack.c.b16 %v7035, %v7031
    %v7876 = vpack.c.b16 %v7036, %v7032
    %v7877 = vpack.c.b16 %v7037, %v7033
    %v7878 = vpack.c.b16 %v7038, %v7034
    %v7879 = vpack.c.b16 %v7043, %v7039
    %v7880 = vpack.c.b16 %v7044, %v7040
    %v7881 = vpack.c.b16 %v7045, %v7041
    %v7882 = vpack.c.b16 %v7046, %v7042
    %v7883 = vpack.c.b16 %v7051, %v7047
    %v7884 = vpack.c.b16 %v7052, %v7048
    %v7885 = vpack.c.b16 %v7053, %v7049
    %v7886 = vpack.c.b16 %v7054, %v7050
    %v7887 = vpack.c.b16 %v7059, %v7055
    %v7888 = vpack.c.b16 %v7060, %v7056
    %v7889 = vpack.c.b16 %v7061, %v7057
    %v7890 = vpack.c.b16 %v7062, %v7058
    %v7891 = vpack.c.b16 %v7067, %v7063
    %v7892 = vpack.c.b16 %v7068, %v7064
    %v7893 = vpack.c.b16 %v7069, %v7065
    %v7894 = vpack.c.b16 %v7070, %v7066
    %v7895 = vpack.c.b16 %v7075, %v7071
    %v7896 = vpack.c.b16 %v7076, %v7072
    %v7897 = vpack.c.b16 %v7077, %v7073
    %v7898 = vpack.c.b16 %v7078, %v7074
    %v7899 = vpack.c.b16 %v7083, %v7079
    %v7900 = vpack.c.b16 %v7084, %v7080
    %v7901 = vpack.c.b16 %v7085, %v7081
    %v7902 = vpack.c.b16 %v7086, %v7082
    %v7903 = vpack.c.b16 %v7091, %v7087
    %v7904 = vpack.c.b16 %v7092, %v7088
    %v7905 = vpack.c.b16 %v7093, %v7089
    %v7906 = vpack.c.b16 %v7094, %v7090
    %v7907 = vpack.c.b16 %v7099, %v7095
    %v7908 = vpack.c.b16 %v7100, %v7096
    %v7909 = vpack.c.b16 %v7101, %v7097
    %v7910 = vpack.c.b16 %v7102, %v7098
    %v7911 = vpack.c.b16 %v7107, %v7103
    %v7912 = vpack.c.b16 %v7108, %v7104
    %v7913 = vpack.c.b16 %v7109, %v7105
    %v7914 = vpack.c.b16 %v7110, %v7106
    %v7915 = vpack.c.b16 %v7115, %v7111
    %v7916 = vpack.c.b16 %v7116, %v7112
    %v7917 = vpack.c.b16 %v7117, %v7113
    %v7918 = vpack.c.b16 %v7118, %v7114
    %v7919 = vpack.c.b16 %v7123, %v7119
    %v7920 = vpack.c.b16 %v7124, %v7120
    %v7921 = vpack.c.b16 %v7125, %v7121
    %v7922 = vpack.c.b16 %v7126, %v7122
    %v7923 = vpack.c.b16 %v7131, %v7127
    %v7924 = vpack.c.b16 %v7132, %v7128
    %v7925 = vpack.c.b16 %v7133, %v7129
    %v7926 = vpack.c.b16 %v7134, %v7130
    %v7927 = vpack.c.b16 %v7139, %v7135
    %v7928 = vpack.c.b16 %v7140, %v7136
    %v7929 = vpack.c.b16 %v7141, %v7137
    %v7930 = vpack.c.b16 %v7142, %v7138
    %v7931 = vpack.c.b16 %v7147, %v7143
    %v7932 = vpack.c.b16 %v7148, %v7144
    %v7933 = vpack.c.b16 %v7149, %v7145
    %v7934 = vpack.c.b16 %v7150, %v7146
    %v7935 = vpack.c.b16 %v7155, %v7151
    %v7936 = vpack.c.b16 %v7156, %v7152
    %v7937 = vpack.c.b16 %v7157, %v7153
    %v7938 = vpack.c.b16 %v7158, %v7154
    %v7939 = vpack.c.b16 %v7163, %v7159
    %v7940 = vpack.c.b16 %v7164, %v7160
    %v7941 = vpack.c.b16 %v7165, %v7161
    %v7942 = vpack.c.b16 %v7166, %v7162
    %v7943 = vpack.c.b16 %v7171, %v7167
    %v7944 = vpack.c.b16 %v7172, %v7168
    %v7945 = vpack.c.b16 %v7173, %v7169
    %v7946 = vpack.c.b16 %v7174, %v7170
    %v7947 = vpack.c.b16 %v7179, %v7175
    %v7948 = vpack.c.b16 %v7180, %v7176
    %v7949 = vpack.c.b16 %v7181, %v7177
    %v7950 = vpack.c.b16 %v7182, %v7178
    %v7951 = vpack.c.b16 %v7187, %v7183
    %v7952 = vpack.c.b16 %v7188, %v7184
    %v7953 = vpack.c.b16 %v7189, %v7185
    %v7954 = vpack.c.b16 %v7190, %v7186
    %v7955 = vpack.c.b16 %v7195, %v7191
    %v7956 = vpack.c.b16 %v7196, %v7192
    %v7957 = vpack.c.b16 %v7197, %v7193
    %v7958 = vpack.c.b16 %v7198, %v7194
    %v7959 = vpack.c.b16 %v7203, %v7199
    %v7960 = vpack.c.b16 %v7204, %v7200
    %v7961 = vpack.c.b16 %v7205, %v7201
    %v7962 = vpack.c.b16 %v7206, %v7202
    %v7963 = vpack.c.b16 %v7211, %v7207
    %v7964 = vpack.c.b16 %v7212, %v7208
    %v7965 = vpack.c.b16 %v7213, %v7209
    %v7966 = vpack.c.b16 %v7214, %v7210
    %v7967 = vpack.c.b16 %v7219, %v7215
    %v7968 = vpack.c.b16 %v7220, %v7216
    %v7969 = vpack.c.b16 %v7221, %v7217
    %v7970 = vpack.c.b16 %v7222, %v7218
    %v7971 = vpack.c.b16 %v7227, %v7223
    %v7972 = vpack.c.b16 %v7228, %v7224
    %v7973 = vpack.c.b16 %v7229, %v7225
    %v7974 = vpack.c.b16 %v7230, %v7226
    %v7975 = vpack.c.b16 %v7235, %v7231
    %v7976 = vpack.c.b16 %v7236, %v7232
    %v7977 = vpack.c.b16 %v7237, %v7233
    %v7978 = vpack.c.b16 %v7238, %v7234
    %v7979 = vpack.c.b16 %v7243, %v7239
    %v7980 = vpack.c.b16 %v7244, %v7240
    %v7981 = vpack.c.b16 %v7245, %v7241
    %v7982 = vpack.c.b16 %v7246, %v7242
    %v7983 = vpack.c.b16 %v7251, %v7247
    %v7984 = vpack.c.b16 %v7252, %v7248
    %v7985 = vpack.c.b16 %v7253, %v7249
    %v7986 = vpack.c.b16 %v7254, %v7250
    %v7987 = vpack.c.b16 %v7259, %v7255
    %v7988 = vpack.c.b16 %v7260, %v7256
    %v7989 = vpack.c.b16 %v7261, %v7257
    %v7990 = vpack.c.b16 %v7262, %v7258
    %v7991 = vpack.c.b16 %v7267, %v7263
    %v7992 = vpack.c.b16 %v7268, %v7264
    %v7993 = vpack.c.b16 %v7269, %v7265
    %v7994 = vpack.c.b16 %v7270, %v7266
    %v7995 = vpack.c.b16 %v7275, %v7271
    %v7996 = vpack.c.b16 %v7276, %v7272
    %v7997 = vpack.c.b16 %v7277, %v7273
    %v7998 = vpack.c.b16 %v7278, %v7274
    %v7999 = vpack.c.b16 %v7283, %v7279
    %v8000 = vpack.c.b16 %v7284, %v7280
    %v8001 = vpack.c.b16 %v7285, %v7281
    %v8002 = vpack.c.b16 %v7286, %v7282
    %v8003 = vpack.c.b16 %v7291, %v7287
    %v8004 = vpack.c.b16 %v7292, %v7288
    %v8005 = vpack.c.b16 %v7293, %v7289
    %v8006 = vpack.c.b16 %v7294, %v7290
    %v8007 = vpack.c.b16 %v7299, %v7295
    %v8008 = vpack.c.b16 %v7300, %v7296
    %v8009 = vpack.c.b16 %v7301, %v7297
    %v8010 = vpack.c.b16 %v7302, %v7298
    %v8011 = vpack.c.b16 %v7307, %v7303
    %v8012 = vpack.c.b16 %v7308, %v7304
    %v8013 = vpack.c.b16 %v7309, %v7305
    %v8014 = vpack.c.b16 %v7310, %v7306
    %v8015 = vpack.c.b16 %v7315, %v7311
    %v8016 = vpack.c.b16 %v7316, %v7312
    %v8017 = vpack.c.b16 %v7317, %v7313
    %v8018 = vpack.c.b16 %v7318, %v7314
    %v8019 = vpack.c.b16 %v7323, %v7319
    %v8020 = vpack.c.b16 %v7324, %v7320
    %v8021 = vpack.c.b16 %v7325, %v7321
    %v8022 = vpack.c.b16 %v7326, %v7322
    %v8023 = vpack.c.b16 %v7331, %v7327
    %v8024 = vpack.c.b16 %v7332, %v7328
    %v8025 = vpack.c.b16 %v7333, %v7329
    %v8026 = vpack.c.b16 %v7334, %v7330
    %v8027 = vpack.c.b16 %v7339, %v7335
    %v8028 = vpack.c.b16 %v7340, %v7336
    %v8029 = vpack.c.b16 %v7341, %v7337
    %v8030 = vpack.c.b16 %v7342, %v7338
    %v8031 = vpack.c.b16 %v7347, %v7343
    %v8032 = vpack.c.b16 %v7348, %v7344
    %v8033 = vpack.c.b16 %v7349, %v7345
    %v8034 = vpack.c.b16 %v7350, %v7346
    %v8035 = vpack.c.b16 %v7355, %v7351
    %v8036 = vpack.c.b16 %v7356, %v7352
    %v8037 = vpack.c.b16 %v7357, %v7353
    %v8038 = vpack.c.b16 %v7358, %v7354
    %v8039 = vpack.c.b16 %v7363, %v7359
    %v8040 = vpack.c.b16 %v7364, %v7360
    %v8041 = vpack.c.b16 %v7365, %v7361
    %v8042 = vpack.c.b16 %v7366, %v7362
    %v8043 = vpack.c.b16 %v7371, %v7367
    %v8044 = vpack.c.b16 %v7372, %v7368
    %v8045 = vpack.c.b16 %v7373, %v7369
    %v8046 = vpack.c.b16 %v7374, %v7370
    %v8047 = vpack.c.b16 %v7379, %v7375
    %v8048 = vpack.c.b16 %v7380, %v7376
    %v8049 = vpack.c.b16 %v7381, %v7377
    %v8050 = vpack.c.b16 %v7382, %v7378
    %v8051 = vpack.c.b16 %v7387, %v7383
    %v8052 = vpack.c.b16 %v7388, %v7384
    %v8053 = vpack.c.b16 %v7389, %v7385
    %v8054 = vpack.c.b16 %v7390, %v7386
    %v8055 = vpack.c.b16 %v7395, %v7391
    %v8056 = vpack.c.b16 %v7396, %v7392
    %v8057 = vpack.c.b16 %v7397, %v7393
    %v8058 = vpack.c.b16 %v7398, %v7394
    %v8059 = vpack.c.b16 %v7403, %v7399
    %v8060 = vpack.c.b16 %v7404, %v7400
    %v8061 = vpack.c.b16 %v7405, %v7401
    %v8062 = vpack.c.b16 %v7406, %v7402
    %v8063 = vpack.c.b16 %v7411, %v7407
    %v8064 = vpack.c.b16 %v7412, %v7408
    %v8065 = vpack.c.b16 %v7413, %v7409
    %v8066 = vpack.c.b16 %v7414, %v7410
    %v8067 = vpack.c.b16 %v7419, %v7415
    %v8068 = vpack.c.b16 %v7420, %v7416
    %v8069 = vpack.c.b16 %v7421, %v7417
    %v8070 = vpack.c.b16 %v7422, %v7418
    %v8071 = vpack.c.b16 %v7427, %v7423
    %v8072 = vpack.c.b16 %v7428, %v7424
    %v8073 = vpack.c.b16 %v7429, %v7425
    %v8074 = vpack.c.b16 %v7430, %v7426
    %v8075 = vpack.c.b16 %v7435, %v7431
    %v8076 = vpack.c.b16 %v7436, %v7432
    %v8077 = vpack.c.b16 %v7437, %v7433
    %v8078 = vpack.c.b16 %v7438, %v7434
    %v8079 = vpack.c.b16 %v7443, %v7439
    %v8080 = vpack.c.b16 %v7444, %v7440
    %v8081 = vpack.c.b16 %v7445, %v7441
    %v8082 = vpack.c.b16 %v7446, %v7442
    %v8083 = vpack.c.b16 %v7451, %v7447
    %v8084 = vpack.c.b16 %v7452, %v7448
    %v8085 = vpack.c.b16 %v7453, %v7449
    %v8086 = vpack.c.b16 %v7454, %v7450
    %v8087 = vpack.c.b16 %v7459, %v7455
    %v8088 = vpack.c.b16 %v7460, %v7456
    %v8089 = vpack.c.b16 %v7461, %v7457
    %v8090 = vpack.c.b16 %v7462, %v7458
    %v8091 = vpack.c.b16 %v7467, %v7463
    %v8092 = vpack.c.b16 %v7468, %v7464
    %v8093 = vpack.c.b16 %v7469, %v7465
    %v8094 = vpack.c.b16 %v7470, %v7466
    %v8095 = vpack.c.b16 %v7475, %v7471
    %v8096 = vpack.c.b16 %v7476, %v7472
    %v8097 = vpack.c.b16 %v7477, %v7473
    %v8098 = vpack.c.b16 %v7478, %v7474
    %v8099 = vpack.c.b16 %v7483, %v7479
    %v8100 = vpack.c.b16 %v7484, %v7480
    %v8101 = vpack.c.b16 %v7485, %v7481
    %v8102 = vpack.c.b16 %v7486, %v7482
    %v8103 = vpack.c.b16 %v7491, %v7487
    %v8104 = vpack.c.b16 %v7492, %v7488
    %v8105 = vpack.c.b16 %v7493, %v7489
    %v8106 = vpack.c.b16 %v7494, %v7490
    %v8107 = vpack.c.b16 %v7499, %v7495
    %v8108 = vpack.c.b16 %v7500, %v7496
    %v8109 = vpack.c.b16 %v7501, %v7497
    %v8110 = vpack.c.b16 %v7502, %v7498
    %v8111 = vpack.c.b16 %v7507, %v7503
    %v8112 = vpack.c.b16 %v7508, %v7504
    %v8113 = vpack.c.b16 %v7509, %v7505
    %v8114 = vpack.c.b16 %v7510, %v7506
    %v8115 = vpack.c.b16 %v7515, %v7511
    %v8116 = vpack.c.b16 %v7516, %v7512
    %v8117 = vpack.c.b16 %v7517, %v7513
    %v8118 = vpack.c.b16 %v7518, %v7514
    %v8119 = vpack.c.b16 %v7523, %v7519
    %v8120 = vpack.c.b16 %v7524, %v7520
    %v8121 = vpack.c.b16 %v7525, %v7521
    %v8122 = vpack.c.b16 %v7526, %v7522
    %v8123 = vpack.c.b16 %v7531, %v7527
    %v8124 = vpack.c.b16 %v7532, %v7528
    %v8125 = vpack.c.b16 %v7533, %v7529
    %v8126 = vpack.c.b16 %v7534, %v7530
    %v8127 = vpack.c.b16 %v7539, %v7535
    %v8128 = vpack.c.b16 %v7540, %v7536
    %v8129 = vpack.c.b16 %v7541, %v7537
    %v8130 = vpack.c.b16 %v7542, %v7538
    %v8131 = vpack.c.b16 %v7547, %v7543
    %v8132 = vpack.c.b16 %v7548, %v7544
    %v8133 = vpack.c.b16 %v7549, %v7545
    %v8134 = vpack.c.b16 %v7550, %v7546
    %v8135 = vpack.c.b16 %v7555, %v7551
    %v8136 = vpack.c.b16 %v7556, %v7552
    %v8137 = vpack.c.b16 %v7557, %v7553
    %v8138 = vpack.c.b16 %v7558, %v7554
    %v8139 = vpack.c.b16 %v7563, %v7559
    %v8140 = vpack.c.b16 %v7564, %v7560
    %v8141 = vpack.c.b16 %v7565, %v7561
    %v8142 = vpack.c.b16 %v7566, %v7562
    %v8143 = vpack.c.b16 %v7571, %v7567
    %v8144 = vpack.c.b16 %v7572, %v7568
    %v8145 = vpack.c.b16 %v7573, %v7569
    %v8146 = vpack.c.b16 %v7574, %v7570
    %v8147 = vpack.c.b16 %v7579, %v7575
    %v8148 = vpack.c.b16 %v7580, %v7576
    %v8149 = vpack.c.b16 %v7581, %v7577
    %v8150 = vpack.c.b16 %v7582, %v7578
    %v8151 = vpack.c.b16 %v7587, %v7583
    %v8152 = vpack.c.b16 %v7588, %v7584
    %v8153 = vpack.c.b16 %v7589, %v7585
    %v8154 = vpack.c.b16 %v7590, %v7586
    %v8155 = vpack.c.b16 %v7595, %v7591
    %v8156 = vpack.c.b16 %v7596, %v7592
    %v8157 = vpack.c.b16 %v7597, %v7593
    %v8158 = vpack.c.b16 %v7598, %v7594
    %v8159 = vpack.c.b16 %v7603, %v7599
    %v8160 = vpack.c.b16 %v7604, %v7600
    %v8161 = vpack.c.b16 %v7605, %v7601
    %v8162 = vpack.c.b16 %v7606, %v7602
    %v8163 = vpack.c.b16 %v7611, %v7607
    %v8164 = vpack.c.b16 %v7612, %v7608
    %v8165 = vpack.c.b16 %v7613, %v7609
    %v8166 = vpack.c.b16 %v7614, %v7610
    %v8167 = vpack.c.b16 %v7619, %v7615
    %v8168 = vpack.c.b16 %v7620, %v7616
    %v8169 = vpack.c.b16 %v7621, %v7617
    %v8170 = vpack.c.b16 %v7622, %v7618
    %v8171 = vpack.c.b16 %v7627, %v7623
    %v8172 = vpack.c.b16 %v7628, %v7624
    %v8173 = vpack.c.b16 %v7629, %v7625
    %v8174 = vpack.c.b16 %v7630, %v7626
    %v8175 = vpack.c.b16 %v7635, %v7631
    %v8176 = vpack.c.b16 %v7636, %v7632
    %v8177 = vpack.c.b16 %v7637, %v7633
    %v8178 = vpack.c.b16 %v7638, %v7634
    %v8179 = vpack.c.b16 %v7643, %v7639
    %v8180 = vpack.c.b16 %v7644, %v7640
    %v8181 = vpack.c.b16 %v7645, %v7641
    %v8182 = vpack.c.b16 %v7646, %v7642
    %v8183 = vpack.c.b16 %v7651, %v7647
    %v8184 = vpack.c.b16 %v7652, %v7648
    %v8185 = vpack.c.b16 %v7653, %v7649
    %v8186 = vpack.c.b16 %v7654, %v7650
    %v8187 = vpack.c.b16 %v7659, %v7655
    %v8188 = vpack.c.b16 %v7660, %v7656
    %v8189 = vpack.c.b16 %v7661, %v7657
    %v8190 = vpack.c.b16 %v7662, %v7658
    %v8191 = vpack.c.b16 %v7667, %v7663
    %v8192 = vpack.c.b16 %v7668, %v7664
    %v8193 = vpack.c.b16 %v7669, %v7665
    %v8194 = vpack.c.b16 %v7670, %v7666
    %v8195 = vpack.c.b16 %v7675, %v7671
    %v8196 = vpack.c.b16 %v7676, %v7672
    %v8197 = vpack.c.b16 %v7677, %v7673
    %v8198 = vpack.c.b16 %v7678, %v7674
    %v8199 = vpack.c.b16 %v7683, %v7679
    %v8200 = vpack.c.b16 %v7684, %v7680
    %v8201 = vpack.c.b16 %v7685, %v7681
    %v8202 = vpack.c.b16 %v7686, %v7682
    %v8203 = vpack.c.b16 %v7691, %v7687
    %v8204 = vpack.c.b16 %v7692, %v7688
    %v8205 = vpack.c.b16 %v7693, %v7689
    %v8206 = vpack.c.b16 %v7694, %v7690
    %8719 = vmatprep.subr.bf16.mxu0 %v7696
    %8720 = vmatpush1.bf16.msra.mxu0 %v7695
    %8721 = vmatprep.subr.bf16.mxu0 %v7700
    %8722 = vmatpush1.bf16.msra.mxu0 %v7699
    %8723 = vmatprep.subr.bf16.mxu0 %v7704
    %8724 = vmatpush1.bf16.msra.mxu0 %v7703
    %8725 = vmatprep.subr.bf16.mxu0 %v7708
    %8726 = vmatpush1.bf16.msra.mxu0 %v7707
    %8727 = vmatprep.subr.bf16.mxu0 %v7712
    %8728 = vmatpush1.bf16.msra.mxu0 %v7711
    %8729 = vmatprep.subr.bf16.mxu0 %v7716
    %8730 = vmatpush1.bf16.msra.mxu0 %v7715
    %8731 = vmatprep.subr.bf16.mxu0 %v7720
    %8732 = vmatpush1.bf16.msra.mxu0 %v7719
    %8733 = vmatprep.subr.bf16.mxu0 %v7724
    %8734 = vmatpush1.bf16.msra.mxu0 %v7723
    %8735 = vmatprep.subr.bf16.mxu0 %v7728
    %8736 = vmatpush1.bf16.msra.mxu0 %v7727
    %8737 = vmatprep.subr.bf16.mxu0 %v7732
    %8738 = vmatpush1.bf16.msra.mxu0 %v7731
    %8739 = vmatprep.subr.bf16.mxu0 %v7736
    %8740 = vmatpush1.bf16.msra.mxu0 %v7735
    %8741 = vmatprep.subr.bf16.mxu0 %v7740
    %8742 = vmatpush1.bf16.msra.mxu0 %v7739
    %8743 = vmatprep.subr.bf16.mxu0 %v7744
    %8744 = vmatpush1.bf16.msra.mxu0 %v7743
    %8745 = vmatprep.subr.bf16.mxu0 %v7748
    %8746 = vmatpush1.bf16.msra.mxu0 %v7747
    %8747 = vmatprep.subr.bf16.mxu0 %v7752
    %8748 = vmatpush1.bf16.msra.mxu0 %v7751
    %8749 = vmatprep.subr.bf16.mxu0 %v7756
    %8750 = vmatpush1.bf16.msra.mxu0 %v7755
    %8751 = vmatprep.mubr.bf16.mxu0 %v5498
    %8752 = vmatmul.mubr.bf16.gmra.mrb[0].mxu0 %v5497
    %v8753 = vpop.f32.mrb[0].mxu0
    %v8754 = vadd.f32 %v6142, %v8753
    %v8755 = vpop.f32.mrb[0].mxu0
    %v8756 = vadd.f32 %v6146, %v8755
    %v8757 = vpop.f32.mrb[0].mxu0
    %v8758 = vadd.f32 %v6142, %v8757
    %v8759 = vpop.f32.mrb[0].mxu0
    %v8760 = vadd.f32 %v6146, %v8759
    %8761 = vmatprep.mubr.bf16.mxu0 %v5514
    %8762 = vmatmul.mubr.bf16.gmra.mrb[0].mxu0 %v5513
    %v8763 = vpop.f32.mrb[0].mxu0
    %v8764 = vadd.f32 %v6142, %v8763
    %v8765 = vpop.f32.mrb[0].mxu0
    %v8766 = vadd.f32 %v6146, %v8765
    %v8767 = vpop.f32.mrb[0].mxu0
    %v8768 = vadd.f32 %v6142, %v8767
    %v8769 = vpop.f32.mrb[0].mxu0
    %v8770 = vadd.f32 %v6146, %v8769
    %8771 = vmatprep.mubr.bf16.mxu0 %v5530
    %8772 = vmatmul.mubr.bf16.gmra.mrb[0].mxu0 %v5529
    %v8773 = vpop.f32.mrb[0].mxu0
    %v8774 = vadd.f32 %v6142, %v8773
    %v8775 = vpop.f32.mrb[0].mxu0
    %v8776 = vadd.f32 %v6146, %v8775
    %v8777 = vpop.f32.mrb[0].mxu0
    %v8778 = vadd.f32 %v6142, %v8777
    %v8779 = vpop.f32.mrb[0].mxu0
    %v8780 = vadd.f32 %v6146, %v8779
    %8781 = vmatprep.mubr.bf16.mxu0 %v5546
    %8782 = vmatmul.mubr.bf16.gmra.mrb[0].mxu0 %v5545
    %v8783 = vpop.f32.mrb[0].mxu0
    %v8784 = vadd.f32 %v6142, %v8783
    %v8785 = vpop.f32.mrb[0].mxu0
    %v8786 = vadd.f32 %v6146, %v8785
    %v8787 = vpop.f32.mrb[0].mxu0
    %v8788 = vadd.f32 %v6142, %v8787
    %v8789 = vpop.f32.mrb[0].mxu0
    %v8790 = vadd.f32 %v6146, %v8789
    %8791 = vmatprep.mubr.bf16.mxu0 %v5562
    %8792 = vmatmul.mubr.bf16.gmra.mrb[0].mxu0 %v5561
    %v8793 = vpop.f32.mrb[0].mxu0
    %v8794 = vadd.f32 %v6142, %v8793
    %v8795 = vpop.f32.mrb[0].mxu0
    %v8796 = vadd.f32 %v6146, %v8795
    %v8797 = vpop.f32.mrb[0].mxu0
    %v8798 = vadd.f32 %v6142, %v8797
    %v8799 = vpop.f32.mrb[0].mxu0
    %v8800 = vadd.f32 %v6146, %v8799
    %8801 = vmatprep.mubr.bf16.mxu0 %v5578
    %8802 = vmatmul.mubr.bf16.gmra.mrb[0].mxu0 %v5577
    %v8803 = vpop.f32.mrb[0].mxu0
    %v8804 = vadd.f32 %v6142, %v8803
    %v8805 = vpop.f32.mrb[0].mxu0
    %v8806 = vadd.f32 %v6146, %v8805
    %v8807 = vpop.f32.mrb[0].mxu0
    %v8808 = vadd.f32 %v6142, %v8807
    %v8809 = vpop.f32.mrb[0].mxu0
    %v8810 = vadd.f32 %v6146, %v8809
    %8811 = vmatprep.mubr.bf16.mxu0 %v5594
    %8812 = vmatmul.mubr.bf16.gmra.mrb[0].mxu0 %v5593
    %v8813 = vpop.f32.mrb[0].mxu0
    %v8814 = vadd.f32 %v6142, %v8813
    %v8815 = vpop.f32.mrb[0].mxu0
    %v8816 = vadd.f32 %v6146, %v8815
    %v8817 = vpop.f32.mrb[0].mxu0
    %v8818 = vadd.f32 %v6142, %v8817
    %v8819 = vpop.f32.mrb[0].mxu0
    %v8820 = vadd.f32 %v6146, %v8819
    %8821 = vmatprep.mubr.bf16.mxu0 %v5610
    %8822 = vmatmul.mubr.bf16.gmra.mrb[0].mxu0 %v5609
    %v8823 = vpop.f32.mrb[0].mxu0
    %v8824 = vadd.f32 %v6142, %v8823
    %v8825 = vpop.f32.mrb[0].mxu0
    %v8826 = vadd.f32 %v6146, %v8825
    %v8827 = vpop.f32.mrb[0].mxu0
    %v8828 = vadd.f32 %v6142, %v8827
    %v8829 = vpop.f32.mrb[0].mxu0
    %v8830 = vadd.f32 %v6146, %v8829
    %8831 = vdwg.mxu0
    %8832 = vmatprep.subr.bf16.mxu0 %v7760
    %8833 = vmatpush1.bf16.msra.mxu0 %v7759
    %8834 = vmatprep.subr.bf16.mxu0 %v7764
    %8835 = vmatpush1.bf16.msra.mxu0 %v7763
    %8836 = vmatprep.subr.bf16.mxu0 %v7768
    %8837 = vmatpush1.bf16.msra.mxu0 %v7767
    %8838 = vmatprep.subr.bf16.mxu0 %v7772
    %8839 = vmatpush1.bf16.msra.mxu0 %v7771
    %8840 = vmatprep.subr.bf16.mxu0 %v7776
    %8841 = vmatpush1.bf16.msra.mxu0 %v7775
    %8842 = vmatprep.subr.bf16.mxu0 %v7780
    %8843 = vmatpush1.bf16.msra.mxu0 %v7779
    %8844 = vmatprep.subr.bf16.mxu0 %v7784
    %8845 = vmatpush1.bf16.msra.mxu0 %v7783
    %8846 = vmatprep.subr.bf16.mxu0 %v7788
    %8847 = vmatpush1.bf16.msra.mxu0 %v7787
    %8848 = vmatprep.subr.bf16.mxu0 %v7792
    %8849 = vmatpush1.bf16.msra.mxu0 %v7791
    %8850 = vmatprep.subr.bf16.mxu0 %v7796
    %8851 = vmatpush1.bf16.msra.mxu0 %v7795
    %8852 = vmatprep.subr.bf16.mxu0 %v7800
    %8853 = vmatpush1.bf16.msra.mxu0 %v7799
    %8854 = vmatprep.subr.bf16.mxu0 %v7804
    %8855 = vmatpush1.bf16.msra.mxu0 %v7803
    %8856 = vmatprep.subr.bf16.mxu0 %v7808
    %8857 = vmatpush1.bf16.msra.mxu0 %v7807
    %8858 = vmatprep.subr.bf16.mxu0 %v7812
    %8859 = vmatpush1.bf16.msra.mxu0 %v7811
    %8860 = vmatprep.subr.bf16.mxu0 %v7816
    %8861 = vmatpush1.bf16.msra.mxu0 %v7815
    %8862 = vmatprep.subr.bf16.mxu0 %v7820
    %8863 = vmatpush1.bf16.msra.mxu0 %v7819
    %8864 = vmatprep.mubr.bf16.mxu0 %v5500
    %8865 = vmatmul.mubr.bf16.gmra.mrb[0].mxu0 %v5499
    %v8866 = vpop.f32.mrb[0].mxu0
    %v8867 = vadd.f32 %v8754, %v8866
    %v8868 = vpop.f32.mrb[0].mxu0
    %v8869 = vadd.f32 %v8756, %v8868
    %v8870 = vpop.f32.mrb[0].mxu0
    %v8871 = vadd.f32 %v8758, %v8870
    %v8872 = vpop.f32.mrb[0].mxu0
    %v8873 = vadd.f32 %v8760, %v8872
    %8874 = vmatprep.mubr.bf16.mxu0 %v5516
    %8875 = vmatmul.mubr.bf16.gmra.mrb[0].mxu0 %v5515
    %v8876 = vpop.f32.mrb[0].mxu0
    %v8877 = vadd.f32 %v8764, %v8876
    %v8878 = vpop.f32.mrb[0].mxu0
    %v8879 = vadd.f32 %v8766, %v8878
    %v8880 = vpop.f32.mrb[0].mxu0
    %v8881 = vadd.f32 %v8768, %v8880
    %v8882 = vpop.f32.mrb[0].mxu0
    %v8883 = vadd.f32 %v8770, %v8882
    %8884 = vmatprep.mubr.bf16.mxu0 %v5532
    %8885 = vmatmul.mubr.bf16.gmra.mrb[0].mxu0 %v5531
    %v8886 = vpop.f32.mrb[0].mxu0
    %v8887 = vadd.f32 %v8774, %v8886
    %v8888 = vpop.f32.mrb[0].mxu0
    %v8889 = vadd.f32 %v8776, %v8888
    %v8890 = vpop.f32.mrb[0].mxu0
    %v8891 = vadd.f32 %v8778, %v8890
    %v8892 = vpop.f32.mrb[0].mxu0
    %v8893 = vadd.f32 %v8780, %v8892
    %8894 = vmatprep.mubr.bf16.mxu0 %v5548
    %8895 = vmatmul.mubr.bf16.gmra.mrb[0].mxu0 %v5547
    %v8896 = vpop.f32.mrb[0].mxu0
    %v8897 = vadd.f32 %v8784, %v8896
    %v8898 = vpop.f32.mrb[0].mxu0
    %v8899 = vadd.f32 %v8786, %v8898
    %v8900 = vpop.f32.mrb[0].mxu0
    %v8901 = vadd.f32 %v8788, %v8900
    %v8902 = vpop.f32.mrb[0].mxu0
    %v8903 = vadd.f32 %v8790, %v8902
    %8904 = vmatprep.mubr.bf16.mxu0 %v5564
    %8905 = vmatmul.mubr.bf16.gmra.mrb[0].mxu0 %v5563
    %v8906 = vpop.f32.mrb[0].mxu0
    %v8907 = vadd.f32 %v8794, %v8906
    %v8908 = vpop.f32.mrb[0].mxu0
    %v8909 = vadd.f32 %v8796, %v8908
    %v8910 = vpop.f32.mrb[0].mxu0
    %v8911 = vadd.f32 %v8798, %v8910
    %v8912 = vpop.f32.mrb[0].mxu0
    %v8913 = vadd.f32 %v8800, %v8912
    %8914 = vmatprep.mubr.bf16.mxu0 %v5580
    %8915 = vmatmul.mubr.bf16.gmra.mrb[0].mxu0 %v5579
    %v8916 = vpop.f32.mrb[0].mxu0
    %v8917 = vadd.f32 %v8804, %v8916
    %v8918 = vpop.f32.mrb[0].mxu0
    %v8919 = vadd.f32 %v8806, %v8918
    %v8920 = vpop.f32.mrb[0].mxu0
    %v8921 = vadd.f32 %v8808, %v8920
    %v8922 = vpop.f32.mrb[0].mxu0
    %v8923 = vadd.f32 %v8810, %v8922
    %8924 = vmatprep.mubr.bf16.mxu0 %v5596
    %8925 = vmatmul.mubr.bf16.gmra.mrb[0].mxu0 %v5595
    %v8926 = vpop.f32.mrb[0].mxu0
    %v8927 = vadd.f32 %v8814, %v8926
    %v8928 = vpop.f32.mrb[0].mxu0
    %v8929 = vadd.f32 %v8816, %v8928
    %v8930 = vpop.f32.mrb[0].mxu0
    %v8931 = vadd.f32 %v8818, %v8930
    %v8932 = vpop.f32.mrb[0].mxu0
    %v8933 = vadd.f32 %v8820, %v8932
    %8934 = vmatprep.mubr.bf16.mxu0 %v5612
    %8935 = vmatmul.mubr.bf16.gmra.mrb[0].mxu0 %v5611
    %v8936 = vpop.f32.mrb[0].mxu0
    %v8937 = vadd.f32 %v8824, %v8936
    %v8938 = vpop.f32.mrb[0].mxu0
    %v8939 = vadd.f32 %v8826, %v8938
    %v8940 = vpop.f32.mrb[0].mxu0
    %v8941 = vadd.f32 %v8828, %v8940
    %v8942 = vpop.f32.mrb[0].mxu0
    %v8943 = vadd.f32 %v8830, %v8942
    %8944 = vdwg.mxu0
    %8945 = vmatprep.subr.bf16.mxu0 %v7824
    %8946 = vmatpush1.bf16.msra.mxu0 %v7823
    %8947 = vmatprep.subr.bf16.mxu0 %v7828
    %8948 = vmatpush1.bf16.msra.mxu0 %v7827
    %8949 = vmatprep.subr.bf16.mxu0 %v7832
    %8950 = vmatpush1.bf16.msra.mxu0 %v7831
    %8951 = vmatprep.subr.bf16.mxu0 %v7836
    %8952 = vmatpush1.bf16.msra.mxu0 %v7835
    %8953 = vmatprep.subr.bf16.mxu0 %v7840
    %8954 = vmatpush1.bf16.msra.mxu0 %v7839
    %8955 = vmatprep.subr.bf16.mxu0 %v7844
    %8956 = vmatpush1.bf16.msra.mxu0 %v7843
    %8957 = vmatprep.subr.bf16.mxu0 %v7848
    %8958 = vmatpush1.bf16.msra.mxu0 %v7847
    %8959 = vmatprep.subr.bf16.mxu0 %v7852
    %8960 = vmatpush1.bf16.msra.mxu0 %v7851
    %8961 = vmatprep.subr.bf16.mxu0 %v7856
    %8962 = vmatpush1.bf16.msra.mxu0 %v7855
    %8963 = vmatprep.subr.bf16.mxu0 %v7860
    %8964 = vmatpush1.bf16.msra.mxu0 %v7859
    %8965 = vmatprep.subr.bf16.mxu0 %v7864
    %8966 = vmatpush1.bf16.msra.mxu0 %v7863
    %8967 = vmatprep.subr.bf16.mxu0 %v7868
    %8968 = vmatpush1.bf16.msra.mxu0 %v7867
    %8969 = vmatprep.subr.bf16.mxu0 %v7872
    %8970 = vmatpush1.bf16.msra.mxu0 %v7871
    %8971 = vmatprep.subr.bf16.mxu0 %v7876
    %8972 = vmatpush1.bf16.msra.mxu0 %v7875
    %8973 = vmatprep.subr.bf16.mxu0 %v7880
    %8974 = vmatpush1.bf16.msra.mxu0 %v7879
    %8975 = vmatprep.subr.bf16.mxu0 %v7884
    %8976 = vmatpush1.bf16.msra.mxu0 %v7883
    %8977 = vmatprep.mubr.bf16.mxu0 %v5502
    %8978 = vmatmul.mubr.bf16.gmra.mrb[0].mxu0 %v5501
    %v8979 = vpop.f32.mrb[0].mxu0
    %v8980 = vadd.f32 %v8867, %v8979
    %v8981 = vpop.f32.mrb[0].mxu0
    %v8982 = vadd.f32 %v8869, %v8981
    %v8983 = vpop.f32.mrb[0].mxu0
    %v8984 = vadd.f32 %v8871, %v8983
    %v8985 = vpop.f32.mrb[0].mxu0
    %v8986 = vadd.f32 %v8873, %v8985
    %8987 = vmatprep.mubr.bf16.mxu0 %v5518
    %8988 = vmatmul.mubr.bf16.gmra.mrb[0].mxu0 %v5517
    %v8989 = vpop.f32.mrb[0].mxu0
    %v8990 = vadd.f32 %v8877, %v8989
    %v8991 = vpop.f32.mrb[0].mxu0
    %v8992 = vadd.f32 %v8879, %v8991
    %v8993 = vpop.f32.mrb[0].mxu0
    %v8994 = vadd.f32 %v8881, %v8993
    %v8995 = vpop.f32.mrb[0].mxu0
    %v8996 = vadd.f32 %v8883, %v8995
    %8997 = vmatprep.mubr.bf16.mxu0 %v5534
    %8998 = vmatmul.mubr.bf16.gmra.mrb[0].mxu0 %v5533
    %v8999 = vpop.f32.mrb[0].mxu0
    %v9000 = vadd.f32 %v8887, %v8999
    %v9001 = vpop.f32.mrb[0].mxu0
    %v9002 = vadd.f32 %v8889, %v9001
    %v9003 = vpop.f32.mrb[0].mxu0
    %v9004 = vadd.f32 %v8891, %v9003
    %v9005 = vpop.f32.mrb[0].mxu0
    %v9006 = vadd.f32 %v8893, %v9005
    %9007 = vmatprep.mubr.bf16.mxu0 %v5550
    %9008 = vmatmul.mubr.bf16.gmra.mrb[0].mxu0 %v5549
    %v9009 = vpop.f32.mrb[0].mxu0
    %v9010 = vadd.f32 %v8897, %v9009
    %v9011 = vpop.f32.mrb[0].mxu0
    %v9012 = vadd.f32 %v8899, %v9011
    %v9013 = vpop.f32.mrb[0].mxu0
    %v9014 = vadd.f32 %v8901, %v9013
    %v9015 = vpop.f32.mrb[0].mxu0
    %v9016 = vadd.f32 %v8903, %v9015
    %9017 = vmatprep.mubr.bf16.mxu0 %v5566
    %9018 = vmatmul.mubr.bf16.gmra.mrb[0].mxu0 %v5565
    %v9019 = vpop.f32.mrb[0].mxu0
    %v9020 = vadd.f32 %v8907, %v9019
    %v9021 = vpop.f32.mrb[0].mxu0
    %v9022 = vadd.f32 %v8909, %v9021
    %v9023 = vpop.f32.mrb[0].mxu0
    %v9024 = vadd.f32 %v8911, %v9023
    %v9025 = vpop.f32.mrb[0].mxu0
    %v9026 = vadd.f32 %v8913, %v9025
    %9027 = vmatprep.mubr.bf16.mxu0 %v5582
    %9028 = vmatmul.mubr.bf16.gmra.mrb[0].mxu0 %v5581
    %v9029 = vpop.f32.mrb[0].mxu0
    %v9030 = vadd.f32 %v8917, %v9029
    %v9031 = vpop.f32.mrb[0].mxu0
    %v9032 = vadd.f32 %v8919, %v9031
    %v9033 = vpop.f32.mrb[0].mxu0
    %v9034 = vadd.f32 %v8921, %v9033
    %v9035 = vpop.f32.mrb[0].mxu0
    %v9036 = vadd.f32 %v8923, %v9035
    %9037 = vmatprep.mubr.bf16.mxu0 %v5598
    %9038 = vmatmul.mubr.bf16.gmra.mrb[0].mxu0 %v5597
    %v9039 = vpop.f32.mrb[0].mxu0
    %v9040 = vadd.f32 %v8927, %v9039
    %v9041 = vpop.f32.mrb[0].mxu0
    %v9042 = vadd.f32 %v8929, %v9041
    %v9043 = vpop.f32.mrb[0].mxu0
    %v9044 = vadd.f32 %v8931, %v9043
    %v9045 = vpop.f32.mrb[0].mxu0
    %v9046 = vadd.f32 %v8933, %v9045
    %9047 = vmatprep.mubr.bf16.mxu0 %v5614
    %9048 = vmatmul.mubr.bf16.gmra.mrb[0].mxu0 %v5613
    %v9049 = vpop.f32.mrb[0].mxu0
    %v9050 = vadd.f32 %v8937, %v9049
    %v9051 = vpop.f32.mrb[0].mxu0
    %v9052 = vadd.f32 %v8939, %v9051
    %v9053 = vpop.f32.mrb[0].mxu0
    %v9054 = vadd.f32 %v8941, %v9053
    %v9055 = vpop.f32.mrb[0].mxu0
    %v9056 = vadd.f32 %v8943, %v9055
    %9057 = vdwg.mxu0
    %9058 = vmatprep.subr.bf16.mxu0 %v7888
    %9059 = vmatpush1.bf16.msra.mxu0 %v7887
    %9060 = vmatprep.subr.bf16.mxu0 %v7892
    %9061 = vmatpush1.bf16.msra.mxu0 %v7891
    %9062 = vmatprep.subr.bf16.mxu0 %v7896
    %9063 = vmatpush1.bf16.msra.mxu0 %v7895
    %9064 = vmatprep.subr.bf16.mxu0 %v7900
    %9065 = vmatpush1.bf16.msra.mxu0 %v7899
    %9066 = vmatprep.subr.bf16.mxu0 %v7904
    %9067 = vmatpush1.bf16.msra.mxu0 %v7903
    %9068 = vmatprep.subr.bf16.mxu0 %v7908
    %9069 = vmatpush1.bf16.msra.mxu0 %v7907
    %9070 = vmatprep.subr.bf16.mxu0 %v7912
    %9071 = vmatpush1.bf16.msra.mxu0 %v7911
    %9072 = vmatprep.subr.bf16.mxu0 %v7916
    %9073 = vmatpush1.bf16.msra.mxu0 %v7915
    %9074 = vmatprep.subr.bf16.mxu0 %v7920
    %9075 = vmatpush1.bf16.msra.mxu0 %v7919
    %9076 = vmatprep.subr.bf16.mxu0 %v7924
    %9077 = vmatpush1.bf16.msra.mxu0 %v7923
    %9078 = vmatprep.subr.bf16.mxu0 %v7928
    %9079 = vmatpush1.bf16.msra.mxu0 %v7927
    %9080 = vmatprep.subr.bf16.mxu0 %v7932
    %9081 = vmatpush1.bf16.msra.mxu0 %v7931
    %9082 = vmatprep.subr.bf16.mxu0 %v7936
    %9083 = vmatpush1.bf16.msra.mxu0 %v7935
    %9084 = vmatprep.subr.bf16.mxu0 %v7940
    %9085 = vmatpush1.bf16.msra.mxu0 %v7939
    %9086 = vmatprep.subr.bf16.mxu0 %v7944
    %9087 = vmatpush1.bf16.msra.mxu0 %v7943
    %9088 = vmatprep.subr.bf16.mxu0 %v7948
    %9089 = vmatpush1.bf16.msra.mxu0 %v7947
    %9090 = vmatprep.mubr.bf16.mxu0 %v5504
    %9091 = vmatmul.mubr.bf16.gmra.mrb[0].mxu0 %v5503
    %v9092 = vpop.f32.mrb[0].mxu0
    %v9093 = vadd.f32 %v8980, %v9092
    %v9094 = vpop.f32.mrb[0].mxu0
    %v9095 = vadd.f32 %v8982, %v9094
    %v9096 = vpop.f32.mrb[0].mxu0
    %v9097 = vadd.f32 %v8984, %v9096
    %v9098 = vpop.f32.mrb[0].mxu0
    %v9099 = vadd.f32 %v8986, %v9098
    %9100 = vmatprep.mubr.bf16.mxu0 %v5520
    %9101 = vmatmul.mubr.bf16.gmra.mrb[0].mxu0 %v5519
    %v9102 = vpop.f32.mrb[0].mxu0
    %v9103 = vadd.f32 %v8990, %v9102
    %v9104 = vpop.f32.mrb[0].mxu0
    %v9105 = vadd.f32 %v8992, %v9104
    %v9106 = vpop.f32.mrb[0].mxu0
    %v9107 = vadd.f32 %v8994, %v9106
    %v9108 = vpop.f32.mrb[0].mxu0
    %v9109 = vadd.f32 %v8996, %v9108
    %9110 = vmatprep.mubr.bf16.mxu0 %v5536
    %9111 = vmatmul.mubr.bf16.gmra.mrb[0].mxu0 %v5535
    %v9112 = vpop.f32.mrb[0].mxu0
    %v9113 = vadd.f32 %v9000, %v9112
    %v9114 = vpop.f32.mrb[0].mxu0
    %v9115 = vadd.f32 %v9002, %v9114
    %v9116 = vpop.f32.mrb[0].mxu0
    %v9117 = vadd.f32 %v9004, %v9116
    %v9118 = vpop.f32.mrb[0].mxu0
    %v9119 = vadd.f32 %v9006, %v9118
    %9120 = vmatprep.mubr.bf16.mxu0 %v5552
    %9121 = vmatmul.mubr.bf16.gmra.mrb[0].mxu0 %v5551
    %v9122 = vpop.f32.mrb[0].mxu0
    %v9123 = vadd.f32 %v9010, %v9122
    %v9124 = vpop.f32.mrb[0].mxu0
    %v9125 = vadd.f32 %v9012, %v9124
    %v9126 = vpop.f32.mrb[0].mxu0
    %v9127 = vadd.f32 %v9014, %v9126
    %v9128 = vpop.f32.mrb[0].mxu0
    %v9129 = vadd.f32 %v9016, %v9128
    %9130 = vmatprep.mubr.bf16.mxu0 %v5568
    %9131 = vmatmul.mubr.bf16.gmra.mrb[0].mxu0 %v5567
    %v9132 = vpop.f32.mrb[0].mxu0
    %v9133 = vadd.f32 %v9020, %v9132
    %v9134 = vpop.f32.mrb[0].mxu0
    %v9135 = vadd.f32 %v9022, %v9134
    %v9136 = vpop.f32.mrb[0].mxu0
    %v9137 = vadd.f32 %v9024, %v9136
    %v9138 = vpop.f32.mrb[0].mxu0
    %v9139 = vadd.f32 %v9026, %v9138
    %9140 = vmatprep.mubr.bf16.mxu0 %v5584
    %9141 = vmatmul.mubr.bf16.gmra.mrb[0].mxu0 %v5583
    %v9142 = vpop.f32.mrb[0].mxu0
    %v9143 = vadd.f32 %v9030, %v9142
    %v9144 = vpop.f32.mrb[0].mxu0
    %v9145 = vadd.f32 %v9032, %v9144
    %v9146 = vpop.f32.mrb[0].mxu0
    %v9147 = vadd.f32 %v9034, %v9146
    %v9148 = vpop.f32.mrb[0].mxu0
    %v9149 = vadd.f32 %v9036, %v9148
    %9150 = vmatprep.mubr.bf16.mxu0 %v5600
    %9151 = vmatmul.mubr.bf16.gmra.mrb[0].mxu0 %v5599
    %v9152 = vpop.f32.mrb[0].mxu0
    %v9153 = vadd.f32 %v9040, %v9152
    %v9154 = vpop.f32.mrb[0].mxu0
    %v9155 = vadd.f32 %v9042, %v9154
    %v9156 = vpop.f32.mrb[0].mxu0
    %v9157 = vadd.f32 %v9044, %v9156
    %v9158 = vpop.f32.mrb[0].mxu0
    %v9159 = vadd.f32 %v9046, %v9158
    %9160 = vmatprep.mubr.bf16.mxu0 %v5616
    %9161 = vmatmul.mubr.bf16.gmra.mrb[0].mxu0 %v5615
    %v9162 = vpop.f32.mrb[0].mxu0
    %v9163 = vadd.f32 %v9050, %v9162
    %v9164 = vpop.f32.mrb[0].mxu0
    %v9165 = vadd.f32 %v9052, %v9164
    %v9166 = vpop.f32.mrb[0].mxu0
    %v9167 = vadd.f32 %v9054, %v9166
    %v9168 = vpop.f32.mrb[0].mxu0
    %v9169 = vadd.f32 %v9056, %v9168
    %9170 = vdwg.mxu0
    %9171 = vmatprep.subr.bf16.mxu0 %v7952
    %9172 = vmatpush1.bf16.msra.mxu0 %v7951
    %9173 = vmatprep.subr.bf16.mxu0 %v7956
    %9174 = vmatpush1.bf16.msra.mxu0 %v7955
    %9175 = vmatprep.subr.bf16.mxu0 %v7960
    %9176 = vmatpush1.bf16.msra.mxu0 %v7959
    %9177 = vmatprep.subr.bf16.mxu0 %v7964
    %9178 = vmatpush1.bf16.msra.mxu0 %v7963
    %9179 = vmatprep.subr.bf16.mxu0 %v7968
    %9180 = vmatpush1.bf16.msra.mxu0 %v7967
    %9181 = vmatprep.subr.bf16.mxu0 %v7972
    %9182 = vmatpush1.bf16.msra.mxu0 %v7971
    %9183 = vmatprep.subr.bf16.mxu0 %v7976
    %9184 = vmatpush1.bf16.msra.mxu0 %v7975
    %9185 = vmatprep.subr.bf16.mxu0 %v7980
    %9186 = vmatpush1.bf16.msra.mxu0 %v7979
    %9187 = vmatprep.subr.bf16.mxu0 %v7984
    %9188 = vmatpush1.bf16.msra.mxu0 %v7983
    %9189 = vmatprep.subr.bf16.mxu0 %v7988
    %9190 = vmatpush1.bf16.msra.mxu0 %v7987
    %9191 = vmatprep.subr.bf16.mxu0 %v7992
    %9192 = vmatpush1.bf16.msra.mxu0 %v7991
    %9193 = vmatprep.subr.bf16.mxu0 %v7996
    %9194 = vmatpush1.bf16.msra.mxu0 %v7995
    %9195 = vmatprep.subr.bf16.mxu0 %v8000
    %9196 = vmatpush1.bf16.msra.mxu0 %v7999
    %9197 = vmatprep.subr.bf16.mxu0 %v8004
    %9198 = vmatpush1.bf16.msra.mxu0 %v8003
    %9199 = vmatprep.subr.bf16.mxu0 %v8008
    %9200 = vmatpush1.bf16.msra.mxu0 %v8007
    %9201 = vmatprep.subr.bf16.mxu0 %v8012
    %9202 = vmatpush1.bf16.msra.mxu0 %v8011
    %9203 = vmatprep.mubr.bf16.mxu0 %v5506
    %9204 = vmatmul.mubr.bf16.gmra.mrb[0].mxu0 %v5505
    %v9205 = vpop.f32.mrb[0].mxu0
    %v9206 = vadd.f32 %v9093, %v9205
    %v9207 = vpop.f32.mrb[0].mxu0
    %v9208 = vadd.f32 %v9095, %v9207
    %v9209 = vpop.f32.mrb[0].mxu0
    %v9210 = vadd.f32 %v9097, %v9209
    %v9211 = vpop.f32.mrb[0].mxu0
    %v9212 = vadd.f32 %v9099, %v9211
    %9213 = vmatprep.mubr.bf16.mxu0 %v5522
    %9214 = vmatmul.mubr.bf16.gmra.mrb[0].mxu0 %v5521
    %v9215 = vpop.f32.mrb[0].mxu0
    %v9216 = vadd.f32 %v9103, %v9215
    %v9217 = vpop.f32.mrb[0].mxu0
    %v9218 = vadd.f32 %v9105, %v9217
    %v9219 = vpop.f32.mrb[0].mxu0
    %v9220 = vadd.f32 %v9107, %v9219
    %v9221 = vpop.f32.mrb[0].mxu0
    %v9222 = vadd.f32 %v9109, %v9221
    %9223 = vmatprep.mubr.bf16.mxu0 %v5538
    %9224 = vmatmul.mubr.bf16.gmra.mrb[0].mxu0 %v5537
    %v9225 = vpop.f32.mrb[0].mxu0
    %v9226 = vadd.f32 %v9113, %v9225
    %v9227 = vpop.f32.mrb[0].mxu0
    %v9228 = vadd.f32 %v9115, %v9227
    %v9229 = vpop.f32.mrb[0].mxu0
    %v9230 = vadd.f32 %v9117, %v9229
    %v9231 = vpop.f32.mrb[0].mxu0
    %v9232 = vadd.f32 %v9119, %v9231
    %9233 = vmatprep.mubr.bf16.mxu0 %v5554
    %9234 = vmatmul.mubr.bf16.gmra.mrb[0].mxu0 %v5553
    %v9235 = vpop.f32.mrb[0].mxu0
    %v9236 = vadd.f32 %v9123, %v9235
    %v9237 = vpop.f32.mrb[0].mxu0
    %v9238 = vadd.f32 %v9125, %v9237
    %v9239 = vpop.f32.mrb[0].mxu0
    %v9240 = vadd.f32 %v9127, %v9239
    %v9241 = vpop.f32.mrb[0].mxu0
    %v9242 = vadd.f32 %v9129, %v9241
    %9243 = vmatprep.mubr.bf16.mxu0 %v5570
    %9244 = vmatmul.mubr.bf16.gmra.mrb[0].mxu0 %v5569
    %v9245 = vpop.f32.mrb[0].mxu0
    %v9246 = vadd.f32 %v9133, %v9245
    %v9247 = vpop.f32.mrb[0].mxu0
    %v9248 = vadd.f32 %v9135, %v9247
    %v9249 = vpop.f32.mrb[0].mxu0
    %v9250 = vadd.f32 %v9137, %v9249
    %v9251 = vpop.f32.mrb[0].mxu0
    %v9252 = vadd.f32 %v9139, %v9251
    %9253 = vmatprep.mubr.bf16.mxu0 %v5586
    %9254 = vmatmul.mubr.bf16.gmra.mrb[0].mxu0 %v5585
    %v9255 = vpop.f32.mrb[0].mxu0
    %v9256 = vadd.f32 %v9143, %v9255
    %v9257 = vpop.f32.mrb[0].mxu0
    %v9258 = vadd.f32 %v9145, %v9257
    %v9259 = vpop.f32.mrb[0].mxu0
    %v9260 = vadd.f32 %v9147, %v9259
    %v9261 = vpop.f32.mrb[0].mxu0
    %v9262 = vadd.f32 %v9149, %v9261
    %9263 = vmatprep.mubr.bf16.mxu0 %v5602
    %9264 = vmatmul.mubr.bf16.gmra.mrb[0].mxu0 %v5601
    %v9265 = vpop.f32.mrb[0].mxu0
    %v9266 = vadd.f32 %v9153, %v9265
    %v9267 = vpop.f32.mrb[0].mxu0
    %v9268 = vadd.f32 %v9155, %v9267
    %v9269 = vpop.f32.mrb[0].mxu0
    %v9270 = vadd.f32 %v9157, %v9269
    %v9271 = vpop.f32.mrb[0].mxu0
    %v9272 = vadd.f32 %v9159, %v9271
    %9273 = vmatprep.mubr.bf16.mxu0 %v5618
    %9274 = vmatmul.mubr.bf16.gmra.mrb[0].mxu0 %v5617
    %v9275 = vpop.f32.mrb[0].mxu0
    %v9276 = vadd.f32 %v9163, %v9275
    %v9277 = vpop.f32.mrb[0].mxu0
    %v9278 = vadd.f32 %v9165, %v9277
    %v9279 = vpop.f32.mrb[0].mxu0
    %v9280 = vadd.f32 %v9167, %v9279
    %v9281 = vpop.f32.mrb[0].mxu0
    %v9282 = vadd.f32 %v9169, %v9281
    %9283 = vdwg.mxu0
    %9284 = vmatprep.subr.bf16.mxu0 %v8016
    %9285 = vmatpush1.bf16.msra.mxu0 %v8015
    %9286 = vmatprep.subr.bf16.mxu0 %v8020
    %9287 = vmatpush1.bf16.msra.mxu0 %v8019
    %9288 = vmatprep.subr.bf16.mxu0 %v8024
    %9289 = vmatpush1.bf16.msra.mxu0 %v8023
    %9290 = vmatprep.subr.bf16.mxu0 %v8028
    %9291 = vmatpush1.bf16.msra.mxu0 %v8027
    %9292 = vmatprep.subr.bf16.mxu0 %v8032
    %9293 = vmatpush1.bf16.msra.mxu0 %v8031
    %9294 = vmatprep.subr.bf16.mxu0 %v8036
    %9295 = vmatpush1.bf16.msra.mxu0 %v8035
    %9296 = vmatprep.subr.bf16.mxu0 %v8040
    %9297 = vmatpush1.bf16.msra.mxu0 %v8039
    %9298 = vmatprep.subr.bf16.mxu0 %v8044
    %9299 = vmatpush1.bf16.msra.mxu0 %v8043
    %9300 = vmatprep.subr.bf16.mxu0 %v8048
    %9301 = vmatpush1.bf16.msra.mxu0 %v8047
    %9302 = vmatprep.subr.bf16.mxu0 %v8052
    %9303 = vmatpush1.bf16.msra.mxu0 %v8051
    %9304 = vmatprep.subr.bf16.mxu0 %v8056
    %9305 = vmatpush1.bf16.msra.mxu0 %v8055
    %9306 = vmatprep.subr.bf16.mxu0 %v8060
    %9307 = vmatpush1.bf16.msra.mxu0 %v8059
    %9308 = vmatprep.subr.bf16.mxu0 %v8064
    %9309 = vmatpush1.bf16.msra.mxu0 %v8063
    %9310 = vmatprep.subr.bf16.mxu0 %v8068
    %9311 = vmatpush1.bf16.msra.mxu0 %v8067
    %9312 = vmatprep.subr.bf16.mxu0 %v8072
    %9313 = vmatpush1.bf16.msra.mxu0 %v8071
    %9314 = vmatprep.subr.bf16.mxu0 %v8076
    %9315 = vmatpush1.bf16.msra.mxu0 %v8075
    %9316 = vmatprep.mubr.bf16.mxu0 %v5508
    %9317 = vmatmul.mubr.bf16.gmra.mrb[0].mxu0 %v5507
    %v9318 = vpop.f32.mrb[0].mxu0
    %v9319 = vadd.f32 %v9206, %v9318
    %v9320 = vpop.f32.mrb[0].mxu0
    %v9321 = vadd.f32 %v9208, %v9320
    %v9322 = vpop.f32.mrb[0].mxu0
    %v9323 = vadd.f32 %v9210, %v9322
    %v9324 = vpop.f32.mrb[0].mxu0
    %v9325 = vadd.f32 %v9212, %v9324
    %9326 = vmatprep.mubr.bf16.mxu0 %v5524
    %9327 = vmatmul.mubr.bf16.gmra.mrb[0].mxu0 %v5523
    %v9328 = vpop.f32.mrb[0].mxu0
    %v9329 = vadd.f32 %v9216, %v9328
    %v9330 = vpop.f32.mrb[0].mxu0
    %v9331 = vadd.f32 %v9218, %v9330
    %v9332 = vpop.f32.mrb[0].mxu0
    %v9333 = vadd.f32 %v9220, %v9332
    %v9334 = vpop.f32.mrb[0].mxu0
    %v9335 = vadd.f32 %v9222, %v9334
    %9336 = vmatprep.mubr.bf16.mxu0 %v5540
    %9337 = vmatmul.mubr.bf16.gmra.mrb[0].mxu0 %v5539
    %v9338 = vpop.f32.mrb[0].mxu0
    %v9339 = vadd.f32 %v9226, %v9338
    %v9340 = vpop.f32.mrb[0].mxu0
    %v9341 = vadd.f32 %v9228, %v9340
    %v9342 = vpop.f32.mrb[0].mxu0
    %v9343 = vadd.f32 %v9230, %v9342
    %v9344 = vpop.f32.mrb[0].mxu0
    %v9345 = vadd.f32 %v9232, %v9344
    %9346 = vmatprep.mubr.bf16.mxu0 %v5556
    %9347 = vmatmul.mubr.bf16.gmra.mrb[0].mxu0 %v5555
    %v9348 = vpop.f32.mrb[0].mxu0
    %v9349 = vadd.f32 %v9236, %v9348
    %v9350 = vpop.f32.mrb[0].mxu0
    %v9351 = vadd.f32 %v9238, %v9350
    %v9352 = vpop.f32.mrb[0].mxu0
    %v9353 = vadd.f32 %v9240, %v9352
    %v9354 = vpop.f32.mrb[0].mxu0
    %v9355 = vadd.f32 %v9242, %v9354
    %9356 = vmatprep.mubr.bf16.mxu0 %v5572
    %9357 = vmatmul.mubr.bf16.gmra.mrb[0].mxu0 %v5571
    %v9358 = vpop.f32.mrb[0].mxu0
    %v9359 = vadd.f32 %v9246, %v9358
    %v9360 = vpop.f32.mrb[0].mxu0
    %v9361 = vadd.f32 %v9248, %v9360
    %v9362 = vpop.f32.mrb[0].mxu0
    %v9363 = vadd.f32 %v9250, %v9362
    %v9364 = vpop.f32.mrb[0].mxu0
    %v9365 = vadd.f32 %v9252, %v9364
    %9366 = vmatprep.mubr.bf16.mxu0 %v5588
    %9367 = vmatmul.mubr.bf16.gmra.mrb[0].mxu0 %v5587
    %v9368 = vpop.f32.mrb[0].mxu0
    %v9369 = vadd.f32 %v9256, %v9368
    %v9370 = vpop.f32.mrb[0].mxu0
    %v9371 = vadd.f32 %v9258, %v9370
    %v9372 = vpop.f32.mrb[0].mxu0
    %v9373 = vadd.f32 %v9260, %v9372
    %v9374 = vpop.f32.mrb[0].mxu0
    %v9375 = vadd.f32 %v9262, %v9374
    %9376 = vmatprep.mubr.bf16.mxu0 %v5604
    %9377 = vmatmul.mubr.bf16.gmra.mrb[0].mxu0 %v5603
    %v9378 = vpop.f32.mrb[0].mxu0
    %v9379 = vadd.f32 %v9266, %v9378
    %v9380 = vpop.f32.mrb[0].mxu0
    %v9381 = vadd.f32 %v9268, %v9380
    %v9382 = vpop.f32.mrb[0].mxu0
    %v9383 = vadd.f32 %v9270, %v9382
    %v9384 = vpop.f32.mrb[0].mxu0
    %v9385 = vadd.f32 %v9272, %v9384
    %9386 = vmatprep.mubr.bf16.mxu0 %v5620
    %9387 = vmatmul.mubr.bf16.gmra.mrb[0].mxu0 %v5619
    %v9388 = vpop.f32.mrb[0].mxu0
    %v9389 = vadd.f32 %v9276, %v9388
    %v9390 = vpop.f32.mrb[0].mxu0
    %v9391 = vadd.f32 %v9278, %v9390
    %v9392 = vpop.f32.mrb[0].mxu0
    %v9393 = vadd.f32 %v9280, %v9392
    %v9394 = vpop.f32.mrb[0].mxu0
    %v9395 = vadd.f32 %v9282, %v9394
    %9396 = vdwg.mxu0
    %9397 = vmatprep.subr.bf16.mxu0 %v8080
    %9398 = vmatpush1.bf16.msra.mxu0 %v8079
    %9399 = vmatprep.subr.bf16.mxu0 %v8084
    %9400 = vmatpush1.bf16.msra.mxu0 %v8083
    %9401 = vmatprep.subr.bf16.mxu0 %v8088
    %9402 = vmatpush1.bf16.msra.mxu0 %v8087
    %9403 = vmatprep.subr.bf16.mxu0 %v8092
    %9404 = vmatpush1.bf16.msra.mxu0 %v8091
    %9405 = vmatprep.subr.bf16.mxu0 %v8096
    %9406 = vmatpush1.bf16.msra.mxu0 %v8095
    %9407 = vmatprep.subr.bf16.mxu0 %v8100
    %9408 = vmatpush1.bf16.msra.mxu0 %v8099
    %9409 = vmatprep.subr.bf16.mxu0 %v8104
    %9410 = vmatpush1.bf16.msra.mxu0 %v8103
    %9411 = vmatprep.subr.bf16.mxu0 %v8108
    %9412 = vmatpush1.bf16.msra.mxu0 %v8107
    %9413 = vmatprep.subr.bf16.mxu0 %v8112
    %9414 = vmatpush1.bf16.msra.mxu0 %v8111
    %9415 = vmatprep.subr.bf16.mxu0 %v8116
    %9416 = vmatpush1.bf16.msra.mxu0 %v8115
    %9417 = vmatprep.subr.bf16.mxu0 %v8120
    %9418 = vmatpush1.bf16.msra.mxu0 %v8119
    %9419 = vmatprep.subr.bf16.mxu0 %v8124
    %9420 = vmatpush1.bf16.msra.mxu0 %v8123
    %9421 = vmatprep.subr.bf16.mxu0 %v8128
    %9422 = vmatpush1.bf16.msra.mxu0 %v8127
    %9423 = vmatprep.subr.bf16.mxu0 %v8132
    %9424 = vmatpush1.bf16.msra.mxu0 %v8131
    %9425 = vmatprep.subr.bf16.mxu0 %v8136
    %9426 = vmatpush1.bf16.msra.mxu0 %v8135
    %9427 = vmatprep.subr.bf16.mxu0 %v8140
    %9428 = vmatpush1.bf16.msra.mxu0 %v8139
    %9429 = vmatprep.mubr.bf16.mxu0 %v5510
    %9430 = vmatmul.mubr.bf16.gmra.mrb[0].mxu0 %v5509
    %v9431 = vpop.f32.mrb[0].mxu0
    %v9432 = vadd.f32 %v9319, %v9431
    %v9433 = vpop.f32.mrb[0].mxu0
    %v9434 = vadd.f32 %v9321, %v9433
    %v9435 = vpop.f32.mrb[0].mxu0
    %v9436 = vadd.f32 %v9323, %v9435
    %v9437 = vpop.f32.mrb[0].mxu0
    %v9438 = vadd.f32 %v9325, %v9437
    %9439 = vmatprep.mubr.bf16.mxu0 %v5526
    %9440 = vmatmul.mubr.bf16.gmra.mrb[0].mxu0 %v5525
    %v9441 = vpop.f32.mrb[0].mxu0
    %v9442 = vadd.f32 %v9329, %v9441
    %v9443 = vpop.f32.mrb[0].mxu0
    %v9444 = vadd.f32 %v9331, %v9443
    %v9445 = vpop.f32.mrb[0].mxu0
    %v9446 = vadd.f32 %v9333, %v9445
    %v9447 = vpop.f32.mrb[0].mxu0
    %v9448 = vadd.f32 %v9335, %v9447
    %9449 = vmatprep.mubr.bf16.mxu0 %v5542
    %9450 = vmatmul.mubr.bf16.gmra.mrb[0].mxu0 %v5541
    %v9451 = vpop.f32.mrb[0].mxu0
    %v9452 = vadd.f32 %v9339, %v9451
    %v9453 = vpop.f32.mrb[0].mxu0
    %v9454 = vadd.f32 %v9341, %v9453
    %v9455 = vpop.f32.mrb[0].mxu0
    %v9456 = vadd.f32 %v9343, %v9455
    %v9457 = vpop.f32.mrb[0].mxu0
    %v9458 = vadd.f32 %v9345, %v9457
    %9459 = vmatprep.mubr.bf16.mxu0 %v5558
    %9460 = vmatmul.mubr.bf16.gmra.mrb[0].mxu0 %v5557
    %v9461 = vpop.f32.mrb[0].mxu0
    %v9462 = vadd.f32 %v9349, %v9461
    %v9463 = vpop.f32.mrb[0].mxu0
    %v9464 = vadd.f32 %v9351, %v9463
    %v9465 = vpop.f32.mrb[0].mxu0
    %v9466 = vadd.f32 %v9353, %v9465
    %v9467 = vpop.f32.mrb[0].mxu0
    %v9468 = vadd.f32 %v9355, %v9467
    %9469 = vmatprep.mubr.bf16.mxu0 %v5574
    %9470 = vmatmul.mubr.bf16.gmra.mrb[0].mxu0 %v5573
    %v9471 = vpop.f32.mrb[0].mxu0
    %v9472 = vadd.f32 %v9359, %v9471
    %v9473 = vpop.f32.mrb[0].mxu0
    %v9474 = vadd.f32 %v9361, %v9473
    %v9475 = vpop.f32.mrb[0].mxu0
    %v9476 = vadd.f32 %v9363, %v9475
    %v9477 = vpop.f32.mrb[0].mxu0
    %v9478 = vadd.f32 %v9365, %v9477
    %9479 = vmatprep.mubr.bf16.mxu0 %v5590
    %9480 = vmatmul.mubr.bf16.gmra.mrb[0].mxu0 %v5589
    %v9481 = vpop.f32.mrb[0].mxu0
    %v9482 = vadd.f32 %v9369, %v9481
    %v9483 = vpop.f32.mrb[0].mxu0
    %v9484 = vadd.f32 %v9371, %v9483
    %v9485 = vpop.f32.mrb[0].mxu0
    %v9486 = vadd.f32 %v9373, %v9485
    %v9487 = vpop.f32.mrb[0].mxu0
    %v9488 = vadd.f32 %v9375, %v9487
    %9489 = vmatprep.mubr.bf16.mxu0 %v5606
    %9490 = vmatmul.mubr.bf16.gmra.mrb[0].mxu0 %v5605
    %v9491 = vpop.f32.mrb[0].mxu0
    %v9492 = vadd.f32 %v9379, %v9491
    %v9493 = vpop.f32.mrb[0].mxu0
    %v9494 = vadd.f32 %v9381, %v9493
    %v9495 = vpop.f32.mrb[0].mxu0
    %v9496 = vadd.f32 %v9383, %v9495
    %v9497 = vpop.f32.mrb[0].mxu0
    %v9498 = vadd.f32 %v9385, %v9497
    %9499 = vmatprep.mubr.bf16.mxu0 %v5622
    %9500 = vmatmul.mubr.bf16.gmra.mrb[0].mxu0 %v5621
    %v9501 = vpop.f32.mrb[0].mxu0
    %v9502 = vadd.f32 %v9389, %v9501
    %v9503 = vpop.f32.mrb[0].mxu0
    %v9504 = vadd.f32 %v9391, %v9503
    %v9505 = vpop.f32.mrb[0].mxu0
    %v9506 = vadd.f32 %v9393, %v9505
    %v9507 = vpop.f32.mrb[0].mxu0
    %v9508 = vadd.f32 %v9395, %v9507
    %9509 = vdwg.mxu0
    %9510 = vmatprep.subr.bf16.mxu0 %v8144
    %9511 = vmatpush1.bf16.msra.mxu0 %v8143
    %9512 = vmatprep.subr.bf16.mxu0 %v8148
    %9513 = vmatpush1.bf16.msra.mxu0 %v8147
    %9514 = vmatprep.subr.bf16.mxu0 %v8152
    %9515 = vmatpush1.bf16.msra.mxu0 %v8151
    %9516 = vmatprep.subr.bf16.mxu0 %v8156
    %9517 = vmatpush1.bf16.msra.mxu0 %v8155
    %9518 = vmatprep.subr.bf16.mxu0 %v8160
    %9519 = vmatpush1.bf16.msra.mxu0 %v8159
    %9520 = vmatprep.subr.bf16.mxu0 %v8164
    %9521 = vmatpush1.bf16.msra.mxu0 %v8163
    %9522 = vmatprep.subr.bf16.mxu0 %v8168
    %9523 = vmatpush1.bf16.msra.mxu0 %v8167
    %9524 = vmatprep.subr.bf16.mxu0 %v8172
    %9525 = vmatpush1.bf16.msra.mxu0 %v8171
    %9526 = vmatprep.subr.bf16.mxu0 %v8176
    %9527 = vmatpush1.bf16.msra.mxu0 %v8175
    %9528 = vmatprep.subr.bf16.mxu0 %v8180
    %9529 = vmatpush1.bf16.msra.mxu0 %v8179
    %9530 = vmatprep.subr.bf16.mxu0 %v8184
    %9531 = vmatpush1.bf16.msra.mxu0 %v8183
    %9532 = vmatprep.subr.bf16.mxu0 %v8188
    %9533 = vmatpush1.bf16.msra.mxu0 %v8187
    %9534 = vmatprep.subr.bf16.mxu0 %v8192
    %9535 = vmatpush1.bf16.msra.mxu0 %v8191
    %9536 = vmatprep.subr.bf16.mxu0 %v8196
    %9537 = vmatpush1.bf16.msra.mxu0 %v8195
    %9538 = vmatprep.subr.bf16.mxu0 %v8200
    %9539 = vmatpush1.bf16.msra.mxu0 %v8199
    %9540 = vmatprep.subr.bf16.mxu0 %v8204
    %9541 = vmatpush1.bf16.msra.mxu0 %v8203
    %9542 = vmatprep.mubr.bf16.mxu0 %v5512
    %9543 = vmatmul.mubr.bf16.gmra.mrb[0].mxu0 %v5511
    %v9544 = vpop.f32.mrb[0].mxu0
    %v9545 = vadd.f32 %v9432, %v9544
    %v9546 = vpop.f32.mrb[0].mxu0
    %v9547 = vadd.f32 %v9434, %v9546
    %v9548 = vpop.f32.mrb[0].mxu0
    %v9549 = vadd.f32 %v9436, %v9548
    %v9550 = vpop.f32.mrb[0].mxu0
    %v9551 = vadd.f32 %v9438, %v9550
    %9552 = vmatprep.mubr.bf16.mxu0 %v5528
    %9553 = vmatmul.mubr.bf16.gmra.mrb[0].mxu0 %v5527
    %v9554 = vpop.f32.mrb[0].mxu0
    %v9555 = vadd.f32 %v9442, %v9554
    %v9556 = vpop.f32.mrb[0].mxu0
    %v9557 = vadd.f32 %v9444, %v9556
    %v9558 = vpop.f32.mrb[0].mxu0
    %v9559 = vadd.f32 %v9446, %v9558
    %v9560 = vpop.f32.mrb[0].mxu0
    %v9561 = vadd.f32 %v9448, %v9560
    %9562 = vmatprep.mubr.bf16.mxu0 %v5544
    %9563 = vmatmul.mubr.bf16.gmra.mrb[0].mxu0 %v5543
    %v9564 = vpop.f32.mrb[0].mxu0
    %v9565 = vadd.f32 %v9452, %v9564
    %v9566 = vpop.f32.mrb[0].mxu0
    %v9567 = vadd.f32 %v9454, %v9566
    %v9568 = vpop.f32.mrb[0].mxu0
    %v9569 = vadd.f32 %v9456, %v9568
    %v9570 = vpop.f32.mrb[0].mxu0
    %v9571 = vadd.f32 %v9458, %v9570
    %9572 = vmatprep.mubr.bf16.mxu0 %v5560
    %9573 = vmatmul.mubr.bf16.gmra.mrb[0].mxu0 %v5559
    %v9574 = vpop.f32.mrb[0].mxu0
    %v9575 = vadd.f32 %v9462, %v9574
    %v9576 = vpop.f32.mrb[0].mxu0
    %v9577 = vadd.f32 %v9464, %v9576
    %v9578 = vpop.f32.mrb[0].mxu0
    %v9579 = vadd.f32 %v9466, %v9578
    %v9580 = vpop.f32.mrb[0].mxu0
    %v9581 = vadd.f32 %v9468, %v9580
    %9582 = vmatprep.mubr.bf16.mxu0 %v5576
    %9583 = vmatmul.mubr.bf16.gmra.mrb[0].mxu0 %v5575
    %v9584 = vpop.f32.mrb[0].mxu0
    %v9585 = vadd.f32 %v9472, %v9584
    %v9586 = vpop.f32.mrb[0].mxu0
    %v9587 = vadd.f32 %v9474, %v9586
    %v9588 = vpop.f32.mrb[0].mxu0
    %v9589 = vadd.f32 %v9476, %v9588
    %v9590 = vpop.f32.mrb[0].mxu0
    %v9591 = vadd.f32 %v9478, %v9590
    %9592 = vmatprep.mubr.bf16.mxu0 %v5592
    %9593 = vmatmul.mubr.bf16.gmra.mrb[0].mxu0 %v5591
    %v9594 = vpop.f32.mrb[0].mxu0
    %v9595 = vadd.f32 %v9482, %v9594
    %v9596 = vpop.f32.mrb[0].mxu0
    %v9597 = vadd.f32 %v9484, %v9596
    %v9598 = vpop.f32.mrb[0].mxu0
    %v9599 = vadd.f32 %v9486, %v9598
    %v9600 = vpop.f32.mrb[0].mxu0
    %v9601 = vadd.f32 %v9488, %v9600
    %9602 = vmatprep.mubr.bf16.mxu0 %v5608
    %9603 = vmatmul.mubr.bf16.gmra.mrb[0].mxu0 %v5607
    %v9604 = vpop.f32.mrb[0].mxu0
    %v9605 = vadd.f32 %v9492, %v9604
    %v9606 = vpop.f32.mrb[0].mxu0
    %v9607 = vadd.f32 %v9494, %v9606
    %v9608 = vpop.f32.mrb[0].mxu0
    %v9609 = vadd.f32 %v9496, %v9608
    %v9610 = vpop.f32.mrb[0].mxu0
    %v9611 = vadd.f32 %v9498, %v9610
    %9612 = vmatprep.mubr.bf16.mxu0 %v5624
    %9613 = vmatmul.mubr.bf16.gmra.mrb[0].mxu0 %v5623
    %v9614 = vpop.f32.mrb[0].mxu0
    %v9615 = vadd.f32 %v9502, %v9614
    %v9616 = vpop.f32.mrb[0].mxu0
    %v9617 = vadd.f32 %v9504, %v9616
    %v9618 = vpop.f32.mrb[0].mxu0
    %v9619 = vadd.f32 %v9506, %v9618
    %v9620 = vpop.f32.mrb[0].mxu0
    %v9621 = vadd.f32 %v9508, %v9620
    %9622 = vdwg.mxu0
    %9623 = vmatprep.subr.bf16.mxu0 %v7698
    %9624 = vmatpush1.bf16.msra.mxu0 %v7697
    %9625 = vmatprep.subr.bf16.mxu0 %v7702
    %9626 = vmatpush1.bf16.msra.mxu0 %v7701
    %9627 = vmatprep.subr.bf16.mxu0 %v7706
    %9628 = vmatpush1.bf16.msra.mxu0 %v7705
    %9629 = vmatprep.subr.bf16.mxu0 %v7710
    %9630 = vmatpush1.bf16.msra.mxu0 %v7709
    %9631 = vmatprep.subr.bf16.mxu0 %v7714
    %9632 = vmatpush1.bf16.msra.mxu0 %v7713
    %9633 = vmatprep.subr.bf16.mxu0 %v7718
    %9634 = vmatpush1.bf16.msra.mxu0 %v7717
    %9635 = vmatprep.subr.bf16.mxu0 %v7722
    %9636 = vmatpush1.bf16.msra.mxu0 %v7721
    %9637 = vmatprep.subr.bf16.mxu0 %v7726
    %9638 = vmatpush1.bf16.msra.mxu0 %v7725
    %9639 = vmatprep.subr.bf16.mxu0 %v7730
    %9640 = vmatpush1.bf16.msra.mxu0 %v7729
    %9641 = vmatprep.subr.bf16.mxu0 %v7734
    %9642 = vmatpush1.bf16.msra.mxu0 %v7733
    %9643 = vmatprep.subr.bf16.mxu0 %v7738
    %9644 = vmatpush1.bf16.msra.mxu0 %v7737
    %9645 = vmatprep.subr.bf16.mxu0 %v7742
    %9646 = vmatpush1.bf16.msra.mxu0 %v7741
    %9647 = vmatprep.subr.bf16.mxu0 %v7746
    %9648 = vmatpush1.bf16.msra.mxu0 %v7745
    %9649 = vmatprep.subr.bf16.mxu0 %v7750
    %9650 = vmatpush1.bf16.msra.mxu0 %v7749
    %9651 = vmatprep.subr.bf16.mxu0 %v7754
    %9652 = vmatpush1.bf16.msra.mxu0 %v7753
    %9653 = vmatprep.subr.bf16.mxu0 %v7758
    %9654 = vmatpush1.bf16.msra.mxu0 %v7757
    %9655 = vmatprep.mubr.bf16.mxu0 %v5498
    %9656 = vmatmul.mubr.bf16.gmra.mrb[0].mxu0 %v5497
    %v9657 = vpop.f32.mrb[0].mxu0
    %v9658 = vadd.f32 %v6150, %v9657
    %v9659 = vpop.f32.mrb[0].mxu0
    %v9660 = vadd.f32 %v6154, %v9659
    %v9661 = vpop.f32.mrb[0].mxu0
    %v9662 = vadd.f32 %v6150, %v9661
    %v9663 = vpop.f32.mrb[0].mxu0
    %v9664 = vadd.f32 %v6154, %v9663
    %9665 = vmatprep.mubr.bf16.mxu0 %v5514
    %9666 = vmatmul.mubr.bf16.gmra.mrb[0].mxu0 %v5513
    %v9667 = vpop.f32.mrb[0].mxu0
    %v9668 = vadd.f32 %v6150, %v9667
    %v9669 = vpop.f32.mrb[0].mxu0
    %v9670 = vadd.f32 %v6154, %v9669
    %v9671 = vpop.f32.mrb[0].mxu0
    %v9672 = vadd.f32 %v6150, %v9671
    %v9673 = vpop.f32.mrb[0].mxu0
    %v9674 = vadd.f32 %v6154, %v9673
    %9675 = vmatprep.mubr.bf16.mxu0 %v5530
    %9676 = vmatmul.mubr.bf16.gmra.mrb[0].mxu0 %v5529
    %v9677 = vpop.f32.mrb[0].mxu0
    %v9678 = vadd.f32 %v6150, %v9677
    %v9679 = vpop.f32.mrb[0].mxu0
    %v9680 = vadd.f32 %v6154, %v9679
    %v9681 = vpop.f32.mrb[0].mxu0
    %v9682 = vadd.f32 %v6150, %v9681
    %v9683 = vpop.f32.mrb[0].mxu0
    %v9684 = vadd.f32 %v6154, %v9683
    %9685 = vmatprep.mubr.bf16.mxu0 %v5546
    %9686 = vmatmul.mubr.bf16.gmra.mrb[0].mxu0 %v5545
    %v9687 = vpop.f32.mrb[0].mxu0
    %v9688 = vadd.f32 %v6150, %v9687
    %v9689 = vpop.f32.mrb[0].mxu0
    %v9690 = vadd.f32 %v6154, %v9689
    %v9691 = vpop.f32.mrb[0].mxu0
    %v9692 = vadd.f32 %v6150, %v9691
    %v9693 = vpop.f32.mrb[0].mxu0
    %v9694 = vadd.f32 %v6154, %v9693
    %9695 = vmatprep.mubr.bf16.mxu0 %v5562
    %9696 = vmatmul.mubr.bf16.gmra.mrb[0].mxu0 %v5561
    %v9697 = vpop.f32.mrb[0].mxu0
    %v9698 = vadd.f32 %v6150, %v9697
    %v9699 = vpop.f32.mrb[0].mxu0
    %v9700 = vadd.f32 %v6154, %v9699
    %v9701 = vpop.f32.mrb[0].mxu0
    %v9702 = vadd.f32 %v6150, %v9701
    %v9703 = vpop.f32.mrb[0].mxu0
    %v9704 = vadd.f32 %v6154, %v9703
    %9705 = vmatprep.mubr.bf16.mxu0 %v5578
    %9706 = vmatmul.mubr.bf16.gmra.mrb[0].mxu0 %v5577
    %v9707 = vpop.f32.mrb[0].mxu0
    %v9708 = vadd.f32 %v6150, %v9707
    %v9709 = vpop.f32.mrb[0].mxu0
    %v9710 = vadd.f32 %v6154, %v9709
    %v9711 = vpop.f32.mrb[0].mxu0
    %v9712 = vadd.f32 %v6150, %v9711
    %v9713 = vpop.f32.mrb[0].mxu0
    %v9714 = vadd.f32 %v6154, %v9713
    %9715 = vmatprep.mubr.bf16.mxu0 %v5594
    %9716 = vmatmul.mubr.bf16.gmra.mrb[0].mxu0 %v5593
    %v9717 = vpop.f32.mrb[0].mxu0
    %v9718 = vadd.f32 %v6150, %v9717
    %v9719 = vpop.f32.mrb[0].mxu0
    %v9720 = vadd.f32 %v6154, %v9719
    %v9721 = vpop.f32.mrb[0].mxu0
    %v9722 = vadd.f32 %v6150, %v9721
    %v9723 = vpop.f32.mrb[0].mxu0
    %v9724 = vadd.f32 %v6154, %v9723
    %9725 = vmatprep.mubr.bf16.mxu0 %v5610
    %9726 = vmatmul.mubr.bf16.gmra.mrb[0].mxu0 %v5609
    %v9727 = vpop.f32.mrb[0].mxu0
    %v9728 = vadd.f32 %v6150, %v9727
    %v9729 = vpop.f32.mrb[0].mxu0
    %v9730 = vadd.f32 %v6154, %v9729
    %v9731 = vpop.f32.mrb[0].mxu0
    %v9732 = vadd.f32 %v6150, %v9731
    %v9733 = vpop.f32.mrb[0].mxu0
    %v9734 = vadd.f32 %v6154, %v9733
    %9735 = vdwg.mxu0
    %9736 = vmatprep.subr.bf16.mxu0 %v7762
    %9737 = vmatpush1.bf16.msra.mxu0 %v7761
    %9738 = vmatprep.subr.bf16.mxu0 %v7766
    %9739 = vmatpush1.bf16.msra.mxu0 %v7765
    %9740 = vmatprep.subr.bf16.mxu0 %v7770
    %9741 = vmatpush1.bf16.msra.mxu0 %v7769
    %9742 = vmatprep.subr.bf16.mxu0 %v7774
    %9743 = vmatpush1.bf16.msra.mxu0 %v7773
    %9744 = vmatprep.subr.bf16.mxu0 %v7778
    %9745 = vmatpush1.bf16.msra.mxu0 %v7777
    %9746 = vmatprep.subr.bf16.mxu0 %v7782
    %9747 = vmatpush1.bf16.msra.mxu0 %v7781
    %9748 = vmatprep.subr.bf16.mxu0 %v7786
    %9749 = vmatpush1.bf16.msra.mxu0 %v7785
    %9750 = vmatprep.subr.bf16.mxu0 %v7790
    %9751 = vmatpush1.bf16.msra.mxu0 %v7789
    %9752 = vmatprep.subr.bf16.mxu0 %v7794
    %9753 = vmatpush1.bf16.msra.mxu0 %v7793
    %9754 = vmatprep.subr.bf16.mxu0 %v7798
    %9755 = vmatpush1.bf16.msra.mxu0 %v7797
    %9756 = vmatprep.subr.bf16.mxu0 %v7802
    %9757 = vmatpush1.bf16.msra.mxu0 %v7801
    %9758 = vmatprep.subr.bf16.mxu0 %v7806
    %9759 = vmatpush1.bf16.msra.mxu0 %v7805
    %9760 = vmatprep.subr.bf16.mxu0 %v7810
    %9761 = vmatpush1.bf16.msra.mxu0 %v7809
    %9762 = vmatprep.subr.bf16.mxu0 %v7814
    %9763 = vmatpush1.bf16.msra.mxu0 %v7813
    %9764 = vmatprep.subr.bf16.mxu0 %v7818
    %9765 = vmatpush1.bf16.msra.mxu0 %v7817
    %9766 = vmatprep.subr.bf16.mxu0 %v7822
    %9767 = vmatpush1.bf16.msra.mxu0 %v7821
    %9768 = vmatprep.mubr.bf16.mxu0 %v5500
    %9769 = vmatmul.mubr.bf16.gmra.mrb[0].mxu0 %v5499
    %v9770 = vpop.f32.mrb[0].mxu0
    %v9771 = vadd.f32 %v9658, %v9770
    %v9772 = vpop.f32.mrb[0].mxu0
    %v9773 = vadd.f32 %v9660, %v9772
    %v9774 = vpop.f32.mrb[0].mxu0
    %v9775 = vadd.f32 %v9662, %v9774
    %v9776 = vpop.f32.mrb[0].mxu0
    %v9777 = vadd.f32 %v9664, %v9776
    %9778 = vmatprep.mubr.bf16.mxu0 %v5516
    %9779 = vmatmul.mubr.bf16.gmra.mrb[0].mxu0 %v5515
    %v9780 = vpop.f32.mrb[0].mxu0
    %v9781 = vadd.f32 %v9668, %v9780
    %v9782 = vpop.f32.mrb[0].mxu0
    %v9783 = vadd.f32 %v9670, %v9782
    %v9784 = vpop.f32.mrb[0].mxu0
    %v9785 = vadd.f32 %v9672, %v9784
    %v9786 = vpop.f32.mrb[0].mxu0
    %v9787 = vadd.f32 %v9674, %v9786
    %9788 = vmatprep.mubr.bf16.mxu0 %v5532
    %9789 = vmatmul.mubr.bf16.gmra.mrb[0].mxu0 %v5531
    %v9790 = vpop.f32.mrb[0].mxu0
    %v9791 = vadd.f32 %v9678, %v9790
    %v9792 = vpop.f32.mrb[0].mxu0
    %v9793 = vadd.f32 %v9680, %v9792
    %v9794 = vpop.f32.mrb[0].mxu0
    %v9795 = vadd.f32 %v9682, %v9794
    %v9796 = vpop.f32.mrb[0].mxu0
    %v9797 = vadd.f32 %v9684, %v9796
    %9798 = vmatprep.mubr.bf16.mxu0 %v5548
    %9799 = vmatmul.mubr.bf16.gmra.mrb[0].mxu0 %v5547
    %v9800 = vpop.f32.mrb[0].mxu0
    %v9801 = vadd.f32 %v9688, %v9800
    %v9802 = vpop.f32.mrb[0].mxu0
    %v9803 = vadd.f32 %v9690, %v9802
    %v9804 = vpop.f32.mrb[0].mxu0
    %v9805 = vadd.f32 %v9692, %v9804
    %v9806 = vpop.f32.mrb[0].mxu0
    %v9807 = vadd.f32 %v9694, %v9806
    %9808 = vmatprep.mubr.bf16.mxu0 %v5564
    %9809 = vmatmul.mubr.bf16.gmra.mrb[0].mxu0 %v5563
    %v9810 = vpop.f32.mrb[0].mxu0
    %v9811 = vadd.f32 %v9698, %v9810
    %v9812 = vpop.f32.mrb[0].mxu0
    %v9813 = vadd.f32 %v9700, %v9812
    %v9814 = vpop.f32.mrb[0].mxu0
    %v9815 = vadd.f32 %v9702, %v9814
    %v9816 = vpop.f32.mrb[0].mxu0
    %v9817 = vadd.f32 %v9704, %v9816
    %9818 = vmatprep.mubr.bf16.mxu0 %v5580
    %9819 = vmatmul.mubr.bf16.gmra.mrb[0].mxu0 %v5579
    %v9820 = vpop.f32.mrb[0].mxu0
    %v9821 = vadd.f32 %v9708, %v9820
    %v9822 = vpop.f32.mrb[0].mxu0
    %v9823 = vadd.f32 %v9710, %v9822
    %v9824 = vpop.f32.mrb[0].mxu0
    %v9825 = vadd.f32 %v9712, %v9824
    %v9826 = vpop.f32.mrb[0].mxu0
    %v9827 = vadd.f32 %v9714, %v9826
    %9828 = vmatprep.mubr.bf16.mxu0 %v5596
    %9829 = vmatmul.mubr.bf16.gmra.mrb[0].mxu0 %v5595
    %v9830 = vpop.f32.mrb[0].mxu0
    %v9831 = vadd.f32 %v9718, %v9830
    %v9832 = vpop.f32.mrb[0].mxu0
    %v9833 = vadd.f32 %v9720, %v9832
    %v9834 = vpop.f32.mrb[0].mxu0
    %v9835 = vadd.f32 %v9722, %v9834
    %v9836 = vpop.f32.mrb[0].mxu0
    %v9837 = vadd.f32 %v9724, %v9836
    %9838 = vmatprep.mubr.bf16.mxu0 %v5612
    %9839 = vmatmul.mubr.bf16.gmra.mrb[0].mxu0 %v5611
    %v9840 = vpop.f32.mrb[0].mxu0
    %v9841 = vadd.f32 %v9728, %v9840
    %v9842 = vpop.f32.mrb[0].mxu0
    %v9843 = vadd.f32 %v9730, %v9842
    %v9844 = vpop.f32.mrb[0].mxu0
    %v9845 = vadd.f32 %v9732, %v9844
    %v9846 = vpop.f32.mrb[0].mxu0
    %v9847 = vadd.f32 %v9734, %v9846
    %9848 = vdwg.mxu0
    %9849 = vmatprep.subr.bf16.mxu0 %v7826
    %9850 = vmatpush1.bf16.msra.mxu0 %v7825
    %9851 = vmatprep.subr.bf16.mxu0 %v7830
    %9852 = vmatpush1.bf16.msra.mxu0 %v7829
    %9853 = vmatprep.subr.bf16.mxu0 %v7834
    %9854 = vmatpush1.bf16.msra.mxu0 %v7833
    %9855 = vmatprep.subr.bf16.mxu0 %v7838
    %9856 = vmatpush1.bf16.msra.mxu0 %v7837
    %9857 = vmatprep.subr.bf16.mxu0 %v7842
    %9858 = vmatpush1.bf16.msra.mxu0 %v7841
    %9859 = vmatprep.subr.bf16.mxu0 %v7846
    %9860 = vmatpush1.bf16.msra.mxu0 %v7845
    %9861 = vmatprep.subr.bf16.mxu0 %v7850
    %9862 = vmatpush1.bf16.msra.mxu0 %v7849
    %9863 = vmatprep.subr.bf16.mxu0 %v7854
    %9864 = vmatpush1.bf16.msra.mxu0 %v7853
    %9865 = vmatprep.subr.bf16.mxu0 %v7858
    %9866 = vmatpush1.bf16.msra.mxu0 %v7857
    %9867 = vmatprep.subr.bf16.mxu0 %v7862
    %9868 = vmatpush1.bf16.msra.mxu0 %v7861
    %9869 = vmatprep.subr.bf16.mxu0 %v7866
    %9870 = vmatpush1.bf16.msra.mxu0 %v7865
    %9871 = vmatprep.subr.bf16.mxu0 %v7870
    %9872 = vmatpush1.bf16.msra.mxu0 %v7869
    %9873 = vmatprep.subr.bf16.mxu0 %v7874
    %9874 = vmatpush1.bf16.msra.mxu0 %v7873
    %9875 = vmatprep.subr.bf16.mxu0 %v7878
    %9876 = vmatpush1.bf16.msra.mxu0 %v7877
    %9877 = vmatprep.subr.bf16.mxu0 %v7882
    %9878 = vmatpush1.bf16.msra.mxu0 %v7881
    %9879 = vmatprep.subr.bf16.mxu0 %v7886
    %9880 = vmatpush1.bf16.msra.mxu0 %v7885
    %9881 = vmatprep.mubr.bf16.mxu0 %v5502
    %9882 = vmatmul.mubr.bf16.gmra.mrb[0].mxu0 %v5501
    %v9883 = vpop.f32.mrb[0].mxu0
    %v9884 = vadd.f32 %v9771, %v9883
    %v9885 = vpop.f32.mrb[0].mxu0
    %v9886 = vadd.f32 %v9773, %v9885
    %v9887 = vpop.f32.mrb[0].mxu0
    %v9888 = vadd.f32 %v9775, %v9887
    %v9889 = vpop.f32.mrb[0].mxu0
    %v9890 = vadd.f32 %v9777, %v9889
    %9891 = vmatprep.mubr.bf16.mxu0 %v5518
    %9892 = vmatmul.mubr.bf16.gmra.mrb[0].mxu0 %v5517
    %v9893 = vpop.f32.mrb[0].mxu0
    %v9894 = vadd.f32 %v9781, %v9893
    %v9895 = vpop.f32.mrb[0].mxu0
    %v9896 = vadd.f32 %v9783, %v9895
    %v9897 = vpop.f32.mrb[0].mxu0
    %v9898 = vadd.f32 %v9785, %v9897
    %v9899 = vpop.f32.mrb[0].mxu0
    %v9900 = vadd.f32 %v9787, %v9899
    %9901 = vmatprep.mubr.bf16.mxu0 %v5534
    %9902 = vmatmul.mubr.bf16.gmra.mrb[0].mxu0 %v5533
    %v9903 = vpop.f32.mrb[0].mxu0
    %v9904 = vadd.f32 %v9791, %v9903
    %v9905 = vpop.f32.mrb[0].mxu0
    %v9906 = vadd.f32 %v9793, %v9905
    %v9907 = vpop.f32.mrb[0].mxu0
    %v9908 = vadd.f32 %v9795, %v9907
    %v9909 = vpop.f32.mrb[0].mxu0
    %v9910 = vadd.f32 %v9797, %v9909
    %9911 = vmatprep.mubr.bf16.mxu0 %v5550
    %9912 = vmatmul.mubr.bf16.gmra.mrb[0].mxu0 %v5549
    %v9913 = vpop.f32.mrb[0].mxu0
    %v9914 = vadd.f32 %v9801, %v9913
    %v9915 = vpop.f32.mrb[0].mxu0
    %v9916 = vadd.f32 %v9803, %v9915
    %v9917 = vpop.f32.mrb[0].mxu0
    %v9918 = vadd.f32 %v9805, %v9917
    %v9919 = vpop.f32.mrb[0].mxu0
    %v9920 = vadd.f32 %v9807, %v9919
    %9921 = vmatprep.mubr.bf16.mxu0 %v5566
    %9922 = vmatmul.mubr.bf16.gmra.mrb[0].mxu0 %v5565
    %v9923 = vpop.f32.mrb[0].mxu0
    %v9924 = vadd.f32 %v9811, %v9923
    %v9925 = vpop.f32.mrb[0].mxu0
    %v9926 = vadd.f32 %v9813, %v9925
    %v9927 = vpop.f32.mrb[0].mxu0
    %v9928 = vadd.f32 %v9815, %v9927
    %v9929 = vpop.f32.mrb[0].mxu0
    %v9930 = vadd.f32 %v9817, %v9929
    %9931 = vmatprep.mubr.bf16.mxu0 %v5582
    %9932 = vmatmul.mubr.bf16.gmra.mrb[0].mxu0 %v5581
    %v9933 = vpop.f32.mrb[0].mxu0
    %v9934 = vadd.f32 %v9821, %v9933
    %v9935 = vpop.f32.mrb[0].mxu0
    %v9936 = vadd.f32 %v9823, %v9935
    %v9937 = vpop.f32.mrb[0].mxu0
    %v9938 = vadd.f32 %v9825, %v9937
    %v9939 = vpop.f32.mrb[0].mxu0
    %v9940 = vadd.f32 %v9827, %v9939
    %9941 = vmatprep.mubr.bf16.mxu0 %v5598
    %9942 = vmatmul.mubr.bf16.gmra.mrb[0].mxu0 %v5597
    %v9943 = vpop.f32.mrb[0].mxu0
    %v9944 = vadd.f32 %v9831, %v9943
    %v9945 = vpop.f32.mrb[0].mxu0
    %v9946 = vadd.f32 %v9833, %v9945
    %v9947 = vpop.f32.mrb[0].mxu0
    %v9948 = vadd.f32 %v9835, %v9947
    %v9949 = vpop.f32.mrb[0].mxu0
    %v9950 = vadd.f32 %v9837, %v9949
    %9951 = vmatprep.mubr.bf16.mxu0 %v5614
    %9952 = vmatmul.mubr.bf16.gmra.mrb[0].mxu0 %v5613
    %v9953 = vpop.f32.mrb[0].mxu0
    %v9954 = vadd.f32 %v9841, %v9953
    %v9955 = vpop.f32.mrb[0].mxu0
    %v9956 = vadd.f32 %v9843, %v9955
    %v9957 = vpop.f32.mrb[0].mxu0
    %v9958 = vadd.f32 %v9845, %v9957
    %v9959 = vpop.f32.mrb[0].mxu0
    %v9960 = vadd.f32 %v9847, %v9959
    %9961 = vdwg.mxu0
    %9962 = vmatprep.subr.bf16.mxu0 %v7890
    %9963 = vmatpush1.bf16.msra.mxu0 %v7889
    %9964 = vmatprep.subr.bf16.mxu0 %v7894
    %9965 = vmatpush1.bf16.msra.mxu0 %v7893
    %9966 = vmatprep.subr.bf16.mxu0 %v7898
    %9967 = vmatpush1.bf16.msra.mxu0 %v7897
    %9968 = vmatprep.subr.bf16.mxu0 %v7902
    %9969 = vmatpush1.bf16.msra.mxu0 %v7901
    %9970 = vmatprep.subr.bf16.mxu0 %v7906
    %9971 = vmatpush1.bf16.msra.mxu0 %v7905
    %9972 = vmatprep.subr.bf16.mxu0 %v7910
    %9973 = vmatpush1.bf16.msra.mxu0 %v7909
    %9974 = vmatprep.subr.bf16.mxu0 %v7914
    %9975 = vmatpush1.bf16.msra.mxu0 %v7913
    %9976 = vmatprep.subr.bf16.mxu0 %v7918
    %9977 = vmatpush1.bf16.msra.mxu0 %v7917
    %9978 = vmatprep.subr.bf16.mxu0 %v7922
    %9979 = vmatpush1.bf16.msra.mxu0 %v7921
    %9980 = vmatprep.subr.bf16.mxu0 %v7926
    %9981 = vmatpush1.bf16.msra.mxu0 %v7925
    %9982 = vmatprep.subr.bf16.mxu0 %v7930
    %9983 = vmatpush1.bf16.msra.mxu0 %v7929
    %9984 = vmatprep.subr.bf16.mxu0 %v7934
    %9985 = vmatpush1.bf16.msra.mxu0 %v7933
    %9986 = vmatprep.subr.bf16.mxu0 %v7938
    %9987 = vmatpush1.bf16.msra.mxu0 %v7937
    %9988 = vmatprep.subr.bf16.mxu0 %v7942
    %9989 = vmatpush1.bf16.msra.mxu0 %v7941
    %9990 = vmatprep.subr.bf16.mxu0 %v7946
    %9991 = vmatpush1.bf16.msra.mxu0 %v7945
    %9992 = vmatprep.subr.bf16.mxu0 %v7950
    %9993 = vmatpush1.bf16.msra.mxu0 %v7949
    %9994 = vmatprep.mubr.bf16.mxu0 %v5504
    %9995 = vmatmul.mubr.bf16.gmra.mrb[0].mxu0 %v5503
    %v9996 = vpop.f32.mrb[0].mxu0
    %v9997 = vadd.f32 %v9884, %v9996
    %v9998 = vpop.f32.mrb[0].mxu0
    %v9999 = vadd.f32 %v9886, %v9998
    %v10000 = vpop.f32.mrb[0].mxu0
    %v10001 = vadd.f32 %v9888, %v10000
    %v10002 = vpop.f32.mrb[0].mxu0
    %v10003 = vadd.f32 %v9890, %v10002
    %10004 = vmatprep.mubr.bf16.mxu0 %v5520
    %10005 = vmatmul.mubr.bf16.gmra.mrb[0].mxu0 %v5519
    %v10006 = vpop.f32.mrb[0].mxu0
    %v10007 = vadd.f32 %v9894, %v10006
    %v10008 = vpop.f32.mrb[0].mxu0
    %v10009 = vadd.f32 %v9896, %v10008
    %v10010 = vpop.f32.mrb[0].mxu0
    %v10011 = vadd.f32 %v9898, %v10010
    %v10012 = vpop.f32.mrb[0].mxu0
    %v10013 = vadd.f32 %v9900, %v10012
    %10014 = vmatprep.mubr.bf16.mxu0 %v5536
    %10015 = vmatmul.mubr.bf16.gmra.mrb[0].mxu0 %v5535
    %v10016 = vpop.f32.mrb[0].mxu0
    %v10017 = vadd.f32 %v9904, %v10016
    %v10018 = vpop.f32.mrb[0].mxu0
    %v10019 = vadd.f32 %v9906, %v10018
    %v10020 = vpop.f32.mrb[0].mxu0
    %v10021 = vadd.f32 %v9908, %v10020
    %v10022 = vpop.f32.mrb[0].mxu0
    %v10023 = vadd.f32 %v9910, %v10022
    %10024 = vmatprep.mubr.bf16.mxu0 %v5552
    %10025 = vmatmul.mubr.bf16.gmra.mrb[0].mxu0 %v5551
    %v10026 = vpop.f32.mrb[0].mxu0
    %v10027 = vadd.f32 %v9914, %v10026
    %v10028 = vpop.f32.mrb[0].mxu0
    %v10029 = vadd.f32 %v9916, %v10028
    %v10030 = vpop.f32.mrb[0].mxu0
    %v10031 = vadd.f32 %v9918, %v10030
    %v10032 = vpop.f32.mrb[0].mxu0
    %v10033 = vadd.f32 %v9920, %v10032
    %10034 = vmatprep.mubr.bf16.mxu0 %v5568
    %10035 = vmatmul.mubr.bf16.gmra.mrb[0].mxu0 %v5567
    %v10036 = vpop.f32.mrb[0].mxu0
    %v10037 = vadd.f32 %v9924, %v10036
    %v10038 = vpop.f32.mrb[0].mxu0
    %v10039 = vadd.f32 %v9926, %v10038
    %v10040 = vpop.f32.mrb[0].mxu0
    %v10041 = vadd.f32 %v9928, %v10040
    %v10042 = vpop.f32.mrb[0].mxu0
    %v10043 = vadd.f32 %v9930, %v10042
    %10044 = vmatprep.mubr.bf16.mxu0 %v5584
    %10045 = vmatmul.mubr.bf16.gmra.mrb[0].mxu0 %v5583
    %v10046 = vpop.f32.mrb[0].mxu0
    %v10047 = vadd.f32 %v9934, %v10046
    %v10048 = vpop.f32.mrb[0].mxu0
    %v10049 = vadd.f32 %v9936, %v10048
    %v10050 = vpop.f32.mrb[0].mxu0
    %v10051 = vadd.f32 %v9938, %v10050
    %v10052 = vpop.f32.mrb[0].mxu0
    %v10053 = vadd.f32 %v9940, %v10052
    %10054 = vmatprep.mubr.bf16.mxu0 %v5600
    %10055 = vmatmul.mubr.bf16.gmra.mrb[0].mxu0 %v5599
    %v10056 = vpop.f32.mrb[0].mxu0
    %v10057 = vadd.f32 %v9944, %v10056
    %v10058 = vpop.f32.mrb[0].mxu0
    %v10059 = vadd.f32 %v9946, %v10058
    %v10060 = vpop.f32.mrb[0].mxu0
    %v10061 = vadd.f32 %v9948, %v10060
    %v10062 = vpop.f32.mrb[0].mxu0
    %v10063 = vadd.f32 %v9950, %v10062
    %10064 = vmatprep.mubr.bf16.mxu0 %v5616
    %10065 = vmatmul.mubr.bf16.gmra.mrb[0].mxu0 %v5615
    %v10066 = vpop.f32.mrb[0].mxu0
    %v10067 = vadd.f32 %v9954, %v10066
    %v10068 = vpop.f32.mrb[0].mxu0
    %v10069 = vadd.f32 %v9956, %v10068
    %v10070 = vpop.f32.mrb[0].mxu0
    %v10071 = vadd.f32 %v9958, %v10070
    %v10072 = vpop.f32.mrb[0].mxu0
    %v10073 = vadd.f32 %v9960, %v10072
    %10074 = vdwg.mxu0
    %10075 = vmatprep.subr.bf16.mxu0 %v7954
    %10076 = vmatpush1.bf16.msra.mxu0 %v7953
    %10077 = vmatprep.subr.bf16.mxu0 %v7958
    %10078 = vmatpush1.bf16.msra.mxu0 %v7957
    %10079 = vmatprep.subr.bf16.mxu0 %v7962
    %10080 = vmatpush1.bf16.msra.mxu0 %v7961
    %10081 = vmatprep.subr.bf16.mxu0 %v7966
    %10082 = vmatpush1.bf16.msra.mxu0 %v7965
    %10083 = vmatprep.subr.bf16.mxu0 %v7970
    %10084 = vmatpush1.bf16.msra.mxu0 %v7969
    %10085 = vmatprep.subr.bf16.mxu0 %v7974
    %10086 = vmatpush1.bf16.msra.mxu0 %v7973
    %10087 = vmatprep.subr.bf16.mxu0 %v7978
    %10088 = vmatpush1.bf16.msra.mxu0 %v7977
    %10089 = vmatprep.subr.bf16.mxu0 %v7982
    %10090 = vmatpush1.bf16.msra.mxu0 %v7981
    %10091 = vmatprep.subr.bf16.mxu0 %v7986
    %10092 = vmatpush1.bf16.msra.mxu0 %v7985
    %10093 = vmatprep.subr.bf16.mxu0 %v7990
    %10094 = vmatpush1.bf16.msra.mxu0 %v7989
    %10095 = vmatprep.subr.bf16.mxu0 %v7994
    %10096 = vmatpush1.bf16.msra.mxu0 %v7993
    %10097 = vmatprep.subr.bf16.mxu0 %v7998
    %10098 = vmatpush1.bf16.msra.mxu0 %v7997
    %10099 = vmatprep.subr.bf16.mxu0 %v8002
    %10100 = vmatpush1.bf16.msra.mxu0 %v8001
    %10101 = vmatprep.subr.bf16.mxu0 %v8006
    %10102 = vmatpush1.bf16.msra.mxu0 %v8005
    %10103 = vmatprep.subr.bf16.mxu0 %v8010
    %10104 = vmatpush1.bf16.msra.mxu0 %v8009
    %10105 = vmatprep.subr.bf16.mxu0 %v8014
    %10106 = vmatpush1.bf16.msra.mxu0 %v8013
    %10107 = vmatprep.mubr.bf16.mxu0 %v5506
    %10108 = vmatmul.mubr.bf16.gmra.mrb[0].mxu0 %v5505
    %v10109 = vpop.f32.mrb[0].mxu0
    %v10110 = vadd.f32 %v9997, %v10109
    %v10111 = vpop.f32.mrb[0].mxu0
    %v10112 = vadd.f32 %v9999, %v10111
    %v10113 = vpop.f32.mrb[0].mxu0
    %v10114 = vadd.f32 %v10001, %v10113
    %v10115 = vpop.f32.mrb[0].mxu0
    %v10116 = vadd.f32 %v10003, %v10115
    %10117 = vmatprep.mubr.bf16.mxu0 %v5522
    %10118 = vmatmul.mubr.bf16.gmra.mrb[0].mxu0 %v5521
    %v10119 = vpop.f32.mrb[0].mxu0
    %v10120 = vadd.f32 %v10007, %v10119
    %v10121 = vpop.f32.mrb[0].mxu0
    %v10122 = vadd.f32 %v10009, %v10121
    %v10123 = vpop.f32.mrb[0].mxu0
    %v10124 = vadd.f32 %v10011, %v10123
    %v10125 = vpop.f32.mrb[0].mxu0
    %v10126 = vadd.f32 %v10013, %v10125
    %10127 = vmatprep.mubr.bf16.mxu0 %v5538
    %10128 = vmatmul.mubr.bf16.gmra.mrb[0].mxu0 %v5537
    %v10129 = vpop.f32.mrb[0].mxu0
    %v10130 = vadd.f32 %v10017, %v10129
    %v10131 = vpop.f32.mrb[0].mxu0
    %v10132 = vadd.f32 %v10019, %v10131
    %v10133 = vpop.f32.mrb[0].mxu0
    %v10134 = vadd.f32 %v10021, %v10133
    %v10135 = vpop.f32.mrb[0].mxu0
    %v10136 = vadd.f32 %v10023, %v10135
    %10137 = vmatprep.mubr.bf16.mxu0 %v5554
    %10138 = vmatmul.mubr.bf16.gmra.mrb[0].mxu0 %v5553
    %v10139 = vpop.f32.mrb[0].mxu0
    %v10140 = vadd.f32 %v10027, %v10139
    %v10141 = vpop.f32.mrb[0].mxu0
    %v10142 = vadd.f32 %v10029, %v10141
    %v10143 = vpop.f32.mrb[0].mxu0
    %v10144 = vadd.f32 %v10031, %v10143
    %v10145 = vpop.f32.mrb[0].mxu0
    %v10146 = vadd.f32 %v10033, %v10145
    %10147 = vmatprep.mubr.bf16.mxu0 %v5570
    %10148 = vmatmul.mubr.bf16.gmra.mrb[0].mxu0 %v5569
    %v10149 = vpop.f32.mrb[0].mxu0
    %v10150 = vadd.f32 %v10037, %v10149
    %v10151 = vpop.f32.mrb[0].mxu0
    %v10152 = vadd.f32 %v10039, %v10151
    %v10153 = vpop.f32.mrb[0].mxu0
    %v10154 = vadd.f32 %v10041, %v10153
    %v10155 = vpop.f32.mrb[0].mxu0
    %v10156 = vadd.f32 %v10043, %v10155
    %10157 = vmatprep.mubr.bf16.mxu0 %v5586
    %10158 = vmatmul.mubr.bf16.gmra.mrb[0].mxu0 %v5585
    %v10159 = vpop.f32.mrb[0].mxu0
    %v10160 = vadd.f32 %v10047, %v10159
    %v10161 = vpop.f32.mrb[0].mxu0
    %v10162 = vadd.f32 %v10049, %v10161
    %v10163 = vpop.f32.mrb[0].mxu0
    %v10164 = vadd.f32 %v10051, %v10163
    %v10165 = vpop.f32.mrb[0].mxu0
    %v10166 = vadd.f32 %v10053, %v10165
    %10167 = vmatprep.mubr.bf16.mxu0 %v5602
    %10168 = vmatmul.mubr.bf16.gmra.mrb[0].mxu0 %v5601
    %v10169 = vpop.f32.mrb[0].mxu0
    %v10170 = vadd.f32 %v10057, %v10169
    %v10171 = vpop.f32.mrb[0].mxu0
    %v10172 = vadd.f32 %v10059, %v10171
    %v10173 = vpop.f32.mrb[0].mxu0
    %v10174 = vadd.f32 %v10061, %v10173
    %v10175 = vpop.f32.mrb[0].mxu0
    %v10176 = vadd.f32 %v10063, %v10175
    %10177 = vmatprep.mubr.bf16.mxu0 %v5618
    %10178 = vmatmul.mubr.bf16.gmra.mrb[0].mxu0 %v5617
    %v10179 = vpop.f32.mrb[0].mxu0
    %v10180 = vadd.f32 %v10067, %v10179
    %v10181 = vpop.f32.mrb[0].mxu0
    %v10182 = vadd.f32 %v10069, %v10181
    %v10183 = vpop.f32.mrb[0].mxu0
    %v10184 = vadd.f32 %v10071, %v10183
    %v10185 = vpop.f32.mrb[0].mxu0
    %v10186 = vadd.f32 %v10073, %v10185
    %10187 = vdwg.mxu0
    %10188 = vmatprep.subr.bf16.mxu0 %v8018
    %10189 = vmatpush1.bf16.msra.mxu0 %v8017
    %10190 = vmatprep.subr.bf16.mxu0 %v8022
    %10191 = vmatpush1.bf16.msra.mxu0 %v8021
    %10192 = vmatprep.subr.bf16.mxu0 %v8026
    %10193 = vmatpush1.bf16.msra.mxu0 %v8025
    %10194 = vmatprep.subr.bf16.mxu0 %v8030
    %10195 = vmatpush1.bf16.msra.mxu0 %v8029
    %10196 = vmatprep.subr.bf16.mxu0 %v8034
    %10197 = vmatpush1.bf16.msra.mxu0 %v8033
    %10198 = vmatprep.subr.bf16.mxu0 %v8038
    %10199 = vmatpush1.bf16.msra.mxu0 %v8037
    %10200 = vmatprep.subr.bf16.mxu0 %v8042
    %10201 = vmatpush1.bf16.msra.mxu0 %v8041
    %10202 = vmatprep.subr.bf16.mxu0 %v8046
    %10203 = vmatpush1.bf16.msra.mxu0 %v8045
    %10204 = vmatprep.subr.bf16.mxu0 %v8050
    %10205 = vmatpush1.bf16.msra.mxu0 %v8049
    %10206 = vmatprep.subr.bf16.mxu0 %v8054
    %10207 = vmatpush1.bf16.msra.mxu0 %v8053
    %10208 = vmatprep.subr.bf16.mxu0 %v8058
    %10209 = vmatpush1.bf16.msra.mxu0 %v8057
    %10210 = vmatprep.subr.bf16.mxu0 %v8062
    %10211 = vmatpush1.bf16.msra.mxu0 %v8061
    %10212 = vmatprep.subr.bf16.mxu0 %v8066
    %10213 = vmatpush1.bf16.msra.mxu0 %v8065
    %10214 = vmatprep.subr.bf16.mxu0 %v8070
    %10215 = vmatpush1.bf16.msra.mxu0 %v8069
    %10216 = vmatprep.subr.bf16.mxu0 %v8074
    %10217 = vmatpush1.bf16.msra.mxu0 %v8073
    %10218 = vmatprep.subr.bf16.mxu0 %v8078
    %10219 = vmatpush1.bf16.msra.mxu0 %v8077
    %10220 = vmatprep.mubr.bf16.mxu0 %v5508
    %10221 = vmatmul.mubr.bf16.gmra.mrb[0].mxu0 %v5507
    %v10222 = vpop.f32.mrb[0].mxu0
    %v10223 = vadd.f32 %v10110, %v10222
    %v10224 = vpop.f32.mrb[0].mxu0
    %v10225 = vadd.f32 %v10112, %v10224
    %v10226 = vpop.f32.mrb[0].mxu0
    %v10227 = vadd.f32 %v10114, %v10226
    %v10228 = vpop.f32.mrb[0].mxu0
    %v10229 = vadd.f32 %v10116, %v10228
    %10230 = vmatprep.mubr.bf16.mxu0 %v5524
    %10231 = vmatmul.mubr.bf16.gmra.mrb[0].mxu0 %v5523
    %v10232 = vpop.f32.mrb[0].mxu0
    %v10233 = vadd.f32 %v10120, %v10232
    %v10234 = vpop.f32.mrb[0].mxu0
    %v10235 = vadd.f32 %v10122, %v10234
    %v10236 = vpop.f32.mrb[0].mxu0
    %v10237 = vadd.f32 %v10124, %v10236
    %v10238 = vpop.f32.mrb[0].mxu0
    %v10239 = vadd.f32 %v10126, %v10238
    %10240 = vmatprep.mubr.bf16.mxu0 %v5540
    %10241 = vmatmul.mubr.bf16.gmra.mrb[0].mxu0 %v5539
    %v10242 = vpop.f32.mrb[0].mxu0
    %v10243 = vadd.f32 %v10130, %v10242
    %v10244 = vpop.f32.mrb[0].mxu0
    %v10245 = vadd.f32 %v10132, %v10244
    %v10246 = vpop.f32.mrb[0].mxu0
    %v10247 = vadd.f32 %v10134, %v10246
    %v10248 = vpop.f32.mrb[0].mxu0
    %v10249 = vadd.f32 %v10136, %v10248
    %10250 = vmatprep.mubr.bf16.mxu0 %v5556
    %10251 = vmatmul.mubr.bf16.gmra.mrb[0].mxu0 %v5555
    %v10252 = vpop.f32.mrb[0].mxu0
    %v10253 = vadd.f32 %v10140, %v10252
    %v10254 = vpop.f32.mrb[0].mxu0
    %v10255 = vadd.f32 %v10142, %v10254
    %v10256 = vpop.f32.mrb[0].mxu0
    %v10257 = vadd.f32 %v10144, %v10256
    %v10258 = vpop.f32.mrb[0].mxu0
    %v10259 = vadd.f32 %v10146, %v10258
    %10260 = vmatprep.mubr.bf16.mxu0 %v5572
    %10261 = vmatmul.mubr.bf16.gmra.mrb[0].mxu0 %v5571
    %v10262 = vpop.f32.mrb[0].mxu0
    %v10263 = vadd.f32 %v10150, %v10262
    %v10264 = vpop.f32.mrb[0].mxu0
    %v10265 = vadd.f32 %v10152, %v10264
    %v10266 = vpop.f32.mrb[0].mxu0
    %v10267 = vadd.f32 %v10154, %v10266
    %v10268 = vpop.f32.mrb[0].mxu0
    %v10269 = vadd.f32 %v10156, %v10268
    %10270 = vmatprep.mubr.bf16.mxu0 %v5588
    %10271 = vmatmul.mubr.bf16.gmra.mrb[0].mxu0 %v5587
    %v10272 = vpop.f32.mrb[0].mxu0
    %v10273 = vadd.f32 %v10160, %v10272
    %v10274 = vpop.f32.mrb[0].mxu0
    %v10275 = vadd.f32 %v10162, %v10274
    %v10276 = vpop.f32.mrb[0].mxu0
    %v10277 = vadd.f32 %v10164, %v10276
    %v10278 = vpop.f32.mrb[0].mxu0
    %v10279 = vadd.f32 %v10166, %v10278
    %10280 = vmatprep.mubr.bf16.mxu0 %v5604
    %10281 = vmatmul.mubr.bf16.gmra.mrb[0].mxu0 %v5603
    %v10282 = vpop.f32.mrb[0].mxu0
    %v10283 = vadd.f32 %v10170, %v10282
    %v10284 = vpop.f32.mrb[0].mxu0
    %v10285 = vadd.f32 %v10172, %v10284
    %v10286 = vpop.f32.mrb[0].mxu0
    %v10287 = vadd.f32 %v10174, %v10286
    %v10288 = vpop.f32.mrb[0].mxu0
    %v10289 = vadd.f32 %v10176, %v10288
    %10290 = vmatprep.mubr.bf16.mxu0 %v5620
    %10291 = vmatmul.mubr.bf16.gmra.mrb[0].mxu0 %v5619
    %v10292 = vpop.f32.mrb[0].mxu0
    %v10293 = vadd.f32 %v10180, %v10292
    %v10294 = vpop.f32.mrb[0].mxu0
    %v10295 = vadd.f32 %v10182, %v10294
    %v10296 = vpop.f32.mrb[0].mxu0
    %v10297 = vadd.f32 %v10184, %v10296
    %v10298 = vpop.f32.mrb[0].mxu0
    %v10299 = vadd.f32 %v10186, %v10298
    %10300 = vdwg.mxu0
    %10301 = vmatprep.subr.bf16.mxu0 %v8082
    %10302 = vmatpush1.bf16.msra.mxu0 %v8081
    %10303 = vmatprep.subr.bf16.mxu0 %v8086
    %10304 = vmatpush1.bf16.msra.mxu0 %v8085
    %10305 = vmatprep.subr.bf16.mxu0 %v8090
    %10306 = vmatpush1.bf16.msra.mxu0 %v8089
    %10307 = vmatprep.subr.bf16.mxu0 %v8094
    %10308 = vmatpush1.bf16.msra.mxu0 %v8093
    %10309 = vmatprep.subr.bf16.mxu0 %v8098
    %10310 = vmatpush1.bf16.msra.mxu0 %v8097
    %10311 = vmatprep.subr.bf16.mxu0 %v8102
    %10312 = vmatpush1.bf16.msra.mxu0 %v8101
    %10313 = vmatprep.subr.bf16.mxu0 %v8106
    %10314 = vmatpush1.bf16.msra.mxu0 %v8105
    %10315 = vmatprep.subr.bf16.mxu0 %v8110
    %10316 = vmatpush1.bf16.msra.mxu0 %v8109
    %10317 = vmatprep.subr.bf16.mxu0 %v8114
    %10318 = vmatpush1.bf16.msra.mxu0 %v8113
    %10319 = vmatprep.subr.bf16.mxu0 %v8118
    %10320 = vmatpush1.bf16.msra.mxu0 %v8117
    %10321 = vmatprep.subr.bf16.mxu0 %v8122
    %10322 = vmatpush1.bf16.msra.mxu0 %v8121
    %10323 = vmatprep.subr.bf16.mxu0 %v8126
    %10324 = vmatpush1.bf16.msra.mxu0 %v8125
    %10325 = vmatprep.subr.bf16.mxu0 %v8130
    %10326 = vmatpush1.bf16.msra.mxu0 %v8129
    %10327 = vmatprep.subr.bf16.mxu0 %v8134
    %10328 = vmatpush1.bf16.msra.mxu0 %v8133
    %10329 = vmatprep.subr.bf16.mxu0 %v8138
    %10330 = vmatpush1.bf16.msra.mxu0 %v8137
    %10331 = vmatprep.subr.bf16.mxu0 %v8142
    %10332 = vmatpush1.bf16.msra.mxu0 %v8141
    %10333 = vmatprep.mubr.bf16.mxu0 %v5510
    %10334 = vmatmul.mubr.bf16.gmra.mrb[0].mxu0 %v5509
    %v10335 = vpop.f32.mrb[0].mxu0
    %v10336 = vadd.f32 %v10223, %v10335
    %v10337 = vpop.f32.mrb[0].mxu0
    %v10338 = vadd.f32 %v10225, %v10337
    %v10339 = vpop.f32.mrb[0].mxu0
    %v10340 = vadd.f32 %v10227, %v10339
    %v10341 = vpop.f32.mrb[0].mxu0
    %v10342 = vadd.f32 %v10229, %v10341
    %10343 = vmatprep.mubr.bf16.mxu0 %v5526
    %10344 = vmatmul.mubr.bf16.gmra.mrb[0].mxu0 %v5525
    %v10345 = vpop.f32.mrb[0].mxu0
    %v10346 = vadd.f32 %v10233, %v10345
    %v10347 = vpop.f32.mrb[0].mxu0
    %v10348 = vadd.f32 %v10235, %v10347
    %v10349 = vpop.f32.mrb[0].mxu0
    %v10350 = vadd.f32 %v10237, %v10349
    %v10351 = vpop.f32.mrb[0].mxu0
    %v10352 = vadd.f32 %v10239, %v10351
    %10353 = vmatprep.mubr.bf16.mxu0 %v5542
    %10354 = vmatmul.mubr.bf16.gmra.mrb[0].mxu0 %v5541
    %v10355 = vpop.f32.mrb[0].mxu0
    %v10356 = vadd.f32 %v10243, %v10355
    %v10357 = vpop.f32.mrb[0].mxu0
    %v10358 = vadd.f32 %v10245, %v10357
    %v10359 = vpop.f32.mrb[0].mxu0
    %v10360 = vadd.f32 %v10247, %v10359
    %v10361 = vpop.f32.mrb[0].mxu0
    %v10362 = vadd.f32 %v10249, %v10361
    %10363 = vmatprep.mubr.bf16.mxu0 %v5558
    %10364 = vmatmul.mubr.bf16.gmra.mrb[0].mxu0 %v5557
    %v10365 = vpop.f32.mrb[0].mxu0
    %v10366 = vadd.f32 %v10253, %v10365
    %v10367 = vpop.f32.mrb[0].mxu0
    %v10368 = vadd.f32 %v10255, %v10367
    %v10369 = vpop.f32.mrb[0].mxu0
    %v10370 = vadd.f32 %v10257, %v10369
    %v10371 = vpop.f32.mrb[0].mxu0
    %v10372 = vadd.f32 %v10259, %v10371
    %10373 = vmatprep.mubr.bf16.mxu0 %v5574
    %10374 = vmatmul.mubr.bf16.gmra.mrb[0].mxu0 %v5573
    %v10375 = vpop.f32.mrb[0].mxu0
    %v10376 = vadd.f32 %v10263, %v10375
    %v10377 = vpop.f32.mrb[0].mxu0
    %v10378 = vadd.f32 %v10265, %v10377
    %v10379 = vpop.f32.mrb[0].mxu0
    %v10380 = vadd.f32 %v10267, %v10379
    %v10381 = vpop.f32.mrb[0].mxu0
    %v10382 = vadd.f32 %v10269, %v10381
    %10383 = vmatprep.mubr.bf16.mxu0 %v5590
    %10384 = vmatmul.mubr.bf16.gmra.mrb[0].mxu0 %v5589
    %v10385 = vpop.f32.mrb[0].mxu0
    %v10386 = vadd.f32 %v10273, %v10385
    %v10387 = vpop.f32.mrb[0].mxu0
    %v10388 = vadd.f32 %v10275, %v10387
    %v10389 = vpop.f32.mrb[0].mxu0
    %v10390 = vadd.f32 %v10277, %v10389
    %v10391 = vpop.f32.mrb[0].mxu0
    %v10392 = vadd.f32 %v10279, %v10391
    %10393 = vmatprep.mubr.bf16.mxu0 %v5606
    %10394 = vmatmul.mubr.bf16.gmra.mrb[0].mxu0 %v5605
    %v10395 = vpop.f32.mrb[0].mxu0
    %v10396 = vadd.f32 %v10283, %v10395
    %v10397 = vpop.f32.mrb[0].mxu0
    %v10398 = vadd.f32 %v10285, %v10397
    %v10399 = vpop.f32.mrb[0].mxu0
    %v10400 = vadd.f32 %v10287, %v10399
    %v10401 = vpop.f32.mrb[0].mxu0
    %v10402 = vadd.f32 %v10289, %v10401
    %10403 = vmatprep.mubr.bf16.mxu0 %v5622
    %10404 = vmatmul.mubr.bf16.gmra.mrb[0].mxu0 %v5621
    %v10405 = vpop.f32.mrb[0].mxu0
    %v10406 = vadd.f32 %v10293, %v10405
    %v10407 = vpop.f32.mrb[0].mxu0
    %v10408 = vadd.f32 %v10295, %v10407
    %v10409 = vpop.f32.mrb[0].mxu0
    %v10410 = vadd.f32 %v10297, %v10409
    %v10411 = vpop.f32.mrb[0].mxu0
    %v10412 = vadd.f32 %v10299, %v10411
    %10413 = vdwg.mxu0
    %10414 = vmatprep.subr.bf16.mxu0 %v8146
    %10415 = vmatpush1.bf16.msra.mxu0 %v8145
    %10416 = vmatprep.subr.bf16.mxu0 %v8150
    %10417 = vmatpush1.bf16.msra.mxu0 %v8149
    %10418 = vmatprep.subr.bf16.mxu0 %v8154
    %10419 = vmatpush1.bf16.msra.mxu0 %v8153
    %10420 = vmatprep.subr.bf16.mxu0 %v8158
    %10421 = vmatpush1.bf16.msra.mxu0 %v8157
    %10422 = vmatprep.subr.bf16.mxu0 %v8162
    %10423 = vmatpush1.bf16.msra.mxu0 %v8161
    %10424 = vmatprep.subr.bf16.mxu0 %v8166
    %10425 = vmatpush1.bf16.msra.mxu0 %v8165
    %10426 = vmatprep.subr.bf16.mxu0 %v8170
    %10427 = vmatpush1.bf16.msra.mxu0 %v8169
    %10428 = vmatprep.subr.bf16.mxu0 %v8174
    %10429 = vmatpush1.bf16.msra.mxu0 %v8173
    %10430 = vmatprep.subr.bf16.mxu0 %v8178
    %10431 = vmatpush1.bf16.msra.mxu0 %v8177
    %10432 = vmatprep.subr.bf16.mxu0 %v8182
    %10433 = vmatpush1.bf16.msra.mxu0 %v8181
    %10434 = vmatprep.subr.bf16.mxu0 %v8186
    %10435 = vmatpush1.bf16.msra.mxu0 %v8185
    %10436 = vmatprep.subr.bf16.mxu0 %v8190
    %10437 = vmatpush1.bf16.msra.mxu0 %v8189
    %10438 = vmatprep.subr.bf16.mxu0 %v8194
    %10439 = vmatpush1.bf16.msra.mxu0 %v8193
    %10440 = vmatprep.subr.bf16.mxu0 %v8198
    %10441 = vmatpush1.bf16.msra.mxu0 %v8197
    %10442 = vmatprep.subr.bf16.mxu0 %v8202
    %10443 = vmatpush1.bf16.msra.mxu0 %v8201
    %10444 = vmatprep.subr.bf16.mxu0 %v8206
    %10445 = vmatpush1.bf16.msra.mxu0 %v8205
    %10446 = vmatprep.mubr.bf16.mxu0 %v5512
    %10447 = vmatmul.mubr.bf16.gmra.mrb[0].mxu0 %v5511
    %v10448 = vpop.f32.mrb[0].mxu0
    %v10449 = vadd.f32 %v10336, %v10448
    %v10450 = vpop.f32.mrb[0].mxu0
    %v10451 = vadd.f32 %v10338, %v10450
    %v10452 = vpop.f32.mrb[0].mxu0
    %v10453 = vadd.f32 %v10340, %v10452
    %v10454 = vpop.f32.mrb[0].mxu0
    %v10455 = vadd.f32 %v10342, %v10454
    %10456 = vmatprep.mubr.bf16.mxu0 %v5528
    %10457 = vmatmul.mubr.bf16.gmra.mrb[0].mxu0 %v5527
    %v10458 = vpop.f32.mrb[0].mxu0
    %v10459 = vadd.f32 %v10346, %v10458
    %v10460 = vpop.f32.mrb[0].mxu0
    %v10461 = vadd.f32 %v10348, %v10460
    %v10462 = vpop.f32.mrb[0].mxu0
    %v10463 = vadd.f32 %v10350, %v10462
    %v10464 = vpop.f32.mrb[0].mxu0
    %v10465 = vadd.f32 %v10352, %v10464
    %10466 = vmatprep.mubr.bf16.mxu0 %v5544
    %10467 = vmatmul.mubr.bf16.gmra.mrb[0].mxu0 %v5543
    %v10468 = vpop.f32.mrb[0].mxu0
    %v10469 = vadd.f32 %v10356, %v10468
    %v10470 = vpop.f32.mrb[0].mxu0
    %v10471 = vadd.f32 %v10358, %v10470
    %v10472 = vpop.f32.mrb[0].mxu0
    %v10473 = vadd.f32 %v10360, %v10472
    %v10474 = vpop.f32.mrb[0].mxu0
    %v10475 = vadd.f32 %v10362, %v10474
    %10476 = vmatprep.mubr.bf16.mxu0 %v5560
    %10477 = vmatmul.mubr.bf16.gmra.mrb[0].mxu0 %v5559
    %v10478 = vpop.f32.mrb[0].mxu0
    %v10479 = vadd.f32 %v10366, %v10478
    %v10480 = vpop.f32.mrb[0].mxu0
    %v10481 = vadd.f32 %v10368, %v10480
    %v10482 = vpop.f32.mrb[0].mxu0
    %v10483 = vadd.f32 %v10370, %v10482
    %v10484 = vpop.f32.mrb[0].mxu0
    %v10485 = vadd.f32 %v10372, %v10484
    %10486 = vmatprep.mubr.bf16.mxu0 %v5576
    %10487 = vmatmul.mubr.bf16.gmra.mrb[0].mxu0 %v5575
    %v10488 = vpop.f32.mrb[0].mxu0
    %v10489 = vadd.f32 %v10376, %v10488
    %v10490 = vpop.f32.mrb[0].mxu0
    %v10491 = vadd.f32 %v10378, %v10490
    %v10492 = vpop.f32.mrb[0].mxu0
    %v10493 = vadd.f32 %v10380, %v10492
    %v10494 = vpop.f32.mrb[0].mxu0
    %v10495 = vadd.f32 %v10382, %v10494
    %10496 = vmatprep.mubr.bf16.mxu0 %v5592
    %10497 = vmatmul.mubr.bf16.gmra.mrb[0].mxu0 %v5591
    %v10498 = vpop.f32.mrb[0].mxu0
    %v10499 = vadd.f32 %v10386, %v10498
    %v10500 = vpop.f32.mrb[0].mxu0
    %v10501 = vadd.f32 %v10388, %v10500
    %v10502 = vpop.f32.mrb[0].mxu0
    %v10503 = vadd.f32 %v10390, %v10502
    %v10504 = vpop.f32.mrb[0].mxu0
    %v10505 = vadd.f32 %v10392, %v10504
    %10506 = vmatprep.mubr.bf16.mxu0 %v5608
    %10507 = vmatmul.mubr.bf16.gmra.mrb[0].mxu0 %v5607
    %v10508 = vpop.f32.mrb[0].mxu0
    %v10509 = vadd.f32 %v10396, %v10508
    %v10510 = vpop.f32.mrb[0].mxu0
    %v10511 = vadd.f32 %v10398, %v10510
    %v10512 = vpop.f32.mrb[0].mxu0
    %v10513 = vadd.f32 %v10400, %v10512
    %v10514 = vpop.f32.mrb[0].mxu0
    %v10515 = vadd.f32 %v10402, %v10514
    %10516 = vmatprep.mubr.bf16.mxu0 %v5624
    %10517 = vmatmul.mubr.bf16.gmra.mrb[0].mxu0 %v5623
    %v10518 = vpop.f32.mrb[0].mxu0
    %v10519 = vadd.f32 %v10406, %v10518
    %v10520 = vpop.f32.mrb[0].mxu0
    %v10521 = vadd.f32 %v10408, %v10520
    %v10522 = vpop.f32.mrb[0].mxu0
    %v10523 = vadd.f32 %v10410, %v10522
    %v10524 = vpop.f32.mrb[0].mxu0
    %v10525 = vadd.f32 %v10412, %v10524
    %10526 = vdwg.mxu0
    %v10527 = vpack.c.bf16 %v9549, %v9545
    %v10528 = vpack.c.bf16 %v9551, %v9547
    %v10529 = vpack.c.bf16 %v10453, %v10449
    %v10530 = vpack.c.bf16 %v10455, %v10451
    %v10531 = vpack.c.bf16 %v9559, %v9555
    %v10532 = vpack.c.bf16 %v9561, %v9557
    %v10533 = vpack.c.bf16 %v10463, %v10459
    %v10534 = vpack.c.bf16 %v10465, %v10461
    %v10535 = vpack.c.bf16 %v9569, %v9565
    %v10536 = vpack.c.bf16 %v9571, %v9567
    %v10537 = vpack.c.bf16 %v10473, %v10469
    %v10538 = vpack.c.bf16 %v10475, %v10471
    %v10539 = vpack.c.bf16 %v9579, %v9575
    %v10540 = vpack.c.bf16 %v9581, %v9577
    %v10541 = vpack.c.bf16 %v10483, %v10479
    %v10542 = vpack.c.bf16 %v10485, %v10481
    %v10543 = vpack.c.bf16 %v9589, %v9585
    %v10544 = vpack.c.bf16 %v9591, %v9587
    %v10545 = vpack.c.bf16 %v10493, %v10489
    %v10546 = vpack.c.bf16 %v10495, %v10491
    %v10547 = vpack.c.bf16 %v9599, %v9595
    %v10548 = vpack.c.bf16 %v9601, %v9597
    %v10549 = vpack.c.bf16 %v10503, %v10499
    %v10550 = vpack.c.bf16 %v10505, %v10501
    %v10551 = vpack.c.bf16 %v9609, %v9605
    %v10552 = vpack.c.bf16 %v9611, %v9607
    %v10553 = vpack.c.bf16 %v10513, %v10509
    %v10554 = vpack.c.bf16 %v10515, %v10511
    %v10555 = vpack.c.bf16 %v9619, %v9615
    %v10556 = vpack.c.bf16 %v9621, %v9617
    %v10557 = vpack.c.bf16 %v10523, %v10519
    %v10558 = vpack.c.bf16 %v10525, %v10521
    %v10591 = vunpack.c.l.b16 %v10527
    %v10592 = vunpack.c.l.b16 %v10528
    %v10593 = vunpack.c.l.b16 %v10529
    %v10594 = vunpack.c.l.b16 %v10530
    %v10595 = vunpack.c.h.b16 %v10527
    %v10596 = vunpack.c.h.b16 %v10528
    %v10597 = vunpack.c.h.b16 %v10529
    %v10598 = vunpack.c.h.b16 %v10530
    %v10599 = vunpack.c.l.b16 %v10531
    %v10600 = vunpack.c.l.b16 %v10532
    %v10601 = vunpack.c.l.b16 %v10533
    %v10602 = vunpack.c.l.b16 %v10534
    %v10603 = vunpack.c.h.b16 %v10531
    %v10604 = vunpack.c.h.b16 %v10532
    %v10605 = vunpack.c.h.b16 %v10533
    %v10606 = vunpack.c.h.b16 %v10534
    %v10607 = vunpack.c.l.b16 %v10535
    %v10608 = vunpack.c.l.b16 %v10536
    %v10609 = vunpack.c.l.b16 %v10537
    %v10610 = vunpack.c.l.b16 %v10538
    %v10611 = vunpack.c.h.b16 %v10535
    %v10612 = vunpack.c.h.b16 %v10536
    %v10613 = vunpack.c.h.b16 %v10537
    %v10614 = vunpack.c.h.b16 %v10538
    %v10615 = vunpack.c.l.b16 %v10539
    %v10616 = vunpack.c.l.b16 %v10540
    %v10617 = vunpack.c.l.b16 %v10541
    %v10618 = vunpack.c.l.b16 %v10542
    %v10619 = vunpack.c.h.b16 %v10539
    %v10620 = vunpack.c.h.b16 %v10540
    %v10621 = vunpack.c.h.b16 %v10541
    %v10622 = vunpack.c.h.b16 %v10542
    %v10623 = vunpack.c.l.b16 %v10543
    %v10624 = vunpack.c.l.b16 %v10544
    %v10625 = vunpack.c.l.b16 %v10545
    %v10626 = vunpack.c.l.b16 %v10546
    %v10627 = vunpack.c.h.b16 %v10543
    %v10628 = vunpack.c.h.b16 %v10544
    %v10629 = vunpack.c.h.b16 %v10545
    %v10630 = vunpack.c.h.b16 %v10546
    %v10631 = vunpack.c.l.b16 %v10547
    %v10632 = vunpack.c.l.b16 %v10548
    %v10633 = vunpack.c.l.b16 %v10549
    %v10634 = vunpack.c.l.b16 %v10550
    %v10635 = vunpack.c.h.b16 %v10547
    %v10636 = vunpack.c.h.b16 %v10548
    %v10637 = vunpack.c.h.b16 %v10549
    %v10638 = vunpack.c.h.b16 %v10550
    %v10639 = vunpack.c.l.b16 %v10551
    %v10640 = vunpack.c.l.b16 %v10552
    %v10641 = vunpack.c.l.b16 %v10553
    %v10642 = vunpack.c.l.b16 %v10554
    %v10643 = vunpack.c.h.b16 %v10551
    %v10644 = vunpack.c.h.b16 %v10552
    %v10645 = vunpack.c.h.b16 %v10553
    %v10646 = vunpack.c.h.b16 %v10554
    %v10647 = vunpack.c.l.b16 %v10555
    %v10648 = vunpack.c.l.b16 %v10556
    %v10649 = vunpack.c.l.b16 %v10557
    %v10650 = vunpack.c.l.b16 %v10558
    %v10651 = vunpack.c.h.b16 %v10555
    %v10652 = vunpack.c.h.b16 %v10556
    %v10653 = vunpack.c.h.b16 %v10557
    %v10654 = vunpack.c.h.b16 %v10558
    %v10655 = vpack.c.b16 %v10592, %v10591
    %v10656 = vpack.c.b16 %v10594, %v10593
    %v10657 = vpack.c.b16 %v10596, %v10595
    %v10658 = vpack.c.b16 %v10598, %v10597
    %v10659 = vpack.c.b16 %v10600, %v10599
    %v10660 = vpack.c.b16 %v10602, %v10601
    %v10661 = vpack.c.b16 %v10604, %v10603
    %v10662 = vpack.c.b16 %v10606, %v10605
    %v10663 = vpack.c.b16 %v10608, %v10607
    %v10664 = vpack.c.b16 %v10610, %v10609
    %v10665 = vpack.c.b16 %v10612, %v10611
    %v10666 = vpack.c.b16 %v10614, %v10613
    %v10667 = vpack.c.b16 %v10616, %v10615
    %v10668 = vpack.c.b16 %v10618, %v10617
    %v10669 = vpack.c.b16 %v10620, %v10619
    %v10670 = vpack.c.b16 %v10622, %v10621
    %v10671 = vpack.c.b16 %v10624, %v10623
    %v10672 = vpack.c.b16 %v10626, %v10625
    %v10673 = vpack.c.b16 %v10628, %v10627
    %v10674 = vpack.c.b16 %v10630, %v10629
    %v10675 = vpack.c.b16 %v10632, %v10631
    %v10676 = vpack.c.b16 %v10634, %v10633
    %v10677 = vpack.c.b16 %v10636, %v10635
    %v10678 = vpack.c.b16 %v10638, %v10637
    %v10679 = vpack.c.b16 %v10640, %v10639
    %v10680 = vpack.c.b16 %v10642, %v10641
    %v10681 = vpack.c.b16 %v10644, %v10643
    %v10682 = vpack.c.b16 %v10646, %v10645
    %v10683 = vpack.c.b16 %v10648, %v10647
    %v10684 = vpack.c.b16 %v10650, %v10649
    %v10685 = vpack.c.b16 %v10652, %v10651
    %v10686 = vpack.c.b16 %v10654, %v10653
    %10719 = vst [vmem:[#allocation11] sm:$0xff] %v10655
    %10720 = vst [vmem:[#allocation11 + $0x8] sm:$0xff] %v10656
    %10721 = vst [vmem:[#allocation11 + $0x10] sm:$0xff] %v10657
    %10722 = vst [vmem:[#allocation11 + $0x18] sm:$0xff] %v10658
    %10723 = vst [vmem:[#allocation11 + $0x20] sm:$0xff] %v10659
    %10724 = vst [vmem:[#allocation11 + $0x28] sm:$0xff] %v10660
    %10725 = vst [vmem:[#allocation11 + $0x30] sm:$0xff] %v10661
    %10726 = vst [vmem:[#allocation11 + $0x38] sm:$0xff] %v10662
    %10727 = vst [vmem:[#allocation11 + $0x40] sm:$0xff] %v10663
    %10728 = vst [vmem:[#allocation11 + $0x48] sm:$0xff] %v10664
    %10729 = vst [vmem:[#allocation11 + $0x50] sm:$0xff] %v10665
    %10730 = vst [vmem:[#allocation11 + $0x58] sm:$0xff] %v10666
    %10731 = vst [vmem:[#allocation11 + $0x60] sm:$0xff] %v10667
    %10732 = vst [vmem:[#allocation11 + $0x68] sm:$0xff] %v10668
    %10733 = vst [vmem:[#allocation11 + $0x70] sm:$0xff] %v10669
    %10734 = vst [vmem:[#allocation11 + $0x78] sm:$0xff] %v10670
    %10735 = vst [vmem:[#allocation11 + $0x80] sm:$0xff] %v10671
    %10736 = vst [vmem:[#allocation11 + $0x88] sm:$0xff] %v10672
    %10737 = vst [vmem:[#allocation11 + $0x90] sm:$0xff] %v10673
    %10738 = vst [vmem:[#allocation11 + $0x98] sm:$0xff] %v10674
    %10739 = vst [vmem:[#allocation11 + $0xa0] sm:$0xff] %v10675
    %10740 = vst [vmem:[#allocation11 + $0xa8] sm:$0xff] %v10676
    %10741 = vst [vmem:[#allocation11 + $0xb0] sm:$0xff] %v10677
    %10742 = vst [vmem:[#allocation11 + $0xb8] sm:$0xff] %v10678
    %10743 = vst [vmem:[#allocation11 + $0xc0] sm:$0xff] %v10679
    %10744 = vst [vmem:[#allocation11 + $0xc8] sm:$0xff] %v10680
    %10745 = vst [vmem:[#allocation11 + $0xd0] sm:$0xff] %v10681
    %10746 = vst [vmem:[#allocation11 + $0xd8] sm:$0xff] %v10682
    %10747 = vst [vmem:[#allocation11 + $0xe0] sm:$0xff] %v10683
    %10748 = vst [vmem:[#allocation11 + $0xe8] sm:$0xff] %v10684
    %10749 = vst [vmem:[#allocation11 + $0xf0] sm:$0xff] %v10685
    %10750 = vst [vmem:[#allocation11 + $0xf8] sm:$0xff] %v10686
    // Predicated region
    $region42: #{tpu_custom_call.1} parent=1 // pred_check
      _
    $region43: #{tpu_custom_call.1} parent=1 // pred_check_branch
      %10752 = sbr.rel (0) target = $region45
    $region44: #{tpu_custom_call.1} parent=1 // pred_region
      %s10754 = ssub.s32 4096, 4096
      %10755 = vsyncadd [#allocation4], %s10754
      %s10756 = sshll.u32 [#allocation11], 4
      %s10757 = int_to_ptr.vmem [resolvable:$true] %s10756
      %10762 = dma.vmem_to_hbm [thread:$0]  %s10757, 4096, %s5, [#allocation4], 256, 256, 16
    $region45: #{tpu_custom_call.1} parent=1 // pred_fallthru
      _
    // Predicated region
    $region46: #{tpu_custom_call.1} parent=1 // pred_check
      _
    $region47: #{tpu_custom_call.1} parent=1 // pred_check_branch
      %10764 = sbr.rel (0) target = $region49
    $region48: #{tpu_custom_call.1} parent=1 // pred_region
      %10765 = dma.done [#allocation4], 4096
    $region49: #{tpu_custom_call.1} parent=1 // pred_fallthru
      _
    %10766 = vsyncpa [#allocation3], 1
    %10767 = vsyncpa [#allocation6], 1
    %10768 = vsyncpa [#allocation9], 1
    %10769 = vsyncpa [#allocation4], 1

</llo_original>
